<compile_context>
chip_gen: v7x
topology: tpu7x:2x2x1
jax: 0.10.0
libtpu: 0.0.40
codegen_flags: <defaults>
</compile_context>

<pallas_src>
import functools

import jax
import jax.numpy as jnp
from jax.experimental import pallas as pl
from jax.experimental.pallas import tpu as pltpu

_HIGHEST = jax.lax.Precision.HIGHEST
_F32 = jnp.float32


def _dot(a, b):
    return jnp.dot(a, b, precision=_HIGHEST, preferred_element_type=_F32)


def _encoder_kernel(scat_ref, adjt_ref, wpre_ref, wmat_ref, vecs_ref, h_ref):
    # scat_ref : [T, M, 2Fs]   rows ordered (t, (b, n)), M = B_blk * N
    # adjt_ref : [M, M]        block-diag kron(I_Bblk, adj^T)
    # wpre_ref : [2Fs, 4H]     fused [[wrs | wxs], [wes | 0]]
    # wmat_ref : [2H, 3H]      rows 0:H = wxg (gcn part of w_x), rows H:2H = w_h
    # vecs_ref : [3, 4H]       packed row vectors (see wrapper)
    # h_ref    : [T, M, H]     output hidden states
    T, M, _ = scat_ref.shape
    H = wmat_ref.shape[0] // 2
    H3 = 3 * H

    # ---- unpack packed operands (one-time static slices) -------------------
    vecs = vecs_ref[...]
    bpre = vecs[0:1, :]                    # [1,4H] = [b_rel | b_x + b_h(r,z)]
    wr0 = vecs[1:2, 0:H]                   # xn row of w_root
    we0 = vecs[1:2, H:2 * H]               # xn row of w_rel
    wo_row = vecs[1:2, 2 * H:3 * H]        # w_out as a row
    bh_n = vecs[1:2, 3 * H:4 * H]          # n-gate slice of b_h
    wx0 = vecs[2:3, 0:H3]                  # xn row of w_x
    bo = vecs[2:3, H3:H3 + 1]              # b_out

    wmat = wmat_ref[...]
    wxg = wmat[:H, :]                      # [H, 3H]
    wh = wmat[H:, :]                       # [H, 3H]
    adjt = adjt_ref[...]                   # [M, M]

    # ---- time-static pre-pass: one lane-dense (4H wide) MXU pass ------------
    scat = scat_ref[...].reshape(T * M, scat_ref.shape[2])
    base = _dot(scat, wpre_ref[...]) + bpre                  # [T*M, 4H]
    base_g = base[:, :H]                                     # GraphConv static part
    base_x = base[:, H:]                                     # GRU gate_x static part

    # ---- hoisted broadcasts (JAX does not CSE broadcast_in_dim) -------------
    wr0_b = jnp.broadcast_to(wr0, (M, H))
    we0_b = jnp.broadcast_to(we0, (M, H))
    wx0_b = jnp.broadcast_to(wx0, (M, H3))
    wo_b = jnp.broadcast_to(wo_row, (M, H))
    bhn_b = jnp.broadcast_to(bh_n, (M, H))

    hn = jnp.zeros((M, H), _F32)
    xn = jnp.zeros((M, 1), _F32)

    # hist_len is small: fully unrolled recurrence, state carried in vregs.
    for t in range(T):
        r0 = t * M
        bg = base_g[r0:r0 + M, :]
        bx = base_x[r0:r0 + M, :]

        # GraphConv.  A^T(xn * we0) == (A^T xn) * we0  -> width-H matmul,
        # no [*,1] MXU product on the recurrence chain.
        gcn = jax.nn.sigmoid(bg + xn * wr0_b + _dot(adjt, xn * we0_b))

        # GRU cell on cat((x, gcn)) via row-split weights (no lane concat).
        gate_x = bx + xn * wx0_b + _dot(gcn, wxg)            # [M, 3H]
        gate_h = _dot(hn, wh)                                # [M, 3H]
        r = jax.nn.sigmoid(gate_x[:, :H] + gate_h[:, :H])
        z = jax.nn.sigmoid(gate_x[:, H:2 * H] + gate_h[:, H:2 * H])
        n = jnp.tanh(gate_x[:, 2 * H:] + r * (gate_h[:, 2 * H:] + bhn_b))
        hn = n + z * (hn - n)

        # xn for the next step: VPU multiply + lane reduce (no width-1 matmul).
        xn = jnp.sum(hn * wo_b, axis=-1, keepdims=True) + bo

        # Direct per-step store (no list/concat epilogue).
        h_ref[t] = hn


@functools.partial(jax.jit, static_argnums=(4, 5))
def encoder_forward(X, y, adj, params, hist_len, hid_dim):
    B, _, N, in_dim = X.shape
    emb_dim = params['emb'].shape[1]
    Fin = (in_dim - 1) + emb_dim + 2          # width of x = [xn | y | feats | emb]
    Fs = Fin - 1                              # static part (everything but xn)
    T = hist_len
    H = hid_dim

    # --- hoisted, time-static preprocessing (pure XLA, once for all T) ------
    idx = X[:, :T, :, -1].astype(jnp.int32)
    emb = jnp.take(params['emb'], idx, axis=0)                            # [B,T,N,E]
    static = jnp.concatenate([y[:, :T], X[:, :T, :, :-1], emb], axis=-1)  # [B,T,N,Fs]
    agg = jnp.einsum('ji,btjf->btif', adj, static, precision=_HIGHEST)    # A^T @ static
    scat = jnp.concatenate([static, agg], axis=-1)                        # [B,T,N,2Fs]
    scat = jnp.transpose(scat, (1, 0, 2, 3)).reshape(T, B * N, 2 * Fs)    # rows (t,(b,n))

    # --- fused pre-pass weights: base = [S|AS] @ [[wrs|wxs],[wes|0]] + bias --
    w_root, w_rel, w_x = params['w_root'], params['w_rel'], params['w_x']
    wr0, wrs = w_root[0:1], w_root[1:]
    we0, wes = w_rel[0:1], w_rel[1:]
    wx0, wxs, wxg = w_x[0:1], w_x[1:Fin], w_x[Fin:]
    wpre = jnp.concatenate([
        jnp.concatenate([wrs, wxs], axis=1),                              # [Fs, 4H]
        jnp.concatenate([wes, jnp.zeros((Fs, 3 * H), _F32)], axis=1),     # [Fs, 4H]
    ], axis=0)                                                            # [2Fs, 4H]

    # b_h r/z parts fold into b_x (r,z only see gate_x+gate_h); n-part stays.
    b_h = params['b_h']
    bx_fold = params['b_x'] + jnp.concatenate(
        [b_h[:, :2 * H], jnp.zeros((1, H), _F32)], axis=-1)
    bh_n = b_h[:, 2 * H:]
    bpre = jnp.concatenate([params['b_rel'], bx_fold], axis=-1)           # [1, 4H]

    # --- pack the small operands into two arrays (fewer DMA descriptors) ----
    wo_row = params['w_out'].T                                            # [1, H]
    bo = params['b_out']                                                  # [1, 1]
    row1 = jnp.concatenate([wr0, we0, wo_row, bh_n], axis=-1)             # [1, 4H]
    row2 = jnp.concatenate([wx0, bo, jnp.zeros((1, H - 1), _F32)], axis=-1)
    vecs = jnp.concatenate([bpre, row1, row2], axis=0)                    # [3, 4H]
    wmat = jnp.concatenate([wxg, params['w_h']], axis=0)                  # [2H, 3H]

    # --- batch blocking: <=2 blocks so the "parallel" grid maps one block per
    #     TensorCore on v7x; per-step matmuls carry M = (B/NB)*N rows.  On
    #     single-TC chips (v5e/v6e) a single block over the whole batch is the
    #     best choice — set NB = 1 there if B*N rows fit (they do at these sizes).
    NB = 2 if (B >= 2 and B % 2 == 0 and ((B // 2) * N) % 8 == 0) else 1
    Bb = B // NB
    M = Bb * N
    bd_adjt = jnp.kron(jnp.eye(Bb, dtype=_F32), adj.T)                    # [M, M]

    in_specs = [
        pl.BlockSpec((T, M, 2 * Fs), lambda i: (0, i, 0)),
        pl.BlockSpec(bd_adjt.shape, lambda i: (0, 0)),
        pl.BlockSpec(wpre.shape, lambda i: (0, 0)),
        pl.BlockSpec(wmat.shape, lambda i: (0, 0)),
        pl.BlockSpec(vecs.shape, lambda i: (0, 0)),
    ]
    out_specs = pl.BlockSpec((T, M, H), lambda i: (0, i, 0))
    out_shape = jax.ShapeDtypeStruct((T, B * N, H), _F32)

    h_flat = pl.pallas_call(
        _encoder_kernel,
        grid=(NB,),
        in_specs=in_specs,
        out_specs=out_specs,
        out_shape=out_shape,
        compiler_params=pltpu.CompilerParams(
            dimension_semantics=("parallel",)),    # batch blocks across TCs (v7x)
    )(scat, bd_adjt, wpre, wmat, vecs)

    Hh = jnp.transpose(h_flat.reshape(T, B, N, H), (1, 0, 2, 3))          # [B,T,N,H]
    # fc_out on the outputs: one lane-dense XLA matmul over all B*T*N rows
    # (the recurrence inside the kernel still uses the identical xn values).
    preds = jnp.einsum('btnh,ho->btno', Hh, params['w_out'],
                       precision=_HIGHEST) + params['b_out']
    return Hh, preds


def encoder_ref(X, y, adj, params, hist_len, hid_dim):
    """Pure-JAX reference mirroring the PyTorch forward exactly."""
    B, T, N, in_dim = X.shape
    hn = jnp.zeros((B, N, hid_dim), jnp.float32)
    xn = jnp.zeros((B, N, 1), jnp.float32)
    Hs, ps = [], []
    for i in range(hist_len):
        idx = X[:, i, :, -1].astype(jnp.int32)
        emb = params['emb'][idx]
        x = jnp.concatenate([xn, y[:, i], X[:, i, :, :-1], emb], axis=-1)
        agg = jnp.einsum('jn,bjf->bnf', adj, x, precision=_HIGHEST)
        gcn = jax.nn.sigmoid(
            jnp.einsum('bnf,fh->bnh', agg, params['w_rel'], precision=_HIGHEST)
            + params['b_rel']
            + jnp.einsum('bnf,fh->bnh', x, params['w_root'], precision=_HIGHEST))
        x2 = jnp.concatenate([x, gcn], axis=-1)
        gx = jnp.einsum('bnf,fk->bnk', x2, params['w_x'], precision=_HIGHEST) + params['b_x']
        gh = jnp.einsum('bnh,hk->bnk', hn, params['w_h'], precision=_HIGHEST) + params['b_h']
        Hd = hid_dim
        r = jax.nn.sigmoid(gx[..., :Hd] + gh[..., :Hd])
        z = jax.nn.sigmoid(gx[..., Hd:2 * Hd] + gh[..., Hd:2 * Hd])
        n = jnp.tanh(gx[..., 2 * Hd:] + r * gh[..., 2 * Hd:])
        hn = n + z * (hn - n)
        xn = jnp.einsum('bnh,ho->bno', hn, params['w_out'], precision=_HIGHEST) + params['b_out']
        Hs.append(hn)
        ps.append(xn)
    return jnp.stack(Hs, axis=1), jnp.stack(ps, axis=1)


if __name__ == "__main__":
    key = jax.random.PRNGKey(0)
    B, N = 2, 8             # batch_size, city_num
    in_dim = 5              # last feature is the spatio-temporal embedding index
    hid = 32
    emb_dim = 16
    num_embeddings = 12
    hist_len = 4
    T = hist_len + 2        # hist_len + forecast_len

    ks = jax.random.split(key, 16)
    feats = jax.random.normal(ks[0], (B, T, N, in_dim - 1), jnp.float32)
    idx = jax.random.randint(ks[1], (B, T, N), 0, num_embeddings)
    X = jnp.concatenate([feats, idx.astype(jnp.float32)[..., None]], axis=-1)
    y = jax.random.normal(ks[2], (B, T, N, 1), jnp.float32)
    adj = jax.random.uniform(ks[3], (N, N), jnp.float32)

    Fin = (in_dim - 1) + emb_dim + 2 * 1   # in_dim-1 + emb_dim + 2*out_dim
    s = 0.1
    params = {
        'emb':    jax.random.normal(ks[4], (num_embeddings, emb_dim)) * s,
        'w_root': jax.random.normal(ks[5], (Fin, hid)) * s,
        'w_rel':  jax.random.normal(ks[6], (Fin, hid)) * s,
        'b_rel':  jax.random.normal(ks[7], (1, hid)) * s,
        'w_x':    jax.random.normal(ks[8], (Fin + hid, 3 * hid)) * s,
        'b_x':    jax.random.normal(ks[9], (1, 3 * hid)) * s,
        'w_h':    jax.random.normal(ks[10], (hid, 3 * hid)) * s,
        'b_h':    jax.random.normal(ks[11], (1, 3 * hid)) * s,
        'w_out':  jax.random.normal(ks[12], (hid, 1)) * s,
        'b_out':  jax.random.normal(ks[13], (1, 1)) * s,
    }
    params = jax.tree_util.tree_map(lambda a: a.astype(jnp.float32), params)

    H_out, preds = encoder_forward(X, y, adj, params, hist_len, hid)
    jax.block_until_ready((H_out, preds))

    H_ref, p_ref = encoder_ref(X, y, adj, params, hist_len, hid)
    assert H_out.shape == (B, hist_len, N, hid)
    assert preds.shape == (B, hist_len, N, 1)
    assert jnp.allclose(H_out, H_ref, atol=2e-4, rtol=2e-4)
    assert jnp.allclose(preds, p_ref, atol=2e-4, rtol=2e-4)
    print("KERNEL_OK")
</pallas_src>

<mosaic_0001>
module attributes {stable_mosaic.version = 11 : i64} {
  func.func @_encoder_kernel(%arg0: i32, %arg1: memref<4x8x42xf32, #tpu.memory_space<vmem>>, %arg2: memref<8x8xf32, #tpu.memory_space<vmem>>, %arg3: memref<42x128xf32, #tpu.memory_space<vmem>>, %arg4: memref<64x96xf32, #tpu.memory_space<vmem>>, %arg5: memref<3x128xf32, #tpu.memory_space<vmem>>, %arg6: memref<4x8x32xf32, #tpu.memory_space<vmem>>) attributes {dimension_semantics = [#tpu.dimension_semantics<parallel>], iteration_bounds = array<i64: 2>, scalar_prefetch = 0 : i64, scratch_operands = 0 : i64, tpu.core_type = #tpu.core_type<tc>, window_params = [{transform_indices = @transform_0, window_bounds = array<i64: 4, 8, 42>}, {pipeline_mode = #tpu.pipeline_mode<synchronous>, transform_indices = @transform_1, window_bounds = array<i64: 8, 8>}, {pipeline_mode = #tpu.pipeline_mode<synchronous>, transform_indices = @transform_2, window_bounds = array<i64: 42, 128>}, {pipeline_mode = #tpu.pipeline_mode<synchronous>, transform_indices = @transform_3, window_bounds = array<i64: 64, 96>}, {pipeline_mode = #tpu.pipeline_mode<synchronous>, transform_indices = @transform_4, window_bounds = array<i64: 3, 128>}, {transform_indices = @transform_5, window_bounds = array<i64: 4, 8, 32>}]} {
    %c0 = arith.constant 0 : index
    %c0_0 = arith.constant 0 : index
    %0 = vector.load %arg5[%c0, %c0_0] : memref<3x128xf32, #tpu.memory_space<vmem>>, vector<3x128xf32>
    %1 = vector.extract_strided_slice %0 {offsets = [0, 0], sizes = [1, 128], strides = [1, 1]} : vector<3x128xf32> to vector<1x128xf32>
    %2 = vector.extract_strided_slice %0 {offsets = [1, 0], sizes = [1, 32], strides = [1, 1]} : vector<3x128xf32> to vector<1x32xf32>
    %3 = vector.extract_strided_slice %0 {offsets = [1, 32], sizes = [1, 32], strides = [1, 1]} : vector<3x128xf32> to vector<1x32xf32>
    %4 = vector.extract_strided_slice %0 {offsets = [1, 64], sizes = [1, 32], strides = [1, 1]} : vector<3x128xf32> to vector<1x32xf32>
    %5 = vector.extract_strided_slice %0 {offsets = [1, 96], sizes = [1, 32], strides = [1, 1]} : vector<3x128xf32> to vector<1x32xf32>
    %6 = vector.extract_strided_slice %0 {offsets = [2, 0], sizes = [1, 96], strides = [1, 1]} : vector<3x128xf32> to vector<1x96xf32>
    %7 = vector.extract_strided_slice %0 {offsets = [2, 96], sizes = [1, 1], strides = [1, 1]} : vector<3x128xf32> to vector<1x1xf32>
    %c0_1 = arith.constant 0 : index
    %c0_2 = arith.constant 0 : index
    %8 = vector.load %arg4[%c0_1, %c0_2] : memref<64x96xf32, #tpu.memory_space<vmem>>, vector<64x96xf32>
    %9 = vector.extract_strided_slice %8 {offsets = [0, 0], sizes = [32, 96], strides = [1, 1]} : vector<64x96xf32> to vector<32x96xf32>
    %10 = vector.extract_strided_slice %8 {offsets = [32, 0], sizes = [32, 96], strides = [1, 1]} : vector<64x96xf32> to vector<32x96xf32>
    %c0_3 = arith.constant 0 : index
    %c0_4 = arith.constant 0 : index
    %11 = vector.load %arg2[%c0_3, %c0_4] : memref<8x8xf32, #tpu.memory_space<vmem>>, vector<8x8xf32>
    %c0_5 = arith.constant 0 : index
    %c0_6 = arith.constant 0 : index
    %c0_7 = arith.constant 0 : index
    %12 = vector.load %arg1[%c0_5, %c0_6, %c0_7] : memref<4x8x42xf32, #tpu.memory_space<vmem>>, vector<4x8x42xf32>
    %13 = vector.shape_cast %12 : vector<4x8x42xf32> to vector<32x42xf32>
    %c0_8 = arith.constant 0 : index
    %c0_9 = arith.constant 0 : index
    %14 = vector.load %arg3[%c0_8, %c0_9] : memref<42x128xf32, #tpu.memory_space<vmem>>, vector<42x128xf32>
    %cst = arith.constant dense<0.000000e+00> : vector<32x128xf32>
    %15 = tpu.matmul %13, %14, %cst {dimension_numbers = #tpu.dot_dimension_numbers<[1], [0], [0], [1], [0, 0, 1, 1], [], []>, precision = #tpu.contract_precision<fp32>} : vector<32x42xf32>, vector<42x128xf32>, vector<32x128xf32> -> vector<32x128xf32>
    %16 = vector.broadcast %1 : vector<1x128xf32> to vector<32x128xf32>
    %17 = arith.addf %15, %16 : vector<32x128xf32>
    %18 = vector.extract_strided_slice %17 {offsets = [0, 0], sizes = [32, 32], strides = [1, 1]} : vector<32x128xf32> to vector<32x32xf32>
    %19 = vector.extract_strided_slice %17 {offsets = [0, 32], sizes = [32, 96], strides = [1, 1]} : vector<32x128xf32> to vector<32x96xf32>
    %20 = vector.shape_cast %2 : vector<1x32xf32> to vector<1x32xf32>
    %21 = vector.broadcast %20 : vector<1x32xf32> to vector<8x32xf32>
    %22 = vector.shape_cast %3 : vector<1x32xf32> to vector<1x32xf32>
    %23 = vector.broadcast %22 : vector<1x32xf32> to vector<8x32xf32>
    %24 = vector.shape_cast %6 : vector<1x96xf32> to vector<1x96xf32>
    %25 = vector.broadcast %24 : vector<1x96xf32> to vector<8x96xf32>
    %26 = vector.shape_cast %4 : vector<1x32xf32> to vector<1x32xf32>
    %27 = vector.broadcast %26 : vector<1x32xf32> to vector<8x32xf32>
    %28 = vector.shape_cast %5 : vector<1x32xf32> to vector<1x32xf32>
    %29 = vector.broadcast %28 : vector<1x32xf32> to vector<8x32xf32>
    %cst_10 = arith.constant 0.000000e+00 : f32
    %30 = vector.broadcast %cst_10 : f32 to vector<8x32xf32>
    %cst_11 = arith.constant 0.000000e+00 : f32
    %31 = vector.broadcast %cst_11 : f32 to vector<8x1xf32>
    %32 = vector.extract_strided_slice %18 {offsets = [0, 0], sizes = [8, 32], strides = [1, 1]} : vector<32x32xf32> to vector<8x32xf32>
    %33 = vector.extract_strided_slice %19 {offsets = [0, 0], sizes = [8, 96], strides = [1, 1]} : vector<32x96xf32> to vector<8x96xf32>
    %34 = vector.broadcast %31 : vector<8x1xf32> to vector<8x32xf32>
    %35 = arith.mulf %34, %21 : vector<8x32xf32>
    %36 = arith.addf %32, %35 : vector<8x32xf32>
    %37 = vector.broadcast %31 : vector<8x1xf32> to vector<8x32xf32>
    %38 = arith.mulf %37, %23 : vector<8x32xf32>
    %cst_12 = arith.constant dense<0.000000e+00> : vector<8x32xf32>
    %39 = tpu.matmul %11, %38, %cst_12 {dimension_numbers = #tpu.dot_dimension_numbers<[1], [0], [0], [1], [0, 0, 1, 1], [], []>, precision = #tpu.contract_precision<fp32>} : vector<8x8xf32>, vector<8x32xf32>, vector<8x32xf32> -> vector<8x32xf32>
    %40 = arith.addf %36, %39 : vector<8x32xf32>
    %41 = arith.negf %40 : vector<8x32xf32>
    %42 = math.exp %41 : vector<8x32xf32>
    %cst_13 = arith.constant 1.000000e+00 : f32
    %43 = vector.broadcast %cst_13 : f32 to vector<8x32xf32>
    %44 = arith.addf %43, %42 : vector<8x32xf32>
    %45 = arith.divf %43, %44 : vector<8x32xf32>
    %46 = vector.broadcast %31 : vector<8x1xf32> to vector<8x96xf32>
    %47 = arith.mulf %46, %25 : vector<8x96xf32>
    %48 = arith.addf %33, %47 : vector<8x96xf32>
    %cst_14 = arith.constant dense<0.000000e+00> : vector<8x96xf32>
    %49 = tpu.matmul %45, %9, %cst_14 {dimension_numbers = #tpu.dot_dimension_numbers<[1], [0], [0], [1], [0, 0, 1, 1], [], []>, precision = #tpu.contract_precision<fp32>} : vector<8x32xf32>, vector<32x96xf32>, vector<8x96xf32> -> vector<8x96xf32>
    %50 = arith.addf %48, %49 : vector<8x96xf32>
    %cst_15 = arith.constant dense<0.000000e+00> : vector<8x96xf32>
    %51 = tpu.matmul %30, %10, %cst_15 {dimension_numbers = #tpu.dot_dimension_numbers<[1], [0], [0], [1], [0, 0, 1, 1], [], []>, precision = #tpu.contract_precision<fp32>} : vector<8x32xf32>, vector<32x96xf32>, vector<8x96xf32> -> vector<8x96xf32>
    %52 = vector.extract_strided_slice %50 {offsets = [0, 0], sizes = [8, 32], strides = [1, 1]} : vector<8x96xf32> to vector<8x32xf32>
    %53 = vector.extract_strided_slice %51 {offsets = [0, 0], sizes = [8, 32], strides = [1, 1]} : vector<8x96xf32> to vector<8x32xf32>
    %54 = arith.addf %52, %53 : vector<8x32xf32>
    %55 = arith.negf %54 : vector<8x32xf32>
    %56 = math.exp %55 : vector<8x32xf32>
    %cst_16 = arith.constant 1.000000e+00 : f32
    %57 = vector.broadcast %cst_16 : f32 to vector<8x32xf32>
    %58 = arith.addf %57, %56 : vector<8x32xf32>
    %59 = arith.divf %57, %58 : vector<8x32xf32>
    %60 = vector.extract_strided_slice %50 {offsets = [0, 32], sizes = [8, 32], strides = [1, 1]} : vector<8x96xf32> to vector<8x32xf32>
    %61 = vector.extract_strided_slice %51 {offsets = [0, 32], sizes = [8, 32], strides = [1, 1]} : vector<8x96xf32> to vector<8x32xf32>
    %62 = arith.addf %60, %61 : vector<8x32xf32>
    %63 = arith.negf %62 : vector<8x32xf32>
    %64 = math.exp %63 : vector<8x32xf32>
    %cst_17 = arith.constant 1.000000e+00 : f32
    %65 = vector.broadcast %cst_17 : f32 to vector<8x32xf32>
    %66 = arith.addf %65, %64 : vector<8x32xf32>
    %67 = arith.divf %65, %66 : vector<8x32xf32>
    %68 = vector.extract_strided_slice %50 {offsets = [0, 64], sizes = [8, 32], strides = [1, 1]} : vector<8x96xf32> to vector<8x32xf32>
    %69 = vector.extract_strided_slice %51 {offsets = [0, 64], sizes = [8, 32], strides = [1, 1]} : vector<8x96xf32> to vector<8x32xf32>
    %70 = arith.addf %69, %29 : vector<8x32xf32>
    %71 = arith.mulf %59, %70 : vector<8x32xf32>
    %72 = arith.addf %68, %71 : vector<8x32xf32>
    %73 = math.tanh %72 : vector<8x32xf32>
    %74 = arith.subf %30, %73 : vector<8x32xf32>
    %75 = arith.mulf %67, %74 : vector<8x32xf32>
    %76 = arith.addf %73, %75 : vector<8x32xf32>
    %77 = arith.mulf %76, %27 : vector<8x32xf32>
    %cst_18 = arith.constant dense<0.000000e+00> : vector<8xf32>
    %78 = vector.multi_reduction <add>, %77, %cst_18 [1] : vector<8x32xf32> to vector<8xf32>
    %79 = vector.shape_cast %78 : vector<8xf32> to vector<8x1xf32>
    %80 = vector.broadcast %7 : vector<1x1xf32> to vector<8x1xf32>
    %81 = arith.addf %79, %80 : vector<8x1xf32>
    %c0_19 = arith.constant 0 : index
    %c0_20 = arith.constant 0 : index
    %c0_21 = arith.constant 0 : index
    %82 = vector.load %arg6[%c0_19, %c0_20, %c0_21] : memref<4x8x32xf32, #tpu.memory_space<vmem>>, vector<1x8x32xf32>
    %83 = vector.shape_cast %82 : vector<1x8x32xf32> to vector<8x32xf32>
    %84 = vector.shape_cast %76 : vector<8x32xf32> to vector<1x8x32xf32>
    tpu.vector_store %arg6[%c0_19, %c0_20, %c0_21], %84 {strides = array<i32>} : memref<4x8x32xf32, #tpu.memory_space<vmem>>, vector<1x8x32xf32>,
    %85 = vector.extract_strided_slice %18 {offsets = [8, 0], sizes = [8, 32], strides = [1, 1]} : vector<32x32xf32> to vector<8x32xf32>
    %86 = vector.extract_strided_slice %19 {offsets = [8, 0], sizes = [8, 96], strides = [1, 1]} : vector<32x96xf32> to vector<8x96xf32>
    %87 = vector.broadcast %81 : vector<8x1xf32> to vector<8x32xf32>
    %88 = arith.mulf %87, %21 : vector<8x32xf32>
    %89 = arith.addf %85, %88 : vector<8x32xf32>
    %90 = vector.broadcast %81 : vector<8x1xf32> to vector<8x32xf32>
    %91 = arith.mulf %90, %23 : vector<8x32xf32>
    %cst_22 = arith.constant dense<0.000000e+00> : vector<8x32xf32>
    %92 = tpu.matmul %11, %91, %cst_22 {dimension_numbers = #tpu.dot_dimension_numbers<[1], [0], [0], [1], [0, 0, 1, 1], [], []>, precision = #tpu.contract_precision<fp32>} : vector<8x8xf32>, vector<8x32xf32>, vector<8x32xf32> -> vector<8x32xf32>
    %93 = arith.addf %89, %92 : vector<8x32xf32>
    %94 = arith.negf %93 : vector<8x32xf32>
    %95 = math.exp %94 : vector<8x32xf32>
    %cst_23 = arith.constant 1.000000e+00 : f32
    %96 = vector.broadcast %cst_23 : f32 to vector<8x32xf32>
    %97 = arith.addf %96, %95 : vector<8x32xf32>
    %98 = arith.divf %96, %97 : vector<8x32xf32>
    %99 = vector.broadcast %81 : vector<8x1xf32> to vector<8x96xf32>
    %100 = arith.mulf %99, %25 : vector<8x96xf32>
    %101 = arith.addf %86, %100 : vector<8x96xf32>
    %cst_24 = arith.constant dense<0.000000e+00> : vector<8x96xf32>
    %102 = tpu.matmul %98, %9, %cst_24 {dimension_numbers = #tpu.dot_dimension_numbers<[1], [0], [0], [1], [0, 0, 1, 1], [], []>, precision = #tpu.contract_precision<fp32>} : vector<8x32xf32>, vector<32x96xf32>, vector<8x96xf32> -> vector<8x96xf32>
    %103 = arith.addf %101, %102 : vector<8x96xf32>
    %cst_25 = arith.constant dense<0.000000e+00> : vector<8x96xf32>
    %104 = tpu.matmul %76, %10, %cst_25 {dimension_numbers = #tpu.dot_dimension_numbers<[1], [0], [0], [1], [0, 0, 1, 1], [], []>, precision = #tpu.contract_precision<fp32>} : vector<8x32xf32>, vector<32x96xf32>, vector<8x96xf32> -> vector<8x96xf32>
    %105 = vector.extract_strided_slice %103 {offsets = [0, 0], sizes = [8, 32], strides = [1, 1]} : vector<8x96xf32> to vector<8x32xf32>
    %106 = vector.extract_strided_slice %104 {offsets = [0, 0], sizes = [8, 32], strides = [1, 1]} : vector<8x96xf32> to vector<8x32xf32>
    %107 = arith.addf %105, %106 : vector<8x32xf32>
    %108 = arith.negf %107 : vector<8x32xf32>
    %109 = math.exp %108 : vector<8x32xf32>
    %cst_26 = arith.constant 1.000000e+00 : f32
    %110 = vector.broadcast %cst_26 : f32 to vector<8x32xf32>
    %111 = arith.addf %110, %109 : vector<8x32xf32>
    %112 = arith.divf %110, %111 : vector<8x32xf32>
    %113 = vector.extract_strided_slice %103 {offsets = [0, 32], sizes = [8, 32], strides = [1, 1]} : vector<8x96xf32> to vector<8x32xf32>
    %114 = vector.extract_strided_slice %104 {offsets = [0, 32], sizes = [8, 32], strides = [1, 1]} : vector<8x96xf32> to vector<8x32xf32>
    %115 = arith.addf %113, %114 : vector<8x32xf32>
    %116 = arith.negf %115 : vector<8x32xf32>
    %117 = math.exp %116 : vector<8x32xf32>
    %cst_27 = arith.constant 1.000000e+00 : f32
    %118 = vector.broadcast %cst_27 : f32 to vector<8x32xf32>
    %119 = arith.addf %118, %117 : vector<8x32xf32>
    %120 = arith.divf %118, %119 : vector<8x32xf32>
    %121 = vector.extract_strided_slice %103 {offsets = [0, 64], sizes = [8, 32], strides = [1, 1]} : vector<8x96xf32> to vector<8x32xf32>
    %122 = vector.extract_strided_slice %104 {offsets = [0, 64], sizes = [8, 32], strides = [1, 1]} : vector<8x96xf32> to vector<8x32xf32>
    %123 = arith.addf %122, %29 : vector<8x32xf32>
    %124 = arith.mulf %112, %123 : vector<8x32xf32>
    %125 = arith.addf %121, %124 : vector<8x32xf32>
    %126 = math.tanh %125 : vector<8x32xf32>
    %127 = arith.subf %76, %126 : vector<8x32xf32>
    %128 = arith.mulf %120, %127 : vector<8x32xf32>
    %129 = arith.addf %126, %128 : vector<8x32xf32>
    %130 = arith.mulf %129, %27 : vector<8x32xf32>
    %cst_28 = arith.constant dense<0.000000e+00> : vector<8xf32>
    %131 = vector.multi_reduction <add>, %130, %cst_28 [1] : vector<8x32xf32> to vector<8xf32>
    %132 = vector.shape_cast %131 : vector<8xf32> to vector<8x1xf32>
    %133 = vector.broadcast %7 : vector<1x1xf32> to vector<8x1xf32>
    %134 = arith.addf %132, %133 : vector<8x1xf32>
    %c1 = arith.constant 1 : index
    %c0_29 = arith.constant 0 : index
    %c0_30 = arith.constant 0 : index
    %135 = vector.load %arg6[%c1, %c0_29, %c0_30] : memref<4x8x32xf32, #tpu.memory_space<vmem>>, vector<1x8x32xf32>
    %136 = vector.shape_cast %135 : vector<1x8x32xf32> to vector<8x32xf32>
    %137 = vector.shape_cast %129 : vector<8x32xf32> to vector<1x8x32xf32>
    tpu.vector_store %arg6[%c1, %c0_29, %c0_30], %137 {strides = array<i32>} : memref<4x8x32xf32, #tpu.memory_space<vmem>>, vector<1x8x32xf32>,
    %138 = vector.extract_strided_slice %18 {offsets = [16, 0], sizes = [8, 32], strides = [1, 1]} : vector<32x32xf32> to vector<8x32xf32>
    %139 = vector.extract_strided_slice %19 {offsets = [16, 0], sizes = [8, 96], strides = [1, 1]} : vector<32x96xf32> to vector<8x96xf32>
    %140 = vector.broadcast %134 : vector<8x1xf32> to vector<8x32xf32>
    %141 = arith.mulf %140, %21 : vector<8x32xf32>
    %142 = arith.addf %138, %141 : vector<8x32xf32>
    %143 = vector.broadcast %134 : vector<8x1xf32> to vector<8x32xf32>
    %144 = arith.mulf %143, %23 : vector<8x32xf32>
    %cst_31 = arith.constant dense<0.000000e+00> : vector<8x32xf32>
    %145 = tpu.matmul %11, %144, %cst_31 {dimension_numbers = #tpu.dot_dimension_numbers<[1], [0], [0], [1], [0, 0, 1, 1], [], []>, precision = #tpu.contract_precision<fp32>} : vector<8x8xf32>, vector<8x32xf32>, vector<8x32xf32> -> vector<8x32xf32>
    %146 = arith.addf %142, %145 : vector<8x32xf32>
    %147 = arith.negf %146 : vector<8x32xf32>
    %148 = math.exp %147 : vector<8x32xf32>
    %cst_32 = arith.constant 1.000000e+00 : f32
    %149 = vector.broadcast %cst_32 : f32 to vector<8x32xf32>
    %150 = arith.addf %149, %148 : vector<8x32xf32>
    %151 = arith.divf %149, %150 : vector<8x32xf32>
    %152 = vector.broadcast %134 : vector<8x1xf32> to vector<8x96xf32>
    %153 = arith.mulf %152, %25 : vector<8x96xf32>
    %154 = arith.addf %139, %153 : vector<8x96xf32>
    %cst_33 = arith.constant dense<0.000000e+00> : vector<8x96xf32>
    %155 = tpu.matmul %151, %9, %cst_33 {dimension_numbers = #tpu.dot_dimension_numbers<[1], [0], [0], [1], [0, 0, 1, 1], [], []>, precision = #tpu.contract_precision<fp32>} : vector<8x32xf32>, vector<32x96xf32>, vector<8x96xf32> -> vector<8x96xf32>
    %156 = arith.addf %154, %155 : vector<8x96xf32>
    %cst_34 = arith.constant dense<0.000000e+00> : vector<8x96xf32>
    %157 = tpu.matmul %129, %10, %cst_34 {dimension_numbers = #tpu.dot_dimension_numbers<[1], [0], [0], [1], [0, 0, 1, 1], [], []>, precision = #tpu.contract_precision<fp32>} : vector<8x32xf32>, vector<32x96xf32>, vector<8x96xf32> -> vector<8x96xf32>
    %158 = vector.extract_strided_slice %156 {offsets = [0, 0], sizes = [8, 32], strides = [1, 1]} : vector<8x96xf32> to vector<8x32xf32>
    %159 = vector.extract_strided_slice %157 {offsets = [0, 0], sizes = [8, 32], strides = [1, 1]} : vector<8x96xf32> to vector<8x32xf32>
    %160 = arith.addf %158, %159 : vector<8x32xf32>
    %161 = arith.negf %160 : vector<8x32xf32>
    %162 = math.exp %161 : vector<8x32xf32>
    %cst_35 = arith.constant 1.000000e+00 : f32
    %163 = vector.broadcast %cst_35 : f32 to vector<8x32xf32>
    %164 = arith.addf %163, %162 : vector<8x32xf32>
    %165 = arith.divf %163, %164 : vector<8x32xf32>
    %166 = vector.extract_strided_slice %156 {offsets = [0, 32], sizes = [8, 32], strides = [1, 1]} : vector<8x96xf32> to vector<8x32xf32>
    %167 = vector.extract_strided_slice %157 {offsets = [0, 32], sizes = [8, 32], strides = [1, 1]} : vector<8x96xf32> to vector<8x32xf32>
    %168 = arith.addf %166, %167 : vector<8x32xf32>
    %169 = arith.negf %168 : vector<8x32xf32>
    %170 = math.exp %169 : vector<8x32xf32>
    %cst_36 = arith.constant 1.000000e+00 : f32
    %171 = vector.broadcast %cst_36 : f32 to vector<8x32xf32>
    %172 = arith.addf %171, %170 : vector<8x32xf32>
    %173 = arith.divf %171, %172 : vector<8x32xf32>
    %174 = vector.extract_strided_slice %156 {offsets = [0, 64], sizes = [8, 32], strides = [1, 1]} : vector<8x96xf32> to vector<8x32xf32>
    %175 = vector.extract_strided_slice %157 {offsets = [0, 64], sizes = [8, 32], strides = [1, 1]} : vector<8x96xf32> to vector<8x32xf32>
    %176 = arith.addf %175, %29 : vector<8x32xf32>
    %177 = arith.mulf %165, %176 : vector<8x32xf32>
    %178 = arith.addf %174, %177 : vector<8x32xf32>
    %179 = math.tanh %178 : vector<8x32xf32>
    %180 = arith.subf %129, %179 : vector<8x32xf32>
    %181 = arith.mulf %173, %180 : vector<8x32xf32>
    %182 = arith.addf %179, %181 : vector<8x32xf32>
    %183 = arith.mulf %182, %27 : vector<8x32xf32>
    %cst_37 = arith.constant dense<0.000000e+00> : vector<8xf32>
    %184 = vector.multi_reduction <add>, %183, %cst_37 [1] : vector<8x32xf32> to vector<8xf32>
    %185 = vector.shape_cast %184 : vector<8xf32> to vector<8x1xf32>
    %186 = vector.broadcast %7 : vector<1x1xf32> to vector<8x1xf32>
    %187 = arith.addf %185, %186 : vector<8x1xf32>
    %c2 = arith.constant 2 : index
    %c0_38 = arith.constant 0 : index
    %c0_39 = arith.constant 0 : index
    %188 = vector.load %arg6[%c2, %c0_38, %c0_39] : memref<4x8x32xf32, #tpu.memory_space<vmem>>, vector<1x8x32xf32>
    %189 = vector.shape_cast %188 : vector<1x8x32xf32> to vector<8x32xf32>
    %190 = vector.shape_cast %182 : vector<8x32xf32> to vector<1x8x32xf32>
    tpu.vector_store %arg6[%c2, %c0_38, %c0_39], %190 {strides = array<i32>} : memref<4x8x32xf32, #tpu.memory_space<vmem>>, vector<1x8x32xf32>,
    %191 = vector.extract_strided_slice %18 {offsets = [24, 0], sizes = [8, 32], strides = [1, 1]} : vector<32x32xf32> to vector<8x32xf32>
    %192 = vector.extract_strided_slice %19 {offsets = [24, 0], sizes = [8, 96], strides = [1, 1]} : vector<32x96xf32> to vector<8x96xf32>
    %193 = vector.broadcast %187 : vector<8x1xf32> to vector<8x32xf32>
    %194 = arith.mulf %193, %21 : vector<8x32xf32>
    %195 = arith.addf %191, %194 : vector<8x32xf32>
    %196 = vector.broadcast %187 : vector<8x1xf32> to vector<8x32xf32>
    %197 = arith.mulf %196, %23 : vector<8x32xf32>
    %cst_40 = arith.constant dense<0.000000e+00> : vector<8x32xf32>
    %198 = tpu.matmul %11, %197, %cst_40 {dimension_numbers = #tpu.dot_dimension_numbers<[1], [0], [0], [1], [0, 0, 1, 1], [], []>, precision = #tpu.contract_precision<fp32>} : vector<8x8xf32>, vector<8x32xf32>, vector<8x32xf32> -> vector<8x32xf32>
    %199 = arith.addf %195, %198 : vector<8x32xf32>
    %200 = arith.negf %199 : vector<8x32xf32>
    %201 = math.exp %200 : vector<8x32xf32>
    %cst_41 = arith.constant 1.000000e+00 : f32
    %202 = vector.broadcast %cst_41 : f32 to vector<8x32xf32>
    %203 = arith.addf %202, %201 : vector<8x32xf32>
    %204 = arith.divf %202, %203 : vector<8x32xf32>
    %205 = vector.broadcast %187 : vector<8x1xf32> to vector<8x96xf32>
    %206 = arith.mulf %205, %25 : vector<8x96xf32>
    %207 = arith.addf %192, %206 : vector<8x96xf32>
    %cst_42 = arith.constant dense<0.000000e+00> : vector<8x96xf32>
    %208 = tpu.matmul %204, %9, %cst_42 {dimension_numbers = #tpu.dot_dimension_numbers<[1], [0], [0], [1], [0, 0, 1, 1], [], []>, precision = #tpu.contract_precision<fp32>} : vector<8x32xf32>, vector<32x96xf32>, vector<8x96xf32> -> vector<8x96xf32>
    %209 = arith.addf %207, %208 : vector<8x96xf32>
    %cst_43 = arith.constant dense<0.000000e+00> : vector<8x96xf32>
    %210 = tpu.matmul %182, %10, %cst_43 {dimension_numbers = #tpu.dot_dimension_numbers<[1], [0], [0], [1], [0, 0, 1, 1], [], []>, precision = #tpu.contract_precision<fp32>} : vector<8x32xf32>, vector<32x96xf32>, vector<8x96xf32> -> vector<8x96xf32>
    %211 = vector.extract_strided_slice %209 {offsets = [0, 0], sizes = [8, 32], strides = [1, 1]} : vector<8x96xf32> to vector<8x32xf32>
    %212 = vector.extract_strided_slice %210 {offsets = [0, 0], sizes = [8, 32], strides = [1, 1]} : vector<8x96xf32> to vector<8x32xf32>
    %213 = arith.addf %211, %212 : vector<8x32xf32>
    %214 = arith.negf %213 : vector<8x32xf32>
    %215 = math.exp %214 : vector<8x32xf32>
    %cst_44 = arith.constant 1.000000e+00 : f32
    %216 = vector.broadcast %cst_44 : f32 to vector<8x32xf32>
    %217 = arith.addf %216, %215 : vector<8x32xf32>
    %218 = arith.divf %216, %217 : vector<8x32xf32>
    %219 = vector.extract_strided_slice %209 {offsets = [0, 32], sizes = [8, 32], strides = [1, 1]} : vector<8x96xf32> to vector<8x32xf32>
    %220 = vector.extract_strided_slice %210 {offsets = [0, 32], sizes = [8, 32], strides = [1, 1]} : vector<8x96xf32> to vector<8x32xf32>
    %221 = arith.addf %219, %220 : vector<8x32xf32>
    %222 = arith.negf %221 : vector<8x32xf32>
    %223 = math.exp %222 : vector<8x32xf32>
    %cst_45 = arith.constant 1.000000e+00 : f32
    %224 = vector.broadcast %cst_45 : f32 to vector<8x32xf32>
    %225 = arith.addf %224, %223 : vector<8x32xf32>
    %226 = arith.divf %224, %225 : vector<8x32xf32>
    %227 = vector.extract_strided_slice %209 {offsets = [0, 64], sizes = [8, 32], strides = [1, 1]} : vector<8x96xf32> to vector<8x32xf32>
    %228 = vector.extract_strided_slice %210 {offsets = [0, 64], sizes = [8, 32], strides = [1, 1]} : vector<8x96xf32> to vector<8x32xf32>
    %229 = arith.addf %228, %29 : vector<8x32xf32>
    %230 = arith.mulf %218, %229 : vector<8x32xf32>
    %231 = arith.addf %227, %230 : vector<8x32xf32>
    %232 = math.tanh %231 : vector<8x32xf32>
    %233 = arith.subf %182, %232 : vector<8x32xf32>
    %234 = arith.mulf %226, %233 : vector<8x32xf32>
    %235 = arith.addf %232, %234 : vector<8x32xf32>
    %c3 = arith.constant 3 : index
    %c0_46 = arith.constant 0 : index
    %c0_47 = arith.constant 0 : index
    %236 = vector.load %arg6[%c3, %c0_46, %c0_47] : memref<4x8x32xf32, #tpu.memory_space<vmem>>, vector<1x8x32xf32>
    %237 = vector.shape_cast %236 : vector<1x8x32xf32> to vector<8x32xf32>
    %238 = vector.shape_cast %235 : vector<8x32xf32> to vector<1x8x32xf32>
    tpu.vector_store %arg6[%c3, %c0_46, %c0_47], %238 {strides = array<i32>} : memref<4x8x32xf32, #tpu.memory_space<vmem>>, vector<1x8x32xf32>,
    return
  }
  func.func @transform_0(%arg0: i32) -> (i32, i32, i32) {
    %c0_i32 = arith.constant 0 : i32
    %c0_i32_0 = arith.constant 0 : i32
    %c0_i32_1 = arith.constant 0 : i32
    return %c0_i32, %arg0, %c0_i32_0 : i32, i32, i32
  }
  func.func @transform_1(%arg0: i32) -> (i32, i32) {
    %c0_i32 = arith.constant 0 : i32
    %c0_i32_0 = arith.constant 0 : i32
    %c0_i32_1 = arith.constant 0 : i32
    return %c0_i32, %c0_i32_0 : i32, i32
  }
  func.func @transform_2(%arg0: i32) -> (i32, i32) {
    %c0_i32 = arith.constant 0 : i32
    %c0_i32_0 = arith.constant 0 : i32
    %c0_i32_1 = arith.constant 0 : i32
    return %c0_i32, %c0_i32_0 : i32, i32
  }
  func.func @transform_3(%arg0: i32) -> (i32, i32) {
    %c0_i32 = arith.constant 0 : i32
    %c0_i32_0 = arith.constant 0 : i32
    %c0_i32_1 = arith.constant 0 : i32
    return %c0_i32, %c0_i32_0 : i32, i32
  }
  func.func @transform_4(%arg0: i32) -> (i32, i32) {
    %c0_i32 = arith.constant 0 : i32
    %c0_i32_0 = arith.constant 0 : i32
    %c0_i32_1 = arith.constant 0 : i32
    return %c0_i32, %c0_i32_0 : i32, i32
  }
  func.func @transform_5(%arg0: i32) -> (i32, i32, i32) {
    %c0_i32 = arith.constant 0 : i32
    %c0_i32_0 = arith.constant 0 : i32
    %c0_i32_1 = arith.constant 0 : i32
    return %c0_i32, %arg0, %c0_i32_0 : i32, i32, i32
  }
}

</mosaic_0001>

<llo_original>
// kernel: encoder_forward.1
$region0: #{encoder_forward.1}
  #allocation0 [shape = 'u32[]', space=smem, size = 0x4, offset = 0x4, fixed_abs, tag = 'smem constant byte address 0x4 - core index']
  #allocation1 [shape = 'u32[144,128]{1,0:T(1,128)}', space=vmem, size = 0x12000, scoped, tag = 'internal scratch']
  %s0 = inlined_call_operand.vmem [shape: f32[4,16,42], index: 0, kind: input, shape index: {}]
  %s1 = inlined_call_operand.vmem [shape: f32[8,8], index: 1, kind: input, shape index: {}]
  %s2 = inlined_call_operand.vmem [shape: f32[42,128], index: 2, kind: input, shape index: {}]
  %s3 = inlined_call_operand.vmem [shape: f32[64,96], index: 3, kind: input, shape index: {}]
  %s4 = inlined_call_operand.vmem [shape: f32[3,128], index: 4, kind: input, shape index: {}]
  %s5 = inlined_call_operand.vmem [shape: f32[4,16,32], index: 5, kind: output, shape index: {}]
  %s6 = sld [smem:[#allocation0]]
  $region125: #{encoder_forward.1} parent=0
    _
  %s8 = ssub.s32 1, %s6
  %s9 = scalar_select 0, %s8, %s6
  $region1: #{encoder_forward.1} parent=0
    #allocation2 [shape = 'u8[32768]{0}', space=vmem, size = 0x8000, scoped, tag = 'input window, operand 0']
    #allocation3 [shape = 'u8[32768]{0}', space=vmem, size = 0x8000, scoped, tag = 'output window, operand 0']
    loop: start=0, step=1, limit=4
    $region2: #{encoder_forward.1} parent=1 // loop_pre_header
      _
    $region3: #{encoder_forward.1} parent=1 // loop_header
      %s11 = sphi 0, %s15
      %p12 = scmp.ge.s32.totalorder %s11, 4
      %s21 = sphi 0, %s23
      %s24 = sphi 0, %s21
      %s25 = sphi 0, %s24
      %s41 = sphi 0, %s25
      %s45 = sphi 0, %s45
      %s47 = sphi 0, %s45
      %s48 = sphi 0, %s47
      %s62 = sphi 0, %s48
      %s66 = sphi 0, %s66
      %s68 = sphi 0, %s66
      %s69 = sphi 0, %s68
      %s83 = sphi 0, %s69
      %s87 = sphi 0, %s87
      %s89 = sphi 0, %s87
      %s90 = sphi 0, %s89
      %s104 = sphi 0, %s90
      %s108 = sphi 0, %s108
      %s110 = sphi 0, %s108
      %s111 = sphi 0, %s110
      %s125 = sphi 0, %s111
      %s131 = sphi 0, %s133
      %s134 = sphi 0, %s131
      %s135 = sphi 0, %s134
      %s151 = sphi 0, %s135
    $region4: #{encoder_forward.1} parent=1 // loop_header_branch
      %14 = sbr.rel (%p12) target = $region8
    $region5: #{encoder_forward.1} parent=1 // loop_body
      %s16 = ssub.s32 %s11, 1
      %s17 = ssub.s32 %s11, 2
      %s18 = sadd.s32 %s11, 1
      %s19 = ssub.s32 %s11, %s18
      %p20 = scmp.eq.s32.totalorder %s19, 0
      %s22 = sadd.s32 %s21, 1
      %s23 = scalar_select %p20, %s21, %s22
      %p26 = pneg %p20
      %p27 = scmp.eq.s32.totalorder %s11, 1
      %p28 = por %p26, %p27
      %p29 = scmp.ne.s32.totalorder %s21, %s24
      %p30 = scmp.eq.s32.totalorder %s11, 0
      %p31 = por %p29, %p30
      %p32 = scmp.ne.s32.totalorder %s21, %s24
      %p33 = scmp.eq.s32.totalorder %s16, 1
      %p34 = por %p32, %p33
      %p35 = scmp.ne.s32.totalorder %s24, %s25
      %p36 = scmp.eq.s32.totalorder %s16, 0
      %p37 = por %p35, %p36
      %p38 = scmp.ne.s32.totalorder %s24, %s25
      %p39 = scmp.eq.s32.totalorder %s17, 1
      %p40 = por %p38, %p39
      %p42 = scmp.ne.s32.totalorder %s25, %s41
      %p43 = scmp.eq.s32.totalorder %s17, 0
      %p44 = por %p42, %p43
      %s46 = sadd.s32 %s45, 1
      %p49 = scmp.eq.s32.totalorder %s11, 1
      %p50 = scmp.ne.s32.totalorder %s45, %s47
      %p51 = scmp.eq.s32.totalorder %s11, 0
      %p52 = por %p50, %p51
      %p53 = scmp.ne.s32.totalorder %s45, %s47
      %p54 = scmp.eq.s32.totalorder %s16, 1
      %p55 = por %p53, %p54
      %p56 = scmp.ne.s32.totalorder %s47, %s48
      %p57 = scmp.eq.s32.totalorder %s16, 0
      %p58 = por %p56, %p57
      %p59 = scmp.ne.s32.totalorder %s47, %s48
      %p60 = scmp.eq.s32.totalorder %s17, 1
      %p61 = por %p59, %p60
      %p63 = scmp.ne.s32.totalorder %s48, %s62
      %p64 = scmp.eq.s32.totalorder %s17, 0
      %p65 = por %p63, %p64
      %s67 = sadd.s32 %s66, 1
      %p70 = scmp.eq.s32.totalorder %s11, 1
      %p71 = scmp.ne.s32.totalorder %s66, %s68
      %p72 = scmp.eq.s32.totalorder %s11, 0
      %p73 = por %p71, %p72
      %p74 = scmp.ne.s32.totalorder %s66, %s68
      %p75 = scmp.eq.s32.totalorder %s16, 1
      %p76 = por %p74, %p75
      %p77 = scmp.ne.s32.totalorder %s68, %s69
      %p78 = scmp.eq.s32.totalorder %s16, 0
      %p79 = por %p77, %p78
      %p80 = scmp.ne.s32.totalorder %s68, %s69
      %p81 = scmp.eq.s32.totalorder %s17, 1
      %p82 = por %p80, %p81
      %p84 = scmp.ne.s32.totalorder %s69, %s83
      %p85 = scmp.eq.s32.totalorder %s17, 0
      %p86 = por %p84, %p85
      %s88 = sadd.s32 %s87, 1
      %p91 = scmp.eq.s32.totalorder %s11, 1
      %p92 = scmp.ne.s32.totalorder %s87, %s89
      %p93 = scmp.eq.s32.totalorder %s11, 0
      %p94 = por %p92, %p93
      %p95 = scmp.ne.s32.totalorder %s87, %s89
      %p96 = scmp.eq.s32.totalorder %s16, 1
      %p97 = por %p95, %p96
      %p98 = scmp.ne.s32.totalorder %s89, %s90
      %p99 = scmp.eq.s32.totalorder %s16, 0
      %p100 = por %p98, %p99
      %p101 = scmp.ne.s32.totalorder %s89, %s90
      %p102 = scmp.eq.s32.totalorder %s17, 1
      %p103 = por %p101, %p102
      %p105 = scmp.ne.s32.totalorder %s90, %s104
      %p106 = scmp.eq.s32.totalorder %s17, 0
      %p107 = por %p105, %p106
      %s109 = sadd.s32 %s108, 1
      %p112 = scmp.eq.s32.totalorder %s11, 1
      %p113 = scmp.ne.s32.totalorder %s108, %s110
      %p114 = scmp.eq.s32.totalorder %s11, 0
      %p115 = por %p113, %p114
      %p116 = scmp.ne.s32.totalorder %s108, %s110
      %p117 = scmp.eq.s32.totalorder %s16, 1
      %p118 = por %p116, %p117
      %p119 = scmp.ne.s32.totalorder %s110, %s111
      %p120 = scmp.eq.s32.totalorder %s16, 0
      %p121 = por %p119, %p120
      %p122 = scmp.ne.s32.totalorder %s110, %s111
      %p123 = scmp.eq.s32.totalorder %s17, 1
      %p124 = por %p122, %p123
      %p126 = scmp.ne.s32.totalorder %s111, %s125
      %p127 = scmp.eq.s32.totalorder %s17, 0
      %p128 = por %p126, %p127
      %s129 = ssub.s32 %s11, %s18
      %p130 = scmp.eq.s32.totalorder %s129, 0
      %s132 = sadd.s32 %s131, 1
      %s133 = scalar_select %p130, %s131, %s132
      %p136 = pneg %p130
      %p137 = scmp.eq.s32.totalorder %s11, 1
      %p138 = por %p136, %p137
      %p139 = scmp.ne.s32.totalorder %s131, %s134
      %p140 = scmp.eq.s32.totalorder %s11, 0
      %p141 = por %p139, %p140
      %p142 = scmp.ne.s32.totalorder %s131, %s134
      %p143 = scmp.eq.s32.totalorder %s16, 1
      %p144 = por %p142, %p143
      %p145 = scmp.ne.s32.totalorder %s134, %s135
      %p146 = scmp.eq.s32.totalorder %s16, 0
      %p147 = por %p145, %p146
      %p148 = scmp.ne.s32.totalorder %s134, %s135
      %p149 = scmp.eq.s32.totalorder %s17, 1
      %p150 = por %p148, %p149
      %p152 = scmp.ne.s32.totalorder %s135, %s151
      %p153 = scmp.eq.s32.totalorder %s17, 0
      %p154 = por %p152, %p153
      %p155 = scmp.le.s32.totalorder 1, %s11
      %p156 = scmp.lt.s32.totalorder %s11, 3
      %p157 = pnand %p155, %p156
      %p158 = pneg %p157
      // Predicated region
      $region9: #{encoder_forward.1} parent=5 // pred_check
        _
      $region10: #{encoder_forward.1} parent=5 // pred_check_branch
        %160 = sbr.rel (%p157) target = $region12
      $region11: #{encoder_forward.1} parent=5 // pred_region
        %s161 = ssub.s32 %s11, 1
        // Predicated region
        $region13: #{encoder_forward.1} parent=11 // pred_check
          %p162 = pneg %p58
        $region14: #{encoder_forward.1} parent=11 // pred_check_branch
          %164 = sbr.rel (%p162) target = $region16
        $region15: #{encoder_forward.1} parent=11 // pred_region
          _
        $region16: #{encoder_forward.1} parent=11 // pred_fallthru
          _
        // Predicated region
        $region17: #{encoder_forward.1} parent=11 // pred_check
          %p165 = pneg %p79
        $region18: #{encoder_forward.1} parent=11 // pred_check_branch
          %167 = sbr.rel (%p165) target = $region20
        $region19: #{encoder_forward.1} parent=11 // pred_region
          _
        $region20: #{encoder_forward.1} parent=11 // pred_fallthru
          _
        // Predicated region
        $region21: #{encoder_forward.1} parent=11 // pred_check
          %p168 = pneg %p100
        $region22: #{encoder_forward.1} parent=11 // pred_check_branch
          %170 = sbr.rel (%p168) target = $region24
        $region23: #{encoder_forward.1} parent=11 // pred_region
          _
        $region24: #{encoder_forward.1} parent=11 // pred_fallthru
          _
        // Predicated region
        $region25: #{encoder_forward.1} parent=11 // pred_check
          %p171 = pneg %p121
        $region26: #{encoder_forward.1} parent=11 // pred_check_branch
          %173 = sbr.rel (%p171) target = $region28
        $region27: #{encoder_forward.1} parent=11 // pred_region
          _
        $region28: #{encoder_forward.1} parent=11 // pred_fallthru
          _
      $region12: #{encoder_forward.1} parent=5 // pred_fallthru
        _
      %p174 = scmp.lt.s32.totalorder %s11, 2
      // Predicated region
      $region29: #{encoder_forward.1} parent=5 // pred_check
        %p175 = pneg %p174
      $region30: #{encoder_forward.1} parent=5 // pred_check_branch
        %177 = sbr.rel (%p175) target = $region32
      $region31: #{encoder_forward.1} parent=5 // pred_region
        // Predicated region
        $region33: #{encoder_forward.1} parent=31 // pred_check
          %p178 = pneg %p31
        $region34: #{encoder_forward.1} parent=31 // pred_check_branch
          %180 = sbr.rel (%p178) target = $region36
        $region35: #{encoder_forward.1} parent=31 // pred_region
          %s181 = sand.u32 %s21, 1
          %s182 = sand.u32 %s21, 1
          %s183 = smul.addr %s182, 32
          %s184 = scalar_lea.vmem [#allocation2], %s183
          %s185 = smul.addr %s11, 8
          %s186 = scalar_lea.vmem %s0, %s185
          // Predicated region
          $region37: #{encoder_forward.1} parent=35 // pred_check
            _
          $region38: #{encoder_forward.1} parent=35 // pred_check_branch
            %188 = sbr.rel (0) target = $region40
          $region39: #{encoder_forward.1} parent=35 // pred_region
            // Predicated region
            $region41: #{encoder_forward.1} parent=39 // pred_check
              _
            $region42: #{encoder_forward.1} parent=39 // pred_check_branch
              %190 = sbr.rel (0) target = $region44
            $region43: #{encoder_forward.1} parent=39 // pred_region
              // Predicated region
              $region56: #{encoder_forward.1} parent=43 // pred_check
                _
              $region57: #{encoder_forward.1} parent=43 // pred_check_branch
                %211 = sbr.rel (0) target = $region59
              $region58: #{encoder_forward.1} parent=43 // pred_region
                loop: start=0, step=1, limit=1
                $region60: #{encoder_forward.1} parent=58 // loop_pre_header
                  _
                $region61: #{encoder_forward.1} parent=58 // loop_header
                  %s213 = sphi 0, %s217
                  %p214 = scmp.ge.s32.totalorder %s213, 1
                  %s218 = sphi %s186, %s186
                  %s219 = sphi %s184, %s184
                $region62: #{encoder_forward.1} parent=58 // loop_header_branch
                  %216 = sbr.rel (%p214) target = $region66
                $region63: #{encoder_forward.1} parent=58 // loop_body
                  %v220 = vld [vmem:[%s218] sm:$0xff]
                  %221 = vst [vmem:[%s219] sm:$0xff] %v220
                  %v222 = vld [vmem:[%s218 + $0x10] sm:$0xff]
                  %223 = vst [vmem:[%s219 + $0x8] sm:$0xff] %v222
                  %v224 = vld [vmem:[%s218 + $0x20] sm:$0xff]
                  %225 = vst [vmem:[%s219 + $0x10] sm:$0xff] %v224
                  %v226 = vld [vmem:[%s218 + $0x30] sm:$0xff]
                  %227 = vst [vmem:[%s219 + $0x18] sm:$0xff] %v226
                $region64: #{encoder_forward.1} parent=58 // loop_footer
                  %s217 = sadd.s32 1, %s213
                $region65: #{encoder_forward.1} parent=58 // loop_footer_branch
                  %212 = sbr.rel target = $region61
                $region66: #{encoder_forward.1} parent=58 // loop_exit
                  _
              $region59: #{encoder_forward.1} parent=43 // pred_fallthru
                _
              // Predicated region
              $region67: #{encoder_forward.1} parent=43 // pred_check
                _
              $region68: #{encoder_forward.1} parent=43 // pred_check_branch
                %229 = sbr.rel target = $region70
              $region69: #{encoder_forward.1} parent=43 // pred_region
                _
              $region70: #{encoder_forward.1} parent=43 // pred_fallthru
                _
            $region44: #{encoder_forward.1} parent=39 // pred_fallthru
              _
            // Predicated region
            $region45: #{encoder_forward.1} parent=39 // pred_check
              _
            $region46: #{encoder_forward.1} parent=39 // pred_check_branch
              %192 = sbr.rel target = $region48
            $region47: #{encoder_forward.1} parent=39 // pred_region
              loop: start=0, step=1, limit=1
              $region49: #{encoder_forward.1} parent=47 // loop_pre_header
                _
              $region50: #{encoder_forward.1} parent=47 // loop_header
                %s195 = sphi 0, %s199
                %p196 = scmp.ge.s32.totalorder %s195, 1
                %s200 = sphi %s186, %s186
                %s201 = sphi %s184, %s184
              $region51: #{encoder_forward.1} parent=47 // loop_header_branch
                %198 = sbr.rel (%p196) target = $region55
              $region52: #{encoder_forward.1} parent=47 // loop_body
                %v202 = vld [vmem:[%s200] sm:$0xff]
                %203 = vst [vmem:[%s201] sm:$0xff] %v202
                %v204 = vld [vmem:[%s200 + $0x10] sm:$0xff]
                %205 = vst [vmem:[%s201 + $0x8] sm:$0xff] %v204
                %v206 = vld [vmem:[%s200 + $0x20] sm:$0xff]
                %207 = vst [vmem:[%s201 + $0x10] sm:$0xff] %v206
                %v208 = vld [vmem:[%s200 + $0x30] sm:$0xff]
                %209 = vst [vmem:[%s201 + $0x18] sm:$0xff] %v208
              $region53: #{encoder_forward.1} parent=47 // loop_footer
                %s199 = sadd.s32 1, %s195
              $region54: #{encoder_forward.1} parent=47 // loop_footer_branch
                %194 = sbr.rel target = $region50
              $region55: #{encoder_forward.1} parent=47 // loop_exit
                _
            $region48: #{encoder_forward.1} parent=39 // pred_fallthru
              _
          $region40: #{encoder_forward.1} parent=35 // pred_fallthru
            _
          %230 = vnop
        $region36: #{encoder_forward.1} parent=31 // pred_fallthru
          _
      $region32: #{encoder_forward.1} parent=5 // pred_fallthru
        _
      %p231 = scmp.le.s32.totalorder 1, %s11
      %p232 = scmp.lt.s32.totalorder %s11, 3
      %p233 = pnand %p231, %p232
      %p234 = pneg %p233
      // Predicated region
      $region71: #{encoder_forward.1} parent=5 // pred_check
        _
      $region72: #{encoder_forward.1} parent=5 // pred_check_branch
        %236 = sbr.rel (%p233) target = $region74
      $region73: #{encoder_forward.1} parent=5 // pred_region
        %s237 = ssub.s32 %s11, 1
        %s238 = sand.u32 %s24, 1
        %s239 = sand.u32 %s24, 1
        %s240 = smul.addr %s239, 32
        %s241 = scalar_lea.vmem [#allocation2], %s240
        // Predicated region
        $region75: #{encoder_forward.1} parent=73 // pred_check
          %p242 = pneg %p37
        $region76: #{encoder_forward.1} parent=73 // pred_check_branch
          %244 = sbr.rel (%p242) target = $region78
        $region77: #{encoder_forward.1} parent=73 // pred_region
          _
        $region78: #{encoder_forward.1} parent=73 // pred_fallthru
          _
        %s245 = sand.u32 %s24, 1
        %s246 = sand.u32 %s24, 1
        %s247 = smul.addr %s246, 32
        %s248 = scalar_lea.vmem [#allocation2], %s247
        %p249 = pneg %p37
        %p250 = pneg %p34
        %p251 = pneg %p58
        %p252 = pneg %p55
        %p253 = pneg %p79
        %p254 = pneg %p76
        %p255 = pneg %p100
        %p256 = pneg %p97
        %p257 = pneg %p121
        %p258 = pneg %p118
        %p259 = pneg %p147
        %p260 = pneg %p144
        %s261 = sand.u32 %s134, 1
        %s262 = sand.u32 %s134, 1
        %s263 = smul.addr %s262, 32
        %s264 = scalar_lea.vmem [#allocation3], %s263
        %v265 = vld [vmem:[%s4] sm:$0x7]
        %v266 = vld [vmem:[%s3] sm:$0xff]
        %v267 = vld [vmem:[%s3 + $0x8] sm:$0xff]
        %v268 = vld [vmem:[%s3 + $0x10] sm:$0xff]
        %v269 = vld [vmem:[%s3 + $0x18] sm:$0xff]
        %v270 = vld [vmem:[%s3 + $0x20] sm:$0xff]
        %v271 = vld [vmem:[%s3 + $0x28] sm:$0xff]
        %v272 = vld [vmem:[%s3 + $0x30] sm:$0xff]
        %v273 = vld [vmem:[%s3 + $0x38] sm:$0xff]
        %v274 = vld [vmem:[%s1] sm:$0xff]
        %v275 = vld [vmem:[%s241] sm:$0xff]
        %v276 = vld [vmem:[%s241 + $0x8] sm:$0xff]
        %v277 = vld [vmem:[%s241 + $0x10] sm:$0xff]
        %v278 = vld [vmem:[%s241 + $0x18] sm:$0xff]
        %v279 = vld [vmem:[%s2] sm:$0xff]
        %v280 = vld [vmem:[%s2 + $0x8] sm:$0xff]
        %v281 = vld [vmem:[%s2 + $0x10] sm:$0xff]
        %v282 = vld [vmem:[%s2 + $0x18] sm:$0xff]
        %v283 = vld [vmem:[%s2 + $0x20] sm:$0xff]
        %v284 = vld [vmem:[%s2 + $0x28] sm:$0x3]
        %v285 = vlaneseq
        %v286 = vshrl.u32 %v285, 7
        %v287 = vsub.s32 0, %v286
        %v288 = vrot.slane %v265, %v287
        %vm289 = vcmask 343040
        %v291 = vsel %vm289, %v275, 0
        %v294 = vsel %vm289, %v276, 0
        %v297 = vsel %vm289, %v277, 0
        %v300 = vsel %vm289, %v278, 0
        %vm302 = vcmask 1041408
        %v304 = vsel %vm302, %v284, 0
        %306 = vmatprep.subr.mxu0 0.0
        %v307 = vand.u32 %v279, 4294901760
        %308 = vmatpush1.msra.mxu0 %v307
        %309 = vmatprep.subr.mxu0 0.0
        %v310 = vand.u32 %v280, 4294901760
        %311 = vmatpush1.msra.mxu0 %v310
        %312 = vmatprep.subr.mxu0 0.0
        %v313 = vand.u32 %v281, 4294901760
        %314 = vmatpush1.msra.mxu0 %v313
        %315 = vmatprep.subr.mxu0 0.0
        %v316 = vand.u32 %v282, 4294901760
        %317 = vmatpush1.msra.mxu0 %v316
        %318 = vmatprep.subr.mxu0 0.0
        %v319 = vand.u32 %v283, 4294901760
        %320 = vmatpush1.msra.mxu0 %v319
        %321 = vmatprep.subr.mxu0 0.0
        %v322 = vand.u32 %v304, 4294901760
        %323 = vmatpush1.msra.mxu0 %v322
        %324 = vmatprep.subr.mxu0 0.0
        %325 = vmatpush1.msra.mxu0 0.0
        %326 = vmatprep.subr.mxu0 0.0
        %327 = vmatpush1.msra.mxu0 0.0
        %328 = vmatprep.subr.mxu0 0.0
        %329 = vmatpush1.msra.mxu0 0.0
        %330 = vmatprep.subr.mxu0 0.0
        %331 = vmatpush1.msra.mxu0 0.0
        %332 = vmatprep.subr.mxu0 0.0
        %333 = vmatpush1.msra.mxu0 0.0
        %334 = vmatprep.subr.mxu0 0.0
        %335 = vmatpush1.msra.mxu0 0.0
        %336 = vmatprep.subr.mxu0 0.0
        %337 = vmatpush1.msra.mxu0 0.0
        %338 = vmatprep.subr.mxu0 0.0
        %339 = vmatpush1.msra.mxu0 0.0
        %340 = vmatprep.subr.mxu0 0.0
        %341 = vmatpush1.msra.mxu0 0.0
        %342 = vmatprep.subr.mxu0 0.0
        %343 = vmatpush1.msra.mxu0 0.0
        %344 = vmatprep.subr.mxu0 0.0
        %345 = vmatpush1.msra.mxu0 0.0
        %346 = vmatprep.subr.mxu0 0.0
        %347 = vmatpush1.msra.mxu0 0.0
        %348 = vmatprep.subr.mxu0 0.0
        %349 = vmatpush1.msra.mxu0 0.0
        %350 = vmatprep.subr.mxu0 0.0
        %351 = vmatpush1.msra.mxu0 0.0
        %352 = vmatprep.subr.mxu0 0.0
        %353 = vmatpush1.msra.mxu0 0.0
        %354 = vmatprep.subr.mxu0 0.0
        %355 = vmatpush1.msra.mxu0 0.0
        %356 = vmatprep.subr.mxu0 0.0
        %357 = vmatpush1.msra.mxu0 0.0
        %358 = vmatprep.subr.mxu0 0.0
        %359 = vmatpush1.msra.mxu0 0.0
        %360 = vmatprep.subr.mxu0 0.0
        %361 = vmatpush1.msra.mxu0 0.0
        %362 = vmatprep.subr.mxu0 0.0
        %363 = vmatpush1.msra.mxu0 0.0
        %364 = vmatprep.subr.mxu0 0.0
        %365 = vmatpush1.msra.mxu0 0.0
        %366 = vmatprep.subr.mxu0 0.0
        %367 = vmatpush1.msra.mxu0 0.0
        %368 = vmatprep.subr.mxu0 0.0
        %369 = vmatpush1.msra.mxu0 0.0
        %370 = vmatprep.subr.mxu0 0.0
        %371 = vmatpush1.msra.mxu0 0.0
        %372 = vmatprep.subr.mxu0 0.0
        %373 = vmatpush1.msra.mxu0 0.0
        %374 = vmatprep.subr.mxu0 0.0
        %375 = vmatpush1.msra.mxu0 0.0
        %376 = vmatprep.mubr.f32.mxu0 0.0
        %v377 = vand.u32 %v291, 4294901760
        %v378 = vsub.f32 %v291, %v377
        %v379 = vand.u32 %v378, 4294901760
        %v380 = vsub.f32 %v378, %v379
        %v381 = vand.u32 %v380, 4294901760
        %382 = vmatmul.mubr.f32.gmra.mrb[0].mxu0 %v381
        %v383 = vpop.f32.mrb[0].mxu0
        %v384 = vadd.f32 %v288, %v383
        %v385 = vpop.f32.mrb[0].mxu0
        %386 = vmatprep.mubr.f32.mxu0 0.0
        %v387 = vand.u32 %v294, 4294901760
        %v388 = vsub.f32 %v294, %v387
        %v389 = vand.u32 %v388, 4294901760
        %v390 = vsub.f32 %v388, %v389
        %v391 = vand.u32 %v390, 4294901760
        %392 = vmatmul.mubr.f32.gmra.mrb[0].mxu0 %v391
        %v393 = vpop.f32.mrb[0].mxu0
        %v394 = vadd.f32 %v288, %v393
        %v395 = vpop.f32.mrb[0].mxu0
        %396 = vmatprep.mubr.f32.mxu0 0.0
        %v397 = vand.u32 %v297, 4294901760
        %v398 = vsub.f32 %v297, %v397
        %v399 = vand.u32 %v398, 4294901760
        %v400 = vsub.f32 %v398, %v399
        %v401 = vand.u32 %v400, 4294901760
        %402 = vmatmul.mubr.f32.gmra.mrb[0].mxu0 %v401
        %v403 = vpop.f32.mrb[0].mxu0
        %v404 = vadd.f32 %v288, %v403
        %v405 = vpop.f32.mrb[0].mxu0
        %406 = vmatprep.mubr.f32.mxu0 0.0
        %v407 = vand.u32 %v300, 4294901760
        %v408 = vsub.f32 %v300, %v407
        %v409 = vand.u32 %v408, 4294901760
        %v410 = vsub.f32 %v408, %v409
        %v411 = vand.u32 %v410, 4294901760
        %412 = vmatmul.mubr.f32.gmra.mrb[0].mxu0 %v411
        %v413 = vpop.f32.mrb[0].mxu0
        %v414 = vadd.f32 %v288, %v413
        %v415 = vpop.f32.mrb[0].mxu0
        %416 = vdwg.mxu0
        %417 = vmatprep.subr.mxu0 0.0
        %v418 = vand.u32 %v279, 4294901760
        %v419 = vsub.f32 %v279, %v418
        %v420 = vand.u32 %v419, 4294901760
        %v421 = vsub.f32 %v419, %v420
        %v422 = vand.u32 %v421, 4294901760
        %423 = vmatpush1.msra.mxu0 %v422
        %424 = vmatprep.subr.mxu0 0.0
        %v425 = vand.u32 %v280, 4294901760
        %v426 = vsub.f32 %v280, %v425
        %v427 = vand.u32 %v426, 4294901760
        %v428 = vsub.f32 %v426, %v427
        %v429 = vand.u32 %v428, 4294901760
        %430 = vmatpush1.msra.mxu0 %v429
        %431 = vmatprep.subr.mxu0 0.0
        %v432 = vand.u32 %v281, 4294901760
        %v433 = vsub.f32 %v281, %v432
        %v434 = vand.u32 %v433, 4294901760
        %v435 = vsub.f32 %v433, %v434
        %v436 = vand.u32 %v435, 4294901760
        %437 = vmatpush1.msra.mxu0 %v436
        %438 = vmatprep.subr.mxu0 0.0
        %v439 = vand.u32 %v282, 4294901760
        %v440 = vsub.f32 %v282, %v439
        %v441 = vand.u32 %v440, 4294901760
        %v442 = vsub.f32 %v440, %v441
        %v443 = vand.u32 %v442, 4294901760
        %444 = vmatpush1.msra.mxu0 %v443
        %445 = vmatprep.subr.mxu0 0.0
        %v446 = vand.u32 %v283, 4294901760
        %v447 = vsub.f32 %v283, %v446
        %v448 = vand.u32 %v447, 4294901760
        %v449 = vsub.f32 %v447, %v448
        %v450 = vand.u32 %v449, 4294901760
        %451 = vmatpush1.msra.mxu0 %v450
        %452 = vmatprep.subr.mxu0 0.0
        %v453 = vand.u32 %v304, 4294901760
        %v454 = vsub.f32 %v304, %v453
        %v455 = vand.u32 %v454, 4294901760
        %v456 = vsub.f32 %v454, %v455
        %v457 = vand.u32 %v456, 4294901760
        %458 = vmatpush1.msra.mxu0 %v457
        %459 = vmatprep.subr.mxu0 0.0
        %460 = vmatpush1.msra.mxu0 0.0
        %461 = vmatprep.subr.mxu0 0.0
        %462 = vmatpush1.msra.mxu0 0.0
        %463 = vmatprep.subr.mxu0 0.0
        %464 = vmatpush1.msra.mxu0 0.0
        %465 = vmatprep.subr.mxu0 0.0
        %466 = vmatpush1.msra.mxu0 0.0
        %467 = vmatprep.subr.mxu0 0.0
        %468 = vmatpush1.msra.mxu0 0.0
        %469 = vmatprep.subr.mxu0 0.0
        %470 = vmatpush1.msra.mxu0 0.0
        %471 = vmatprep.subr.mxu0 0.0
        %472 = vmatpush1.msra.mxu0 0.0
        %473 = vmatprep.subr.mxu0 0.0
        %474 = vmatpush1.msra.mxu0 0.0
        %475 = vmatprep.subr.mxu0 0.0
        %476 = vmatpush1.msra.mxu0 0.0
        %477 = vmatprep.subr.mxu0 0.0
        %478 = vmatpush1.msra.mxu0 0.0
        %479 = vmatprep.subr.mxu0 0.0
        %480 = vmatpush1.msra.mxu0 0.0
        %481 = vmatprep.subr.mxu0 0.0
        %482 = vmatpush1.msra.mxu0 0.0
        %483 = vmatprep.subr.mxu0 0.0
        %484 = vmatpush1.msra.mxu0 0.0
        %485 = vmatprep.subr.mxu0 0.0
        %486 = vmatpush1.msra.mxu0 0.0
        %487 = vmatprep.subr.mxu0 0.0
        %488 = vmatpush1.msra.mxu0 0.0
        %489 = vmatprep.subr.mxu0 0.0
        %490 = vmatpush1.msra.mxu0 0.0
        %491 = vmatprep.subr.mxu0 0.0
        %492 = vmatpush1.msra.mxu0 0.0
        %493 = vmatprep.subr.mxu0 0.0
        %494 = vmatpush1.msra.mxu0 0.0
        %495 = vmatprep.subr.mxu0 0.0
        %496 = vmatpush1.msra.mxu0 0.0
        %497 = vmatprep.subr.mxu0 0.0
        %498 = vmatpush1.msra.mxu0 0.0
        %499 = vmatprep.subr.mxu0 0.0
        %500 = vmatpush1.msra.mxu0 0.0
        %501 = vmatprep.subr.mxu0 0.0
        %502 = vmatpush1.msra.mxu0 0.0
        %503 = vmatprep.subr.mxu0 0.0
        %504 = vmatpush1.msra.mxu0 0.0
        %505 = vmatprep.subr.mxu0 0.0
        %506 = vmatpush1.msra.mxu0 0.0
        %507 = vmatprep.subr.mxu0 0.0
        %508 = vmatpush1.msra.mxu0 0.0
        %509 = vmatprep.subr.mxu0 0.0
        %510 = vmatpush1.msra.mxu0 0.0
        %511 = vmatprep.mubr.f32.mxu0 0.0
        %v512 = vand.u32 %v291, 4294901760
        %513 = vmatmul.mubr.f32.gmra.mrb[0].mxu0 %v512
        %v514 = vpop.f32.mrb[0].mxu0
        %v515 = vadd.f32 %v384, %v514
        %v516 = vpop.f32.mrb[0].mxu0
        %517 = vmatprep.mubr.f32.mxu0 0.0
        %v518 = vand.u32 %v294, 4294901760
        %519 = vmatmul.mubr.f32.gmra.mrb[0].mxu0 %v518
        %v520 = vpop.f32.mrb[0].mxu0
        %v521 = vadd.f32 %v394, %v520
        %v522 = vpop.f32.mrb[0].mxu0
        %523 = vmatprep.mubr.f32.mxu0 0.0
        %v524 = vand.u32 %v297, 4294901760
        %525 = vmatmul.mubr.f32.gmra.mrb[0].mxu0 %v524
        %v526 = vpop.f32.mrb[0].mxu0
        %v527 = vadd.f32 %v404, %v526
        %v528 = vpop.f32.mrb[0].mxu0
        %529 = vmatprep.mubr.f32.mxu0 0.0
        %v530 = vand.u32 %v300, 4294901760
        %531 = vmatmul.mubr.f32.gmra.mrb[0].mxu0 %v530
        %v532 = vpop.f32.mrb[0].mxu0
        %v533 = vadd.f32 %v414, %v532
        %v534 = vpop.f32.mrb[0].mxu0
        %535 = vdwg.mxu0
        %536 = vmatprep.subr.mxu0 0.0
        %v537 = vand.u32 %v279, 4294901760
        %v538 = vsub.f32 %v279, %v537
        %539 = vmatpush1.msra.mxu0 %v538
        %540 = vmatprep.subr.mxu0 0.0
        %v541 = vand.u32 %v280, 4294901760
        %v542 = vsub.f32 %v280, %v541
        %543 = vmatpush1.msra.mxu0 %v542
        %544 = vmatprep.subr.mxu0 0.0
        %v545 = vand.u32 %v281, 4294901760
        %v546 = vsub.f32 %v281, %v545
        %547 = vmatpush1.msra.mxu0 %v546
        %548 = vmatprep.subr.mxu0 0.0
        %v549 = vand.u32 %v282, 4294901760
        %v550 = vsub.f32 %v282, %v549
        %551 = vmatpush1.msra.mxu0 %v550
        %552 = vmatprep.subr.mxu0 0.0
        %v553 = vand.u32 %v283, 4294901760
        %v554 = vsub.f32 %v283, %v553
        %555 = vmatpush1.msra.mxu0 %v554
        %556 = vmatprep.subr.mxu0 0.0
        %v557 = vand.u32 %v304, 4294901760
        %v558 = vsub.f32 %v304, %v557
        %559 = vmatpush1.msra.mxu0 %v558
        %560 = vmatprep.subr.mxu0 0.0
        %561 = vmatpush1.msra.mxu0 0.0
        %562 = vmatprep.subr.mxu0 0.0
        %563 = vmatpush1.msra.mxu0 0.0
        %564 = vmatprep.subr.mxu0 0.0
        %565 = vmatpush1.msra.mxu0 0.0
        %566 = vmatprep.subr.mxu0 0.0
        %567 = vmatpush1.msra.mxu0 0.0
        %568 = vmatprep.subr.mxu0 0.0
        %569 = vmatpush1.msra.mxu0 0.0
        %570 = vmatprep.subr.mxu0 0.0
        %571 = vmatpush1.msra.mxu0 0.0
        %572 = vmatprep.subr.mxu0 0.0
        %573 = vmatpush1.msra.mxu0 0.0
        %574 = vmatprep.subr.mxu0 0.0
        %575 = vmatpush1.msra.mxu0 0.0
        %576 = vmatprep.subr.mxu0 0.0
        %577 = vmatpush1.msra.mxu0 0.0
        %578 = vmatprep.subr.mxu0 0.0
        %579 = vmatpush1.msra.mxu0 0.0
        %580 = vmatprep.subr.mxu0 0.0
        %581 = vmatpush1.msra.mxu0 0.0
        %582 = vmatprep.subr.mxu0 0.0
        %583 = vmatpush1.msra.mxu0 0.0
        %584 = vmatprep.subr.mxu0 0.0
        %585 = vmatpush1.msra.mxu0 0.0
        %586 = vmatprep.subr.mxu0 0.0
        %587 = vmatpush1.msra.mxu0 0.0
        %588 = vmatprep.subr.mxu0 0.0
        %589 = vmatpush1.msra.mxu0 0.0
        %590 = vmatprep.subr.mxu0 0.0
        %591 = vmatpush1.msra.mxu0 0.0
        %592 = vmatprep.subr.mxu0 0.0
        %593 = vmatpush1.msra.mxu0 0.0
        %594 = vmatprep.subr.mxu0 0.0
        %595 = vmatpush1.msra.mxu0 0.0
        %596 = vmatprep.subr.mxu0 0.0
        %597 = vmatpush1.msra.mxu0 0.0
        %598 = vmatprep.subr.mxu0 0.0
        %599 = vmatpush1.msra.mxu0 0.0
        %600 = vmatprep.subr.mxu0 0.0
        %601 = vmatpush1.msra.mxu0 0.0
        %602 = vmatprep.subr.mxu0 0.0
        %603 = vmatpush1.msra.mxu0 0.0
        %604 = vmatprep.subr.mxu0 0.0
        %605 = vmatpush1.msra.mxu0 0.0
        %606 = vmatprep.subr.mxu0 0.0
        %607 = vmatpush1.msra.mxu0 0.0
        %608 = vmatprep.subr.mxu0 0.0
        %609 = vmatpush1.msra.mxu0 0.0
        %610 = vmatprep.subr.mxu0 0.0
        %611 = vmatpush1.msra.mxu0 0.0
        %612 = vmatprep.mubr.f32.mxu0 0.0
        %v613 = vand.u32 %v291, 4294901760
        %v614 = vsub.f32 %v291, %v613
        %615 = vmatmul.mubr.f32.gmra.mrb[0].mxu0 %v614
        %v616 = vpop.f32.mrb[0].mxu0
        %v617 = vadd.f32 %v515, %v616
        %v618 = vpop.f32.mrb[0].mxu0
        %619 = vmatprep.mubr.f32.mxu0 0.0
        %v620 = vand.u32 %v294, 4294901760
        %v621 = vsub.f32 %v294, %v620
        %622 = vmatmul.mubr.f32.gmra.mrb[0].mxu0 %v621
        %v623 = vpop.f32.mrb[0].mxu0
        %v624 = vadd.f32 %v521, %v623
        %v625 = vpop.f32.mrb[0].mxu0
        %626 = vmatprep.mubr.f32.mxu0 0.0
        %v627 = vand.u32 %v297, 4294901760
        %v628 = vsub.f32 %v297, %v627
        %629 = vmatmul.mubr.f32.gmra.mrb[0].mxu0 %v628
        %v630 = vpop.f32.mrb[0].mxu0
        %v631 = vadd.f32 %v527, %v630
        %v632 = vpop.f32.mrb[0].mxu0
        %633 = vmatprep.mubr.f32.mxu0 0.0
        %v634 = vand.u32 %v300, 4294901760
        %v635 = vsub.f32 %v300, %v634
        %636 = vmatmul.mubr.f32.gmra.mrb[0].mxu0 %v635
        %v637 = vpop.f32.mrb[0].mxu0
        %v638 = vadd.f32 %v533, %v637
        %v639 = vpop.f32.mrb[0].mxu0
        %640 = vdwg.mxu0
        %641 = vmatprep.subr.mxu0 0.0
        %v642 = vand.u32 %v279, 4294901760
        %643 = vmatpush1.msra.mxu0 %v642
        %644 = vmatprep.subr.mxu0 0.0
        %v645 = vand.u32 %v280, 4294901760
        %646 = vmatpush1.msra.mxu0 %v645
        %647 = vmatprep.subr.mxu0 0.0
        %v648 = vand.u32 %v281, 4294901760
        %649 = vmatpush1.msra.mxu0 %v648
        %650 = vmatprep.subr.mxu0 0.0
        %v651 = vand.u32 %v282, 4294901760
        %652 = vmatpush1.msra.mxu0 %v651
        %653 = vmatprep.subr.mxu0 0.0
        %v654 = vand.u32 %v283, 4294901760
        %655 = vmatpush1.msra.mxu0 %v654
        %656 = vmatprep.subr.mxu0 0.0
        %v657 = vand.u32 %v304, 4294901760
        %658 = vmatpush1.msra.mxu0 %v657
        %659 = vmatprep.subr.mxu0 0.0
        %660 = vmatpush1.msra.mxu0 0.0
        %661 = vmatprep.subr.mxu0 0.0
        %662 = vmatpush1.msra.mxu0 0.0
        %663 = vmatprep.subr.mxu0 0.0
        %664 = vmatpush1.msra.mxu0 0.0
        %665 = vmatprep.subr.mxu0 0.0
        %666 = vmatpush1.msra.mxu0 0.0
        %667 = vmatprep.subr.mxu0 0.0
        %668 = vmatpush1.msra.mxu0 0.0
        %669 = vmatprep.subr.mxu0 0.0
        %670 = vmatpush1.msra.mxu0 0.0
        %671 = vmatprep.subr.mxu0 0.0
        %672 = vmatpush1.msra.mxu0 0.0
        %673 = vmatprep.subr.mxu0 0.0
        %674 = vmatpush1.msra.mxu0 0.0
        %675 = vmatprep.subr.mxu0 0.0
        %676 = vmatpush1.msra.mxu0 0.0
        %677 = vmatprep.subr.mxu0 0.0
        %678 = vmatpush1.msra.mxu0 0.0
        %679 = vmatprep.subr.mxu0 0.0
        %680 = vmatpush1.msra.mxu0 0.0
        %681 = vmatprep.subr.mxu0 0.0
        %682 = vmatpush1.msra.mxu0 0.0
        %683 = vmatprep.subr.mxu0 0.0
        %684 = vmatpush1.msra.mxu0 0.0
        %685 = vmatprep.subr.mxu0 0.0
        %686 = vmatpush1.msra.mxu0 0.0
        %687 = vmatprep.subr.mxu0 0.0
        %688 = vmatpush1.msra.mxu0 0.0
        %689 = vmatprep.subr.mxu0 0.0
        %690 = vmatpush1.msra.mxu0 0.0
        %691 = vmatprep.subr.mxu0 0.0
        %692 = vmatpush1.msra.mxu0 0.0
        %693 = vmatprep.subr.mxu0 0.0
        %694 = vmatpush1.msra.mxu0 0.0
        %695 = vmatprep.subr.mxu0 0.0
        %696 = vmatpush1.msra.mxu0 0.0
        %697 = vmatprep.subr.mxu0 0.0
        %698 = vmatpush1.msra.mxu0 0.0
        %699 = vmatprep.subr.mxu0 0.0
        %700 = vmatpush1.msra.mxu0 0.0
        %701 = vmatprep.subr.mxu0 0.0
        %702 = vmatpush1.msra.mxu0 0.0
        %703 = vmatprep.subr.mxu0 0.0
        %704 = vmatpush1.msra.mxu0 0.0
        %705 = vmatprep.subr.mxu0 0.0
        %706 = vmatpush1.msra.mxu0 0.0
        %707 = vmatprep.subr.mxu0 0.0
        %708 = vmatpush1.msra.mxu0 0.0
        %709 = vmatprep.subr.mxu0 0.0
        %710 = vmatpush1.msra.mxu0 0.0
        %711 = vmatprep.mubr.f32.mxu0 0.0
        %v712 = vand.u32 %v291, 4294901760
        %v713 = vsub.f32 %v291, %v712
        %v714 = vand.u32 %v713, 4294901760
        %715 = vmatmul.mubr.f32.gmra.mrb[0].mxu0 %v714
        %v716 = vpop.f32.mrb[0].mxu0
        %v717 = vadd.f32 %v617, %v716
        %v718 = vpop.f32.mrb[0].mxu0
        %719 = vmatprep.mubr.f32.mxu0 0.0
        %v720 = vand.u32 %v294, 4294901760
        %v721 = vsub.f32 %v294, %v720
        %v722 = vand.u32 %v721, 4294901760
        %723 = vmatmul.mubr.f32.gmra.mrb[0].mxu0 %v722
        %v724 = vpop.f32.mrb[0].mxu0
        %v725 = vadd.f32 %v624, %v724
        %v726 = vpop.f32.mrb[0].mxu0
        %727 = vmatprep.mubr.f32.mxu0 0.0
        %v728 = vand.u32 %v297, 4294901760
        %v729 = vsub.f32 %v297, %v728
        %v730 = vand.u32 %v729, 4294901760
        %731 = vmatmul.mubr.f32.gmra.mrb[0].mxu0 %v730
        %v732 = vpop.f32.mrb[0].mxu0
        %v733 = vadd.f32 %v631, %v732
        %v734 = vpop.f32.mrb[0].mxu0
        %735 = vmatprep.mubr.f32.mxu0 0.0
        %v736 = vand.u32 %v300, 4294901760
        %v737 = vsub.f32 %v300, %v736
        %v738 = vand.u32 %v737, 4294901760
        %739 = vmatmul.mubr.f32.gmra.mrb[0].mxu0 %v738
        %v740 = vpop.f32.mrb[0].mxu0
        %v741 = vadd.f32 %v638, %v740
        %v742 = vpop.f32.mrb[0].mxu0
        %743 = vdwg.mxu0
        %744 = vmatprep.subr.mxu0 0.0
        %v745 = vand.u32 %v279, 4294901760
        %v746 = vsub.f32 %v279, %v745
        %v747 = vand.u32 %v746, 4294901760
        %748 = vmatpush1.msra.mxu0 %v747
        %749 = vmatprep.subr.mxu0 0.0
        %v750 = vand.u32 %v280, 4294901760
        %v751 = vsub.f32 %v280, %v750
        %v752 = vand.u32 %v751, 4294901760
        %753 = vmatpush1.msra.mxu0 %v752
        %754 = vmatprep.subr.mxu0 0.0
        %v755 = vand.u32 %v281, 4294901760
        %v756 = vsub.f32 %v281, %v755
        %v757 = vand.u32 %v756, 4294901760
        %758 = vmatpush1.msra.mxu0 %v757
        %759 = vmatprep.subr.mxu0 0.0
        %v760 = vand.u32 %v282, 4294901760
        %v761 = vsub.f32 %v282, %v760
        %v762 = vand.u32 %v761, 4294901760
        %763 = vmatpush1.msra.mxu0 %v762
        %764 = vmatprep.subr.mxu0 0.0
        %v765 = vand.u32 %v283, 4294901760
        %v766 = vsub.f32 %v283, %v765
        %v767 = vand.u32 %v766, 4294901760
        %768 = vmatpush1.msra.mxu0 %v767
        %769 = vmatprep.subr.mxu0 0.0
        %v770 = vand.u32 %v304, 4294901760
        %v771 = vsub.f32 %v304, %v770
        %v772 = vand.u32 %v771, 4294901760
        %773 = vmatpush1.msra.mxu0 %v772
        %774 = vmatprep.subr.mxu0 0.0
        %775 = vmatpush1.msra.mxu0 0.0
        %776 = vmatprep.subr.mxu0 0.0
        %777 = vmatpush1.msra.mxu0 0.0
        %778 = vmatprep.subr.mxu0 0.0
        %779 = vmatpush1.msra.mxu0 0.0
        %780 = vmatprep.subr.mxu0 0.0
        %781 = vmatpush1.msra.mxu0 0.0
        %782 = vmatprep.subr.mxu0 0.0
        %783 = vmatpush1.msra.mxu0 0.0
        %784 = vmatprep.subr.mxu0 0.0
        %785 = vmatpush1.msra.mxu0 0.0
        %786 = vmatprep.subr.mxu0 0.0
        %787 = vmatpush1.msra.mxu0 0.0
        %788 = vmatprep.subr.mxu0 0.0
        %789 = vmatpush1.msra.mxu0 0.0
        %790 = vmatprep.subr.mxu0 0.0
        %791 = vmatpush1.msra.mxu0 0.0
        %792 = vmatprep.subr.mxu0 0.0
        %793 = vmatpush1.msra.mxu0 0.0
        %794 = vmatprep.subr.mxu0 0.0
        %795 = vmatpush1.msra.mxu0 0.0
        %796 = vmatprep.subr.mxu0 0.0
        %797 = vmatpush1.msra.mxu0 0.0
        %798 = vmatprep.subr.mxu0 0.0
        %799 = vmatpush1.msra.mxu0 0.0
        %800 = vmatprep.subr.mxu0 0.0
        %801 = vmatpush1.msra.mxu0 0.0
        %802 = vmatprep.subr.mxu0 0.0
        %803 = vmatpush1.msra.mxu0 0.0
        %804 = vmatprep.subr.mxu0 0.0
        %805 = vmatpush1.msra.mxu0 0.0
        %806 = vmatprep.subr.mxu0 0.0
        %807 = vmatpush1.msra.mxu0 0.0
        %808 = vmatprep.subr.mxu0 0.0
        %809 = vmatpush1.msra.mxu0 0.0
        %810 = vmatprep.subr.mxu0 0.0
        %811 = vmatpush1.msra.mxu0 0.0
        %812 = vmatprep.subr.mxu0 0.0
        %813 = vmatpush1.msra.mxu0 0.0
        %814 = vmatprep.subr.mxu0 0.0
        %815 = vmatpush1.msra.mxu0 0.0
        %816 = vmatprep.subr.mxu0 0.0
        %817 = vmatpush1.msra.mxu0 0.0
        %818 = vmatprep.subr.mxu0 0.0
        %819 = vmatpush1.msra.mxu0 0.0
        %820 = vmatprep.subr.mxu0 0.0
        %821 = vmatpush1.msra.mxu0 0.0
        %822 = vmatprep.subr.mxu0 0.0
        %823 = vmatpush1.msra.mxu0 0.0
        %824 = vmatprep.subr.mxu0 0.0
        %825 = vmatpush1.msra.mxu0 0.0
        %826 = vmatprep.mubr.f32.mxu0 0.0
        %v827 = vand.u32 %v291, 4294901760
        %828 = vmatmul.mubr.f32.gmra.mrb[0].mxu0 %v827
        %v829 = vpop.f32.mrb[0].mxu0
        %v830 = vadd.f32 %v717, %v829
        %v831 = vpop.f32.mrb[0].mxu0
        %832 = vmatprep.mubr.f32.mxu0 0.0
        %v833 = vand.u32 %v294, 4294901760
        %834 = vmatmul.mubr.f32.gmra.mrb[0].mxu0 %v833
        %v835 = vpop.f32.mrb[0].mxu0
        %v836 = vadd.f32 %v725, %v835
        %v837 = vpop.f32.mrb[0].mxu0
        %838 = vmatprep.mubr.f32.mxu0 0.0
        %v839 = vand.u32 %v297, 4294901760
        %840 = vmatmul.mubr.f32.gmra.mrb[0].mxu0 %v839
        %v841 = vpop.f32.mrb[0].mxu0
        %v842 = vadd.f32 %v733, %v841
        %v843 = vpop.f32.mrb[0].mxu0
        %844 = vmatprep.mubr.f32.mxu0 0.0
        %v845 = vand.u32 %v300, 4294901760
        %846 = vmatmul.mubr.f32.gmra.mrb[0].mxu0 %v845
        %v847 = vpop.f32.mrb[0].mxu0
        %v848 = vadd.f32 %v741, %v847
        %v849 = vpop.f32.mrb[0].mxu0
        %850 = vdwg.mxu0
        %851 = vmatprep.subr.mxu0 0.0
        %v852 = vand.u32 %v279, 4294901760
        %853 = vmatpush1.msra.mxu0 %v852
        %854 = vmatprep.subr.mxu0 0.0
        %v855 = vand.u32 %v280, 4294901760
        %856 = vmatpush1.msra.mxu0 %v855
        %857 = vmatprep.subr.mxu0 0.0
        %v858 = vand.u32 %v281, 4294901760
        %859 = vmatpush1.msra.mxu0 %v858
        %860 = vmatprep.subr.mxu0 0.0
        %v861 = vand.u32 %v282, 4294901760
        %862 = vmatpush1.msra.mxu0 %v861
        %863 = vmatprep.subr.mxu0 0.0
        %v864 = vand.u32 %v283, 4294901760
        %865 = vmatpush1.msra.mxu0 %v864
        %866 = vmatprep.subr.mxu0 0.0
        %v867 = vand.u32 %v304, 4294901760
        %868 = vmatpush1.msra.mxu0 %v867
        %869 = vmatprep.subr.mxu0 0.0
        %870 = vmatpush1.msra.mxu0 0.0
        %871 = vmatprep.subr.mxu0 0.0
        %872 = vmatpush1.msra.mxu0 0.0
        %873 = vmatprep.subr.mxu0 0.0
        %874 = vmatpush1.msra.mxu0 0.0
        %875 = vmatprep.subr.mxu0 0.0
        %876 = vmatpush1.msra.mxu0 0.0
        %877 = vmatprep.subr.mxu0 0.0
        %878 = vmatpush1.msra.mxu0 0.0
        %879 = vmatprep.subr.mxu0 0.0
        %880 = vmatpush1.msra.mxu0 0.0
        %881 = vmatprep.subr.mxu0 0.0
        %882 = vmatpush1.msra.mxu0 0.0
        %883 = vmatprep.subr.mxu0 0.0
        %884 = vmatpush1.msra.mxu0 0.0
        %885 = vmatprep.subr.mxu0 0.0
        %886 = vmatpush1.msra.mxu0 0.0
        %887 = vmatprep.subr.mxu0 0.0
        %888 = vmatpush1.msra.mxu0 0.0
        %889 = vmatprep.subr.mxu0 0.0
        %890 = vmatpush1.msra.mxu0 0.0
        %891 = vmatprep.subr.mxu0 0.0
        %892 = vmatpush1.msra.mxu0 0.0
        %893 = vmatprep.subr.mxu0 0.0
        %894 = vmatpush1.msra.mxu0 0.0
        %895 = vmatprep.subr.mxu0 0.0
        %896 = vmatpush1.msra.mxu0 0.0
        %897 = vmatprep.subr.mxu0 0.0
        %898 = vmatpush1.msra.mxu0 0.0
        %899 = vmatprep.subr.mxu0 0.0
        %900 = vmatpush1.msra.mxu0 0.0
        %901 = vmatprep.subr.mxu0 0.0
        %902 = vmatpush1.msra.mxu0 0.0
        %903 = vmatprep.subr.mxu0 0.0
        %904 = vmatpush1.msra.mxu0 0.0
        %905 = vmatprep.subr.mxu0 0.0
        %906 = vmatpush1.msra.mxu0 0.0
        %907 = vmatprep.subr.mxu0 0.0
        %908 = vmatpush1.msra.mxu0 0.0
        %909 = vmatprep.subr.mxu0 0.0
        %910 = vmatpush1.msra.mxu0 0.0
        %911 = vmatprep.subr.mxu0 0.0
        %912 = vmatpush1.msra.mxu0 0.0
        %913 = vmatprep.subr.mxu0 0.0
        %914 = vmatpush1.msra.mxu0 0.0
        %915 = vmatprep.subr.mxu0 0.0
        %916 = vmatpush1.msra.mxu0 0.0
        %917 = vmatprep.subr.mxu0 0.0
        %918 = vmatpush1.msra.mxu0 0.0
        %919 = vmatprep.subr.mxu0 0.0
        %920 = vmatpush1.msra.mxu0 0.0
        %921 = vmatprep.mubr.f32.mxu0 0.0
        %v922 = vand.u32 %v291, 4294901760
        %923 = vmatmul.mubr.f32.gmra.mrb[0].mxu0 %v922
        %v924 = vpop.f32.mrb[0].mxu0
        %v925 = vadd.f32 %v830, %v924
        %v926 = vpop.f32.mrb[0].mxu0
        %927 = vmatprep.mubr.f32.mxu0 0.0
        %v928 = vand.u32 %v294, 4294901760
        %929 = vmatmul.mubr.f32.gmra.mrb[0].mxu0 %v928
        %v930 = vpop.f32.mrb[0].mxu0
        %v931 = vadd.f32 %v836, %v930
        %v932 = vpop.f32.mrb[0].mxu0
        %933 = vmatprep.mubr.f32.mxu0 0.0
        %v934 = vand.u32 %v297, 4294901760
        %935 = vmatmul.mubr.f32.gmra.mrb[0].mxu0 %v934
        %v936 = vpop.f32.mrb[0].mxu0
        %v937 = vadd.f32 %v842, %v936
        %v938 = vpop.f32.mrb[0].mxu0
        %939 = vmatprep.mubr.f32.mxu0 0.0
        %v940 = vand.u32 %v300, 4294901760
        %941 = vmatmul.mubr.f32.gmra.mrb[0].mxu0 %v940
        %v942 = vpop.f32.mrb[0].mxu0
        %v943 = vadd.f32 %v848, %v942
        %v944 = vpop.f32.mrb[0].mxu0
        %945 = vdwg.mxu0
        %v946 = vlaneseq
        %v947 = vshrl.u32 %v946, 7
        %v948 = vsub.s32 1, %v947
        %v949 = vrot.slane %v265, %v948
        %v950 = vlaneseq
        %v951 = vshrl.u32 %v950, 7
        %v952 = vsub.s32 2, %v951
        %v953 = vrot.slane %v265, %v952
        %v954 = vmul.f32 %v949, 0.0
        %v955 = vadd.f32 %v925, %v954
        %957 = vrot.lane.b32.xlu0 %v954, 96
        %v958 = vpop.permute.xlu0 %957
        %vm960 = vcmask 64512
        %v962 = vsel %vm960, %v274, 0
        %964 = vmatprep.subr.mxu0 0.0
        %v965 = vand.u32 %v958, 4294901760
        %966 = vmatpush1.msra.mxu0 %v965
        %967 = vmatprep.subr.mxu0 0.0
        %968 = vmatpush1.msra.mxu0 0.0
        %969 = vmatprep.subr.mxu0 0.0
        %970 = vmatpush1.msra.mxu0 0.0
        %971 = vmatprep.subr.mxu0 0.0
        %972 = vmatpush1.msra.mxu0 0.0
        %973 = vmatprep.subr.mxu0 0.0
        %974 = vmatpush1.msra.mxu0 0.0
        %975 = vmatprep.subr.mxu0 0.0
        %976 = vmatpush1.msra.mxu0 0.0
        %977 = vmatprep.subr.mxu0 0.0
        %978 = vmatpush1.msra.mxu0 0.0
        %979 = vmatprep.subr.mxu0 0.0
        %980 = vmatpush1.msra.mxu0 0.0
        %981 = vmatprep.subr.mxu0 0.0
        %982 = vmatpush1.msra.mxu0 0.0
        %983 = vmatprep.subr.mxu0 0.0
        %984 = vmatpush1.msra.mxu0 0.0
        %985 = vmatprep.subr.mxu0 0.0
        %986 = vmatpush1.msra.mxu0 0.0
        %987 = vmatprep.subr.mxu0 0.0
        %988 = vmatpush1.msra.mxu0 0.0
        %989 = vmatprep.subr.mxu0 0.0
        %990 = vmatpush1.msra.mxu0 0.0
        %991 = vmatprep.subr.mxu0 0.0
        %992 = vmatpush1.msra.mxu0 0.0
        %993 = vmatprep.subr.mxu0 0.0
        %994 = vmatpush1.msra.mxu0 0.0
        %995 = vmatprep.subr.mxu0 0.0
        %996 = vmatpush1.msra.mxu0 0.0
        %997 = vmatprep.subr.mxu0 0.0
        %998 = vmatpush1.msra.mxu0 0.0
        %999 = vmatprep.subr.mxu0 0.0
        %1000 = vmatpush1.msra.mxu0 0.0
        %1001 = vmatprep.subr.mxu0 0.0
        %1002 = vmatpush1.msra.mxu0 0.0
        %1003 = vmatprep.subr.mxu0 0.0
        %1004 = vmatpush1.msra.mxu0 0.0
        %1005 = vmatprep.subr.mxu0 0.0
        %1006 = vmatpush1.msra.mxu0 0.0
        %1007 = vmatprep.subr.mxu0 0.0
        %1008 = vmatpush1.msra.mxu0 0.0
        %1009 = vmatprep.subr.mxu0 0.0
        %1010 = vmatpush1.msra.mxu0 0.0
        %1011 = vmatprep.subr.mxu0 0.0
        %1012 = vmatpush1.msra.mxu0 0.0
        %1013 = vmatprep.subr.mxu0 0.0
        %1014 = vmatpush1.msra.mxu0 0.0
        %1015 = vmatprep.subr.mxu0 0.0
        %1016 = vmatpush1.msra.mxu0 0.0
        %1017 = vmatprep.subr.mxu0 0.0
        %1018 = vmatpush1.msra.mxu0 0.0
        %1019 = vmatprep.subr.mxu0 0.0
        %1020 = vmatpush1.msra.mxu0 0.0
        %1021 = vmatprep.subr.mxu0 0.0
        %1022 = vmatpush1.msra.mxu0 0.0
        %1023 = vmatprep.subr.mxu0 0.0
        %1024 = vmatpush1.msra.mxu0 0.0
        %1025 = vmatprep.subr.mxu0 0.0
        %1026 = vmatpush1.msra.mxu0 0.0
        %1027 = vmatprep.subr.mxu0 0.0
        %1028 = vmatpush1.msra.mxu0 0.0
        %1029 = vmatprep.mubr.f32.mxu0 0.0
        %v1030 = vand.u32 %v962, 4294901760
        %v1031 = vsub.f32 %v962, %v1030
        %v1032 = vand.u32 %v1031, 4294901760
        %v1033 = vsub.f32 %v1031, %v1032
        %v1034 = vand.u32 %v1033, 4294901760
        %1035 = vmatmul.mubr.f32.gmra.mrb[0].mxu0 %v1034
        %v1036 = vpop.f32.mrb[0].mxu0
        %v1037 = vadd.f32 0.0, %v1036
        %v1038 = vpop.f32.mrb[0].mxu0
        %1039 = vdwg.mxu0
        %1040 = vmatprep.subr.mxu0 0.0
        %v1041 = vand.u32 %v958, 4294901760
        %v1042 = vsub.f32 %v958, %v1041
        %v1043 = vand.u32 %v1042, 4294901760
        %v1044 = vsub.f32 %v1042, %v1043
        %v1045 = vand.u32 %v1044, 4294901760
        %1046 = vmatpush1.msra.mxu0 %v1045
        %1047 = vmatprep.subr.mxu0 0.0
        %1048 = vmatpush1.msra.mxu0 0.0
        %1049 = vmatprep.subr.mxu0 0.0
        %1050 = vmatpush1.msra.mxu0 0.0
        %1051 = vmatprep.subr.mxu0 0.0
        %1052 = vmatpush1.msra.mxu0 0.0
        %1053 = vmatprep.subr.mxu0 0.0
        %1054 = vmatpush1.msra.mxu0 0.0
        %1055 = vmatprep.subr.mxu0 0.0
        %1056 = vmatpush1.msra.mxu0 0.0
        %1057 = vmatprep.subr.mxu0 0.0
        %1058 = vmatpush1.msra.mxu0 0.0
        %1059 = vmatprep.subr.mxu0 0.0
        %1060 = vmatpush1.msra.mxu0 0.0
        %1061 = vmatprep.subr.mxu0 0.0
        %1062 = vmatpush1.msra.mxu0 0.0
        %1063 = vmatprep.subr.mxu0 0.0
        %1064 = vmatpush1.msra.mxu0 0.0
        %1065 = vmatprep.subr.mxu0 0.0
        %1066 = vmatpush1.msra.mxu0 0.0
        %1067 = vmatprep.subr.mxu0 0.0
        %1068 = vmatpush1.msra.mxu0 0.0
        %1069 = vmatprep.subr.mxu0 0.0
        %1070 = vmatpush1.msra.mxu0 0.0
        %1071 = vmatprep.subr.mxu0 0.0
        %1072 = vmatpush1.msra.mxu0 0.0
        %1073 = vmatprep.subr.mxu0 0.0
        %1074 = vmatpush1.msra.mxu0 0.0
        %1075 = vmatprep.subr.mxu0 0.0
        %1076 = vmatpush1.msra.mxu0 0.0
        %1077 = vmatprep.subr.mxu0 0.0
        %1078 = vmatpush1.msra.mxu0 0.0
        %1079 = vmatprep.subr.mxu0 0.0
        %1080 = vmatpush1.msra.mxu0 0.0
        %1081 = vmatprep.subr.mxu0 0.0
        %1082 = vmatpush1.msra.mxu0 0.0
        %1083 = vmatprep.subr.mxu0 0.0
        %1084 = vmatpush1.msra.mxu0 0.0
        %1085 = vmatprep.subr.mxu0 0.0
        %1086 = vmatpush1.msra.mxu0 0.0
        %1087 = vmatprep.subr.mxu0 0.0
        %1088 = vmatpush1.msra.mxu0 0.0
        %1089 = vmatprep.subr.mxu0 0.0
        %1090 = vmatpush1.msra.mxu0 0.0
        %1091 = vmatprep.subr.mxu0 0.0
        %1092 = vmatpush1.msra.mxu0 0.0
        %1093 = vmatprep.subr.mxu0 0.0
        %1094 = vmatpush1.msra.mxu0 0.0
        %1095 = vmatprep.subr.mxu0 0.0
        %1096 = vmatpush1.msra.mxu0 0.0
        %1097 = vmatprep.subr.mxu0 0.0
        %1098 = vmatpush1.msra.mxu0 0.0
        %1099 = vmatprep.subr.mxu0 0.0
        %1100 = vmatpush1.msra.mxu0 0.0
        %1101 = vmatprep.subr.mxu0 0.0
        %1102 = vmatpush1.msra.mxu0 0.0
        %1103 = vmatprep.subr.mxu0 0.0
        %1104 = vmatpush1.msra.mxu0 0.0
        %1105 = vmatprep.subr.mxu0 0.0
        %1106 = vmatpush1.msra.mxu0 0.0
        %1107 = vmatprep.subr.mxu0 0.0
        %1108 = vmatpush1.msra.mxu0 0.0
        %1109 = vmatprep.mubr.f32.mxu0 0.0
        %v1110 = vand.u32 %v962, 4294901760
        %1111 = vmatmul.mubr.f32.gmra.mrb[0].mxu0 %v1110
        %v1112 = vpop.f32.mrb[0].mxu0
        %v1113 = vadd.f32 %v1037, %v1112
        %v1114 = vpop.f32.mrb[0].mxu0
        %1115 = vdwg.mxu0
        %1116 = vmatprep.subr.mxu0 0.0
        %v1117 = vand.u32 %v958, 4294901760
        %v1118 = vsub.f32 %v958, %v1117
        %1119 = vmatpush1.msra.mxu0 %v1118
        %1120 = vmatprep.subr.mxu0 0.0
        %1121 = vmatpush1.msra.mxu0 0.0
        %1122 = vmatprep.subr.mxu0 0.0
        %1123 = vmatpush1.msra.mxu0 0.0
        %1124 = vmatprep.subr.mxu0 0.0
        %1125 = vmatpush1.msra.mxu0 0.0
        %1126 = vmatprep.subr.mxu0 0.0
        %1127 = vmatpush1.msra.mxu0 0.0
        %1128 = vmatprep.subr.mxu0 0.0
        %1129 = vmatpush1.msra.mxu0 0.0
        %1130 = vmatprep.subr.mxu0 0.0
        %1131 = vmatpush1.msra.mxu0 0.0
        %1132 = vmatprep.subr.mxu0 0.0
        %1133 = vmatpush1.msra.mxu0 0.0
        %1134 = vmatprep.subr.mxu0 0.0
        %1135 = vmatpush1.msra.mxu0 0.0
        %1136 = vmatprep.subr.mxu0 0.0
        %1137 = vmatpush1.msra.mxu0 0.0
        %1138 = vmatprep.subr.mxu0 0.0
        %1139 = vmatpush1.msra.mxu0 0.0
        %1140 = vmatprep.subr.mxu0 0.0
        %1141 = vmatpush1.msra.mxu0 0.0
        %1142 = vmatprep.subr.mxu0 0.0
        %1143 = vmatpush1.msra.mxu0 0.0
        %1144 = vmatprep.subr.mxu0 0.0
        %1145 = vmatpush1.msra.mxu0 0.0
        %1146 = vmatprep.subr.mxu0 0.0
        %1147 = vmatpush1.msra.mxu0 0.0
        %1148 = vmatprep.subr.mxu0 0.0
        %1149 = vmatpush1.msra.mxu0 0.0
        %1150 = vmatprep.subr.mxu0 0.0
        %1151 = vmatpush1.msra.mxu0 0.0
        %1152 = vmatprep.subr.mxu0 0.0
        %1153 = vmatpush1.msra.mxu0 0.0
        %1154 = vmatprep.subr.mxu0 0.0
        %1155 = vmatpush1.msra.mxu0 0.0
        %1156 = vmatprep.subr.mxu0 0.0
        %1157 = vmatpush1.msra.mxu0 0.0
        %1158 = vmatprep.subr.mxu0 0.0
        %1159 = vmatpush1.msra.mxu0 0.0
        %1160 = vmatprep.subr.mxu0 0.0
        %1161 = vmatpush1.msra.mxu0 0.0
        %1162 = vmatprep.subr.mxu0 0.0
        %1163 = vmatpush1.msra.mxu0 0.0
        %1164 = vmatprep.subr.mxu0 0.0
        %1165 = vmatpush1.msra.mxu0 0.0
        %1166 = vmatprep.subr.mxu0 0.0
        %1167 = vmatpush1.msra.mxu0 0.0
        %1168 = vmatprep.subr.mxu0 0.0
        %1169 = vmatpush1.msra.mxu0 0.0
        %1170 = vmatprep.subr.mxu0 0.0
        %1171 = vmatpush1.msra.mxu0 0.0
        %1172 = vmatprep.subr.mxu0 0.0
        %1173 = vmatpush1.msra.mxu0 0.0
        %1174 = vmatprep.subr.mxu0 0.0
        %1175 = vmatpush1.msra.mxu0 0.0
        %1176 = vmatprep.subr.mxu0 0.0
        %1177 = vmatpush1.msra.mxu0 0.0
        %1178 = vmatprep.subr.mxu0 0.0
        %1179 = vmatpush1.msra.mxu0 0.0
        %1180 = vmatprep.subr.mxu0 0.0
        %1181 = vmatpush1.msra.mxu0 0.0
        %1182 = vmatprep.mubr.f32.mxu0 0.0
        %v1183 = vand.u32 %v962, 4294901760
        %v1184 = vsub.f32 %v962, %v1183
        %1185 = vmatmul.mubr.f32.gmra.mrb[0].mxu0 %v1184
        %v1186 = vpop.f32.mrb[0].mxu0
        %v1187 = vadd.f32 %v1113, %v1186
        %v1188 = vpop.f32.mrb[0].mxu0
        %1189 = vdwg.mxu0
        %1190 = vmatprep.subr.mxu0 0.0
        %v1191 = vand.u32 %v958, 4294901760
        %1192 = vmatpush1.msra.mxu0 %v1191
        %1193 = vmatprep.subr.mxu0 0.0
        %1194 = vmatpush1.msra.mxu0 0.0
        %1195 = vmatprep.subr.mxu0 0.0
        %1196 = vmatpush1.msra.mxu0 0.0
        %1197 = vmatprep.subr.mxu0 0.0
        %1198 = vmatpush1.msra.mxu0 0.0
        %1199 = vmatprep.subr.mxu0 0.0
        %1200 = vmatpush1.msra.mxu0 0.0
        %1201 = vmatprep.subr.mxu0 0.0
        %1202 = vmatpush1.msra.mxu0 0.0
        %1203 = vmatprep.subr.mxu0 0.0
        %1204 = vmatpush1.msra.mxu0 0.0
        %1205 = vmatprep.subr.mxu0 0.0
        %1206 = vmatpush1.msra.mxu0 0.0
        %1207 = vmatprep.subr.mxu0 0.0
        %1208 = vmatpush1.msra.mxu0 0.0
        %1209 = vmatprep.subr.mxu0 0.0
        %1210 = vmatpush1.msra.mxu0 0.0
        %1211 = vmatprep.subr.mxu0 0.0
        %1212 = vmatpush1.msra.mxu0 0.0
        %1213 = vmatprep.subr.mxu0 0.0
        %1214 = vmatpush1.msra.mxu0 0.0
        %1215 = vmatprep.subr.mxu0 0.0
        %1216 = vmatpush1.msra.mxu0 0.0
        %1217 = vmatprep.subr.mxu0 0.0
        %1218 = vmatpush1.msra.mxu0 0.0
        %1219 = vmatprep.subr.mxu0 0.0
        %1220 = vmatpush1.msra.mxu0 0.0
        %1221 = vmatprep.subr.mxu0 0.0
        %1222 = vmatpush1.msra.mxu0 0.0
        %1223 = vmatprep.subr.mxu0 0.0
        %1224 = vmatpush1.msra.mxu0 0.0
        %1225 = vmatprep.subr.mxu0 0.0
        %1226 = vmatpush1.msra.mxu0 0.0
        %1227 = vmatprep.subr.mxu0 0.0
        %1228 = vmatpush1.msra.mxu0 0.0
        %1229 = vmatprep.subr.mxu0 0.0
        %1230 = vmatpush1.msra.mxu0 0.0
        %1231 = vmatprep.subr.mxu0 0.0
        %1232 = vmatpush1.msra.mxu0 0.0
        %1233 = vmatprep.subr.mxu0 0.0
        %1234 = vmatpush1.msra.mxu0 0.0
        %1235 = vmatprep.subr.mxu0 0.0
        %1236 = vmatpush1.msra.mxu0 0.0
        %1237 = vmatprep.subr.mxu0 0.0
        %1238 = vmatpush1.msra.mxu0 0.0
        %1239 = vmatprep.subr.mxu0 0.0
        %1240 = vmatpush1.msra.mxu0 0.0
        %1241 = vmatprep.subr.mxu0 0.0
        %1242 = vmatpush1.msra.mxu0 0.0
        %1243 = vmatprep.subr.mxu0 0.0
        %1244 = vmatpush1.msra.mxu0 0.0
        %1245 = vmatprep.subr.mxu0 0.0
        %1246 = vmatpush1.msra.mxu0 0.0
        %1247 = vmatprep.subr.mxu0 0.0
        %1248 = vmatpush1.msra.mxu0 0.0
        %1249 = vmatprep.subr.mxu0 0.0
        %1250 = vmatpush1.msra.mxu0 0.0
        %1251 = vmatprep.subr.mxu0 0.0
        %1252 = vmatpush1.msra.mxu0 0.0
        %1253 = vmatprep.subr.mxu0 0.0
        %1254 = vmatpush1.msra.mxu0 0.0
        %1255 = vmatprep.mubr.f32.mxu0 0.0
        %v1256 = vand.u32 %v962, 4294901760
        %v1257 = vsub.f32 %v962, %v1256
        %v1258 = vand.u32 %v1257, 4294901760
        %1259 = vmatmul.mubr.f32.gmra.mrb[0].mxu0 %v1258
        %v1260 = vpop.f32.mrb[0].mxu0
        %v1261 = vadd.f32 %v1187, %v1260
        %v1262 = vpop.f32.mrb[0].mxu0
        %1263 = vdwg.mxu0
        %1264 = vmatprep.subr.mxu0 0.0
        %v1265 = vand.u32 %v958, 4294901760
        %v1266 = vsub.f32 %v958, %v1265
        %v1267 = vand.u32 %v1266, 4294901760
        %1268 = vmatpush1.msra.mxu0 %v1267
        %1269 = vmatprep.subr.mxu0 0.0
        %1270 = vmatpush1.msra.mxu0 0.0
        %1271 = vmatprep.subr.mxu0 0.0
        %1272 = vmatpush1.msra.mxu0 0.0
        %1273 = vmatprep.subr.mxu0 0.0
        %1274 = vmatpush1.msra.mxu0 0.0
        %1275 = vmatprep.subr.mxu0 0.0
        %1276 = vmatpush1.msra.mxu0 0.0
        %1277 = vmatprep.subr.mxu0 0.0
        %1278 = vmatpush1.msra.mxu0 0.0
        %1279 = vmatprep.subr.mxu0 0.0
        %1280 = vmatpush1.msra.mxu0 0.0
        %1281 = vmatprep.subr.mxu0 0.0
        %1282 = vmatpush1.msra.mxu0 0.0
        %1283 = vmatprep.subr.mxu0 0.0
        %1284 = vmatpush1.msra.mxu0 0.0
        %1285 = vmatprep.subr.mxu0 0.0
        %1286 = vmatpush1.msra.mxu0 0.0
        %1287 = vmatprep.subr.mxu0 0.0
        %1288 = vmatpush1.msra.mxu0 0.0
        %1289 = vmatprep.subr.mxu0 0.0
        %1290 = vmatpush1.msra.mxu0 0.0
        %1291 = vmatprep.subr.mxu0 0.0
        %1292 = vmatpush1.msra.mxu0 0.0
        %1293 = vmatprep.subr.mxu0 0.0
        %1294 = vmatpush1.msra.mxu0 0.0
        %1295 = vmatprep.subr.mxu0 0.0
        %1296 = vmatpush1.msra.mxu0 0.0
        %1297 = vmatprep.subr.mxu0 0.0
        %1298 = vmatpush1.msra.mxu0 0.0
        %1299 = vmatprep.subr.mxu0 0.0
        %1300 = vmatpush1.msra.mxu0 0.0
        %1301 = vmatprep.subr.mxu0 0.0
        %1302 = vmatpush1.msra.mxu0 0.0
        %1303 = vmatprep.subr.mxu0 0.0
        %1304 = vmatpush1.msra.mxu0 0.0
        %1305 = vmatprep.subr.mxu0 0.0
        %1306 = vmatpush1.msra.mxu0 0.0
        %1307 = vmatprep.subr.mxu0 0.0
        %1308 = vmatpush1.msra.mxu0 0.0
        %1309 = vmatprep.subr.mxu0 0.0
        %1310 = vmatpush1.msra.mxu0 0.0
        %1311 = vmatprep.subr.mxu0 0.0
        %1312 = vmatpush1.msra.mxu0 0.0
        %1313 = vmatprep.subr.mxu0 0.0
        %1314 = vmatpush1.msra.mxu0 0.0
        %1315 = vmatprep.subr.mxu0 0.0
        %1316 = vmatpush1.msra.mxu0 0.0
        %1317 = vmatprep.subr.mxu0 0.0
        %1318 = vmatpush1.msra.mxu0 0.0
        %1319 = vmatprep.subr.mxu0 0.0
        %1320 = vmatpush1.msra.mxu0 0.0
        %1321 = vmatprep.subr.mxu0 0.0
        %1322 = vmatpush1.msra.mxu0 0.0
        %1323 = vmatprep.subr.mxu0 0.0
        %1324 = vmatpush1.msra.mxu0 0.0
        %1325 = vmatprep.subr.mxu0 0.0
        %1326 = vmatpush1.msra.mxu0 0.0
        %1327 = vmatprep.subr.mxu0 0.0
        %1328 = vmatpush1.msra.mxu0 0.0
        %1329 = vmatprep.subr.mxu0 0.0
        %1330 = vmatpush1.msra.mxu0 0.0
        %1331 = vmatprep.mubr.f32.mxu0 0.0
        %v1332 = vand.u32 %v962, 4294901760
        %1333 = vmatmul.mubr.f32.gmra.mrb[0].mxu0 %v1332
        %v1334 = vpop.f32.mrb[0].mxu0
        %v1335 = vadd.f32 %v1261, %v1334
        %v1336 = vpop.f32.mrb[0].mxu0
        %1337 = vdwg.mxu0
        %1338 = vmatprep.subr.mxu0 0.0
        %v1339 = vand.u32 %v958, 4294901760
        %1340 = vmatpush1.msra.mxu0 %v1339
        %1341 = vmatprep.subr.mxu0 0.0
        %1342 = vmatpush1.msra.mxu0 0.0
        %1343 = vmatprep.subr.mxu0 0.0
        %1344 = vmatpush1.msra.mxu0 0.0
        %1345 = vmatprep.subr.mxu0 0.0
        %1346 = vmatpush1.msra.mxu0 0.0
        %1347 = vmatprep.subr.mxu0 0.0
        %1348 = vmatpush1.msra.mxu0 0.0
        %1349 = vmatprep.subr.mxu0 0.0
        %1350 = vmatpush1.msra.mxu0 0.0
        %1351 = vmatprep.subr.mxu0 0.0
        %1352 = vmatpush1.msra.mxu0 0.0
        %1353 = vmatprep.subr.mxu0 0.0
        %1354 = vmatpush1.msra.mxu0 0.0
        %1355 = vmatprep.subr.mxu0 0.0
        %1356 = vmatpush1.msra.mxu0 0.0
        %1357 = vmatprep.subr.mxu0 0.0
        %1358 = vmatpush1.msra.mxu0 0.0
        %1359 = vmatprep.subr.mxu0 0.0
        %1360 = vmatpush1.msra.mxu0 0.0
        %1361 = vmatprep.subr.mxu0 0.0
        %1362 = vmatpush1.msra.mxu0 0.0
        %1363 = vmatprep.subr.mxu0 0.0
        %1364 = vmatpush1.msra.mxu0 0.0
        %1365 = vmatprep.subr.mxu0 0.0
        %1366 = vmatpush1.msra.mxu0 0.0
        %1367 = vmatprep.subr.mxu0 0.0
        %1368 = vmatpush1.msra.mxu0 0.0
        %1369 = vmatprep.subr.mxu0 0.0
        %1370 = vmatpush1.msra.mxu0 0.0
        %1371 = vmatprep.subr.mxu0 0.0
        %1372 = vmatpush1.msra.mxu0 0.0
        %1373 = vmatprep.subr.mxu0 0.0
        %1374 = vmatpush1.msra.mxu0 0.0
        %1375 = vmatprep.subr.mxu0 0.0
        %1376 = vmatpush1.msra.mxu0 0.0
        %1377 = vmatprep.subr.mxu0 0.0
        %1378 = vmatpush1.msra.mxu0 0.0
        %1379 = vmatprep.subr.mxu0 0.0
        %1380 = vmatpush1.msra.mxu0 0.0
        %1381 = vmatprep.subr.mxu0 0.0
        %1382 = vmatpush1.msra.mxu0 0.0
        %1383 = vmatprep.subr.mxu0 0.0
        %1384 = vmatpush1.msra.mxu0 0.0
        %1385 = vmatprep.subr.mxu0 0.0
        %1386 = vmatpush1.msra.mxu0 0.0
        %1387 = vmatprep.subr.mxu0 0.0
        %1388 = vmatpush1.msra.mxu0 0.0
        %1389 = vmatprep.subr.mxu0 0.0
        %1390 = vmatpush1.msra.mxu0 0.0
        %1391 = vmatprep.subr.mxu0 0.0
        %1392 = vmatpush1.msra.mxu0 0.0
        %1393 = vmatprep.subr.mxu0 0.0
        %1394 = vmatpush1.msra.mxu0 0.0
        %1395 = vmatprep.subr.mxu0 0.0
        %1396 = vmatpush1.msra.mxu0 0.0
        %1397 = vmatprep.subr.mxu0 0.0
        %1398 = vmatpush1.msra.mxu0 0.0
        %1399 = vmatprep.subr.mxu0 0.0
        %1400 = vmatpush1.msra.mxu0 0.0
        %1401 = vmatprep.subr.mxu0 0.0
        %1402 = vmatpush1.msra.mxu0 0.0
        %1403 = vmatprep.mubr.f32.mxu0 0.0
        %v1404 = vand.u32 %v962, 4294901760
        %1405 = vmatmul.mubr.f32.gmra.mrb[0].mxu0 %v1404
        %v1406 = vpop.f32.mrb[0].mxu0
        %v1407 = vadd.f32 %v1335, %v1406
        %v1408 = vpop.f32.mrb[0].mxu0
        %1409 = vdwg.mxu0
        %v1410 = vadd.f32 %v955, %v1407
        %v1411 = vxor.u32 %v1410, 2147483648
        %v1412 = vmul.f32 %v1411, 1.442695
        %v1413 = vpow.pop %v1412
        %v1414 = vadd.f32 %v1413, 1.0
        %v1415 = vrcp.pop %v1414
        %v1416 = vmul.f32 1.0, %v1415
        %v1417 = vmul.f32 %v953, 0.0
        %1419 = vrot.lane.b32.xlu0 %v1417, 32
        %v1420 = vpop.permute.xlu0 %1419
        %v1422 = vadd.f32 %v925, %v1420
        %vm1423 = vcmask 261120
        %v1425 = vsel %vm1423, %v1416, 0
        %1427 = vmatprep.subr.mxu0 0.0
        %v1428 = vand.u32 %v266, 4294901760
        %1429 = vmatpush1.msra.mxu0 %v1428
        %1430 = vmatprep.subr.mxu0 0.0
        %v1431 = vand.u32 %v267, 4294901760
        %1432 = vmatpush1.msra.mxu0 %v1431
        %1433 = vmatprep.subr.mxu0 0.0
        %v1434 = vand.u32 %v268, 4294901760
        %1435 = vmatpush1.msra.mxu0 %v1434
        %1436 = vmatprep.subr.mxu0 0.0
        %v1437 = vand.u32 %v269, 4294901760
        %1438 = vmatpush1.msra.mxu0 %v1437
        %1439 = vmatprep.subr.mxu0 0.0
        %1440 = vmatpush1.msra.mxu0 0.0
        %1441 = vmatprep.subr.mxu0 0.0
        %1442 = vmatpush1.msra.mxu0 0.0
        %1443 = vmatprep.subr.mxu0 0.0
        %1444 = vmatpush1.msra.mxu0 0.0
        %1445 = vmatprep.subr.mxu0 0.0
        %1446 = vmatpush1.msra.mxu0 0.0
        %1447 = vmatprep.subr.mxu0 0.0
        %1448 = vmatpush1.msra.mxu0 0.0
        %1449 = vmatprep.subr.mxu0 0.0
        %1450 = vmatpush1.msra.mxu0 0.0
        %1451 = vmatprep.subr.mxu0 0.0
        %1452 = vmatpush1.msra.mxu0 0.0
        %1453 = vmatprep.subr.mxu0 0.0
        %1454 = vmatpush1.msra.mxu0 0.0
        %1455 = vmatprep.subr.mxu0 0.0
        %1456 = vmatpush1.msra.mxu0 0.0
        %1457 = vmatprep.subr.mxu0 0.0
        %1458 = vmatpush1.msra.mxu0 0.0
        %1459 = vmatprep.subr.mxu0 0.0
        %1460 = vmatpush1.msra.mxu0 0.0
        %1461 = vmatprep.subr.mxu0 0.0
        %1462 = vmatpush1.msra.mxu0 0.0
        %1463 = vmatprep.subr.mxu0 0.0
        %1464 = vmatpush1.msra.mxu0 0.0
        %1465 = vmatprep.subr.mxu0 0.0
        %1466 = vmatpush1.msra.mxu0 0.0
        %1467 = vmatprep.subr.mxu0 0.0
        %1468 = vmatpush1.msra.mxu0 0.0
        %1469 = vmatprep.subr.mxu0 0.0
        %1470 = vmatpush1.msra.mxu0 0.0
        %1471 = vmatprep.subr.mxu0 0.0
        %1472 = vmatpush1.msra.mxu0 0.0
        %1473 = vmatprep.subr.mxu0 0.0
        %1474 = vmatpush1.msra.mxu0 0.0
        %1475 = vmatprep.subr.mxu0 0.0
        %1476 = vmatpush1.msra.mxu0 0.0
        %1477 = vmatprep.subr.mxu0 0.0
        %1478 = vmatpush1.msra.mxu0 0.0
        %1479 = vmatprep.subr.mxu0 0.0
        %1480 = vmatpush1.msra.mxu0 0.0
        %1481 = vmatprep.subr.mxu0 0.0
        %1482 = vmatpush1.msra.mxu0 0.0
        %1483 = vmatprep.subr.mxu0 0.0
        %1484 = vmatpush1.msra.mxu0 0.0
        %1485 = vmatprep.subr.mxu0 0.0
        %1486 = vmatpush1.msra.mxu0 0.0
        %1487 = vmatprep.subr.mxu0 0.0
        %1488 = vmatpush1.msra.mxu0 0.0
        %1489 = vmatprep.subr.mxu0 0.0
        %1490 = vmatpush1.msra.mxu0 0.0
        %1491 = vmatprep.subr.mxu0 0.0
        %1492 = vmatpush1.msra.mxu0 0.0
        %1493 = vmatprep.subr.mxu0 0.0
        %1494 = vmatpush1.msra.mxu0 0.0
        %1495 = vmatprep.mubr.f32.mxu0 0.0
        %v1496 = vand.u32 %v1425, 4294901760
        %v1497 = vsub.f32 %v1425, %v1496
        %v1498 = vand.u32 %v1497, 4294901760
        %v1499 = vsub.f32 %v1497, %v1498
        %v1500 = vand.u32 %v1499, 4294901760
        %1501 = vmatmul.mubr.f32.gmra.mrb[0].mxu0 %v1500
        %v1502 = vpop.f32.mrb[0].mxu0
        %v1503 = vadd.f32 0.0, %v1502
        %v1504 = vpop.f32.mrb[0].mxu0
        %1505 = vdwg.mxu0
        %1506 = vmatprep.subr.mxu0 0.0
        %v1507 = vand.u32 %v266, 4294901760
        %v1508 = vsub.f32 %v266, %v1507
        %v1509 = vand.u32 %v1508, 4294901760
        %v1510 = vsub.f32 %v1508, %v1509
        %v1511 = vand.u32 %v1510, 4294901760
        %1512 = vmatpush1.msra.mxu0 %v1511
        %1513 = vmatprep.subr.mxu0 0.0
        %v1514 = vand.u32 %v267, 4294901760
        %v1515 = vsub.f32 %v267, %v1514
        %v1516 = vand.u32 %v1515, 4294901760
        %v1517 = vsub.f32 %v1515, %v1516
        %v1518 = vand.u32 %v1517, 4294901760
        %1519 = vmatpush1.msra.mxu0 %v1518
        %1520 = vmatprep.subr.mxu0 0.0
        %v1521 = vand.u32 %v268, 4294901760
        %v1522 = vsub.f32 %v268, %v1521
        %v1523 = vand.u32 %v1522, 4294901760
        %v1524 = vsub.f32 %v1522, %v1523
        %v1525 = vand.u32 %v1524, 4294901760
        %1526 = vmatpush1.msra.mxu0 %v1525
        %1527 = vmatprep.subr.mxu0 0.0
        %v1528 = vand.u32 %v269, 4294901760
        %v1529 = vsub.f32 %v269, %v1528
        %v1530 = vand.u32 %v1529, 4294901760
        %v1531 = vsub.f32 %v1529, %v1530
        %v1532 = vand.u32 %v1531, 4294901760
        %1533 = vmatpush1.msra.mxu0 %v1532
        %1534 = vmatprep.subr.mxu0 0.0
        %1535 = vmatpush1.msra.mxu0 0.0
        %1536 = vmatprep.subr.mxu0 0.0
        %1537 = vmatpush1.msra.mxu0 0.0
        %1538 = vmatprep.subr.mxu0 0.0
        %1539 = vmatpush1.msra.mxu0 0.0
        %1540 = vmatprep.subr.mxu0 0.0
        %1541 = vmatpush1.msra.mxu0 0.0
        %1542 = vmatprep.subr.mxu0 0.0
        %1543 = vmatpush1.msra.mxu0 0.0
        %1544 = vmatprep.subr.mxu0 0.0
        %1545 = vmatpush1.msra.mxu0 0.0
        %1546 = vmatprep.subr.mxu0 0.0
        %1547 = vmatpush1.msra.mxu0 0.0
        %1548 = vmatprep.subr.mxu0 0.0
        %1549 = vmatpush1.msra.mxu0 0.0
        %1550 = vmatprep.subr.mxu0 0.0
        %1551 = vmatpush1.msra.mxu0 0.0
        %1552 = vmatprep.subr.mxu0 0.0
        %1553 = vmatpush1.msra.mxu0 0.0
        %1554 = vmatprep.subr.mxu0 0.0
        %1555 = vmatpush1.msra.mxu0 0.0
        %1556 = vmatprep.subr.mxu0 0.0
        %1557 = vmatpush1.msra.mxu0 0.0
        %1558 = vmatprep.subr.mxu0 0.0
        %1559 = vmatpush1.msra.mxu0 0.0
        %1560 = vmatprep.subr.mxu0 0.0
        %1561 = vmatpush1.msra.mxu0 0.0
        %1562 = vmatprep.subr.mxu0 0.0
        %1563 = vmatpush1.msra.mxu0 0.0
        %1564 = vmatprep.subr.mxu0 0.0
        %1565 = vmatpush1.msra.mxu0 0.0
        %1566 = vmatprep.subr.mxu0 0.0
        %1567 = vmatpush1.msra.mxu0 0.0
        %1568 = vmatprep.subr.mxu0 0.0
        %1569 = vmatpush1.msra.mxu0 0.0
        %1570 = vmatprep.subr.mxu0 0.0
        %1571 = vmatpush1.msra.mxu0 0.0
        %1572 = vmatprep.subr.mxu0 0.0
        %1573 = vmatpush1.msra.mxu0 0.0
        %1574 = vmatprep.subr.mxu0 0.0
        %1575 = vmatpush1.msra.mxu0 0.0
        %1576 = vmatprep.subr.mxu0 0.0
        %1577 = vmatpush1.msra.mxu0 0.0
        %1578 = vmatprep.subr.mxu0 0.0
        %1579 = vmatpush1.msra.mxu0 0.0
        %1580 = vmatprep.subr.mxu0 0.0
        %1581 = vmatpush1.msra.mxu0 0.0
        %1582 = vmatprep.subr.mxu0 0.0
        %1583 = vmatpush1.msra.mxu0 0.0
        %1584 = vmatprep.subr.mxu0 0.0
        %1585 = vmatpush1.msra.mxu0 0.0
        %1586 = vmatprep.subr.mxu0 0.0
        %1587 = vmatpush1.msra.mxu0 0.0
        %1588 = vmatprep.subr.mxu0 0.0
        %1589 = vmatpush1.msra.mxu0 0.0
        %1590 = vmatprep.mubr.f32.mxu0 0.0
        %v1591 = vand.u32 %v1425, 4294901760
        %1592 = vmatmul.mubr.f32.gmra.mrb[0].mxu0 %v1591
        %v1593 = vpop.f32.mrb[0].mxu0
        %v1594 = vadd.f32 %v1503, %v1593
        %v1595 = vpop.f32.mrb[0].mxu0
        %1596 = vdwg.mxu0
        %1597 = vmatprep.subr.mxu0 0.0
        %v1598 = vand.u32 %v266, 4294901760
        %v1599 = vsub.f32 %v266, %v1598
        %1600 = vmatpush1.msra.mxu0 %v1599
        %1601 = vmatprep.subr.mxu0 0.0
        %v1602 = vand.u32 %v267, 4294901760
        %v1603 = vsub.f32 %v267, %v1602
        %1604 = vmatpush1.msra.mxu0 %v1603
        %1605 = vmatprep.subr.mxu0 0.0
        %v1606 = vand.u32 %v268, 4294901760
        %v1607 = vsub.f32 %v268, %v1606
        %1608 = vmatpush1.msra.mxu0 %v1607
        %1609 = vmatprep.subr.mxu0 0.0
        %v1610 = vand.u32 %v269, 4294901760
        %v1611 = vsub.f32 %v269, %v1610
        %1612 = vmatpush1.msra.mxu0 %v1611
        %1613 = vmatprep.subr.mxu0 0.0
        %1614 = vmatpush1.msra.mxu0 0.0
        %1615 = vmatprep.subr.mxu0 0.0
        %1616 = vmatpush1.msra.mxu0 0.0
        %1617 = vmatprep.subr.mxu0 0.0
        %1618 = vmatpush1.msra.mxu0 0.0
        %1619 = vmatprep.subr.mxu0 0.0
        %1620 = vmatpush1.msra.mxu0 0.0
        %1621 = vmatprep.subr.mxu0 0.0
        %1622 = vmatpush1.msra.mxu0 0.0
        %1623 = vmatprep.subr.mxu0 0.0
        %1624 = vmatpush1.msra.mxu0 0.0
        %1625 = vmatprep.subr.mxu0 0.0
        %1626 = vmatpush1.msra.mxu0 0.0
        %1627 = vmatprep.subr.mxu0 0.0
        %1628 = vmatpush1.msra.mxu0 0.0
        %1629 = vmatprep.subr.mxu0 0.0
        %1630 = vmatpush1.msra.mxu0 0.0
        %1631 = vmatprep.subr.mxu0 0.0
        %1632 = vmatpush1.msra.mxu0 0.0
        %1633 = vmatprep.subr.mxu0 0.0
        %1634 = vmatpush1.msra.mxu0 0.0
        %1635 = vmatprep.subr.mxu0 0.0
        %1636 = vmatpush1.msra.mxu0 0.0
        %1637 = vmatprep.subr.mxu0 0.0
        %1638 = vmatpush1.msra.mxu0 0.0
        %1639 = vmatprep.subr.mxu0 0.0
        %1640 = vmatpush1.msra.mxu0 0.0
        %1641 = vmatprep.subr.mxu0 0.0
        %1642 = vmatpush1.msra.mxu0 0.0
        %1643 = vmatprep.subr.mxu0 0.0
        %1644 = vmatpush1.msra.mxu0 0.0
        %1645 = vmatprep.subr.mxu0 0.0
        %1646 = vmatpush1.msra.mxu0 0.0
        %1647 = vmatprep.subr.mxu0 0.0
        %1648 = vmatpush1.msra.mxu0 0.0
        %1649 = vmatprep.subr.mxu0 0.0
        %1650 = vmatpush1.msra.mxu0 0.0
        %1651 = vmatprep.subr.mxu0 0.0
        %1652 = vmatpush1.msra.mxu0 0.0
        %1653 = vmatprep.subr.mxu0 0.0
        %1654 = vmatpush1.msra.mxu0 0.0
        %1655 = vmatprep.subr.mxu0 0.0
        %1656 = vmatpush1.msra.mxu0 0.0
        %1657 = vmatprep.subr.mxu0 0.0
        %1658 = vmatpush1.msra.mxu0 0.0
        %1659 = vmatprep.subr.mxu0 0.0
        %1660 = vmatpush1.msra.mxu0 0.0
        %1661 = vmatprep.subr.mxu0 0.0
        %1662 = vmatpush1.msra.mxu0 0.0
        %1663 = vmatprep.subr.mxu0 0.0
        %1664 = vmatpush1.msra.mxu0 0.0
        %1665 = vmatprep.subr.mxu0 0.0
        %1666 = vmatpush1.msra.mxu0 0.0
        %1667 = vmatprep.subr.mxu0 0.0
        %1668 = vmatpush1.msra.mxu0 0.0
        %1669 = vmatprep.mubr.f32.mxu0 0.0
        %v1670 = vand.u32 %v1425, 4294901760
        %v1671 = vsub.f32 %v1425, %v1670
        %1672 = vmatmul.mubr.f32.gmra.mrb[0].mxu0 %v1671
        %v1673 = vpop.f32.mrb[0].mxu0
        %v1674 = vadd.f32 %v1594, %v1673
        %v1675 = vpop.f32.mrb[0].mxu0
        %1676 = vdwg.mxu0
        %1677 = vmatprep.subr.mxu0 0.0
        %v1678 = vand.u32 %v266, 4294901760
        %1679 = vmatpush1.msra.mxu0 %v1678
        %1680 = vmatprep.subr.mxu0 0.0
        %v1681 = vand.u32 %v267, 4294901760
        %1682 = vmatpush1.msra.mxu0 %v1681
        %1683 = vmatprep.subr.mxu0 0.0
        %v1684 = vand.u32 %v268, 4294901760
        %1685 = vmatpush1.msra.mxu0 %v1684
        %1686 = vmatprep.subr.mxu0 0.0
        %v1687 = vand.u32 %v269, 4294901760
        %1688 = vmatpush1.msra.mxu0 %v1687
        %1689 = vmatprep.subr.mxu0 0.0
        %1690 = vmatpush1.msra.mxu0 0.0
        %1691 = vmatprep.subr.mxu0 0.0
        %1692 = vmatpush1.msra.mxu0 0.0
        %1693 = vmatprep.subr.mxu0 0.0
        %1694 = vmatpush1.msra.mxu0 0.0
        %1695 = vmatprep.subr.mxu0 0.0
        %1696 = vmatpush1.msra.mxu0 0.0
        %1697 = vmatprep.subr.mxu0 0.0
        %1698 = vmatpush1.msra.mxu0 0.0
        %1699 = vmatprep.subr.mxu0 0.0
        %1700 = vmatpush1.msra.mxu0 0.0
        %1701 = vmatprep.subr.mxu0 0.0
        %1702 = vmatpush1.msra.mxu0 0.0
        %1703 = vmatprep.subr.mxu0 0.0
        %1704 = vmatpush1.msra.mxu0 0.0
        %1705 = vmatprep.subr.mxu0 0.0
        %1706 = vmatpush1.msra.mxu0 0.0
        %1707 = vmatprep.subr.mxu0 0.0
        %1708 = vmatpush1.msra.mxu0 0.0
        %1709 = vmatprep.subr.mxu0 0.0
        %1710 = vmatpush1.msra.mxu0 0.0
        %1711 = vmatprep.subr.mxu0 0.0
        %1712 = vmatpush1.msra.mxu0 0.0
        %1713 = vmatprep.subr.mxu0 0.0
        %1714 = vmatpush1.msra.mxu0 0.0
        %1715 = vmatprep.subr.mxu0 0.0
        %1716 = vmatpush1.msra.mxu0 0.0
        %1717 = vmatprep.subr.mxu0 0.0
        %1718 = vmatpush1.msra.mxu0 0.0
        %1719 = vmatprep.subr.mxu0 0.0
        %1720 = vmatpush1.msra.mxu0 0.0
        %1721 = vmatprep.subr.mxu0 0.0
        %1722 = vmatpush1.msra.mxu0 0.0
        %1723 = vmatprep.subr.mxu0 0.0
        %1724 = vmatpush1.msra.mxu0 0.0
        %1725 = vmatprep.subr.mxu0 0.0
        %1726 = vmatpush1.msra.mxu0 0.0
        %1727 = vmatprep.subr.mxu0 0.0
        %1728 = vmatpush1.msra.mxu0 0.0
        %1729 = vmatprep.subr.mxu0 0.0
        %1730 = vmatpush1.msra.mxu0 0.0
        %1731 = vmatprep.subr.mxu0 0.0
        %1732 = vmatpush1.msra.mxu0 0.0
        %1733 = vmatprep.subr.mxu0 0.0
        %1734 = vmatpush1.msra.mxu0 0.0
        %1735 = vmatprep.subr.mxu0 0.0
        %1736 = vmatpush1.msra.mxu0 0.0
        %1737 = vmatprep.subr.mxu0 0.0
        %1738 = vmatpush1.msra.mxu0 0.0
        %1739 = vmatprep.subr.mxu0 0.0
        %1740 = vmatpush1.msra.mxu0 0.0
        %1741 = vmatprep.subr.mxu0 0.0
        %1742 = vmatpush1.msra.mxu0 0.0
        %1743 = vmatprep.subr.mxu0 0.0
        %1744 = vmatpush1.msra.mxu0 0.0
        %1745 = vmatprep.mubr.f32.mxu0 0.0
        %v1746 = vand.u32 %v1425, 4294901760
        %v1747 = vsub.f32 %v1425, %v1746
        %v1748 = vand.u32 %v1747, 4294901760
        %1749 = vmatmul.mubr.f32.gmra.mrb[0].mxu0 %v1748
        %v1750 = vpop.f32.mrb[0].mxu0
        %v1751 = vadd.f32 %v1674, %v1750
        %v1752 = vpop.f32.mrb[0].mxu0
        %1753 = vdwg.mxu0
        %1754 = vmatprep.subr.mxu0 0.0
        %v1755 = vand.u32 %v266, 4294901760
        %v1756 = vsub.f32 %v266, %v1755
        %v1757 = vand.u32 %v1756, 4294901760
        %1758 = vmatpush1.msra.mxu0 %v1757
        %1759 = vmatprep.subr.mxu0 0.0
        %v1760 = vand.u32 %v267, 4294901760
        %v1761 = vsub.f32 %v267, %v1760
        %v1762 = vand.u32 %v1761, 4294901760
        %1763 = vmatpush1.msra.mxu0 %v1762
        %1764 = vmatprep.subr.mxu0 0.0
        %v1765 = vand.u32 %v268, 4294901760
        %v1766 = vsub.f32 %v268, %v1765
        %v1767 = vand.u32 %v1766, 4294901760
        %1768 = vmatpush1.msra.mxu0 %v1767
        %1769 = vmatprep.subr.mxu0 0.0
        %v1770 = vand.u32 %v269, 4294901760
        %v1771 = vsub.f32 %v269, %v1770
        %v1772 = vand.u32 %v1771, 4294901760
        %1773 = vmatpush1.msra.mxu0 %v1772
        %1774 = vmatprep.subr.mxu0 0.0
        %1775 = vmatpush1.msra.mxu0 0.0
        %1776 = vmatprep.subr.mxu0 0.0
        %1777 = vmatpush1.msra.mxu0 0.0
        %1778 = vmatprep.subr.mxu0 0.0
        %1779 = vmatpush1.msra.mxu0 0.0
        %1780 = vmatprep.subr.mxu0 0.0
        %1781 = vmatpush1.msra.mxu0 0.0
        %1782 = vmatprep.subr.mxu0 0.0
        %1783 = vmatpush1.msra.mxu0 0.0
        %1784 = vmatprep.subr.mxu0 0.0
        %1785 = vmatpush1.msra.mxu0 0.0
        %1786 = vmatprep.subr.mxu0 0.0
        %1787 = vmatpush1.msra.mxu0 0.0
        %1788 = vmatprep.subr.mxu0 0.0
        %1789 = vmatpush1.msra.mxu0 0.0
        %1790 = vmatprep.subr.mxu0 0.0
        %1791 = vmatpush1.msra.mxu0 0.0
        %1792 = vmatprep.subr.mxu0 0.0
        %1793 = vmatpush1.msra.mxu0 0.0
        %1794 = vmatprep.subr.mxu0 0.0
        %1795 = vmatpush1.msra.mxu0 0.0
        %1796 = vmatprep.subr.mxu0 0.0
        %1797 = vmatpush1.msra.mxu0 0.0
        %1798 = vmatprep.subr.mxu0 0.0
        %1799 = vmatpush1.msra.mxu0 0.0
        %1800 = vmatprep.subr.mxu0 0.0
        %1801 = vmatpush1.msra.mxu0 0.0
        %1802 = vmatprep.subr.mxu0 0.0
        %1803 = vmatpush1.msra.mxu0 0.0
        %1804 = vmatprep.subr.mxu0 0.0
        %1805 = vmatpush1.msra.mxu0 0.0
        %1806 = vmatprep.subr.mxu0 0.0
        %1807 = vmatpush1.msra.mxu0 0.0
        %1808 = vmatprep.subr.mxu0 0.0
        %1809 = vmatpush1.msra.mxu0 0.0
        %1810 = vmatprep.subr.mxu0 0.0
        %1811 = vmatpush1.msra.mxu0 0.0
        %1812 = vmatprep.subr.mxu0 0.0
        %1813 = vmatpush1.msra.mxu0 0.0
        %1814 = vmatprep.subr.mxu0 0.0
        %1815 = vmatpush1.msra.mxu0 0.0
        %1816 = vmatprep.subr.mxu0 0.0
        %1817 = vmatpush1.msra.mxu0 0.0
        %1818 = vmatprep.subr.mxu0 0.0
        %1819 = vmatpush1.msra.mxu0 0.0
        %1820 = vmatprep.subr.mxu0 0.0
        %1821 = vmatpush1.msra.mxu0 0.0
        %1822 = vmatprep.subr.mxu0 0.0
        %1823 = vmatpush1.msra.mxu0 0.0
        %1824 = vmatprep.subr.mxu0 0.0
        %1825 = vmatpush1.msra.mxu0 0.0
        %1826 = vmatprep.subr.mxu0 0.0
        %1827 = vmatpush1.msra.mxu0 0.0
        %1828 = vmatprep.subr.mxu0 0.0
        %1829 = vmatpush1.msra.mxu0 0.0
        %1830 = vmatprep.mubr.f32.mxu0 0.0
        %v1831 = vand.u32 %v1425, 4294901760
        %1832 = vmatmul.mubr.f32.gmra.mrb[0].mxu0 %v1831
        %v1833 = vpop.f32.mrb[0].mxu0
        %v1834 = vadd.f32 %v1751, %v1833
        %v1835 = vpop.f32.mrb[0].mxu0
        %1836 = vdwg.mxu0
        %1837 = vmatprep.subr.mxu0 0.0
        %v1838 = vand.u32 %v266, 4294901760
        %1839 = vmatpush1.msra.mxu0 %v1838
        %1840 = vmatprep.subr.mxu0 0.0
        %v1841 = vand.u32 %v267, 4294901760
        %1842 = vmatpush1.msra.mxu0 %v1841
        %1843 = vmatprep.subr.mxu0 0.0
        %v1844 = vand.u32 %v268, 4294901760
        %1845 = vmatpush1.msra.mxu0 %v1844
        %1846 = vmatprep.subr.mxu0 0.0
        %v1847 = vand.u32 %v269, 4294901760
        %1848 = vmatpush1.msra.mxu0 %v1847
        %1849 = vmatprep.subr.mxu0 0.0
        %1850 = vmatpush1.msra.mxu0 0.0
        %1851 = vmatprep.subr.mxu0 0.0
        %1852 = vmatpush1.msra.mxu0 0.0
        %1853 = vmatprep.subr.mxu0 0.0
        %1854 = vmatpush1.msra.mxu0 0.0
        %1855 = vmatprep.subr.mxu0 0.0
        %1856 = vmatpush1.msra.mxu0 0.0
        %1857 = vmatprep.subr.mxu0 0.0
        %1858 = vmatpush1.msra.mxu0 0.0
        %1859 = vmatprep.subr.mxu0 0.0
        %1860 = vmatpush1.msra.mxu0 0.0
        %1861 = vmatprep.subr.mxu0 0.0
        %1862 = vmatpush1.msra.mxu0 0.0
        %1863 = vmatprep.subr.mxu0 0.0
        %1864 = vmatpush1.msra.mxu0 0.0
        %1865 = vmatprep.subr.mxu0 0.0
        %1866 = vmatpush1.msra.mxu0 0.0
        %1867 = vmatprep.subr.mxu0 0.0
        %1868 = vmatpush1.msra.mxu0 0.0
        %1869 = vmatprep.subr.mxu0 0.0
        %1870 = vmatpush1.msra.mxu0 0.0
        %1871 = vmatprep.subr.mxu0 0.0
        %1872 = vmatpush1.msra.mxu0 0.0
        %1873 = vmatprep.subr.mxu0 0.0
        %1874 = vmatpush1.msra.mxu0 0.0
        %1875 = vmatprep.subr.mxu0 0.0
        %1876 = vmatpush1.msra.mxu0 0.0
        %1877 = vmatprep.subr.mxu0 0.0
        %1878 = vmatpush1.msra.mxu0 0.0
        %1879 = vmatprep.subr.mxu0 0.0
        %1880 = vmatpush1.msra.mxu0 0.0
        %1881 = vmatprep.subr.mxu0 0.0
        %1882 = vmatpush1.msra.mxu0 0.0
        %1883 = vmatprep.subr.mxu0 0.0
        %1884 = vmatpush1.msra.mxu0 0.0
        %1885 = vmatprep.subr.mxu0 0.0
        %1886 = vmatpush1.msra.mxu0 0.0
        %1887 = vmatprep.subr.mxu0 0.0
        %1888 = vmatpush1.msra.mxu0 0.0
        %1889 = vmatprep.subr.mxu0 0.0
        %1890 = vmatpush1.msra.mxu0 0.0
        %1891 = vmatprep.subr.mxu0 0.0
        %1892 = vmatpush1.msra.mxu0 0.0
        %1893 = vmatprep.subr.mxu0 0.0
        %1894 = vmatpush1.msra.mxu0 0.0
        %1895 = vmatprep.subr.mxu0 0.0
        %1896 = vmatpush1.msra.mxu0 0.0
        %1897 = vmatprep.subr.mxu0 0.0
        %1898 = vmatpush1.msra.mxu0 0.0
        %1899 = vmatprep.subr.mxu0 0.0
        %1900 = vmatpush1.msra.mxu0 0.0
        %1901 = vmatprep.subr.mxu0 0.0
        %1902 = vmatpush1.msra.mxu0 0.0
        %1903 = vmatprep.subr.mxu0 0.0
        %1904 = vmatpush1.msra.mxu0 0.0
        %1905 = vmatprep.mubr.f32.mxu0 0.0
        %v1906 = vand.u32 %v1425, 4294901760
        %1907 = vmatmul.mubr.f32.gmra.mrb[0].mxu0 %v1906
        %v1908 = vpop.f32.mrb[0].mxu0
        %v1909 = vadd.f32 %v1834, %v1908
        %v1910 = vpop.f32.mrb[0].mxu0
        %1911 = vdwg.mxu0
        %1913 = vrot.lane.b32.xlu0 %v1909, 32
        %v1914 = vpop.permute.xlu0 %1913
        %v1916 = vadd.f32 %v1422, %v1914
        %v1918 = vsel %vm1423, 0.0, 0
        %1920 = vmatprep.subr.mxu0 0.0
        %v1921 = vand.u32 %v270, 4294901760
        %1922 = vmatpush1.msra.mxu0 %v1921
        %1923 = vmatprep.subr.mxu0 0.0
        %v1924 = vand.u32 %v271, 4294901760
        %1925 = vmatpush1.msra.mxu0 %v1924
        %1926 = vmatprep.subr.mxu0 0.0
        %v1927 = vand.u32 %v272, 4294901760
        %1928 = vmatpush1.msra.mxu0 %v1927
        %1929 = vmatprep.subr.mxu0 0.0
        %v1930 = vand.u32 %v273, 4294901760
        %1931 = vmatpush1.msra.mxu0 %v1930
        %1932 = vmatprep.subr.mxu0 0.0
        %1933 = vmatpush1.msra.mxu0 0.0
        %1934 = vmatprep.subr.mxu0 0.0
        %1935 = vmatpush1.msra.mxu0 0.0
        %1936 = vmatprep.subr.mxu0 0.0
        %1937 = vmatpush1.msra.mxu0 0.0
        %1938 = vmatprep.subr.mxu0 0.0
        %1939 = vmatpush1.msra.mxu0 0.0
        %1940 = vmatprep.subr.mxu0 0.0
        %1941 = vmatpush1.msra.mxu0 0.0
        %1942 = vmatprep.subr.mxu0 0.0
        %1943 = vmatpush1.msra.mxu0 0.0
        %1944 = vmatprep.subr.mxu0 0.0
        %1945 = vmatpush1.msra.mxu0 0.0
        %1946 = vmatprep.subr.mxu0 0.0
        %1947 = vmatpush1.msra.mxu0 0.0
        %1948 = vmatprep.subr.mxu0 0.0
        %1949 = vmatpush1.msra.mxu0 0.0
        %1950 = vmatprep.subr.mxu0 0.0
        %1951 = vmatpush1.msra.mxu0 0.0
        %1952 = vmatprep.subr.mxu0 0.0
        %1953 = vmatpush1.msra.mxu0 0.0
        %1954 = vmatprep.subr.mxu0 0.0
        %1955 = vmatpush1.msra.mxu0 0.0
        %1956 = vmatprep.subr.mxu0 0.0
        %1957 = vmatpush1.msra.mxu0 0.0
        %1958 = vmatprep.subr.mxu0 0.0
        %1959 = vmatpush1.msra.mxu0 0.0
        %1960 = vmatprep.subr.mxu0 0.0
        %1961 = vmatpush1.msra.mxu0 0.0
        %1962 = vmatprep.subr.mxu0 0.0
        %1963 = vmatpush1.msra.mxu0 0.0
        %1964 = vmatprep.subr.mxu0 0.0
        %1965 = vmatpush1.msra.mxu0 0.0
        %1966 = vmatprep.subr.mxu0 0.0
        %1967 = vmatpush1.msra.mxu0 0.0
        %1968 = vmatprep.subr.mxu0 0.0
        %1969 = vmatpush1.msra.mxu0 0.0
        %1970 = vmatprep.subr.mxu0 0.0
        %1971 = vmatpush1.msra.mxu0 0.0
        %1972 = vmatprep.subr.mxu0 0.0
        %1973 = vmatpush1.msra.mxu0 0.0
        %1974 = vmatprep.subr.mxu0 0.0
        %1975 = vmatpush1.msra.mxu0 0.0
        %1976 = vmatprep.subr.mxu0 0.0
        %1977 = vmatpush1.msra.mxu0 0.0
        %1978 = vmatprep.subr.mxu0 0.0
        %1979 = vmatpush1.msra.mxu0 0.0
        %1980 = vmatprep.subr.mxu0 0.0
        %1981 = vmatpush1.msra.mxu0 0.0
        %1982 = vmatprep.subr.mxu0 0.0
        %1983 = vmatpush1.msra.mxu0 0.0
        %1984 = vmatprep.subr.mxu0 0.0
        %1985 = vmatpush1.msra.mxu0 0.0
        %1986 = vmatprep.subr.mxu0 0.0
        %1987 = vmatpush1.msra.mxu0 0.0
        %1988 = vmatprep.mubr.f32.mxu0 0.0
        %v1989 = vand.u32 %v1918, 4294901760
        %v1990 = vsub.f32 %v1918, %v1989
        %v1991 = vand.u32 %v1990, 4294901760
        %v1992 = vsub.f32 %v1990, %v1991
        %v1993 = vand.u32 %v1992, 4294901760
        %1994 = vmatmul.mubr.f32.gmra.mrb[0].mxu0 %v1993
        %v1995 = vpop.f32.mrb[0].mxu0
        %v1996 = vadd.f32 0.0, %v1995
        %v1997 = vpop.f32.mrb[0].mxu0
        %1998 = vdwg.mxu0
        %1999 = vmatprep.subr.mxu0 0.0
        %v2000 = vand.u32 %v270, 4294901760
        %v2001 = vsub.f32 %v270, %v2000
        %v2002 = vand.u32 %v2001, 4294901760
        %v2003 = vsub.f32 %v2001, %v2002
        %v2004 = vand.u32 %v2003, 4294901760
        %2005 = vmatpush1.msra.mxu0 %v2004
        %2006 = vmatprep.subr.mxu0 0.0
        %v2007 = vand.u32 %v271, 4294901760
        %v2008 = vsub.f32 %v271, %v2007
        %v2009 = vand.u32 %v2008, 4294901760
        %v2010 = vsub.f32 %v2008, %v2009
        %v2011 = vand.u32 %v2010, 4294901760
        %2012 = vmatpush1.msra.mxu0 %v2011
        %2013 = vmatprep.subr.mxu0 0.0
        %v2014 = vand.u32 %v272, 4294901760
        %v2015 = vsub.f32 %v272, %v2014
        %v2016 = vand.u32 %v2015, 4294901760
        %v2017 = vsub.f32 %v2015, %v2016
        %v2018 = vand.u32 %v2017, 4294901760
        %2019 = vmatpush1.msra.mxu0 %v2018
        %2020 = vmatprep.subr.mxu0 0.0
        %v2021 = vand.u32 %v273, 4294901760
        %v2022 = vsub.f32 %v273, %v2021
        %v2023 = vand.u32 %v2022, 4294901760
        %v2024 = vsub.f32 %v2022, %v2023
        %v2025 = vand.u32 %v2024, 4294901760
        %2026 = vmatpush1.msra.mxu0 %v2025
        %2027 = vmatprep.subr.mxu0 0.0
        %2028 = vmatpush1.msra.mxu0 0.0
        %2029 = vmatprep.subr.mxu0 0.0
        %2030 = vmatpush1.msra.mxu0 0.0
        %2031 = vmatprep.subr.mxu0 0.0
        %2032 = vmatpush1.msra.mxu0 0.0
        %2033 = vmatprep.subr.mxu0 0.0
        %2034 = vmatpush1.msra.mxu0 0.0
        %2035 = vmatprep.subr.mxu0 0.0
        %2036 = vmatpush1.msra.mxu0 0.0
        %2037 = vmatprep.subr.mxu0 0.0
        %2038 = vmatpush1.msra.mxu0 0.0
        %2039 = vmatprep.subr.mxu0 0.0
        %2040 = vmatpush1.msra.mxu0 0.0
        %2041 = vmatprep.subr.mxu0 0.0
        %2042 = vmatpush1.msra.mxu0 0.0
        %2043 = vmatprep.subr.mxu0 0.0
        %2044 = vmatpush1.msra.mxu0 0.0
        %2045 = vmatprep.subr.mxu0 0.0
        %2046 = vmatpush1.msra.mxu0 0.0
        %2047 = vmatprep.subr.mxu0 0.0
        %2048 = vmatpush1.msra.mxu0 0.0
        %2049 = vmatprep.subr.mxu0 0.0
        %2050 = vmatpush1.msra.mxu0 0.0
        %2051 = vmatprep.subr.mxu0 0.0
        %2052 = vmatpush1.msra.mxu0 0.0
        %2053 = vmatprep.subr.mxu0 0.0
        %2054 = vmatpush1.msra.mxu0 0.0
        %2055 = vmatprep.subr.mxu0 0.0
        %2056 = vmatpush1.msra.mxu0 0.0
        %2057 = vmatprep.subr.mxu0 0.0
        %2058 = vmatpush1.msra.mxu0 0.0
        %2059 = vmatprep.subr.mxu0 0.0
        %2060 = vmatpush1.msra.mxu0 0.0
        %2061 = vmatprep.subr.mxu0 0.0
        %2062 = vmatpush1.msra.mxu0 0.0
        %2063 = vmatprep.subr.mxu0 0.0
        %2064 = vmatpush1.msra.mxu0 0.0
        %2065 = vmatprep.subr.mxu0 0.0
        %2066 = vmatpush1.msra.mxu0 0.0
        %2067 = vmatprep.subr.mxu0 0.0
        %2068 = vmatpush1.msra.mxu0 0.0
        %2069 = vmatprep.subr.mxu0 0.0
        %2070 = vmatpush1.msra.mxu0 0.0
        %2071 = vmatprep.subr.mxu0 0.0
        %2072 = vmatpush1.msra.mxu0 0.0
        %2073 = vmatprep.subr.mxu0 0.0
        %2074 = vmatpush1.msra.mxu0 0.0
        %2075 = vmatprep.subr.mxu0 0.0
        %2076 = vmatpush1.msra.mxu0 0.0
        %2077 = vmatprep.subr.mxu0 0.0
        %2078 = vmatpush1.msra.mxu0 0.0
        %2079 = vmatprep.subr.mxu0 0.0
        %2080 = vmatpush1.msra.mxu0 0.0
        %2081 = vmatprep.subr.mxu0 0.0
        %2082 = vmatpush1.msra.mxu0 0.0
        %2083 = vmatprep.mubr.f32.mxu0 0.0
        %v2084 = vand.u32 %v1918, 4294901760
        %2085 = vmatmul.mubr.f32.gmra.mrb[0].mxu0 %v2084
        %v2086 = vpop.f32.mrb[0].mxu0
        %v2087 = vadd.f32 %v1996, %v2086
        %v2088 = vpop.f32.mrb[0].mxu0
        %2089 = vdwg.mxu0
        %2090 = vmatprep.subr.mxu0 0.0
        %v2091 = vand.u32 %v270, 4294901760
        %v2092 = vsub.f32 %v270, %v2091
        %2093 = vmatpush1.msra.mxu0 %v2092
        %2094 = vmatprep.subr.mxu0 0.0
        %v2095 = vand.u32 %v271, 4294901760
        %v2096 = vsub.f32 %v271, %v2095
        %2097 = vmatpush1.msra.mxu0 %v2096
        %2098 = vmatprep.subr.mxu0 0.0
        %v2099 = vand.u32 %v272, 4294901760
        %v2100 = vsub.f32 %v272, %v2099
        %2101 = vmatpush1.msra.mxu0 %v2100
        %2102 = vmatprep.subr.mxu0 0.0
        %v2103 = vand.u32 %v273, 4294901760
        %v2104 = vsub.f32 %v273, %v2103
        %2105 = vmatpush1.msra.mxu0 %v2104
        %2106 = vmatprep.subr.mxu0 0.0
        %2107 = vmatpush1.msra.mxu0 0.0
        %2108 = vmatprep.subr.mxu0 0.0
        %2109 = vmatpush1.msra.mxu0 0.0
        %2110 = vmatprep.subr.mxu0 0.0
        %2111 = vmatpush1.msra.mxu0 0.0
        %2112 = vmatprep.subr.mxu0 0.0
        %2113 = vmatpush1.msra.mxu0 0.0
        %2114 = vmatprep.subr.mxu0 0.0
        %2115 = vmatpush1.msra.mxu0 0.0
        %2116 = vmatprep.subr.mxu0 0.0
        %2117 = vmatpush1.msra.mxu0 0.0
        %2118 = vmatprep.subr.mxu0 0.0
        %2119 = vmatpush1.msra.mxu0 0.0
        %2120 = vmatprep.subr.mxu0 0.0
        %2121 = vmatpush1.msra.mxu0 0.0
        %2122 = vmatprep.subr.mxu0 0.0
        %2123 = vmatpush1.msra.mxu0 0.0
        %2124 = vmatprep.subr.mxu0 0.0
        %2125 = vmatpush1.msra.mxu0 0.0
        %2126 = vmatprep.subr.mxu0 0.0
        %2127 = vmatpush1.msra.mxu0 0.0
        %2128 = vmatprep.subr.mxu0 0.0
        %2129 = vmatpush1.msra.mxu0 0.0
        %2130 = vmatprep.subr.mxu0 0.0
        %2131 = vmatpush1.msra.mxu0 0.0
        %2132 = vmatprep.subr.mxu0 0.0
        %2133 = vmatpush1.msra.mxu0 0.0
        %2134 = vmatprep.subr.mxu0 0.0
        %2135 = vmatpush1.msra.mxu0 0.0
        %2136 = vmatprep.subr.mxu0 0.0
        %2137 = vmatpush1.msra.mxu0 0.0
        %2138 = vmatprep.subr.mxu0 0.0
        %2139 = vmatpush1.msra.mxu0 0.0
        %2140 = vmatprep.subr.mxu0 0.0
        %2141 = vmatpush1.msra.mxu0 0.0
        %2142 = vmatprep.subr.mxu0 0.0
        %2143 = vmatpush1.msra.mxu0 0.0
        %2144 = vmatprep.subr.mxu0 0.0
        %2145 = vmatpush1.msra.mxu0 0.0
        %2146 = vmatprep.subr.mxu0 0.0
        %2147 = vmatpush1.msra.mxu0 0.0
        %2148 = vmatprep.subr.mxu0 0.0
        %2149 = vmatpush1.msra.mxu0 0.0
        %2150 = vmatprep.subr.mxu0 0.0
        %2151 = vmatpush1.msra.mxu0 0.0
        %2152 = vmatprep.subr.mxu0 0.0
        %2153 = vmatpush1.msra.mxu0 0.0
        %2154 = vmatprep.subr.mxu0 0.0
        %2155 = vmatpush1.msra.mxu0 0.0
        %2156 = vmatprep.subr.mxu0 0.0
        %2157 = vmatpush1.msra.mxu0 0.0
        %2158 = vmatprep.subr.mxu0 0.0
        %2159 = vmatpush1.msra.mxu0 0.0
        %2160 = vmatprep.subr.mxu0 0.0
        %2161 = vmatpush1.msra.mxu0 0.0
        %2162 = vmatprep.mubr.f32.mxu0 0.0
        %v2163 = vand.u32 %v1918, 4294901760
        %v2164 = vsub.f32 %v1918, %v2163
        %2165 = vmatmul.mubr.f32.gmra.mrb[0].mxu0 %v2164
        %v2166 = vpop.f32.mrb[0].mxu0
        %v2167 = vadd.f32 %v2087, %v2166
        %v2168 = vpop.f32.mrb[0].mxu0
        %2169 = vdwg.mxu0
        %2170 = vmatprep.subr.mxu0 0.0
        %v2171 = vand.u32 %v270, 4294901760
        %2172 = vmatpush1.msra.mxu0 %v2171
        %2173 = vmatprep.subr.mxu0 0.0
        %v2174 = vand.u32 %v271, 4294901760
        %2175 = vmatpush1.msra.mxu0 %v2174
        %2176 = vmatprep.subr.mxu0 0.0
        %v2177 = vand.u32 %v272, 4294901760
        %2178 = vmatpush1.msra.mxu0 %v2177
        %2179 = vmatprep.subr.mxu0 0.0
        %v2180 = vand.u32 %v273, 4294901760
        %2181 = vmatpush1.msra.mxu0 %v2180
        %2182 = vmatprep.subr.mxu0 0.0
        %2183 = vmatpush1.msra.mxu0 0.0
        %2184 = vmatprep.subr.mxu0 0.0
        %2185 = vmatpush1.msra.mxu0 0.0
        %2186 = vmatprep.subr.mxu0 0.0
        %2187 = vmatpush1.msra.mxu0 0.0
        %2188 = vmatprep.subr.mxu0 0.0
        %2189 = vmatpush1.msra.mxu0 0.0
        %2190 = vmatprep.subr.mxu0 0.0
        %2191 = vmatpush1.msra.mxu0 0.0
        %2192 = vmatprep.subr.mxu0 0.0
        %2193 = vmatpush1.msra.mxu0 0.0
        %2194 = vmatprep.subr.mxu0 0.0
        %2195 = vmatpush1.msra.mxu0 0.0
        %2196 = vmatprep.subr.mxu0 0.0
        %2197 = vmatpush1.msra.mxu0 0.0
        %2198 = vmatprep.subr.mxu0 0.0
        %2199 = vmatpush1.msra.mxu0 0.0
        %2200 = vmatprep.subr.mxu0 0.0
        %2201 = vmatpush1.msra.mxu0 0.0
        %2202 = vmatprep.subr.mxu0 0.0
        %2203 = vmatpush1.msra.mxu0 0.0
        %2204 = vmatprep.subr.mxu0 0.0
        %2205 = vmatpush1.msra.mxu0 0.0
        %2206 = vmatprep.subr.mxu0 0.0
        %2207 = vmatpush1.msra.mxu0 0.0
        %2208 = vmatprep.subr.mxu0 0.0
        %2209 = vmatpush1.msra.mxu0 0.0
        %2210 = vmatprep.subr.mxu0 0.0
        %2211 = vmatpush1.msra.mxu0 0.0
        %2212 = vmatprep.subr.mxu0 0.0
        %2213 = vmatpush1.msra.mxu0 0.0
        %2214 = vmatprep.subr.mxu0 0.0
        %2215 = vmatpush1.msra.mxu0 0.0
        %2216 = vmatprep.subr.mxu0 0.0
        %2217 = vmatpush1.msra.mxu0 0.0
        %2218 = vmatprep.subr.mxu0 0.0
        %2219 = vmatpush1.msra.mxu0 0.0
        %2220 = vmatprep.subr.mxu0 0.0
        %2221 = vmatpush1.msra.mxu0 0.0
        %2222 = vmatprep.subr.mxu0 0.0
        %2223 = vmatpush1.msra.mxu0 0.0
        %2224 = vmatprep.subr.mxu0 0.0
        %2225 = vmatpush1.msra.mxu0 0.0
        %2226 = vmatprep.subr.mxu0 0.0
        %2227 = vmatpush1.msra.mxu0 0.0
        %2228 = vmatprep.subr.mxu0 0.0
        %2229 = vmatpush1.msra.mxu0 0.0
        %2230 = vmatprep.subr.mxu0 0.0
        %2231 = vmatpush1.msra.mxu0 0.0
        %2232 = vmatprep.subr.mxu0 0.0
        %2233 = vmatpush1.msra.mxu0 0.0
        %2234 = vmatprep.subr.mxu0 0.0
        %2235 = vmatpush1.msra.mxu0 0.0
        %2236 = vmatprep.subr.mxu0 0.0
        %2237 = vmatpush1.msra.mxu0 0.0
        %2238 = vmatprep.mubr.f32.mxu0 0.0
        %v2239 = vand.u32 %v1918, 4294901760
        %v2240 = vsub.f32 %v1918, %v2239
        %v2241 = vand.u32 %v2240, 4294901760
        %2242 = vmatmul.mubr.f32.gmra.mrb[0].mxu0 %v2241
        %v2243 = vpop.f32.mrb[0].mxu0
        %v2244 = vadd.f32 %v2167, %v2243
        %v2245 = vpop.f32.mrb[0].mxu0
        %2246 = vdwg.mxu0
        %2247 = vmatprep.subr.mxu0 0.0
        %v2248 = vand.u32 %v270, 4294901760
        %v2249 = vsub.f32 %v270, %v2248
        %v2250 = vand.u32 %v2249, 4294901760
        %2251 = vmatpush1.msra.mxu0 %v2250
        %2252 = vmatprep.subr.mxu0 0.0
        %v2253 = vand.u32 %v271, 4294901760
        %v2254 = vsub.f32 %v271, %v2253
        %v2255 = vand.u32 %v2254, 4294901760
        %2256 = vmatpush1.msra.mxu0 %v2255
        %2257 = vmatprep.subr.mxu0 0.0
        %v2258 = vand.u32 %v272, 4294901760
        %v2259 = vsub.f32 %v272, %v2258
        %v2260 = vand.u32 %v2259, 4294901760
        %2261 = vmatpush1.msra.mxu0 %v2260
        %2262 = vmatprep.subr.mxu0 0.0
        %v2263 = vand.u32 %v273, 4294901760
        %v2264 = vsub.f32 %v273, %v2263
        %v2265 = vand.u32 %v2264, 4294901760
        %2266 = vmatpush1.msra.mxu0 %v2265
        %2267 = vmatprep.subr.mxu0 0.0
        %2268 = vmatpush1.msra.mxu0 0.0
        %2269 = vmatprep.subr.mxu0 0.0
        %2270 = vmatpush1.msra.mxu0 0.0
        %2271 = vmatprep.subr.mxu0 0.0
        %2272 = vmatpush1.msra.mxu0 0.0
        %2273 = vmatprep.subr.mxu0 0.0
        %2274 = vmatpush1.msra.mxu0 0.0
        %2275 = vmatprep.subr.mxu0 0.0
        %2276 = vmatpush1.msra.mxu0 0.0
        %2277 = vmatprep.subr.mxu0 0.0
        %2278 = vmatpush1.msra.mxu0 0.0
        %2279 = vmatprep.subr.mxu0 0.0
        %2280 = vmatpush1.msra.mxu0 0.0
        %2281 = vmatprep.subr.mxu0 0.0
        %2282 = vmatpush1.msra.mxu0 0.0
        %2283 = vmatprep.subr.mxu0 0.0
        %2284 = vmatpush1.msra.mxu0 0.0
        %2285 = vmatprep.subr.mxu0 0.0
        %2286 = vmatpush1.msra.mxu0 0.0
        %2287 = vmatprep.subr.mxu0 0.0
        %2288 = vmatpush1.msra.mxu0 0.0
        %2289 = vmatprep.subr.mxu0 0.0
        %2290 = vmatpush1.msra.mxu0 0.0
        %2291 = vmatprep.subr.mxu0 0.0
        %2292 = vmatpush1.msra.mxu0 0.0
        %2293 = vmatprep.subr.mxu0 0.0
        %2294 = vmatpush1.msra.mxu0 0.0
        %2295 = vmatprep.subr.mxu0 0.0
        %2296 = vmatpush1.msra.mxu0 0.0
        %2297 = vmatprep.subr.mxu0 0.0
        %2298 = vmatpush1.msra.mxu0 0.0
        %2299 = vmatprep.subr.mxu0 0.0
        %2300 = vmatpush1.msra.mxu0 0.0
        %2301 = vmatprep.subr.mxu0 0.0
        %2302 = vmatpush1.msra.mxu0 0.0
        %2303 = vmatprep.subr.mxu0 0.0
        %2304 = vmatpush1.msra.mxu0 0.0
        %2305 = vmatprep.subr.mxu0 0.0
        %2306 = vmatpush1.msra.mxu0 0.0
        %2307 = vmatprep.subr.mxu0 0.0
        %2308 = vmatpush1.msra.mxu0 0.0
        %2309 = vmatprep.subr.mxu0 0.0
        %2310 = vmatpush1.msra.mxu0 0.0
        %2311 = vmatprep.subr.mxu0 0.0
        %2312 = vmatpush1.msra.mxu0 0.0
        %2313 = vmatprep.subr.mxu0 0.0
        %2314 = vmatpush1.msra.mxu0 0.0
        %2315 = vmatprep.subr.mxu0 0.0
        %2316 = vmatpush1.msra.mxu0 0.0
        %2317 = vmatprep.subr.mxu0 0.0
        %2318 = vmatpush1.msra.mxu0 0.0
        %2319 = vmatprep.subr.mxu0 0.0
        %2320 = vmatpush1.msra.mxu0 0.0
        %2321 = vmatprep.subr.mxu0 0.0
        %2322 = vmatpush1.msra.mxu0 0.0
        %2323 = vmatprep.mubr.f32.mxu0 0.0
        %v2324 = vand.u32 %v1918, 4294901760
        %2325 = vmatmul.mubr.f32.gmra.mrb[0].mxu0 %v2324
        %v2326 = vpop.f32.mrb[0].mxu0
        %v2327 = vadd.f32 %v2244, %v2326
        %v2328 = vpop.f32.mrb[0].mxu0
        %2329 = vdwg.mxu0
        %2330 = vmatprep.subr.mxu0 0.0
        %v2331 = vand.u32 %v270, 4294901760
        %2332 = vmatpush1.msra.mxu0 %v2331
        %2333 = vmatprep.subr.mxu0 0.0
        %v2334 = vand.u32 %v271, 4294901760
        %2335 = vmatpush1.msra.mxu0 %v2334
        %2336 = vmatprep.subr.mxu0 0.0
        %v2337 = vand.u32 %v272, 4294901760
        %2338 = vmatpush1.msra.mxu0 %v2337
        %2339 = vmatprep.subr.mxu0 0.0
        %v2340 = vand.u32 %v273, 4294901760
        %2341 = vmatpush1.msra.mxu0 %v2340
        %2342 = vmatprep.subr.mxu0 0.0
        %2343 = vmatpush1.msra.mxu0 0.0
        %2344 = vmatprep.subr.mxu0 0.0
        %2345 = vmatpush1.msra.mxu0 0.0
        %2346 = vmatprep.subr.mxu0 0.0
        %2347 = vmatpush1.msra.mxu0 0.0
        %2348 = vmatprep.subr.mxu0 0.0
        %2349 = vmatpush1.msra.mxu0 0.0
        %2350 = vmatprep.subr.mxu0 0.0
        %2351 = vmatpush1.msra.mxu0 0.0
        %2352 = vmatprep.subr.mxu0 0.0
        %2353 = vmatpush1.msra.mxu0 0.0
        %2354 = vmatprep.subr.mxu0 0.0
        %2355 = vmatpush1.msra.mxu0 0.0
        %2356 = vmatprep.subr.mxu0 0.0
        %2357 = vmatpush1.msra.mxu0 0.0
        %2358 = vmatprep.subr.mxu0 0.0
        %2359 = vmatpush1.msra.mxu0 0.0
        %2360 = vmatprep.subr.mxu0 0.0
        %2361 = vmatpush1.msra.mxu0 0.0
        %2362 = vmatprep.subr.mxu0 0.0
        %2363 = vmatpush1.msra.mxu0 0.0
        %2364 = vmatprep.subr.mxu0 0.0
        %2365 = vmatpush1.msra.mxu0 0.0
        %2366 = vmatprep.subr.mxu0 0.0
        %2367 = vmatpush1.msra.mxu0 0.0
        %2368 = vmatprep.subr.mxu0 0.0
        %2369 = vmatpush1.msra.mxu0 0.0
        %2370 = vmatprep.subr.mxu0 0.0
        %2371 = vmatpush1.msra.mxu0 0.0
        %2372 = vmatprep.subr.mxu0 0.0
        %2373 = vmatpush1.msra.mxu0 0.0
        %2374 = vmatprep.subr.mxu0 0.0
        %2375 = vmatpush1.msra.mxu0 0.0
        %2376 = vmatprep.subr.mxu0 0.0
        %2377 = vmatpush1.msra.mxu0 0.0
        %2378 = vmatprep.subr.mxu0 0.0
        %2379 = vmatpush1.msra.mxu0 0.0
        %2380 = vmatprep.subr.mxu0 0.0
        %2381 = vmatpush1.msra.mxu0 0.0
        %2382 = vmatprep.subr.mxu0 0.0
        %2383 = vmatpush1.msra.mxu0 0.0
        %2384 = vmatprep.subr.mxu0 0.0
        %2385 = vmatpush1.msra.mxu0 0.0
        %2386 = vmatprep.subr.mxu0 0.0
        %2387 = vmatpush1.msra.mxu0 0.0
        %2388 = vmatprep.subr.mxu0 0.0
        %2389 = vmatpush1.msra.mxu0 0.0
        %2390 = vmatprep.subr.mxu0 0.0
        %2391 = vmatpush1.msra.mxu0 0.0
        %2392 = vmatprep.subr.mxu0 0.0
        %2393 = vmatpush1.msra.mxu0 0.0
        %2394 = vmatprep.subr.mxu0 0.0
        %2395 = vmatpush1.msra.mxu0 0.0
        %2396 = vmatprep.subr.mxu0 0.0
        %2397 = vmatpush1.msra.mxu0 0.0
        %2398 = vmatprep.mubr.f32.mxu0 0.0
        %v2399 = vand.u32 %v1918, 4294901760
        %2400 = vmatmul.mubr.f32.gmra.mrb[0].mxu0 %v2399
        %v2401 = vpop.f32.mrb[0].mxu0
        %v2402 = vadd.f32 %v2327, %v2401
        %v2403 = vpop.f32.mrb[0].mxu0
        %2404 = vdwg.mxu0
        %2406 = vrot.lane.b32.xlu0 %v2402, 32
        %v2407 = vpop.permute.xlu0 %2406
        %v2409 = vadd.f32 %v1916, %v2407
        %v2410 = vxor.u32 %v2409, 2147483648
        %v2411 = vmul.f32 %v2410, 1.442695
        %v2412 = vpow.pop %v2411
        %v2413 = vadd.f32 %v2412, 1.0
        %v2414 = vrcp.pop %v2413
        %v2415 = vmul.f32 1.0, %v2414
        %2417 = vrot.lane.b32.xlu0 %v949, 96
        %v2418 = vpop.permute.xlu0 %2417
        %v2420 = vadd.f32 %v2402, %v2418
        %2422 = vrot.lane.b32.xlu0 %v2420, 96
        %v2423 = vpop.permute.xlu0 %2422
        %v2425 = vmul.f32 %v2415, %v2423
        %2427 = vrot.lane.b32.xlu0 %v2425, 64
        %v2428 = vpop.permute.xlu0 %2427
        %v2430 = vadd.f32 %v1916, %v2428
        %v2431 = vtanh.pop %v2430
        %v2432 = vsub.f32 0.0, %v2431
        %2434 = vrot.lane.b32.xlu0 %v2432, 96
        %v2435 = vpop.permute.xlu0 %2434
        %v2437 = vmul.f32 %v2415, %v2435
        %2439 = vrot.lane.b32.xlu0 %v2437, 32
        %v2440 = vpop.permute.xlu0 %2439
        %v2442 = vadd.f32 %v2431, %v2440
        %2443 = vrot.lane.b32.xlu0 %v949, 32
        %v2444 = vpop.permute.xlu0 %2443
        %v2446 = vmul.f32 %v2442, %v2444
        %2448 = vrot.lane.b32.xlu0 %v2446, 32
        %v2449 = vpop.permute.xlu0 %2448
        %v2451 = vsel %vm1423, %v2449, 0.0
        %2452 = vadd.xlane.f32.xlu0 %v2451
        %v2453 = vpop.xlane.xlu0 %2452
        %v2454 = vadd.f32 %v2453, %v953
        %2456 = vrot.lane.b32.xlu0 %v2442, 32
        %v2457 = vpop.permute.xlu0 %2456
        %2459 = vst.msk [vmem:[%s264] sm:$0xff] %vm1423, %v2457
        %2461 = vset.pattern.permute.xlu0 96
        %2462 = vperm.xlu0 %2461, %v2454
        %v2463 = vpop.permute.xlu0 %2462
        %v2465 = vmul.f32 %v2463, %v949
        %v2466 = vadd.f32 %v931, %v2465
        %2468 = vrot.lane.b32.xlu0 %v2465, 96
        %v2469 = vpop.permute.xlu0 %2468
        %2471 = vmatprep.subr.mxu0 0.0
        %v2472 = vand.u32 %v2469, 4294901760
        %2473 = vmatpush1.msra.mxu0 %v2472
        %2474 = vmatprep.subr.mxu0 0.0
        %2475 = vmatpush1.msra.mxu0 0.0
        %2476 = vmatprep.subr.mxu0 0.0
        %2477 = vmatpush1.msra.mxu0 0.0
        %2478 = vmatprep.subr.mxu0 0.0
        %2479 = vmatpush1.msra.mxu0 0.0
        %2480 = vmatprep.subr.mxu0 0.0
        %2481 = vmatpush1.msra.mxu0 0.0
        %2482 = vmatprep.subr.mxu0 0.0
        %2483 = vmatpush1.msra.mxu0 0.0
        %2484 = vmatprep.subr.mxu0 0.0
        %2485 = vmatpush1.msra.mxu0 0.0
        %2486 = vmatprep.subr.mxu0 0.0
        %2487 = vmatpush1.msra.mxu0 0.0
        %2488 = vmatprep.subr.mxu0 0.0
        %2489 = vmatpush1.msra.mxu0 0.0
        %2490 = vmatprep.subr.mxu0 0.0
        %2491 = vmatpush1.msra.mxu0 0.0
        %2492 = vmatprep.subr.mxu0 0.0
        %2493 = vmatpush1.msra.mxu0 0.0
        %2494 = vmatprep.subr.mxu0 0.0
        %2495 = vmatpush1.msra.mxu0 0.0
        %2496 = vmatprep.subr.mxu0 0.0
        %2497 = vmatpush1.msra.mxu0 0.0
        %2498 = vmatprep.subr.mxu0 0.0
        %2499 = vmatpush1.msra.mxu0 0.0
        %2500 = vmatprep.subr.mxu0 0.0
        %2501 = vmatpush1.msra.mxu0 0.0
        %2502 = vmatprep.subr.mxu0 0.0
        %2503 = vmatpush1.msra.mxu0 0.0
        %2504 = vmatprep.subr.mxu0 0.0
        %2505 = vmatpush1.msra.mxu0 0.0
        %2506 = vmatprep.subr.mxu0 0.0
        %2507 = vmatpush1.msra.mxu0 0.0
        %2508 = vmatprep.subr.mxu0 0.0
        %2509 = vmatpush1.msra.mxu0 0.0
        %2510 = vmatprep.subr.mxu0 0.0
        %2511 = vmatpush1.msra.mxu0 0.0
        %2512 = vmatprep.subr.mxu0 0.0
        %2513 = vmatpush1.msra.mxu0 0.0
        %2514 = vmatprep.subr.mxu0 0.0
        %2515 = vmatpush1.msra.mxu0 0.0
        %2516 = vmatprep.subr.mxu0 0.0
        %2517 = vmatpush1.msra.mxu0 0.0
        %2518 = vmatprep.subr.mxu0 0.0
        %2519 = vmatpush1.msra.mxu0 0.0
        %2520 = vmatprep.subr.mxu0 0.0
        %2521 = vmatpush1.msra.mxu0 0.0
        %2522 = vmatprep.subr.mxu0 0.0
        %2523 = vmatpush1.msra.mxu0 0.0
        %2524 = vmatprep.subr.mxu0 0.0
        %2525 = vmatpush1.msra.mxu0 0.0
        %2526 = vmatprep.subr.mxu0 0.0
        %2527 = vmatpush1.msra.mxu0 0.0
        %2528 = vmatprep.subr.mxu0 0.0
        %2529 = vmatpush1.msra.mxu0 0.0
        %2530 = vmatprep.subr.mxu0 0.0
        %2531 = vmatpush1.msra.mxu0 0.0
        %2532 = vmatprep.subr.mxu0 0.0
        %2533 = vmatpush1.msra.mxu0 0.0
        %2534 = vmatprep.subr.mxu0 0.0
        %2535 = vmatpush1.msra.mxu0 0.0
        %2536 = vmatprep.mubr.f32.mxu0 0.0
        %v2537 = vand.u32 %v962, 4294901760
        %v2538 = vsub.f32 %v962, %v2537
        %v2539 = vand.u32 %v2538, 4294901760
        %v2540 = vsub.f32 %v2538, %v2539
        %v2541 = vand.u32 %v2540, 4294901760
        %2542 = vmatmul.mubr.f32.gmra.mrb[0].mxu0 %v2541
        %v2543 = vpop.f32.mrb[0].mxu0
        %v2544 = vadd.f32 0.0, %v2543
        %v2545 = vpop.f32.mrb[0].mxu0
        %2546 = vdwg.mxu0
        %2547 = vmatprep.subr.mxu0 0.0
        %v2548 = vand.u32 %v2469, 4294901760
        %v2549 = vsub.f32 %v2469, %v2548
        %v2550 = vand.u32 %v2549, 4294901760
        %v2551 = vsub.f32 %v2549, %v2550
        %v2552 = vand.u32 %v2551, 4294901760
        %2553 = vmatpush1.msra.mxu0 %v2552
        %2554 = vmatprep.subr.mxu0 0.0
        %2555 = vmatpush1.msra.mxu0 0.0
        %2556 = vmatprep.subr.mxu0 0.0
        %2557 = vmatpush1.msra.mxu0 0.0
        %2558 = vmatprep.subr.mxu0 0.0
        %2559 = vmatpush1.msra.mxu0 0.0
        %2560 = vmatprep.subr.mxu0 0.0
        %2561 = vmatpush1.msra.mxu0 0.0
        %2562 = vmatprep.subr.mxu0 0.0
        %2563 = vmatpush1.msra.mxu0 0.0
        %2564 = vmatprep.subr.mxu0 0.0
        %2565 = vmatpush1.msra.mxu0 0.0
        %2566 = vmatprep.subr.mxu0 0.0
        %2567 = vmatpush1.msra.mxu0 0.0
        %2568 = vmatprep.subr.mxu0 0.0
        %2569 = vmatpush1.msra.mxu0 0.0
        %2570 = vmatprep.subr.mxu0 0.0
        %2571 = vmatpush1.msra.mxu0 0.0
        %2572 = vmatprep.subr.mxu0 0.0
        %2573 = vmatpush1.msra.mxu0 0.0
        %2574 = vmatprep.subr.mxu0 0.0
        %2575 = vmatpush1.msra.mxu0 0.0
        %2576 = vmatprep.subr.mxu0 0.0
        %2577 = vmatpush1.msra.mxu0 0.0
        %2578 = vmatprep.subr.mxu0 0.0
        %2579 = vmatpush1.msra.mxu0 0.0
        %2580 = vmatprep.subr.mxu0 0.0
        %2581 = vmatpush1.msra.mxu0 0.0
        %2582 = vmatprep.subr.mxu0 0.0
        %2583 = vmatpush1.msra.mxu0 0.0
        %2584 = vmatprep.subr.mxu0 0.0
        %2585 = vmatpush1.msra.mxu0 0.0
        %2586 = vmatprep.subr.mxu0 0.0
        %2587 = vmatpush1.msra.mxu0 0.0
        %2588 = vmatprep.subr.mxu0 0.0
        %2589 = vmatpush1.msra.mxu0 0.0
        %2590 = vmatprep.subr.mxu0 0.0
        %2591 = vmatpush1.msra.mxu0 0.0
        %2592 = vmatprep.subr.mxu0 0.0
        %2593 = vmatpush1.msra.mxu0 0.0
        %2594 = vmatprep.subr.mxu0 0.0
        %2595 = vmatpush1.msra.mxu0 0.0
        %2596 = vmatprep.subr.mxu0 0.0
        %2597 = vmatpush1.msra.mxu0 0.0
        %2598 = vmatprep.subr.mxu0 0.0
        %2599 = vmatpush1.msra.mxu0 0.0
        %2600 = vmatprep.subr.mxu0 0.0
        %2601 = vmatpush1.msra.mxu0 0.0
        %2602 = vmatprep.subr.mxu0 0.0
        %2603 = vmatpush1.msra.mxu0 0.0
        %2604 = vmatprep.subr.mxu0 0.0
        %2605 = vmatpush1.msra.mxu0 0.0
        %2606 = vmatprep.subr.mxu0 0.0
        %2607 = vmatpush1.msra.mxu0 0.0
        %2608 = vmatprep.subr.mxu0 0.0
        %2609 = vmatpush1.msra.mxu0 0.0
        %2610 = vmatprep.subr.mxu0 0.0
        %2611 = vmatpush1.msra.mxu0 0.0
        %2612 = vmatprep.subr.mxu0 0.0
        %2613 = vmatpush1.msra.mxu0 0.0
        %2614 = vmatprep.subr.mxu0 0.0
        %2615 = vmatpush1.msra.mxu0 0.0
        %2616 = vmatprep.mubr.f32.mxu0 0.0
        %v2617 = vand.u32 %v962, 4294901760
        %2618 = vmatmul.mubr.f32.gmra.mrb[0].mxu0 %v2617
        %v2619 = vpop.f32.mrb[0].mxu0
        %v2620 = vadd.f32 %v2544, %v2619
        %v2621 = vpop.f32.mrb[0].mxu0
        %2622 = vdwg.mxu0
        %2623 = vmatprep.subr.mxu0 0.0
        %v2624 = vand.u32 %v2469, 4294901760
        %v2625 = vsub.f32 %v2469, %v2624
        %2626 = vmatpush1.msra.mxu0 %v2625
        %2627 = vmatprep.subr.mxu0 0.0
        %2628 = vmatpush1.msra.mxu0 0.0
        %2629 = vmatprep.subr.mxu0 0.0
        %2630 = vmatpush1.msra.mxu0 0.0
        %2631 = vmatprep.subr.mxu0 0.0
        %2632 = vmatpush1.msra.mxu0 0.0
        %2633 = vmatprep.subr.mxu0 0.0
        %2634 = vmatpush1.msra.mxu0 0.0
        %2635 = vmatprep.subr.mxu0 0.0
        %2636 = vmatpush1.msra.mxu0 0.0
        %2637 = vmatprep.subr.mxu0 0.0
        %2638 = vmatpush1.msra.mxu0 0.0
        %2639 = vmatprep.subr.mxu0 0.0
        %2640 = vmatpush1.msra.mxu0 0.0
        %2641 = vmatprep.subr.mxu0 0.0
        %2642 = vmatpush1.msra.mxu0 0.0
        %2643 = vmatprep.subr.mxu0 0.0
        %2644 = vmatpush1.msra.mxu0 0.0
        %2645 = vmatprep.subr.mxu0 0.0
        %2646 = vmatpush1.msra.mxu0 0.0
        %2647 = vmatprep.subr.mxu0 0.0
        %2648 = vmatpush1.msra.mxu0 0.0
        %2649 = vmatprep.subr.mxu0 0.0
        %2650 = vmatpush1.msra.mxu0 0.0
        %2651 = vmatprep.subr.mxu0 0.0
        %2652 = vmatpush1.msra.mxu0 0.0
        %2653 = vmatprep.subr.mxu0 0.0
        %2654 = vmatpush1.msra.mxu0 0.0
        %2655 = vmatprep.subr.mxu0 0.0
        %2656 = vmatpush1.msra.mxu0 0.0
        %2657 = vmatprep.subr.mxu0 0.0
        %2658 = vmatpush1.msra.mxu0 0.0
        %2659 = vmatprep.subr.mxu0 0.0
        %2660 = vmatpush1.msra.mxu0 0.0
        %2661 = vmatprep.subr.mxu0 0.0
        %2662 = vmatpush1.msra.mxu0 0.0
        %2663 = vmatprep.subr.mxu0 0.0
        %2664 = vmatpush1.msra.mxu0 0.0
        %2665 = vmatprep.subr.mxu0 0.0
        %2666 = vmatpush1.msra.mxu0 0.0
        %2667 = vmatprep.subr.mxu0 0.0
        %2668 = vmatpush1.msra.mxu0 0.0
        %2669 = vmatprep.subr.mxu0 0.0
        %2670 = vmatpush1.msra.mxu0 0.0
        %2671 = vmatprep.subr.mxu0 0.0
        %2672 = vmatpush1.msra.mxu0 0.0
        %2673 = vmatprep.subr.mxu0 0.0
        %2674 = vmatpush1.msra.mxu0 0.0
        %2675 = vmatprep.subr.mxu0 0.0
        %2676 = vmatpush1.msra.mxu0 0.0
        %2677 = vmatprep.subr.mxu0 0.0
        %2678 = vmatpush1.msra.mxu0 0.0
        %2679 = vmatprep.subr.mxu0 0.0
        %2680 = vmatpush1.msra.mxu0 0.0
        %2681 = vmatprep.subr.mxu0 0.0
        %2682 = vmatpush1.msra.mxu0 0.0
        %2683 = vmatprep.subr.mxu0 0.0
        %2684 = vmatpush1.msra.mxu0 0.0
        %2685 = vmatprep.subr.mxu0 0.0
        %2686 = vmatpush1.msra.mxu0 0.0
        %2687 = vmatprep.subr.mxu0 0.0
        %2688 = vmatpush1.msra.mxu0 0.0
        %2689 = vmatprep.mubr.f32.mxu0 0.0
        %v2690 = vand.u32 %v962, 4294901760
        %v2691 = vsub.f32 %v962, %v2690
        %2692 = vmatmul.mubr.f32.gmra.mrb[0].mxu0 %v2691
        %v2693 = vpop.f32.mrb[0].mxu0
        %v2694 = vadd.f32 %v2620, %v2693
        %v2695 = vpop.f32.mrb[0].mxu0
        %2696 = vdwg.mxu0
        %2697 = vmatprep.subr.mxu0 0.0
        %v2698 = vand.u32 %v2469, 4294901760
        %2699 = vmatpush1.msra.mxu0 %v2698
        %2700 = vmatprep.subr.mxu0 0.0
        %2701 = vmatpush1.msra.mxu0 0.0
        %2702 = vmatprep.subr.mxu0 0.0
        %2703 = vmatpush1.msra.mxu0 0.0
        %2704 = vmatprep.subr.mxu0 0.0
        %2705 = vmatpush1.msra.mxu0 0.0
        %2706 = vmatprep.subr.mxu0 0.0
        %2707 = vmatpush1.msra.mxu0 0.0
        %2708 = vmatprep.subr.mxu0 0.0
        %2709 = vmatpush1.msra.mxu0 0.0
        %2710 = vmatprep.subr.mxu0 0.0
        %2711 = vmatpush1.msra.mxu0 0.0
        %2712 = vmatprep.subr.mxu0 0.0
        %2713 = vmatpush1.msra.mxu0 0.0
        %2714 = vmatprep.subr.mxu0 0.0
        %2715 = vmatpush1.msra.mxu0 0.0
        %2716 = vmatprep.subr.mxu0 0.0
        %2717 = vmatpush1.msra.mxu0 0.0
        %2718 = vmatprep.subr.mxu0 0.0
        %2719 = vmatpush1.msra.mxu0 0.0
        %2720 = vmatprep.subr.mxu0 0.0
        %2721 = vmatpush1.msra.mxu0 0.0
        %2722 = vmatprep.subr.mxu0 0.0
        %2723 = vmatpush1.msra.mxu0 0.0
        %2724 = vmatprep.subr.mxu0 0.0
        %2725 = vmatpush1.msra.mxu0 0.0
        %2726 = vmatprep.subr.mxu0 0.0
        %2727 = vmatpush1.msra.mxu0 0.0
        %2728 = vmatprep.subr.mxu0 0.0
        %2729 = vmatpush1.msra.mxu0 0.0
        %2730 = vmatprep.subr.mxu0 0.0
        %2731 = vmatpush1.msra.mxu0 0.0
        %2732 = vmatprep.subr.mxu0 0.0
        %2733 = vmatpush1.msra.mxu0 0.0
        %2734 = vmatprep.subr.mxu0 0.0
        %2735 = vmatpush1.msra.mxu0 0.0
        %2736 = vmatprep.subr.mxu0 0.0
        %2737 = vmatpush1.msra.mxu0 0.0
        %2738 = vmatprep.subr.mxu0 0.0
        %2739 = vmatpush1.msra.mxu0 0.0
        %2740 = vmatprep.subr.mxu0 0.0
        %2741 = vmatpush1.msra.mxu0 0.0
        %2742 = vmatprep.subr.mxu0 0.0
        %2743 = vmatpush1.msra.mxu0 0.0
        %2744 = vmatprep.subr.mxu0 0.0
        %2745 = vmatpush1.msra.mxu0 0.0
        %2746 = vmatprep.subr.mxu0 0.0
        %2747 = vmatpush1.msra.mxu0 0.0
        %2748 = vmatprep.subr.mxu0 0.0
        %2749 = vmatpush1.msra.mxu0 0.0
        %2750 = vmatprep.subr.mxu0 0.0
        %2751 = vmatpush1.msra.mxu0 0.0
        %2752 = vmatprep.subr.mxu0 0.0
        %2753 = vmatpush1.msra.mxu0 0.0
        %2754 = vmatprep.subr.mxu0 0.0
        %2755 = vmatpush1.msra.mxu0 0.0
        %2756 = vmatprep.subr.mxu0 0.0
        %2757 = vmatpush1.msra.mxu0 0.0
        %2758 = vmatprep.subr.mxu0 0.0
        %2759 = vmatpush1.msra.mxu0 0.0
        %2760 = vmatprep.subr.mxu0 0.0
        %2761 = vmatpush1.msra.mxu0 0.0
        %2762 = vmatprep.mubr.f32.mxu0 0.0
        %v2763 = vand.u32 %v962, 4294901760
        %v2764 = vsub.f32 %v962, %v2763
        %v2765 = vand.u32 %v2764, 4294901760
        %2766 = vmatmul.mubr.f32.gmra.mrb[0].mxu0 %v2765
        %v2767 = vpop.f32.mrb[0].mxu0
        %v2768 = vadd.f32 %v2694, %v2767
        %v2769 = vpop.f32.mrb[0].mxu0
        %2770 = vdwg.mxu0
        %2771 = vmatprep.subr.mxu0 0.0
        %v2772 = vand.u32 %v2469, 4294901760
        %v2773 = vsub.f32 %v2469, %v2772
        %v2774 = vand.u32 %v2773, 4294901760
        %2775 = vmatpush1.msra.mxu0 %v2774
        %2776 = vmatprep.subr.mxu0 0.0
        %2777 = vmatpush1.msra.mxu0 0.0
        %2778 = vmatprep.subr.mxu0 0.0
        %2779 = vmatpush1.msra.mxu0 0.0
        %2780 = vmatprep.subr.mxu0 0.0
        %2781 = vmatpush1.msra.mxu0 0.0
        %2782 = vmatprep.subr.mxu0 0.0
        %2783 = vmatpush1.msra.mxu0 0.0
        %2784 = vmatprep.subr.mxu0 0.0
        %2785 = vmatpush1.msra.mxu0 0.0
        %2786 = vmatprep.subr.mxu0 0.0
        %2787 = vmatpush1.msra.mxu0 0.0
        %2788 = vmatprep.subr.mxu0 0.0
        %2789 = vmatpush1.msra.mxu0 0.0
        %2790 = vmatprep.subr.mxu0 0.0
        %2791 = vmatpush1.msra.mxu0 0.0
        %2792 = vmatprep.subr.mxu0 0.0
        %2793 = vmatpush1.msra.mxu0 0.0
        %2794 = vmatprep.subr.mxu0 0.0
        %2795 = vmatpush1.msra.mxu0 0.0
        %2796 = vmatprep.subr.mxu0 0.0
        %2797 = vmatpush1.msra.mxu0 0.0
        %2798 = vmatprep.subr.mxu0 0.0
        %2799 = vmatpush1.msra.mxu0 0.0
        %2800 = vmatprep.subr.mxu0 0.0
        %2801 = vmatpush1.msra.mxu0 0.0
        %2802 = vmatprep.subr.mxu0 0.0
        %2803 = vmatpush1.msra.mxu0 0.0
        %2804 = vmatprep.subr.mxu0 0.0
        %2805 = vmatpush1.msra.mxu0 0.0
        %2806 = vmatprep.subr.mxu0 0.0
        %2807 = vmatpush1.msra.mxu0 0.0
        %2808 = vmatprep.subr.mxu0 0.0
        %2809 = vmatpush1.msra.mxu0 0.0
        %2810 = vmatprep.subr.mxu0 0.0
        %2811 = vmatpush1.msra.mxu0 0.0
        %2812 = vmatprep.subr.mxu0 0.0
        %2813 = vmatpush1.msra.mxu0 0.0
        %2814 = vmatprep.subr.mxu0 0.0
        %2815 = vmatpush1.msra.mxu0 0.0
        %2816 = vmatprep.subr.mxu0 0.0
        %2817 = vmatpush1.msra.mxu0 0.0
        %2818 = vmatprep.subr.mxu0 0.0
        %2819 = vmatpush1.msra.mxu0 0.0
        %2820 = vmatprep.subr.mxu0 0.0
        %2821 = vmatpush1.msra.mxu0 0.0
        %2822 = vmatprep.subr.mxu0 0.0
        %2823 = vmatpush1.msra.mxu0 0.0
        %2824 = vmatprep.subr.mxu0 0.0
        %2825 = vmatpush1.msra.mxu0 0.0
        %2826 = vmatprep.subr.mxu0 0.0
        %2827 = vmatpush1.msra.mxu0 0.0
        %2828 = vmatprep.subr.mxu0 0.0
        %2829 = vmatpush1.msra.mxu0 0.0
        %2830 = vmatprep.subr.mxu0 0.0
        %2831 = vmatpush1.msra.mxu0 0.0
        %2832 = vmatprep.subr.mxu0 0.0
        %2833 = vmatpush1.msra.mxu0 0.0
        %2834 = vmatprep.subr.mxu0 0.0
        %2835 = vmatpush1.msra.mxu0 0.0
        %2836 = vmatprep.subr.mxu0 0.0
        %2837 = vmatpush1.msra.mxu0 0.0
        %2838 = vmatprep.mubr.f32.mxu0 0.0
        %v2839 = vand.u32 %v962, 4294901760
        %2840 = vmatmul.mubr.f32.gmra.mrb[0].mxu0 %v2839
        %v2841 = vpop.f32.mrb[0].mxu0
        %v2842 = vadd.f32 %v2768, %v2841
        %v2843 = vpop.f32.mrb[0].mxu0
        %2844 = vdwg.mxu0
        %2845 = vmatprep.subr.mxu0 0.0
        %v2846 = vand.u32 %v2469, 4294901760
        %2847 = vmatpush1.msra.mxu0 %v2846
        %2848 = vmatprep.subr.mxu0 0.0
        %2849 = vmatpush1.msra.mxu0 0.0
        %2850 = vmatprep.subr.mxu0 0.0
        %2851 = vmatpush1.msra.mxu0 0.0
        %2852 = vmatprep.subr.mxu0 0.0
        %2853 = vmatpush1.msra.mxu0 0.0
        %2854 = vmatprep.subr.mxu0 0.0
        %2855 = vmatpush1.msra.mxu0 0.0
        %2856 = vmatprep.subr.mxu0 0.0
        %2857 = vmatpush1.msra.mxu0 0.0
        %2858 = vmatprep.subr.mxu0 0.0
        %2859 = vmatpush1.msra.mxu0 0.0
        %2860 = vmatprep.subr.mxu0 0.0
        %2861 = vmatpush1.msra.mxu0 0.0
        %2862 = vmatprep.subr.mxu0 0.0
        %2863 = vmatpush1.msra.mxu0 0.0
        %2864 = vmatprep.subr.mxu0 0.0
        %2865 = vmatpush1.msra.mxu0 0.0
        %2866 = vmatprep.subr.mxu0 0.0
        %2867 = vmatpush1.msra.mxu0 0.0
        %2868 = vmatprep.subr.mxu0 0.0
        %2869 = vmatpush1.msra.mxu0 0.0
        %2870 = vmatprep.subr.mxu0 0.0
        %2871 = vmatpush1.msra.mxu0 0.0
        %2872 = vmatprep.subr.mxu0 0.0
        %2873 = vmatpush1.msra.mxu0 0.0
        %2874 = vmatprep.subr.mxu0 0.0
        %2875 = vmatpush1.msra.mxu0 0.0
        %2876 = vmatprep.subr.mxu0 0.0
        %2877 = vmatpush1.msra.mxu0 0.0
        %2878 = vmatprep.subr.mxu0 0.0
        %2879 = vmatpush1.msra.mxu0 0.0
        %2880 = vmatprep.subr.mxu0 0.0
        %2881 = vmatpush1.msra.mxu0 0.0
        %2882 = vmatprep.subr.mxu0 0.0
        %2883 = vmatpush1.msra.mxu0 0.0
        %2884 = vmatprep.subr.mxu0 0.0
        %2885 = vmatpush1.msra.mxu0 0.0
        %2886 = vmatprep.subr.mxu0 0.0
        %2887 = vmatpush1.msra.mxu0 0.0
        %2888 = vmatprep.subr.mxu0 0.0
        %2889 = vmatpush1.msra.mxu0 0.0
        %2890 = vmatprep.subr.mxu0 0.0
        %2891 = vmatpush1.msra.mxu0 0.0
        %2892 = vmatprep.subr.mxu0 0.0
        %2893 = vmatpush1.msra.mxu0 0.0
        %2894 = vmatprep.subr.mxu0 0.0
        %2895 = vmatpush1.msra.mxu0 0.0
        %2896 = vmatprep.subr.mxu0 0.0
        %2897 = vmatpush1.msra.mxu0 0.0
        %2898 = vmatprep.subr.mxu0 0.0
        %2899 = vmatpush1.msra.mxu0 0.0
        %2900 = vmatprep.subr.mxu0 0.0
        %2901 = vmatpush1.msra.mxu0 0.0
        %2902 = vmatprep.subr.mxu0 0.0
        %2903 = vmatpush1.msra.mxu0 0.0
        %2904 = vmatprep.subr.mxu0 0.0
        %2905 = vmatpush1.msra.mxu0 0.0
        %2906 = vmatprep.subr.mxu0 0.0
        %2907 = vmatpush1.msra.mxu0 0.0
        %2908 = vmatprep.subr.mxu0 0.0
        %2909 = vmatpush1.msra.mxu0 0.0
        %2910 = vmatprep.mubr.f32.mxu0 0.0
        %v2911 = vand.u32 %v962, 4294901760
        %2912 = vmatmul.mubr.f32.gmra.mrb[0].mxu0 %v2911
        %v2913 = vpop.f32.mrb[0].mxu0
        %v2914 = vadd.f32 %v2842, %v2913
        %v2915 = vpop.f32.mrb[0].mxu0
        %2916 = vdwg.mxu0
        %v2917 = vadd.f32 %v2466, %v2914
        %v2918 = vxor.u32 %v2917, 2147483648
        %v2919 = vmul.f32 %v2918, 1.442695
        %v2920 = vpow.pop %v2919
        %v2921 = vadd.f32 %v2920, 1.0
        %v2922 = vrcp.pop %v2921
        %v2923 = vmul.f32 1.0, %v2922
        %v2924 = vmul.f32 %v2463, %v953
        %2926 = vrot.lane.b32.xlu0 %v2924, 32
        %v2927 = vpop.permute.xlu0 %2926
        %v2929 = vadd.f32 %v931, %v2927
        %v2931 = vsel %vm1423, %v2923, 0
        %2933 = vmatprep.subr.mxu0 0.0
        %v2934 = vand.u32 %v266, 4294901760
        %2935 = vmatpush1.msra.mxu0 %v2934
        %2936 = vmatprep.subr.mxu0 0.0
        %v2937 = vand.u32 %v267, 4294901760
        %2938 = vmatpush1.msra.mxu0 %v2937
        %2939 = vmatprep.subr.mxu0 0.0
        %v2940 = vand.u32 %v268, 4294901760
        %2941 = vmatpush1.msra.mxu0 %v2940
        %2942 = vmatprep.subr.mxu0 0.0
        %v2943 = vand.u32 %v269, 4294901760
        %2944 = vmatpush1.msra.mxu0 %v2943
        %2945 = vmatprep.subr.mxu0 0.0
        %2946 = vmatpush1.msra.mxu0 0.0
        %2947 = vmatprep.subr.mxu0 0.0
        %2948 = vmatpush1.msra.mxu0 0.0
        %2949 = vmatprep.subr.mxu0 0.0
        %2950 = vmatpush1.msra.mxu0 0.0
        %2951 = vmatprep.subr.mxu0 0.0
        %2952 = vmatpush1.msra.mxu0 0.0
        %2953 = vmatprep.subr.mxu0 0.0
        %2954 = vmatpush1.msra.mxu0 0.0
        %2955 = vmatprep.subr.mxu0 0.0
        %2956 = vmatpush1.msra.mxu0 0.0
        %2957 = vmatprep.subr.mxu0 0.0
        %2958 = vmatpush1.msra.mxu0 0.0
        %2959 = vmatprep.subr.mxu0 0.0
        %2960 = vmatpush1.msra.mxu0 0.0
        %2961 = vmatprep.subr.mxu0 0.0
        %2962 = vmatpush1.msra.mxu0 0.0
        %2963 = vmatprep.subr.mxu0 0.0
        %2964 = vmatpush1.msra.mxu0 0.0
        %2965 = vmatprep.subr.mxu0 0.0
        %2966 = vmatpush1.msra.mxu0 0.0
        %2967 = vmatprep.subr.mxu0 0.0
        %2968 = vmatpush1.msra.mxu0 0.0
        %2969 = vmatprep.subr.mxu0 0.0
        %2970 = vmatpush1.msra.mxu0 0.0
        %2971 = vmatprep.subr.mxu0 0.0
        %2972 = vmatpush1.msra.mxu0 0.0
        %2973 = vmatprep.subr.mxu0 0.0
        %2974 = vmatpush1.msra.mxu0 0.0
        %2975 = vmatprep.subr.mxu0 0.0
        %2976 = vmatpush1.msra.mxu0 0.0
        %2977 = vmatprep.subr.mxu0 0.0
        %2978 = vmatpush1.msra.mxu0 0.0
        %2979 = vmatprep.subr.mxu0 0.0
        %2980 = vmatpush1.msra.mxu0 0.0
        %2981 = vmatprep.subr.mxu0 0.0
        %2982 = vmatpush1.msra.mxu0 0.0
        %2983 = vmatprep.subr.mxu0 0.0
        %2984 = vmatpush1.msra.mxu0 0.0
        %2985 = vmatprep.subr.mxu0 0.0
        %2986 = vmatpush1.msra.mxu0 0.0
        %2987 = vmatprep.subr.mxu0 0.0
        %2988 = vmatpush1.msra.mxu0 0.0
        %2989 = vmatprep.subr.mxu0 0.0
        %2990 = vmatpush1.msra.mxu0 0.0
        %2991 = vmatprep.subr.mxu0 0.0
        %2992 = vmatpush1.msra.mxu0 0.0
        %2993 = vmatprep.subr.mxu0 0.0
        %2994 = vmatpush1.msra.mxu0 0.0
        %2995 = vmatprep.subr.mxu0 0.0
        %2996 = vmatpush1.msra.mxu0 0.0
        %2997 = vmatprep.subr.mxu0 0.0
        %2998 = vmatpush1.msra.mxu0 0.0
        %2999 = vmatprep.subr.mxu0 0.0
        %3000 = vmatpush1.msra.mxu0 0.0
        %3001 = vmatprep.mubr.f32.mxu0 0.0
        %v3002 = vand.u32 %v2931, 4294901760
        %v3003 = vsub.f32 %v2931, %v3002
        %v3004 = vand.u32 %v3003, 4294901760
        %v3005 = vsub.f32 %v3003, %v3004
        %v3006 = vand.u32 %v3005, 4294901760
        %3007 = vmatmul.mubr.f32.gmra.mrb[0].mxu0 %v3006
        %v3008 = vpop.f32.mrb[0].mxu0
        %v3009 = vadd.f32 0.0, %v3008
        %v3010 = vpop.f32.mrb[0].mxu0
        %3011 = vdwg.mxu0
        %3012 = vmatprep.subr.mxu0 0.0
        %v3013 = vand.u32 %v266, 4294901760
        %v3014 = vsub.f32 %v266, %v3013
        %v3015 = vand.u32 %v3014, 4294901760
        %v3016 = vsub.f32 %v3014, %v3015
        %v3017 = vand.u32 %v3016, 4294901760
        %3018 = vmatpush1.msra.mxu0 %v3017
        %3019 = vmatprep.subr.mxu0 0.0
        %v3020 = vand.u32 %v267, 4294901760
        %v3021 = vsub.f32 %v267, %v3020
        %v3022 = vand.u32 %v3021, 4294901760
        %v3023 = vsub.f32 %v3021, %v3022
        %v3024 = vand.u32 %v3023, 4294901760
        %3025 = vmatpush1.msra.mxu0 %v3024
        %3026 = vmatprep.subr.mxu0 0.0
        %v3027 = vand.u32 %v268, 4294901760
        %v3028 = vsub.f32 %v268, %v3027
        %v3029 = vand.u32 %v3028, 4294901760
        %v3030 = vsub.f32 %v3028, %v3029
        %v3031 = vand.u32 %v3030, 4294901760
        %3032 = vmatpush1.msra.mxu0 %v3031
        %3033 = vmatprep.subr.mxu0 0.0
        %v3034 = vand.u32 %v269, 4294901760
        %v3035 = vsub.f32 %v269, %v3034
        %v3036 = vand.u32 %v3035, 4294901760
        %v3037 = vsub.f32 %v3035, %v3036
        %v3038 = vand.u32 %v3037, 4294901760
        %3039 = vmatpush1.msra.mxu0 %v3038
        %3040 = vmatprep.subr.mxu0 0.0
        %3041 = vmatpush1.msra.mxu0 0.0
        %3042 = vmatprep.subr.mxu0 0.0
        %3043 = vmatpush1.msra.mxu0 0.0
        %3044 = vmatprep.subr.mxu0 0.0
        %3045 = vmatpush1.msra.mxu0 0.0
        %3046 = vmatprep.subr.mxu0 0.0
        %3047 = vmatpush1.msra.mxu0 0.0
        %3048 = vmatprep.subr.mxu0 0.0
        %3049 = vmatpush1.msra.mxu0 0.0
        %3050 = vmatprep.subr.mxu0 0.0
        %3051 = vmatpush1.msra.mxu0 0.0
        %3052 = vmatprep.subr.mxu0 0.0
        %3053 = vmatpush1.msra.mxu0 0.0
        %3054 = vmatprep.subr.mxu0 0.0
        %3055 = vmatpush1.msra.mxu0 0.0
        %3056 = vmatprep.subr.mxu0 0.0
        %3057 = vmatpush1.msra.mxu0 0.0
        %3058 = vmatprep.subr.mxu0 0.0
        %3059 = vmatpush1.msra.mxu0 0.0
        %3060 = vmatprep.subr.mxu0 0.0
        %3061 = vmatpush1.msra.mxu0 0.0
        %3062 = vmatprep.subr.mxu0 0.0
        %3063 = vmatpush1.msra.mxu0 0.0
        %3064 = vmatprep.subr.mxu0 0.0
        %3065 = vmatpush1.msra.mxu0 0.0
        %3066 = vmatprep.subr.mxu0 0.0
        %3067 = vmatpush1.msra.mxu0 0.0
        %3068 = vmatprep.subr.mxu0 0.0
        %3069 = vmatpush1.msra.mxu0 0.0
        %3070 = vmatprep.subr.mxu0 0.0
        %3071 = vmatpush1.msra.mxu0 0.0
        %3072 = vmatprep.subr.mxu0 0.0
        %3073 = vmatpush1.msra.mxu0 0.0
        %3074 = vmatprep.subr.mxu0 0.0
        %3075 = vmatpush1.msra.mxu0 0.0
        %3076 = vmatprep.subr.mxu0 0.0
        %3077 = vmatpush1.msra.mxu0 0.0
        %3078 = vmatprep.subr.mxu0 0.0
        %3079 = vmatpush1.msra.mxu0 0.0
        %3080 = vmatprep.subr.mxu0 0.0
        %3081 = vmatpush1.msra.mxu0 0.0
        %3082 = vmatprep.subr.mxu0 0.0
        %3083 = vmatpush1.msra.mxu0 0.0
        %3084 = vmatprep.subr.mxu0 0.0
        %3085 = vmatpush1.msra.mxu0 0.0
        %3086 = vmatprep.subr.mxu0 0.0
        %3087 = vmatpush1.msra.mxu0 0.0
        %3088 = vmatprep.subr.mxu0 0.0
        %3089 = vmatpush1.msra.mxu0 0.0
        %3090 = vmatprep.subr.mxu0 0.0
        %3091 = vmatpush1.msra.mxu0 0.0
        %3092 = vmatprep.subr.mxu0 0.0
        %3093 = vmatpush1.msra.mxu0 0.0
        %3094 = vmatprep.subr.mxu0 0.0
        %3095 = vmatpush1.msra.mxu0 0.0
        %3096 = vmatprep.mubr.f32.mxu0 0.0
        %v3097 = vand.u32 %v2931, 4294901760
        %3098 = vmatmul.mubr.f32.gmra.mrb[0].mxu0 %v3097
        %v3099 = vpop.f32.mrb[0].mxu0
        %v3100 = vadd.f32 %v3009, %v3099
        %v3101 = vpop.f32.mrb[0].mxu0
        %3102 = vdwg.mxu0
        %3103 = vmatprep.subr.mxu0 0.0
        %v3104 = vand.u32 %v266, 4294901760
        %v3105 = vsub.f32 %v266, %v3104
        %3106 = vmatpush1.msra.mxu0 %v3105
        %3107 = vmatprep.subr.mxu0 0.0
        %v3108 = vand.u32 %v267, 4294901760
        %v3109 = vsub.f32 %v267, %v3108
        %3110 = vmatpush1.msra.mxu0 %v3109
        %3111 = vmatprep.subr.mxu0 0.0
        %v3112 = vand.u32 %v268, 4294901760
        %v3113 = vsub.f32 %v268, %v3112
        %3114 = vmatpush1.msra.mxu0 %v3113
        %3115 = vmatprep.subr.mxu0 0.0
        %v3116 = vand.u32 %v269, 4294901760
        %v3117 = vsub.f32 %v269, %v3116
        %3118 = vmatpush1.msra.mxu0 %v3117
        %3119 = vmatprep.subr.mxu0 0.0
        %3120 = vmatpush1.msra.mxu0 0.0
        %3121 = vmatprep.subr.mxu0 0.0
        %3122 = vmatpush1.msra.mxu0 0.0
        %3123 = vmatprep.subr.mxu0 0.0
        %3124 = vmatpush1.msra.mxu0 0.0
        %3125 = vmatprep.subr.mxu0 0.0
        %3126 = vmatpush1.msra.mxu0 0.0
        %3127 = vmatprep.subr.mxu0 0.0
        %3128 = vmatpush1.msra.mxu0 0.0
        %3129 = vmatprep.subr.mxu0 0.0
        %3130 = vmatpush1.msra.mxu0 0.0
        %3131 = vmatprep.subr.mxu0 0.0
        %3132 = vmatpush1.msra.mxu0 0.0
        %3133 = vmatprep.subr.mxu0 0.0
        %3134 = vmatpush1.msra.mxu0 0.0
        %3135 = vmatprep.subr.mxu0 0.0
        %3136 = vmatpush1.msra.mxu0 0.0
        %3137 = vmatprep.subr.mxu0 0.0
        %3138 = vmatpush1.msra.mxu0 0.0
        %3139 = vmatprep.subr.mxu0 0.0
        %3140 = vmatpush1.msra.mxu0 0.0
        %3141 = vmatprep.subr.mxu0 0.0
        %3142 = vmatpush1.msra.mxu0 0.0
        %3143 = vmatprep.subr.mxu0 0.0
        %3144 = vmatpush1.msra.mxu0 0.0
        %3145 = vmatprep.subr.mxu0 0.0
        %3146 = vmatpush1.msra.mxu0 0.0
        %3147 = vmatprep.subr.mxu0 0.0
        %3148 = vmatpush1.msra.mxu0 0.0
        %3149 = vmatprep.subr.mxu0 0.0
        %3150 = vmatpush1.msra.mxu0 0.0
        %3151 = vmatprep.subr.mxu0 0.0
        %3152 = vmatpush1.msra.mxu0 0.0
        %3153 = vmatprep.subr.mxu0 0.0
        %3154 = vmatpush1.msra.mxu0 0.0
        %3155 = vmatprep.subr.mxu0 0.0
        %3156 = vmatpush1.msra.mxu0 0.0
        %3157 = vmatprep.subr.mxu0 0.0
        %3158 = vmatpush1.msra.mxu0 0.0
        %3159 = vmatprep.subr.mxu0 0.0
        %3160 = vmatpush1.msra.mxu0 0.0
        %3161 = vmatprep.subr.mxu0 0.0
        %3162 = vmatpush1.msra.mxu0 0.0
        %3163 = vmatprep.subr.mxu0 0.0
        %3164 = vmatpush1.msra.mxu0 0.0
        %3165 = vmatprep.subr.mxu0 0.0
        %3166 = vmatpush1.msra.mxu0 0.0
        %3167 = vmatprep.subr.mxu0 0.0
        %3168 = vmatpush1.msra.mxu0 0.0
        %3169 = vmatprep.subr.mxu0 0.0
        %3170 = vmatpush1.msra.mxu0 0.0
        %3171 = vmatprep.subr.mxu0 0.0
        %3172 = vmatpush1.msra.mxu0 0.0
        %3173 = vmatprep.subr.mxu0 0.0
        %3174 = vmatpush1.msra.mxu0 0.0
        %3175 = vmatprep.mubr.f32.mxu0 0.0
        %v3176 = vand.u32 %v2931, 4294901760
        %v3177 = vsub.f32 %v2931, %v3176
        %3178 = vmatmul.mubr.f32.gmra.mrb[0].mxu0 %v3177
        %v3179 = vpop.f32.mrb[0].mxu0
        %v3180 = vadd.f32 %v3100, %v3179
        %v3181 = vpop.f32.mrb[0].mxu0
        %3182 = vdwg.mxu0
        %3183 = vmatprep.subr.mxu0 0.0
        %v3184 = vand.u32 %v266, 4294901760
        %3185 = vmatpush1.msra.mxu0 %v3184
        %3186 = vmatprep.subr.mxu0 0.0
        %v3187 = vand.u32 %v267, 4294901760
        %3188 = vmatpush1.msra.mxu0 %v3187
        %3189 = vmatprep.subr.mxu0 0.0
        %v3190 = vand.u32 %v268, 4294901760
        %3191 = vmatpush1.msra.mxu0 %v3190
        %3192 = vmatprep.subr.mxu0 0.0
        %v3193 = vand.u32 %v269, 4294901760
        %3194 = vmatpush1.msra.mxu0 %v3193
        %3195 = vmatprep.subr.mxu0 0.0
        %3196 = vmatpush1.msra.mxu0 0.0
        %3197 = vmatprep.subr.mxu0 0.0
        %3198 = vmatpush1.msra.mxu0 0.0
        %3199 = vmatprep.subr.mxu0 0.0
        %3200 = vmatpush1.msra.mxu0 0.0
        %3201 = vmatprep.subr.mxu0 0.0
        %3202 = vmatpush1.msra.mxu0 0.0
        %3203 = vmatprep.subr.mxu0 0.0
        %3204 = vmatpush1.msra.mxu0 0.0
        %3205 = vmatprep.subr.mxu0 0.0
        %3206 = vmatpush1.msra.mxu0 0.0
        %3207 = vmatprep.subr.mxu0 0.0
        %3208 = vmatpush1.msra.mxu0 0.0
        %3209 = vmatprep.subr.mxu0 0.0
        %3210 = vmatpush1.msra.mxu0 0.0
        %3211 = vmatprep.subr.mxu0 0.0
        %3212 = vmatpush1.msra.mxu0 0.0
        %3213 = vmatprep.subr.mxu0 0.0
        %3214 = vmatpush1.msra.mxu0 0.0
        %3215 = vmatprep.subr.mxu0 0.0
        %3216 = vmatpush1.msra.mxu0 0.0
        %3217 = vmatprep.subr.mxu0 0.0
        %3218 = vmatpush1.msra.mxu0 0.0
        %3219 = vmatprep.subr.mxu0 0.0
        %3220 = vmatpush1.msra.mxu0 0.0
        %3221 = vmatprep.subr.mxu0 0.0
        %3222 = vmatpush1.msra.mxu0 0.0
        %3223 = vmatprep.subr.mxu0 0.0
        %3224 = vmatpush1.msra.mxu0 0.0
        %3225 = vmatprep.subr.mxu0 0.0
        %3226 = vmatpush1.msra.mxu0 0.0
        %3227 = vmatprep.subr.mxu0 0.0
        %3228 = vmatpush1.msra.mxu0 0.0
        %3229 = vmatprep.subr.mxu0 0.0
        %3230 = vmatpush1.msra.mxu0 0.0
        %3231 = vmatprep.subr.mxu0 0.0
        %3232 = vmatpush1.msra.mxu0 0.0
        %3233 = vmatprep.subr.mxu0 0.0
        %3234 = vmatpush1.msra.mxu0 0.0
        %3235 = vmatprep.subr.mxu0 0.0
        %3236 = vmatpush1.msra.mxu0 0.0
        %3237 = vmatprep.subr.mxu0 0.0
        %3238 = vmatpush1.msra.mxu0 0.0
        %3239 = vmatprep.subr.mxu0 0.0
        %3240 = vmatpush1.msra.mxu0 0.0
        %3241 = vmatprep.subr.mxu0 0.0
        %3242 = vmatpush1.msra.mxu0 0.0
        %3243 = vmatprep.subr.mxu0 0.0
        %3244 = vmatpush1.msra.mxu0 0.0
        %3245 = vmatprep.subr.mxu0 0.0
        %3246 = vmatpush1.msra.mxu0 0.0
        %3247 = vmatprep.subr.mxu0 0.0
        %3248 = vmatpush1.msra.mxu0 0.0
        %3249 = vmatprep.subr.mxu0 0.0
        %3250 = vmatpush1.msra.mxu0 0.0
        %3251 = vmatprep.mubr.f32.mxu0 0.0
        %v3252 = vand.u32 %v2931, 4294901760
        %v3253 = vsub.f32 %v2931, %v3252
        %v3254 = vand.u32 %v3253, 4294901760
        %3255 = vmatmul.mubr.f32.gmra.mrb[0].mxu0 %v3254
        %v3256 = vpop.f32.mrb[0].mxu0
        %v3257 = vadd.f32 %v3180, %v3256
        %v3258 = vpop.f32.mrb[0].mxu0
        %3259 = vdwg.mxu0
        %3260 = vmatprep.subr.mxu0 0.0
        %v3261 = vand.u32 %v266, 4294901760
        %v3262 = vsub.f32 %v266, %v3261
        %v3263 = vand.u32 %v3262, 4294901760
        %3264 = vmatpush1.msra.mxu0 %v3263
        %3265 = vmatprep.subr.mxu0 0.0
        %v3266 = vand.u32 %v267, 4294901760
        %v3267 = vsub.f32 %v267, %v3266
        %v3268 = vand.u32 %v3267, 4294901760
        %3269 = vmatpush1.msra.mxu0 %v3268
        %3270 = vmatprep.subr.mxu0 0.0
        %v3271 = vand.u32 %v268, 4294901760
        %v3272 = vsub.f32 %v268, %v3271
        %v3273 = vand.u32 %v3272, 4294901760
        %3274 = vmatpush1.msra.mxu0 %v3273
        %3275 = vmatprep.subr.mxu0 0.0
        %v3276 = vand.u32 %v269, 4294901760
        %v3277 = vsub.f32 %v269, %v3276
        %v3278 = vand.u32 %v3277, 4294901760
        %3279 = vmatpush1.msra.mxu0 %v3278
        %3280 = vmatprep.subr.mxu0 0.0
        %3281 = vmatpush1.msra.mxu0 0.0
        %3282 = vmatprep.subr.mxu0 0.0
        %3283 = vmatpush1.msra.mxu0 0.0
        %3284 = vmatprep.subr.mxu0 0.0
        %3285 = vmatpush1.msra.mxu0 0.0
        %3286 = vmatprep.subr.mxu0 0.0
        %3287 = vmatpush1.msra.mxu0 0.0
        %3288 = vmatprep.subr.mxu0 0.0
        %3289 = vmatpush1.msra.mxu0 0.0
        %3290 = vmatprep.subr.mxu0 0.0
        %3291 = vmatpush1.msra.mxu0 0.0
        %3292 = vmatprep.subr.mxu0 0.0
        %3293 = vmatpush1.msra.mxu0 0.0
        %3294 = vmatprep.subr.mxu0 0.0
        %3295 = vmatpush1.msra.mxu0 0.0
        %3296 = vmatprep.subr.mxu0 0.0
        %3297 = vmatpush1.msra.mxu0 0.0
        %3298 = vmatprep.subr.mxu0 0.0
        %3299 = vmatpush1.msra.mxu0 0.0
        %3300 = vmatprep.subr.mxu0 0.0
        %3301 = vmatpush1.msra.mxu0 0.0
        %3302 = vmatprep.subr.mxu0 0.0
        %3303 = vmatpush1.msra.mxu0 0.0
        %3304 = vmatprep.subr.mxu0 0.0
        %3305 = vmatpush1.msra.mxu0 0.0
        %3306 = vmatprep.subr.mxu0 0.0
        %3307 = vmatpush1.msra.mxu0 0.0
        %3308 = vmatprep.subr.mxu0 0.0
        %3309 = vmatpush1.msra.mxu0 0.0
        %3310 = vmatprep.subr.mxu0 0.0
        %3311 = vmatpush1.msra.mxu0 0.0
        %3312 = vmatprep.subr.mxu0 0.0
        %3313 = vmatpush1.msra.mxu0 0.0
        %3314 = vmatprep.subr.mxu0 0.0
        %3315 = vmatpush1.msra.mxu0 0.0
        %3316 = vmatprep.subr.mxu0 0.0
        %3317 = vmatpush1.msra.mxu0 0.0
        %3318 = vmatprep.subr.mxu0 0.0
        %3319 = vmatpush1.msra.mxu0 0.0
        %3320 = vmatprep.subr.mxu0 0.0
        %3321 = vmatpush1.msra.mxu0 0.0
        %3322 = vmatprep.subr.mxu0 0.0
        %3323 = vmatpush1.msra.mxu0 0.0
        %3324 = vmatprep.subr.mxu0 0.0
        %3325 = vmatpush1.msra.mxu0 0.0
        %3326 = vmatprep.subr.mxu0 0.0
        %3327 = vmatpush1.msra.mxu0 0.0
        %3328 = vmatprep.subr.mxu0 0.0
        %3329 = vmatpush1.msra.mxu0 0.0
        %3330 = vmatprep.subr.mxu0 0.0
        %3331 = vmatpush1.msra.mxu0 0.0
        %3332 = vmatprep.subr.mxu0 0.0
        %3333 = vmatpush1.msra.mxu0 0.0
        %3334 = vmatprep.subr.mxu0 0.0
        %3335 = vmatpush1.msra.mxu0 0.0
        %3336 = vmatprep.mubr.f32.mxu0 0.0
        %v3337 = vand.u32 %v2931, 4294901760
        %3338 = vmatmul.mubr.f32.gmra.mrb[0].mxu0 %v3337
        %v3339 = vpop.f32.mrb[0].mxu0
        %v3340 = vadd.f32 %v3257, %v3339
        %v3341 = vpop.f32.mrb[0].mxu0
        %3342 = vdwg.mxu0
        %3343 = vmatprep.subr.mxu0 0.0
        %v3344 = vand.u32 %v266, 4294901760
        %3345 = vmatpush1.msra.mxu0 %v3344
        %3346 = vmatprep.subr.mxu0 0.0
        %v3347 = vand.u32 %v267, 4294901760
        %3348 = vmatpush1.msra.mxu0 %v3347
        %3349 = vmatprep.subr.mxu0 0.0
        %v3350 = vand.u32 %v268, 4294901760
        %3351 = vmatpush1.msra.mxu0 %v3350
        %3352 = vmatprep.subr.mxu0 0.0
        %v3353 = vand.u32 %v269, 4294901760
        %3354 = vmatpush1.msra.mxu0 %v3353
        %3355 = vmatprep.subr.mxu0 0.0
        %3356 = vmatpush1.msra.mxu0 0.0
        %3357 = vmatprep.subr.mxu0 0.0
        %3358 = vmatpush1.msra.mxu0 0.0
        %3359 = vmatprep.subr.mxu0 0.0
        %3360 = vmatpush1.msra.mxu0 0.0
        %3361 = vmatprep.subr.mxu0 0.0
        %3362 = vmatpush1.msra.mxu0 0.0
        %3363 = vmatprep.subr.mxu0 0.0
        %3364 = vmatpush1.msra.mxu0 0.0
        %3365 = vmatprep.subr.mxu0 0.0
        %3366 = vmatpush1.msra.mxu0 0.0
        %3367 = vmatprep.subr.mxu0 0.0
        %3368 = vmatpush1.msra.mxu0 0.0
        %3369 = vmatprep.subr.mxu0 0.0
        %3370 = vmatpush1.msra.mxu0 0.0
        %3371 = vmatprep.subr.mxu0 0.0
        %3372 = vmatpush1.msra.mxu0 0.0
        %3373 = vmatprep.subr.mxu0 0.0
        %3374 = vmatpush1.msra.mxu0 0.0
        %3375 = vmatprep.subr.mxu0 0.0
        %3376 = vmatpush1.msra.mxu0 0.0
        %3377 = vmatprep.subr.mxu0 0.0
        %3378 = vmatpush1.msra.mxu0 0.0
        %3379 = vmatprep.subr.mxu0 0.0
        %3380 = vmatpush1.msra.mxu0 0.0
        %3381 = vmatprep.subr.mxu0 0.0
        %3382 = vmatpush1.msra.mxu0 0.0
        %3383 = vmatprep.subr.mxu0 0.0
        %3384 = vmatpush1.msra.mxu0 0.0
        %3385 = vmatprep.subr.mxu0 0.0
        %3386 = vmatpush1.msra.mxu0 0.0
        %3387 = vmatprep.subr.mxu0 0.0
        %3388 = vmatpush1.msra.mxu0 0.0
        %3389 = vmatprep.subr.mxu0 0.0
        %3390 = vmatpush1.msra.mxu0 0.0
        %3391 = vmatprep.subr.mxu0 0.0
        %3392 = vmatpush1.msra.mxu0 0.0
        %3393 = vmatprep.subr.mxu0 0.0
        %3394 = vmatpush1.msra.mxu0 0.0
        %3395 = vmatprep.subr.mxu0 0.0
        %3396 = vmatpush1.msra.mxu0 0.0
        %3397 = vmatprep.subr.mxu0 0.0
        %3398 = vmatpush1.msra.mxu0 0.0
        %3399 = vmatprep.subr.mxu0 0.0
        %3400 = vmatpush1.msra.mxu0 0.0
        %3401 = vmatprep.subr.mxu0 0.0
        %3402 = vmatpush1.msra.mxu0 0.0
        %3403 = vmatprep.subr.mxu0 0.0
        %3404 = vmatpush1.msra.mxu0 0.0
        %3405 = vmatprep.subr.mxu0 0.0
        %3406 = vmatpush1.msra.mxu0 0.0
        %3407 = vmatprep.subr.mxu0 0.0
        %3408 = vmatpush1.msra.mxu0 0.0
        %3409 = vmatprep.subr.mxu0 0.0
        %3410 = vmatpush1.msra.mxu0 0.0
        %3411 = vmatprep.mubr.f32.mxu0 0.0
        %v3412 = vand.u32 %v2931, 4294901760
        %3413 = vmatmul.mubr.f32.gmra.mrb[0].mxu0 %v3412
        %v3414 = vpop.f32.mrb[0].mxu0
        %v3415 = vadd.f32 %v3340, %v3414
        %v3416 = vpop.f32.mrb[0].mxu0
        %3417 = vdwg.mxu0
        %3419 = vrot.lane.b32.xlu0 %v3415, 32
        %v3420 = vpop.permute.xlu0 %3419
        %v3422 = vadd.f32 %v2929, %v3420
        %v3423 = vsel %vm1423, %v2457, 0
        %3425 = vmatprep.subr.mxu0 0.0
        %v3426 = vand.u32 %v270, 4294901760
        %3427 = vmatpush1.msra.mxu0 %v3426
        %3428 = vmatprep.subr.mxu0 0.0
        %v3429 = vand.u32 %v271, 4294901760
        %3430 = vmatpush1.msra.mxu0 %v3429
        %3431 = vmatprep.subr.mxu0 0.0
        %v3432 = vand.u32 %v272, 4294901760
        %3433 = vmatpush1.msra.mxu0 %v3432
        %3434 = vmatprep.subr.mxu0 0.0
        %v3435 = vand.u32 %v273, 4294901760
        %3436 = vmatpush1.msra.mxu0 %v3435
        %3437 = vmatprep.subr.mxu0 0.0
        %3438 = vmatpush1.msra.mxu0 0.0
        %3439 = vmatprep.subr.mxu0 0.0
        %3440 = vmatpush1.msra.mxu0 0.0
        %3441 = vmatprep.subr.mxu0 0.0
        %3442 = vmatpush1.msra.mxu0 0.0
        %3443 = vmatprep.subr.mxu0 0.0
        %3444 = vmatpush1.msra.mxu0 0.0
        %3445 = vmatprep.subr.mxu0 0.0
        %3446 = vmatpush1.msra.mxu0 0.0
        %3447 = vmatprep.subr.mxu0 0.0
        %3448 = vmatpush1.msra.mxu0 0.0
        %3449 = vmatprep.subr.mxu0 0.0
        %3450 = vmatpush1.msra.mxu0 0.0
        %3451 = vmatprep.subr.mxu0 0.0
        %3452 = vmatpush1.msra.mxu0 0.0
        %3453 = vmatprep.subr.mxu0 0.0
        %3454 = vmatpush1.msra.mxu0 0.0
        %3455 = vmatprep.subr.mxu0 0.0
        %3456 = vmatpush1.msra.mxu0 0.0
        %3457 = vmatprep.subr.mxu0 0.0
        %3458 = vmatpush1.msra.mxu0 0.0
        %3459 = vmatprep.subr.mxu0 0.0
        %3460 = vmatpush1.msra.mxu0 0.0
        %3461 = vmatprep.subr.mxu0 0.0
        %3462 = vmatpush1.msra.mxu0 0.0
        %3463 = vmatprep.subr.mxu0 0.0
        %3464 = vmatpush1.msra.mxu0 0.0
        %3465 = vmatprep.subr.mxu0 0.0
        %3466 = vmatpush1.msra.mxu0 0.0
        %3467 = vmatprep.subr.mxu0 0.0
        %3468 = vmatpush1.msra.mxu0 0.0
        %3469 = vmatprep.subr.mxu0 0.0
        %3470 = vmatpush1.msra.mxu0 0.0
        %3471 = vmatprep.subr.mxu0 0.0
        %3472 = vmatpush1.msra.mxu0 0.0
        %3473 = vmatprep.subr.mxu0 0.0
        %3474 = vmatpush1.msra.mxu0 0.0
        %3475 = vmatprep.subr.mxu0 0.0
        %3476 = vmatpush1.msra.mxu0 0.0
        %3477 = vmatprep.subr.mxu0 0.0
        %3478 = vmatpush1.msra.mxu0 0.0
        %3479 = vmatprep.subr.mxu0 0.0
        %3480 = vmatpush1.msra.mxu0 0.0
        %3481 = vmatprep.subr.mxu0 0.0
        %3482 = vmatpush1.msra.mxu0 0.0
        %3483 = vmatprep.subr.mxu0 0.0
        %3484 = vmatpush1.msra.mxu0 0.0
        %3485 = vmatprep.subr.mxu0 0.0
        %3486 = vmatpush1.msra.mxu0 0.0
        %3487 = vmatprep.subr.mxu0 0.0
        %3488 = vmatpush1.msra.mxu0 0.0
        %3489 = vmatprep.subr.mxu0 0.0
        %3490 = vmatpush1.msra.mxu0 0.0
        %3491 = vmatprep.subr.mxu0 0.0
        %3492 = vmatpush1.msra.mxu0 0.0
        %3493 = vmatprep.mubr.f32.mxu0 0.0
        %v3494 = vand.u32 %v3423, 4294901760
        %v3495 = vsub.f32 %v3423, %v3494
        %v3496 = vand.u32 %v3495, 4294901760
        %v3497 = vsub.f32 %v3495, %v3496
        %v3498 = vand.u32 %v3497, 4294901760
        %3499 = vmatmul.mubr.f32.gmra.mrb[0].mxu0 %v3498
        %v3500 = vpop.f32.mrb[0].mxu0
        %v3501 = vadd.f32 0.0, %v3500
        %v3502 = vpop.f32.mrb[0].mxu0
        %3503 = vdwg.mxu0
        %3504 = vmatprep.subr.mxu0 0.0
        %v3505 = vand.u32 %v270, 4294901760
        %v3506 = vsub.f32 %v270, %v3505
        %v3507 = vand.u32 %v3506, 4294901760
        %v3508 = vsub.f32 %v3506, %v3507
        %v3509 = vand.u32 %v3508, 4294901760
        %3510 = vmatpush1.msra.mxu0 %v3509
        %3511 = vmatprep.subr.mxu0 0.0
        %v3512 = vand.u32 %v271, 4294901760
        %v3513 = vsub.f32 %v271, %v3512
        %v3514 = vand.u32 %v3513, 4294901760
        %v3515 = vsub.f32 %v3513, %v3514
        %v3516 = vand.u32 %v3515, 4294901760
        %3517 = vmatpush1.msra.mxu0 %v3516
        %3518 = vmatprep.subr.mxu0 0.0
        %v3519 = vand.u32 %v272, 4294901760
        %v3520 = vsub.f32 %v272, %v3519
        %v3521 = vand.u32 %v3520, 4294901760
        %v3522 = vsub.f32 %v3520, %v3521
        %v3523 = vand.u32 %v3522, 4294901760
        %3524 = vmatpush1.msra.mxu0 %v3523
        %3525 = vmatprep.subr.mxu0 0.0
        %v3526 = vand.u32 %v273, 4294901760
        %v3527 = vsub.f32 %v273, %v3526
        %v3528 = vand.u32 %v3527, 4294901760
        %v3529 = vsub.f32 %v3527, %v3528
        %v3530 = vand.u32 %v3529, 4294901760
        %3531 = vmatpush1.msra.mxu0 %v3530
        %3532 = vmatprep.subr.mxu0 0.0
        %3533 = vmatpush1.msra.mxu0 0.0
        %3534 = vmatprep.subr.mxu0 0.0
        %3535 = vmatpush1.msra.mxu0 0.0
        %3536 = vmatprep.subr.mxu0 0.0
        %3537 = vmatpush1.msra.mxu0 0.0
        %3538 = vmatprep.subr.mxu0 0.0
        %3539 = vmatpush1.msra.mxu0 0.0
        %3540 = vmatprep.subr.mxu0 0.0
        %3541 = vmatpush1.msra.mxu0 0.0
        %3542 = vmatprep.subr.mxu0 0.0
        %3543 = vmatpush1.msra.mxu0 0.0
        %3544 = vmatprep.subr.mxu0 0.0
        %3545 = vmatpush1.msra.mxu0 0.0
        %3546 = vmatprep.subr.mxu0 0.0
        %3547 = vmatpush1.msra.mxu0 0.0
        %3548 = vmatprep.subr.mxu0 0.0
        %3549 = vmatpush1.msra.mxu0 0.0
        %3550 = vmatprep.subr.mxu0 0.0
        %3551 = vmatpush1.msra.mxu0 0.0
        %3552 = vmatprep.subr.mxu0 0.0
        %3553 = vmatpush1.msra.mxu0 0.0
        %3554 = vmatprep.subr.mxu0 0.0
        %3555 = vmatpush1.msra.mxu0 0.0
        %3556 = vmatprep.subr.mxu0 0.0
        %3557 = vmatpush1.msra.mxu0 0.0
        %3558 = vmatprep.subr.mxu0 0.0
        %3559 = vmatpush1.msra.mxu0 0.0
        %3560 = vmatprep.subr.mxu0 0.0
        %3561 = vmatpush1.msra.mxu0 0.0
        %3562 = vmatprep.subr.mxu0 0.0
        %3563 = vmatpush1.msra.mxu0 0.0
        %3564 = vmatprep.subr.mxu0 0.0
        %3565 = vmatpush1.msra.mxu0 0.0
        %3566 = vmatprep.subr.mxu0 0.0
        %3567 = vmatpush1.msra.mxu0 0.0
        %3568 = vmatprep.subr.mxu0 0.0
        %3569 = vmatpush1.msra.mxu0 0.0
        %3570 = vmatprep.subr.mxu0 0.0
        %3571 = vmatpush1.msra.mxu0 0.0
        %3572 = vmatprep.subr.mxu0 0.0
        %3573 = vmatpush1.msra.mxu0 0.0
        %3574 = vmatprep.subr.mxu0 0.0
        %3575 = vmatpush1.msra.mxu0 0.0
        %3576 = vmatprep.subr.mxu0 0.0
        %3577 = vmatpush1.msra.mxu0 0.0
        %3578 = vmatprep.subr.mxu0 0.0
        %3579 = vmatpush1.msra.mxu0 0.0
        %3580 = vmatprep.subr.mxu0 0.0
        %3581 = vmatpush1.msra.mxu0 0.0
        %3582 = vmatprep.subr.mxu0 0.0
        %3583 = vmatpush1.msra.mxu0 0.0
        %3584 = vmatprep.subr.mxu0 0.0
        %3585 = vmatpush1.msra.mxu0 0.0
        %3586 = vmatprep.subr.mxu0 0.0
        %3587 = vmatpush1.msra.mxu0 0.0
        %3588 = vmatprep.mubr.f32.mxu0 0.0
        %v3589 = vand.u32 %v3423, 4294901760
        %3590 = vmatmul.mubr.f32.gmra.mrb[0].mxu0 %v3589
        %v3591 = vpop.f32.mrb[0].mxu0
        %v3592 = vadd.f32 %v3501, %v3591
        %v3593 = vpop.f32.mrb[0].mxu0
        %3594 = vdwg.mxu0
        %3595 = vmatprep.subr.mxu0 0.0
        %v3596 = vand.u32 %v270, 4294901760
        %v3597 = vsub.f32 %v270, %v3596
        %3598 = vmatpush1.msra.mxu0 %v3597
        %3599 = vmatprep.subr.mxu0 0.0
        %v3600 = vand.u32 %v271, 4294901760
        %v3601 = vsub.f32 %v271, %v3600
        %3602 = vmatpush1.msra.mxu0 %v3601
        %3603 = vmatprep.subr.mxu0 0.0
        %v3604 = vand.u32 %v272, 4294901760
        %v3605 = vsub.f32 %v272, %v3604
        %3606 = vmatpush1.msra.mxu0 %v3605
        %3607 = vmatprep.subr.mxu0 0.0
        %v3608 = vand.u32 %v273, 4294901760
        %v3609 = vsub.f32 %v273, %v3608
        %3610 = vmatpush1.msra.mxu0 %v3609
        %3611 = vmatprep.subr.mxu0 0.0
        %3612 = vmatpush1.msra.mxu0 0.0
        %3613 = vmatprep.subr.mxu0 0.0
        %3614 = vmatpush1.msra.mxu0 0.0
        %3615 = vmatprep.subr.mxu0 0.0
        %3616 = vmatpush1.msra.mxu0 0.0
        %3617 = vmatprep.subr.mxu0 0.0
        %3618 = vmatpush1.msra.mxu0 0.0
        %3619 = vmatprep.subr.mxu0 0.0
        %3620 = vmatpush1.msra.mxu0 0.0
        %3621 = vmatprep.subr.mxu0 0.0
        %3622 = vmatpush1.msra.mxu0 0.0
        %3623 = vmatprep.subr.mxu0 0.0
        %3624 = vmatpush1.msra.mxu0 0.0
        %3625 = vmatprep.subr.mxu0 0.0
        %3626 = vmatpush1.msra.mxu0 0.0
        %3627 = vmatprep.subr.mxu0 0.0
        %3628 = vmatpush1.msra.mxu0 0.0
        %3629 = vmatprep.subr.mxu0 0.0
        %3630 = vmatpush1.msra.mxu0 0.0
        %3631 = vmatprep.subr.mxu0 0.0
        %3632 = vmatpush1.msra.mxu0 0.0
        %3633 = vmatprep.subr.mxu0 0.0
        %3634 = vmatpush1.msra.mxu0 0.0
        %3635 = vmatprep.subr.mxu0 0.0
        %3636 = vmatpush1.msra.mxu0 0.0
        %3637 = vmatprep.subr.mxu0 0.0
        %3638 = vmatpush1.msra.mxu0 0.0
        %3639 = vmatprep.subr.mxu0 0.0
        %3640 = vmatpush1.msra.mxu0 0.0
        %3641 = vmatprep.subr.mxu0 0.0
        %3642 = vmatpush1.msra.mxu0 0.0
        %3643 = vmatprep.subr.mxu0 0.0
        %3644 = vmatpush1.msra.mxu0 0.0
        %3645 = vmatprep.subr.mxu0 0.0
        %3646 = vmatpush1.msra.mxu0 0.0
        %3647 = vmatprep.subr.mxu0 0.0
        %3648 = vmatpush1.msra.mxu0 0.0
        %3649 = vmatprep.subr.mxu0 0.0
        %3650 = vmatpush1.msra.mxu0 0.0
        %3651 = vmatprep.subr.mxu0 0.0
        %3652 = vmatpush1.msra.mxu0 0.0
        %3653 = vmatprep.subr.mxu0 0.0
        %3654 = vmatpush1.msra.mxu0 0.0
        %3655 = vmatprep.subr.mxu0 0.0
        %3656 = vmatpush1.msra.mxu0 0.0
        %3657 = vmatprep.subr.mxu0 0.0
        %3658 = vmatpush1.msra.mxu0 0.0
        %3659 = vmatprep.subr.mxu0 0.0
        %3660 = vmatpush1.msra.mxu0 0.0
        %3661 = vmatprep.subr.mxu0 0.0
        %3662 = vmatpush1.msra.mxu0 0.0
        %3663 = vmatprep.subr.mxu0 0.0
        %3664 = vmatpush1.msra.mxu0 0.0
        %3665 = vmatprep.subr.mxu0 0.0
        %3666 = vmatpush1.msra.mxu0 0.0
        %3667 = vmatprep.mubr.f32.mxu0 0.0
        %v3668 = vand.u32 %v3423, 4294901760
        %v3669 = vsub.f32 %v3423, %v3668
        %3670 = vmatmul.mubr.f32.gmra.mrb[0].mxu0 %v3669
        %v3671 = vpop.f32.mrb[0].mxu0
        %v3672 = vadd.f32 %v3592, %v3671
        %v3673 = vpop.f32.mrb[0].mxu0
        %3674 = vdwg.mxu0
        %3675 = vmatprep.subr.mxu0 0.0
        %v3676 = vand.u32 %v270, 4294901760
        %3677 = vmatpush1.msra.mxu0 %v3676
        %3678 = vmatprep.subr.mxu0 0.0
        %v3679 = vand.u32 %v271, 4294901760
        %3680 = vmatpush1.msra.mxu0 %v3679
        %3681 = vmatprep.subr.mxu0 0.0
        %v3682 = vand.u32 %v272, 4294901760
        %3683 = vmatpush1.msra.mxu0 %v3682
        %3684 = vmatprep.subr.mxu0 0.0
        %v3685 = vand.u32 %v273, 4294901760
        %3686 = vmatpush1.msra.mxu0 %v3685
        %3687 = vmatprep.subr.mxu0 0.0
        %3688 = vmatpush1.msra.mxu0 0.0
        %3689 = vmatprep.subr.mxu0 0.0
        %3690 = vmatpush1.msra.mxu0 0.0
        %3691 = vmatprep.subr.mxu0 0.0
        %3692 = vmatpush1.msra.mxu0 0.0
        %3693 = vmatprep.subr.mxu0 0.0
        %3694 = vmatpush1.msra.mxu0 0.0
        %3695 = vmatprep.subr.mxu0 0.0
        %3696 = vmatpush1.msra.mxu0 0.0
        %3697 = vmatprep.subr.mxu0 0.0
        %3698 = vmatpush1.msra.mxu0 0.0
        %3699 = vmatprep.subr.mxu0 0.0
        %3700 = vmatpush1.msra.mxu0 0.0
        %3701 = vmatprep.subr.mxu0 0.0
        %3702 = vmatpush1.msra.mxu0 0.0
        %3703 = vmatprep.subr.mxu0 0.0
        %3704 = vmatpush1.msra.mxu0 0.0
        %3705 = vmatprep.subr.mxu0 0.0
        %3706 = vmatpush1.msra.mxu0 0.0
        %3707 = vmatprep.subr.mxu0 0.0
        %3708 = vmatpush1.msra.mxu0 0.0
        %3709 = vmatprep.subr.mxu0 0.0
        %3710 = vmatpush1.msra.mxu0 0.0
        %3711 = vmatprep.subr.mxu0 0.0
        %3712 = vmatpush1.msra.mxu0 0.0
        %3713 = vmatprep.subr.mxu0 0.0
        %3714 = vmatpush1.msra.mxu0 0.0
        %3715 = vmatprep.subr.mxu0 0.0
        %3716 = vmatpush1.msra.mxu0 0.0
        %3717 = vmatprep.subr.mxu0 0.0
        %3718 = vmatpush1.msra.mxu0 0.0
        %3719 = vmatprep.subr.mxu0 0.0
        %3720 = vmatpush1.msra.mxu0 0.0
        %3721 = vmatprep.subr.mxu0 0.0
        %3722 = vmatpush1.msra.mxu0 0.0
        %3723 = vmatprep.subr.mxu0 0.0
        %3724 = vmatpush1.msra.mxu0 0.0
        %3725 = vmatprep.subr.mxu0 0.0
        %3726 = vmatpush1.msra.mxu0 0.0
        %3727 = vmatprep.subr.mxu0 0.0
        %3728 = vmatpush1.msra.mxu0 0.0
        %3729 = vmatprep.subr.mxu0 0.0
        %3730 = vmatpush1.msra.mxu0 0.0
        %3731 = vmatprep.subr.mxu0 0.0
        %3732 = vmatpush1.msra.mxu0 0.0
        %3733 = vmatprep.subr.mxu0 0.0
        %3734 = vmatpush1.msra.mxu0 0.0
        %3735 = vmatprep.subr.mxu0 0.0
        %3736 = vmatpush1.msra.mxu0 0.0
        %3737 = vmatprep.subr.mxu0 0.0
        %3738 = vmatpush1.msra.mxu0 0.0
        %3739 = vmatprep.subr.mxu0 0.0
        %3740 = vmatpush1.msra.mxu0 0.0
        %3741 = vmatprep.subr.mxu0 0.0
        %3742 = vmatpush1.msra.mxu0 0.0
        %3743 = vmatprep.mubr.f32.mxu0 0.0
        %v3744 = vand.u32 %v3423, 4294901760
        %v3745 = vsub.f32 %v3423, %v3744
        %v3746 = vand.u32 %v3745, 4294901760
        %3747 = vmatmul.mubr.f32.gmra.mrb[0].mxu0 %v3746
        %v3748 = vpop.f32.mrb[0].mxu0
        %v3749 = vadd.f32 %v3672, %v3748
        %v3750 = vpop.f32.mrb[0].mxu0
        %3751 = vdwg.mxu0
        %3752 = vmatprep.subr.mxu0 0.0
        %v3753 = vand.u32 %v270, 4294901760
        %v3754 = vsub.f32 %v270, %v3753
        %v3755 = vand.u32 %v3754, 4294901760
        %3756 = vmatpush1.msra.mxu0 %v3755
        %3757 = vmatprep.subr.mxu0 0.0
        %v3758 = vand.u32 %v271, 4294901760
        %v3759 = vsub.f32 %v271, %v3758
        %v3760 = vand.u32 %v3759, 4294901760
        %3761 = vmatpush1.msra.mxu0 %v3760
        %3762 = vmatprep.subr.mxu0 0.0
        %v3763 = vand.u32 %v272, 4294901760
        %v3764 = vsub.f32 %v272, %v3763
        %v3765 = vand.u32 %v3764, 4294901760
        %3766 = vmatpush1.msra.mxu0 %v3765
        %3767 = vmatprep.subr.mxu0 0.0
        %v3768 = vand.u32 %v273, 4294901760
        %v3769 = vsub.f32 %v273, %v3768
        %v3770 = vand.u32 %v3769, 4294901760
        %3771 = vmatpush1.msra.mxu0 %v3770
        %3772 = vmatprep.subr.mxu0 0.0
        %3773 = vmatpush1.msra.mxu0 0.0
        %3774 = vmatprep.subr.mxu0 0.0
        %3775 = vmatpush1.msra.mxu0 0.0
        %3776 = vmatprep.subr.mxu0 0.0
        %3777 = vmatpush1.msra.mxu0 0.0
        %3778 = vmatprep.subr.mxu0 0.0
        %3779 = vmatpush1.msra.mxu0 0.0
        %3780 = vmatprep.subr.mxu0 0.0
        %3781 = vmatpush1.msra.mxu0 0.0
        %3782 = vmatprep.subr.mxu0 0.0
        %3783 = vmatpush1.msra.mxu0 0.0
        %3784 = vmatprep.subr.mxu0 0.0
        %3785 = vmatpush1.msra.mxu0 0.0
        %3786 = vmatprep.subr.mxu0 0.0
        %3787 = vmatpush1.msra.mxu0 0.0
        %3788 = vmatprep.subr.mxu0 0.0
        %3789 = vmatpush1.msra.mxu0 0.0
        %3790 = vmatprep.subr.mxu0 0.0
        %3791 = vmatpush1.msra.mxu0 0.0
        %3792 = vmatprep.subr.mxu0 0.0
        %3793 = vmatpush1.msra.mxu0 0.0
        %3794 = vmatprep.subr.mxu0 0.0
        %3795 = vmatpush1.msra.mxu0 0.0
        %3796 = vmatprep.subr.mxu0 0.0
        %3797 = vmatpush1.msra.mxu0 0.0
        %3798 = vmatprep.subr.mxu0 0.0
        %3799 = vmatpush1.msra.mxu0 0.0
        %3800 = vmatprep.subr.mxu0 0.0
        %3801 = vmatpush1.msra.mxu0 0.0
        %3802 = vmatprep.subr.mxu0 0.0
        %3803 = vmatpush1.msra.mxu0 0.0
        %3804 = vmatprep.subr.mxu0 0.0
        %3805 = vmatpush1.msra.mxu0 0.0
        %3806 = vmatprep.subr.mxu0 0.0
        %3807 = vmatpush1.msra.mxu0 0.0
        %3808 = vmatprep.subr.mxu0 0.0
        %3809 = vmatpush1.msra.mxu0 0.0
        %3810 = vmatprep.subr.mxu0 0.0
        %3811 = vmatpush1.msra.mxu0 0.0
        %3812 = vmatprep.subr.mxu0 0.0
        %3813 = vmatpush1.msra.mxu0 0.0
        %3814 = vmatprep.subr.mxu0 0.0
        %3815 = vmatpush1.msra.mxu0 0.0
        %3816 = vmatprep.subr.mxu0 0.0
        %3817 = vmatpush1.msra.mxu0 0.0
        %3818 = vmatprep.subr.mxu0 0.0
        %3819 = vmatpush1.msra.mxu0 0.0
        %3820 = vmatprep.subr.mxu0 0.0
        %3821 = vmatpush1.msra.mxu0 0.0
        %3822 = vmatprep.subr.mxu0 0.0
        %3823 = vmatpush1.msra.mxu0 0.0
        %3824 = vmatprep.subr.mxu0 0.0
        %3825 = vmatpush1.msra.mxu0 0.0
        %3826 = vmatprep.subr.mxu0 0.0
        %3827 = vmatpush1.msra.mxu0 0.0
        %3828 = vmatprep.mubr.f32.mxu0 0.0
        %v3829 = vand.u32 %v3423, 4294901760
        %3830 = vmatmul.mubr.f32.gmra.mrb[0].mxu0 %v3829
        %v3831 = vpop.f32.mrb[0].mxu0
        %v3832 = vadd.f32 %v3749, %v3831
        %v3833 = vpop.f32.mrb[0].mxu0
        %3834 = vdwg.mxu0
        %3835 = vmatprep.subr.mxu0 0.0
        %v3836 = vand.u32 %v270, 4294901760
        %3837 = vmatpush1.msra.mxu0 %v3836
        %3838 = vmatprep.subr.mxu0 0.0
        %v3839 = vand.u32 %v271, 4294901760
        %3840 = vmatpush1.msra.mxu0 %v3839
        %3841 = vmatprep.subr.mxu0 0.0
        %v3842 = vand.u32 %v272, 4294901760
        %3843 = vmatpush1.msra.mxu0 %v3842
        %3844 = vmatprep.subr.mxu0 0.0
        %v3845 = vand.u32 %v273, 4294901760
        %3846 = vmatpush1.msra.mxu0 %v3845
        %3847 = vmatprep.subr.mxu0 0.0
        %3848 = vmatpush1.msra.mxu0 0.0
        %3849 = vmatprep.subr.mxu0 0.0
        %3850 = vmatpush1.msra.mxu0 0.0
        %3851 = vmatprep.subr.mxu0 0.0
        %3852 = vmatpush1.msra.mxu0 0.0
        %3853 = vmatprep.subr.mxu0 0.0
        %3854 = vmatpush1.msra.mxu0 0.0
        %3855 = vmatprep.subr.mxu0 0.0
        %3856 = vmatpush1.msra.mxu0 0.0
        %3857 = vmatprep.subr.mxu0 0.0
        %3858 = vmatpush1.msra.mxu0 0.0
        %3859 = vmatprep.subr.mxu0 0.0
        %3860 = vmatpush1.msra.mxu0 0.0
        %3861 = vmatprep.subr.mxu0 0.0
        %3862 = vmatpush1.msra.mxu0 0.0
        %3863 = vmatprep.subr.mxu0 0.0
        %3864 = vmatpush1.msra.mxu0 0.0
        %3865 = vmatprep.subr.mxu0 0.0
        %3866 = vmatpush1.msra.mxu0 0.0
        %3867 = vmatprep.subr.mxu0 0.0
        %3868 = vmatpush1.msra.mxu0 0.0
        %3869 = vmatprep.subr.mxu0 0.0
        %3870 = vmatpush1.msra.mxu0 0.0
        %3871 = vmatprep.subr.mxu0 0.0
        %3872 = vmatpush1.msra.mxu0 0.0
        %3873 = vmatprep.subr.mxu0 0.0
        %3874 = vmatpush1.msra.mxu0 0.0
        %3875 = vmatprep.subr.mxu0 0.0
        %3876 = vmatpush1.msra.mxu0 0.0
        %3877 = vmatprep.subr.mxu0 0.0
        %3878 = vmatpush1.msra.mxu0 0.0
        %3879 = vmatprep.subr.mxu0 0.0
        %3880 = vmatpush1.msra.mxu0 0.0
        %3881 = vmatprep.subr.mxu0 0.0
        %3882 = vmatpush1.msra.mxu0 0.0
        %3883 = vmatprep.subr.mxu0 0.0
        %3884 = vmatpush1.msra.mxu0 0.0
        %3885 = vmatprep.subr.mxu0 0.0
        %3886 = vmatpush1.msra.mxu0 0.0
        %3887 = vmatprep.subr.mxu0 0.0
        %3888 = vmatpush1.msra.mxu0 0.0
        %3889 = vmatprep.subr.mxu0 0.0
        %3890 = vmatpush1.msra.mxu0 0.0
        %3891 = vmatprep.subr.mxu0 0.0
        %3892 = vmatpush1.msra.mxu0 0.0
        %3893 = vmatprep.subr.mxu0 0.0
        %3894 = vmatpush1.msra.mxu0 0.0
        %3895 = vmatprep.subr.mxu0 0.0
        %3896 = vmatpush1.msra.mxu0 0.0
        %3897 = vmatprep.subr.mxu0 0.0
        %3898 = vmatpush1.msra.mxu0 0.0
        %3899 = vmatprep.subr.mxu0 0.0
        %3900 = vmatpush1.msra.mxu0 0.0
        %3901 = vmatprep.subr.mxu0 0.0
        %3902 = vmatpush1.msra.mxu0 0.0
        %3903 = vmatprep.mubr.f32.mxu0 0.0
        %v3904 = vand.u32 %v3423, 4294901760
        %3905 = vmatmul.mubr.f32.gmra.mrb[0].mxu0 %v3904
        %v3906 = vpop.f32.mrb[0].mxu0
        %v3907 = vadd.f32 %v3832, %v3906
        %v3908 = vpop.f32.mrb[0].mxu0
        %3909 = vdwg.mxu0
        %3911 = vrot.lane.b32.xlu0 %v3907, 32
        %v3912 = vpop.permute.xlu0 %3911
        %v3914 = vadd.f32 %v3422, %v3912
        %v3915 = vxor.u32 %v3914, 2147483648
        %v3916 = vmul.f32 %v3915, 1.442695
        %v3917 = vpow.pop %v3916
        %v3918 = vadd.f32 %v3917, 1.0
        %v3919 = vrcp.pop %v3918
        %v3920 = vmul.f32 1.0, %v3919
        %v3921 = vadd.f32 %v3907, %v2418
        %3923 = vrot.lane.b32.xlu0 %v3921, 96
        %v3924 = vpop.permute.xlu0 %3923
        %v3926 = vmul.f32 %v3920, %v3924
        %3928 = vrot.lane.b32.xlu0 %v3926, 64
        %v3929 = vpop.permute.xlu0 %3928
        %v3931 = vadd.f32 %v3422, %v3929
        %v3932 = vtanh.pop %v3931
        %v3933 = vsub.f32 %v2442, %v3932
        %3935 = vrot.lane.b32.xlu0 %v3933, 96
        %v3936 = vpop.permute.xlu0 %3935
        %v3938 = vmul.f32 %v3920, %v3936
        %3940 = vrot.lane.b32.xlu0 %v3938, 32
        %v3941 = vpop.permute.xlu0 %3940
        %v3943 = vadd.f32 %v3932, %v3941
        %v3944 = vmul.f32 %v3943, %v2444
        %3946 = vrot.lane.b32.xlu0 %v3944, 32
        %v3947 = vpop.permute.xlu0 %3946
        %v3949 = vsel %vm1423, %v3947, 0.0
        %3950 = vadd.xlane.f32.xlu0 %v3949
        %v3951 = vpop.xlane.xlu0 %3950
        %v3952 = vadd.f32 %v3951, %v953
        %3954 = vrot.lane.b32.xlu0 %v3943, 32
        %v3955 = vpop.permute.xlu0 %3954
        %s3957 = scalar_lea.vmem %s264, 8 [#allocation3]
        %3958 = vst.msk [vmem:[%s3957] sm:$0xff] %vm1423, %v3955
        %3960 = vset.pattern.permute.xlu0 96
        %3961 = vperm.xlu0 %3960, %v3952
        %v3962 = vpop.permute.xlu0 %3961
        %v3964 = vmul.f32 %v3962, %v949
        %v3965 = vadd.f32 %v937, %v3964
        %3967 = vrot.lane.b32.xlu0 %v3964, 96
        %v3968 = vpop.permute.xlu0 %3967
        %3970 = vmatprep.subr.mxu0 0.0
        %v3971 = vand.u32 %v3968, 4294901760
        %3972 = vmatpush1.msra.mxu0 %v3971
        %3973 = vmatprep.subr.mxu0 0.0
        %3974 = vmatpush1.msra.mxu0 0.0
        %3975 = vmatprep.subr.mxu0 0.0
        %3976 = vmatpush1.msra.mxu0 0.0
        %3977 = vmatprep.subr.mxu0 0.0
        %3978 = vmatpush1.msra.mxu0 0.0
        %3979 = vmatprep.subr.mxu0 0.0
        %3980 = vmatpush1.msra.mxu0 0.0
        %3981 = vmatprep.subr.mxu0 0.0
        %3982 = vmatpush1.msra.mxu0 0.0
        %3983 = vmatprep.subr.mxu0 0.0
        %3984 = vmatpush1.msra.mxu0 0.0
        %3985 = vmatprep.subr.mxu0 0.0
        %3986 = vmatpush1.msra.mxu0 0.0
        %3987 = vmatprep.subr.mxu0 0.0
        %3988 = vmatpush1.msra.mxu0 0.0
        %3989 = vmatprep.subr.mxu0 0.0
        %3990 = vmatpush1.msra.mxu0 0.0
        %3991 = vmatprep.subr.mxu0 0.0
        %3992 = vmatpush1.msra.mxu0 0.0
        %3993 = vmatprep.subr.mxu0 0.0
        %3994 = vmatpush1.msra.mxu0 0.0
        %3995 = vmatprep.subr.mxu0 0.0
        %3996 = vmatpush1.msra.mxu0 0.0
        %3997 = vmatprep.subr.mxu0 0.0
        %3998 = vmatpush1.msra.mxu0 0.0
        %3999 = vmatprep.subr.mxu0 0.0
        %4000 = vmatpush1.msra.mxu0 0.0
        %4001 = vmatprep.subr.mxu0 0.0
        %4002 = vmatpush1.msra.mxu0 0.0
        %4003 = vmatprep.subr.mxu0 0.0
        %4004 = vmatpush1.msra.mxu0 0.0
        %4005 = vmatprep.subr.mxu0 0.0
        %4006 = vmatpush1.msra.mxu0 0.0
        %4007 = vmatprep.subr.mxu0 0.0
        %4008 = vmatpush1.msra.mxu0 0.0
        %4009 = vmatprep.subr.mxu0 0.0
        %4010 = vmatpush1.msra.mxu0 0.0
        %4011 = vmatprep.subr.mxu0 0.0
        %4012 = vmatpush1.msra.mxu0 0.0
        %4013 = vmatprep.subr.mxu0 0.0
        %4014 = vmatpush1.msra.mxu0 0.0
        %4015 = vmatprep.subr.mxu0 0.0
        %4016 = vmatpush1.msra.mxu0 0.0
        %4017 = vmatprep.subr.mxu0 0.0
        %4018 = vmatpush1.msra.mxu0 0.0
        %4019 = vmatprep.subr.mxu0 0.0
        %4020 = vmatpush1.msra.mxu0 0.0
        %4021 = vmatprep.subr.mxu0 0.0
        %4022 = vmatpush1.msra.mxu0 0.0
        %4023 = vmatprep.subr.mxu0 0.0
        %4024 = vmatpush1.msra.mxu0 0.0
        %4025 = vmatprep.subr.mxu0 0.0
        %4026 = vmatpush1.msra.mxu0 0.0
        %4027 = vmatprep.subr.mxu0 0.0
        %4028 = vmatpush1.msra.mxu0 0.0
        %4029 = vmatprep.subr.mxu0 0.0
        %4030 = vmatpush1.msra.mxu0 0.0
        %4031 = vmatprep.subr.mxu0 0.0
        %4032 = vmatpush1.msra.mxu0 0.0
        %4033 = vmatprep.subr.mxu0 0.0
        %4034 = vmatpush1.msra.mxu0 0.0
        %4035 = vmatprep.mubr.f32.mxu0 0.0
        %v4036 = vand.u32 %v962, 4294901760
        %v4037 = vsub.f32 %v962, %v4036
        %v4038 = vand.u32 %v4037, 4294901760
        %v4039 = vsub.f32 %v4037, %v4038
        %v4040 = vand.u32 %v4039, 4294901760
        %4041 = vmatmul.mubr.f32.gmra.mrb[0].mxu0 %v4040
        %v4042 = vpop.f32.mrb[0].mxu0
        %v4043 = vadd.f32 0.0, %v4042
        %v4044 = vpop.f32.mrb[0].mxu0
        %4045 = vdwg.mxu0
        %4046 = vmatprep.subr.mxu0 0.0
        %v4047 = vand.u32 %v3968, 4294901760
        %v4048 = vsub.f32 %v3968, %v4047
        %v4049 = vand.u32 %v4048, 4294901760
        %v4050 = vsub.f32 %v4048, %v4049
        %v4051 = vand.u32 %v4050, 4294901760
        %4052 = vmatpush1.msra.mxu0 %v4051
        %4053 = vmatprep.subr.mxu0 0.0
        %4054 = vmatpush1.msra.mxu0 0.0
        %4055 = vmatprep.subr.mxu0 0.0
        %4056 = vmatpush1.msra.mxu0 0.0
        %4057 = vmatprep.subr.mxu0 0.0
        %4058 = vmatpush1.msra.mxu0 0.0
        %4059 = vmatprep.subr.mxu0 0.0
        %4060 = vmatpush1.msra.mxu0 0.0
        %4061 = vmatprep.subr.mxu0 0.0
        %4062 = vmatpush1.msra.mxu0 0.0
        %4063 = vmatprep.subr.mxu0 0.0
        %4064 = vmatpush1.msra.mxu0 0.0
        %4065 = vmatprep.subr.mxu0 0.0
        %4066 = vmatpush1.msra.mxu0 0.0
        %4067 = vmatprep.subr.mxu0 0.0
        %4068 = vmatpush1.msra.mxu0 0.0
        %4069 = vmatprep.subr.mxu0 0.0
        %4070 = vmatpush1.msra.mxu0 0.0
        %4071 = vmatprep.subr.mxu0 0.0
        %4072 = vmatpush1.msra.mxu0 0.0
        %4073 = vmatprep.subr.mxu0 0.0
        %4074 = vmatpush1.msra.mxu0 0.0
        %4075 = vmatprep.subr.mxu0 0.0
        %4076 = vmatpush1.msra.mxu0 0.0
        %4077 = vmatprep.subr.mxu0 0.0
        %4078 = vmatpush1.msra.mxu0 0.0
        %4079 = vmatprep.subr.mxu0 0.0
        %4080 = vmatpush1.msra.mxu0 0.0
        %4081 = vmatprep.subr.mxu0 0.0
        %4082 = vmatpush1.msra.mxu0 0.0
        %4083 = vmatprep.subr.mxu0 0.0
        %4084 = vmatpush1.msra.mxu0 0.0
        %4085 = vmatprep.subr.mxu0 0.0
        %4086 = vmatpush1.msra.mxu0 0.0
        %4087 = vmatprep.subr.mxu0 0.0
        %4088 = vmatpush1.msra.mxu0 0.0
        %4089 = vmatprep.subr.mxu0 0.0
        %4090 = vmatpush1.msra.mxu0 0.0
        %4091 = vmatprep.subr.mxu0 0.0
        %4092 = vmatpush1.msra.mxu0 0.0
        %4093 = vmatprep.subr.mxu0 0.0
        %4094 = vmatpush1.msra.mxu0 0.0
        %4095 = vmatprep.subr.mxu0 0.0
        %4096 = vmatpush1.msra.mxu0 0.0
        %4097 = vmatprep.subr.mxu0 0.0
        %4098 = vmatpush1.msra.mxu0 0.0
        %4099 = vmatprep.subr.mxu0 0.0
        %4100 = vmatpush1.msra.mxu0 0.0
        %4101 = vmatprep.subr.mxu0 0.0
        %4102 = vmatpush1.msra.mxu0 0.0
        %4103 = vmatprep.subr.mxu0 0.0
        %4104 = vmatpush1.msra.mxu0 0.0
        %4105 = vmatprep.subr.mxu0 0.0
        %4106 = vmatpush1.msra.mxu0 0.0
        %4107 = vmatprep.subr.mxu0 0.0
        %4108 = vmatpush1.msra.mxu0 0.0
        %4109 = vmatprep.subr.mxu0 0.0
        %4110 = vmatpush1.msra.mxu0 0.0
        %4111 = vmatprep.subr.mxu0 0.0
        %4112 = vmatpush1.msra.mxu0 0.0
        %4113 = vmatprep.subr.mxu0 0.0
        %4114 = vmatpush1.msra.mxu0 0.0
        %4115 = vmatprep.mubr.f32.mxu0 0.0
        %v4116 = vand.u32 %v962, 4294901760
        %4117 = vmatmul.mubr.f32.gmra.mrb[0].mxu0 %v4116
        %v4118 = vpop.f32.mrb[0].mxu0
        %v4119 = vadd.f32 %v4043, %v4118
        %v4120 = vpop.f32.mrb[0].mxu0
        %4121 = vdwg.mxu0
        %4122 = vmatprep.subr.mxu0 0.0
        %v4123 = vand.u32 %v3968, 4294901760
        %v4124 = vsub.f32 %v3968, %v4123
        %4125 = vmatpush1.msra.mxu0 %v4124
        %4126 = vmatprep.subr.mxu0 0.0
        %4127 = vmatpush1.msra.mxu0 0.0
        %4128 = vmatprep.subr.mxu0 0.0
        %4129 = vmatpush1.msra.mxu0 0.0
        %4130 = vmatprep.subr.mxu0 0.0
        %4131 = vmatpush1.msra.mxu0 0.0
        %4132 = vmatprep.subr.mxu0 0.0
        %4133 = vmatpush1.msra.mxu0 0.0
        %4134 = vmatprep.subr.mxu0 0.0
        %4135 = vmatpush1.msra.mxu0 0.0
        %4136 = vmatprep.subr.mxu0 0.0
        %4137 = vmatpush1.msra.mxu0 0.0
        %4138 = vmatprep.subr.mxu0 0.0
        %4139 = vmatpush1.msra.mxu0 0.0
        %4140 = vmatprep.subr.mxu0 0.0
        %4141 = vmatpush1.msra.mxu0 0.0
        %4142 = vmatprep.subr.mxu0 0.0
        %4143 = vmatpush1.msra.mxu0 0.0
        %4144 = vmatprep.subr.mxu0 0.0
        %4145 = vmatpush1.msra.mxu0 0.0
        %4146 = vmatprep.subr.mxu0 0.0
        %4147 = vmatpush1.msra.mxu0 0.0
        %4148 = vmatprep.subr.mxu0 0.0
        %4149 = vmatpush1.msra.mxu0 0.0
        %4150 = vmatprep.subr.mxu0 0.0
        %4151 = vmatpush1.msra.mxu0 0.0
        %4152 = vmatprep.subr.mxu0 0.0
        %4153 = vmatpush1.msra.mxu0 0.0
        %4154 = vmatprep.subr.mxu0 0.0
        %4155 = vmatpush1.msra.mxu0 0.0
        %4156 = vmatprep.subr.mxu0 0.0
        %4157 = vmatpush1.msra.mxu0 0.0
        %4158 = vmatprep.subr.mxu0 0.0
        %4159 = vmatpush1.msra.mxu0 0.0
        %4160 = vmatprep.subr.mxu0 0.0
        %4161 = vmatpush1.msra.mxu0 0.0
        %4162 = vmatprep.subr.mxu0 0.0
        %4163 = vmatpush1.msra.mxu0 0.0
        %4164 = vmatprep.subr.mxu0 0.0
        %4165 = vmatpush1.msra.mxu0 0.0
        %4166 = vmatprep.subr.mxu0 0.0
        %4167 = vmatpush1.msra.mxu0 0.0
        %4168 = vmatprep.subr.mxu0 0.0
        %4169 = vmatpush1.msra.mxu0 0.0
        %4170 = vmatprep.subr.mxu0 0.0
        %4171 = vmatpush1.msra.mxu0 0.0
        %4172 = vmatprep.subr.mxu0 0.0
        %4173 = vmatpush1.msra.mxu0 0.0
        %4174 = vmatprep.subr.mxu0 0.0
        %4175 = vmatpush1.msra.mxu0 0.0
        %4176 = vmatprep.subr.mxu0 0.0
        %4177 = vmatpush1.msra.mxu0 0.0
        %4178 = vmatprep.subr.mxu0 0.0
        %4179 = vmatpush1.msra.mxu0 0.0
        %4180 = vmatprep.subr.mxu0 0.0
        %4181 = vmatpush1.msra.mxu0 0.0
        %4182 = vmatprep.subr.mxu0 0.0
        %4183 = vmatpush1.msra.mxu0 0.0
        %4184 = vmatprep.subr.mxu0 0.0
        %4185 = vmatpush1.msra.mxu0 0.0
        %4186 = vmatprep.subr.mxu0 0.0
        %4187 = vmatpush1.msra.mxu0 0.0
        %4188 = vmatprep.mubr.f32.mxu0 0.0
        %v4189 = vand.u32 %v962, 4294901760
        %v4190 = vsub.f32 %v962, %v4189
        %4191 = vmatmul.mubr.f32.gmra.mrb[0].mxu0 %v4190
        %v4192 = vpop.f32.mrb[0].mxu0
        %v4193 = vadd.f32 %v4119, %v4192
        %v4194 = vpop.f32.mrb[0].mxu0
        %4195 = vdwg.mxu0
        %4196 = vmatprep.subr.mxu0 0.0
        %v4197 = vand.u32 %v3968, 4294901760
        %4198 = vmatpush1.msra.mxu0 %v4197
        %4199 = vmatprep.subr.mxu0 0.0
        %4200 = vmatpush1.msra.mxu0 0.0
        %4201 = vmatprep.subr.mxu0 0.0
        %4202 = vmatpush1.msra.mxu0 0.0
        %4203 = vmatprep.subr.mxu0 0.0
        %4204 = vmatpush1.msra.mxu0 0.0
        %4205 = vmatprep.subr.mxu0 0.0
        %4206 = vmatpush1.msra.mxu0 0.0
        %4207 = vmatprep.subr.mxu0 0.0
        %4208 = vmatpush1.msra.mxu0 0.0
        %4209 = vmatprep.subr.mxu0 0.0
        %4210 = vmatpush1.msra.mxu0 0.0
        %4211 = vmatprep.subr.mxu0 0.0
        %4212 = vmatpush1.msra.mxu0 0.0
        %4213 = vmatprep.subr.mxu0 0.0
        %4214 = vmatpush1.msra.mxu0 0.0
        %4215 = vmatprep.subr.mxu0 0.0
        %4216 = vmatpush1.msra.mxu0 0.0
        %4217 = vmatprep.subr.mxu0 0.0
        %4218 = vmatpush1.msra.mxu0 0.0
        %4219 = vmatprep.subr.mxu0 0.0
        %4220 = vmatpush1.msra.mxu0 0.0
        %4221 = vmatprep.subr.mxu0 0.0
        %4222 = vmatpush1.msra.mxu0 0.0
        %4223 = vmatprep.subr.mxu0 0.0
        %4224 = vmatpush1.msra.mxu0 0.0
        %4225 = vmatprep.subr.mxu0 0.0
        %4226 = vmatpush1.msra.mxu0 0.0
        %4227 = vmatprep.subr.mxu0 0.0
        %4228 = vmatpush1.msra.mxu0 0.0
        %4229 = vmatprep.subr.mxu0 0.0
        %4230 = vmatpush1.msra.mxu0 0.0
        %4231 = vmatprep.subr.mxu0 0.0
        %4232 = vmatpush1.msra.mxu0 0.0
        %4233 = vmatprep.subr.mxu0 0.0
        %4234 = vmatpush1.msra.mxu0 0.0
        %4235 = vmatprep.subr.mxu0 0.0
        %4236 = vmatpush1.msra.mxu0 0.0
        %4237 = vmatprep.subr.mxu0 0.0
        %4238 = vmatpush1.msra.mxu0 0.0
        %4239 = vmatprep.subr.mxu0 0.0
        %4240 = vmatpush1.msra.mxu0 0.0
        %4241 = vmatprep.subr.mxu0 0.0
        %4242 = vmatpush1.msra.mxu0 0.0
        %4243 = vmatprep.subr.mxu0 0.0
        %4244 = vmatpush1.msra.mxu0 0.0
        %4245 = vmatprep.subr.mxu0 0.0
        %4246 = vmatpush1.msra.mxu0 0.0
        %4247 = vmatprep.subr.mxu0 0.0
        %4248 = vmatpush1.msra.mxu0 0.0
        %4249 = vmatprep.subr.mxu0 0.0
        %4250 = vmatpush1.msra.mxu0 0.0
        %4251 = vmatprep.subr.mxu0 0.0
        %4252 = vmatpush1.msra.mxu0 0.0
        %4253 = vmatprep.subr.mxu0 0.0
        %4254 = vmatpush1.msra.mxu0 0.0
        %4255 = vmatprep.subr.mxu0 0.0
        %4256 = vmatpush1.msra.mxu0 0.0
        %4257 = vmatprep.subr.mxu0 0.0
        %4258 = vmatpush1.msra.mxu0 0.0
        %4259 = vmatprep.subr.mxu0 0.0
        %4260 = vmatpush1.msra.mxu0 0.0
        %4261 = vmatprep.mubr.f32.mxu0 0.0
        %v4262 = vand.u32 %v962, 4294901760
        %v4263 = vsub.f32 %v962, %v4262
        %v4264 = vand.u32 %v4263, 4294901760
        %4265 = vmatmul.mubr.f32.gmra.mrb[0].mxu0 %v4264
        %v4266 = vpop.f32.mrb[0].mxu0
        %v4267 = vadd.f32 %v4193, %v4266
        %v4268 = vpop.f32.mrb[0].mxu0
        %4269 = vdwg.mxu0
        %4270 = vmatprep.subr.mxu0 0.0
        %v4271 = vand.u32 %v3968, 4294901760
        %v4272 = vsub.f32 %v3968, %v4271
        %v4273 = vand.u32 %v4272, 4294901760
        %4274 = vmatpush1.msra.mxu0 %v4273
        %4275 = vmatprep.subr.mxu0 0.0
        %4276 = vmatpush1.msra.mxu0 0.0
        %4277 = vmatprep.subr.mxu0 0.0
        %4278 = vmatpush1.msra.mxu0 0.0
        %4279 = vmatprep.subr.mxu0 0.0
        %4280 = vmatpush1.msra.mxu0 0.0
        %4281 = vmatprep.subr.mxu0 0.0
        %4282 = vmatpush1.msra.mxu0 0.0
        %4283 = vmatprep.subr.mxu0 0.0
        %4284 = vmatpush1.msra.mxu0 0.0
        %4285 = vmatprep.subr.mxu0 0.0
        %4286 = vmatpush1.msra.mxu0 0.0
        %4287 = vmatprep.subr.mxu0 0.0
        %4288 = vmatpush1.msra.mxu0 0.0
        %4289 = vmatprep.subr.mxu0 0.0
        %4290 = vmatpush1.msra.mxu0 0.0
        %4291 = vmatprep.subr.mxu0 0.0
        %4292 = vmatpush1.msra.mxu0 0.0
        %4293 = vmatprep.subr.mxu0 0.0
        %4294 = vmatpush1.msra.mxu0 0.0
        %4295 = vmatprep.subr.mxu0 0.0
        %4296 = vmatpush1.msra.mxu0 0.0
        %4297 = vmatprep.subr.mxu0 0.0
        %4298 = vmatpush1.msra.mxu0 0.0
        %4299 = vmatprep.subr.mxu0 0.0
        %4300 = vmatpush1.msra.mxu0 0.0
        %4301 = vmatprep.subr.mxu0 0.0
        %4302 = vmatpush1.msra.mxu0 0.0
        %4303 = vmatprep.subr.mxu0 0.0
        %4304 = vmatpush1.msra.mxu0 0.0
        %4305 = vmatprep.subr.mxu0 0.0
        %4306 = vmatpush1.msra.mxu0 0.0
        %4307 = vmatprep.subr.mxu0 0.0
        %4308 = vmatpush1.msra.mxu0 0.0
        %4309 = vmatprep.subr.mxu0 0.0
        %4310 = vmatpush1.msra.mxu0 0.0
        %4311 = vmatprep.subr.mxu0 0.0
        %4312 = vmatpush1.msra.mxu0 0.0
        %4313 = vmatprep.subr.mxu0 0.0
        %4314 = vmatpush1.msra.mxu0 0.0
        %4315 = vmatprep.subr.mxu0 0.0
        %4316 = vmatpush1.msra.mxu0 0.0
        %4317 = vmatprep.subr.mxu0 0.0
        %4318 = vmatpush1.msra.mxu0 0.0
        %4319 = vmatprep.subr.mxu0 0.0
        %4320 = vmatpush1.msra.mxu0 0.0
        %4321 = vmatprep.subr.mxu0 0.0
        %4322 = vmatpush1.msra.mxu0 0.0
        %4323 = vmatprep.subr.mxu0 0.0
        %4324 = vmatpush1.msra.mxu0 0.0
        %4325 = vmatprep.subr.mxu0 0.0
        %4326 = vmatpush1.msra.mxu0 0.0
        %4327 = vmatprep.subr.mxu0 0.0
        %4328 = vmatpush1.msra.mxu0 0.0
        %4329 = vmatprep.subr.mxu0 0.0
        %4330 = vmatpush1.msra.mxu0 0.0
        %4331 = vmatprep.subr.mxu0 0.0
        %4332 = vmatpush1.msra.mxu0 0.0
        %4333 = vmatprep.subr.mxu0 0.0
        %4334 = vmatpush1.msra.mxu0 0.0
        %4335 = vmatprep.subr.mxu0 0.0
        %4336 = vmatpush1.msra.mxu0 0.0
        %4337 = vmatprep.mubr.f32.mxu0 0.0
        %v4338 = vand.u32 %v962, 4294901760
        %4339 = vmatmul.mubr.f32.gmra.mrb[0].mxu0 %v4338
        %v4340 = vpop.f32.mrb[0].mxu0
        %v4341 = vadd.f32 %v4267, %v4340
        %v4342 = vpop.f32.mrb[0].mxu0
        %4343 = vdwg.mxu0
        %4344 = vmatprep.subr.mxu0 0.0
        %v4345 = vand.u32 %v3968, 4294901760
        %4346 = vmatpush1.msra.mxu0 %v4345
        %4347 = vmatprep.subr.mxu0 0.0
        %4348 = vmatpush1.msra.mxu0 0.0
        %4349 = vmatprep.subr.mxu0 0.0
        %4350 = vmatpush1.msra.mxu0 0.0
        %4351 = vmatprep.subr.mxu0 0.0
        %4352 = vmatpush1.msra.mxu0 0.0
        %4353 = vmatprep.subr.mxu0 0.0
        %4354 = vmatpush1.msra.mxu0 0.0
        %4355 = vmatprep.subr.mxu0 0.0
        %4356 = vmatpush1.msra.mxu0 0.0
        %4357 = vmatprep.subr.mxu0 0.0
        %4358 = vmatpush1.msra.mxu0 0.0
        %4359 = vmatprep.subr.mxu0 0.0
        %4360 = vmatpush1.msra.mxu0 0.0
        %4361 = vmatprep.subr.mxu0 0.0
        %4362 = vmatpush1.msra.mxu0 0.0
        %4363 = vmatprep.subr.mxu0 0.0
        %4364 = vmatpush1.msra.mxu0 0.0
        %4365 = vmatprep.subr.mxu0 0.0
        %4366 = vmatpush1.msra.mxu0 0.0
        %4367 = vmatprep.subr.mxu0 0.0
        %4368 = vmatpush1.msra.mxu0 0.0
        %4369 = vmatprep.subr.mxu0 0.0
        %4370 = vmatpush1.msra.mxu0 0.0
        %4371 = vmatprep.subr.mxu0 0.0
        %4372 = vmatpush1.msra.mxu0 0.0
        %4373 = vmatprep.subr.mxu0 0.0
        %4374 = vmatpush1.msra.mxu0 0.0
        %4375 = vmatprep.subr.mxu0 0.0
        %4376 = vmatpush1.msra.mxu0 0.0
        %4377 = vmatprep.subr.mxu0 0.0
        %4378 = vmatpush1.msra.mxu0 0.0
        %4379 = vmatprep.subr.mxu0 0.0
        %4380 = vmatpush1.msra.mxu0 0.0
        %4381 = vmatprep.subr.mxu0 0.0
        %4382 = vmatpush1.msra.mxu0 0.0
        %4383 = vmatprep.subr.mxu0 0.0
        %4384 = vmatpush1.msra.mxu0 0.0
        %4385 = vmatprep.subr.mxu0 0.0
        %4386 = vmatpush1.msra.mxu0 0.0
        %4387 = vmatprep.subr.mxu0 0.0
        %4388 = vmatpush1.msra.mxu0 0.0
        %4389 = vmatprep.subr.mxu0 0.0
        %4390 = vmatpush1.msra.mxu0 0.0
        %4391 = vmatprep.subr.mxu0 0.0
        %4392 = vmatpush1.msra.mxu0 0.0
        %4393 = vmatprep.subr.mxu0 0.0
        %4394 = vmatpush1.msra.mxu0 0.0
        %4395 = vmatprep.subr.mxu0 0.0
        %4396 = vmatpush1.msra.mxu0 0.0
        %4397 = vmatprep.subr.mxu0 0.0
        %4398 = vmatpush1.msra.mxu0 0.0
        %4399 = vmatprep.subr.mxu0 0.0
        %4400 = vmatpush1.msra.mxu0 0.0
        %4401 = vmatprep.subr.mxu0 0.0
        %4402 = vmatpush1.msra.mxu0 0.0
        %4403 = vmatprep.subr.mxu0 0.0
        %4404 = vmatpush1.msra.mxu0 0.0
        %4405 = vmatprep.subr.mxu0 0.0
        %4406 = vmatpush1.msra.mxu0 0.0
        %4407 = vmatprep.subr.mxu0 0.0
        %4408 = vmatpush1.msra.mxu0 0.0
        %4409 = vmatprep.mubr.f32.mxu0 0.0
        %v4410 = vand.u32 %v962, 4294901760
        %4411 = vmatmul.mubr.f32.gmra.mrb[0].mxu0 %v4410
        %v4412 = vpop.f32.mrb[0].mxu0
        %v4413 = vadd.f32 %v4341, %v4412
        %v4414 = vpop.f32.mrb[0].mxu0
        %4415 = vdwg.mxu0
        %v4416 = vadd.f32 %v3965, %v4413
        %v4417 = vxor.u32 %v4416, 2147483648
        %v4418 = vmul.f32 %v4417, 1.442695
        %v4419 = vpow.pop %v4418
        %v4420 = vadd.f32 %v4419, 1.0
        %v4421 = vrcp.pop %v4420
        %v4422 = vmul.f32 1.0, %v4421
        %v4423 = vmul.f32 %v3962, %v953
        %4425 = vrot.lane.b32.xlu0 %v4423, 32
        %v4426 = vpop.permute.xlu0 %4425
        %v4428 = vadd.f32 %v937, %v4426
        %v4430 = vsel %vm1423, %v4422, 0
        %4432 = vmatprep.subr.mxu0 0.0
        %v4433 = vand.u32 %v266, 4294901760
        %4434 = vmatpush1.msra.mxu0 %v4433
        %4435 = vmatprep.subr.mxu0 0.0
        %v4436 = vand.u32 %v267, 4294901760
        %4437 = vmatpush1.msra.mxu0 %v4436
        %4438 = vmatprep.subr.mxu0 0.0
        %v4439 = vand.u32 %v268, 4294901760
        %4440 = vmatpush1.msra.mxu0 %v4439
        %4441 = vmatprep.subr.mxu0 0.0
        %v4442 = vand.u32 %v269, 4294901760
        %4443 = vmatpush1.msra.mxu0 %v4442
        %4444 = vmatprep.subr.mxu0 0.0
        %4445 = vmatpush1.msra.mxu0 0.0
        %4446 = vmatprep.subr.mxu0 0.0
        %4447 = vmatpush1.msra.mxu0 0.0
        %4448 = vmatprep.subr.mxu0 0.0
        %4449 = vmatpush1.msra.mxu0 0.0
        %4450 = vmatprep.subr.mxu0 0.0
        %4451 = vmatpush1.msra.mxu0 0.0
        %4452 = vmatprep.subr.mxu0 0.0
        %4453 = vmatpush1.msra.mxu0 0.0
        %4454 = vmatprep.subr.mxu0 0.0
        %4455 = vmatpush1.msra.mxu0 0.0
        %4456 = vmatprep.subr.mxu0 0.0
        %4457 = vmatpush1.msra.mxu0 0.0
        %4458 = vmatprep.subr.mxu0 0.0
        %4459 = vmatpush1.msra.mxu0 0.0
        %4460 = vmatprep.subr.mxu0 0.0
        %4461 = vmatpush1.msra.mxu0 0.0
        %4462 = vmatprep.subr.mxu0 0.0
        %4463 = vmatpush1.msra.mxu0 0.0
        %4464 = vmatprep.subr.mxu0 0.0
        %4465 = vmatpush1.msra.mxu0 0.0
        %4466 = vmatprep.subr.mxu0 0.0
        %4467 = vmatpush1.msra.mxu0 0.0
        %4468 = vmatprep.subr.mxu0 0.0
        %4469 = vmatpush1.msra.mxu0 0.0
        %4470 = vmatprep.subr.mxu0 0.0
        %4471 = vmatpush1.msra.mxu0 0.0
        %4472 = vmatprep.subr.mxu0 0.0
        %4473 = vmatpush1.msra.mxu0 0.0
        %4474 = vmatprep.subr.mxu0 0.0
        %4475 = vmatpush1.msra.mxu0 0.0
        %4476 = vmatprep.subr.mxu0 0.0
        %4477 = vmatpush1.msra.mxu0 0.0
        %4478 = vmatprep.subr.mxu0 0.0
        %4479 = vmatpush1.msra.mxu0 0.0
        %4480 = vmatprep.subr.mxu0 0.0
        %4481 = vmatpush1.msra.mxu0 0.0
        %4482 = vmatprep.subr.mxu0 0.0
        %4483 = vmatpush1.msra.mxu0 0.0
        %4484 = vmatprep.subr.mxu0 0.0
        %4485 = vmatpush1.msra.mxu0 0.0
        %4486 = vmatprep.subr.mxu0 0.0
        %4487 = vmatpush1.msra.mxu0 0.0
        %4488 = vmatprep.subr.mxu0 0.0
        %4489 = vmatpush1.msra.mxu0 0.0
        %4490 = vmatprep.subr.mxu0 0.0
        %4491 = vmatpush1.msra.mxu0 0.0
        %4492 = vmatprep.subr.mxu0 0.0
        %4493 = vmatpush1.msra.mxu0 0.0
        %4494 = vmatprep.subr.mxu0 0.0
        %4495 = vmatpush1.msra.mxu0 0.0
        %4496 = vmatprep.subr.mxu0 0.0
        %4497 = vmatpush1.msra.mxu0 0.0
        %4498 = vmatprep.subr.mxu0 0.0
        %4499 = vmatpush1.msra.mxu0 0.0
        %4500 = vmatprep.mubr.f32.mxu0 0.0
        %v4501 = vand.u32 %v4430, 4294901760
        %v4502 = vsub.f32 %v4430, %v4501
        %v4503 = vand.u32 %v4502, 4294901760
        %v4504 = vsub.f32 %v4502, %v4503
        %v4505 = vand.u32 %v4504, 4294901760
        %4506 = vmatmul.mubr.f32.gmra.mrb[0].mxu0 %v4505
        %v4507 = vpop.f32.mrb[0].mxu0
        %v4508 = vadd.f32 0.0, %v4507
        %v4509 = vpop.f32.mrb[0].mxu0
        %4510 = vdwg.mxu0
        %4511 = vmatprep.subr.mxu0 0.0
        %v4512 = vand.u32 %v266, 4294901760
        %v4513 = vsub.f32 %v266, %v4512
        %v4514 = vand.u32 %v4513, 4294901760
        %v4515 = vsub.f32 %v4513, %v4514
        %v4516 = vand.u32 %v4515, 4294901760
        %4517 = vmatpush1.msra.mxu0 %v4516
        %4518 = vmatprep.subr.mxu0 0.0
        %v4519 = vand.u32 %v267, 4294901760
        %v4520 = vsub.f32 %v267, %v4519
        %v4521 = vand.u32 %v4520, 4294901760
        %v4522 = vsub.f32 %v4520, %v4521
        %v4523 = vand.u32 %v4522, 4294901760
        %4524 = vmatpush1.msra.mxu0 %v4523
        %4525 = vmatprep.subr.mxu0 0.0
        %v4526 = vand.u32 %v268, 4294901760
        %v4527 = vsub.f32 %v268, %v4526
        %v4528 = vand.u32 %v4527, 4294901760
        %v4529 = vsub.f32 %v4527, %v4528
        %v4530 = vand.u32 %v4529, 4294901760
        %4531 = vmatpush1.msra.mxu0 %v4530
        %4532 = vmatprep.subr.mxu0 0.0
        %v4533 = vand.u32 %v269, 4294901760
        %v4534 = vsub.f32 %v269, %v4533
        %v4535 = vand.u32 %v4534, 4294901760
        %v4536 = vsub.f32 %v4534, %v4535
        %v4537 = vand.u32 %v4536, 4294901760
        %4538 = vmatpush1.msra.mxu0 %v4537
        %4539 = vmatprep.subr.mxu0 0.0
        %4540 = vmatpush1.msra.mxu0 0.0
        %4541 = vmatprep.subr.mxu0 0.0
        %4542 = vmatpush1.msra.mxu0 0.0
        %4543 = vmatprep.subr.mxu0 0.0
        %4544 = vmatpush1.msra.mxu0 0.0
        %4545 = vmatprep.subr.mxu0 0.0
        %4546 = vmatpush1.msra.mxu0 0.0
        %4547 = vmatprep.subr.mxu0 0.0
        %4548 = vmatpush1.msra.mxu0 0.0
        %4549 = vmatprep.subr.mxu0 0.0
        %4550 = vmatpush1.msra.mxu0 0.0
        %4551 = vmatprep.subr.mxu0 0.0
        %4552 = vmatpush1.msra.mxu0 0.0
        %4553 = vmatprep.subr.mxu0 0.0
        %4554 = vmatpush1.msra.mxu0 0.0
        %4555 = vmatprep.subr.mxu0 0.0
        %4556 = vmatpush1.msra.mxu0 0.0
        %4557 = vmatprep.subr.mxu0 0.0
        %4558 = vmatpush1.msra.mxu0 0.0
        %4559 = vmatprep.subr.mxu0 0.0
        %4560 = vmatpush1.msra.mxu0 0.0
        %4561 = vmatprep.subr.mxu0 0.0
        %4562 = vmatpush1.msra.mxu0 0.0
        %4563 = vmatprep.subr.mxu0 0.0
        %4564 = vmatpush1.msra.mxu0 0.0
        %4565 = vmatprep.subr.mxu0 0.0
        %4566 = vmatpush1.msra.mxu0 0.0
        %4567 = vmatprep.subr.mxu0 0.0
        %4568 = vmatpush1.msra.mxu0 0.0
        %4569 = vmatprep.subr.mxu0 0.0
        %4570 = vmatpush1.msra.mxu0 0.0
        %4571 = vmatprep.subr.mxu0 0.0
        %4572 = vmatpush1.msra.mxu0 0.0
        %4573 = vmatprep.subr.mxu0 0.0
        %4574 = vmatpush1.msra.mxu0 0.0
        %4575 = vmatprep.subr.mxu0 0.0
        %4576 = vmatpush1.msra.mxu0 0.0
        %4577 = vmatprep.subr.mxu0 0.0
        %4578 = vmatpush1.msra.mxu0 0.0
        %4579 = vmatprep.subr.mxu0 0.0
        %4580 = vmatpush1.msra.mxu0 0.0
        %4581 = vmatprep.subr.mxu0 0.0
        %4582 = vmatpush1.msra.mxu0 0.0
        %4583 = vmatprep.subr.mxu0 0.0
        %4584 = vmatpush1.msra.mxu0 0.0
        %4585 = vmatprep.subr.mxu0 0.0
        %4586 = vmatpush1.msra.mxu0 0.0
        %4587 = vmatprep.subr.mxu0 0.0
        %4588 = vmatpush1.msra.mxu0 0.0
        %4589 = vmatprep.subr.mxu0 0.0
        %4590 = vmatpush1.msra.mxu0 0.0
        %4591 = vmatprep.subr.mxu0 0.0
        %4592 = vmatpush1.msra.mxu0 0.0
        %4593 = vmatprep.subr.mxu0 0.0
        %4594 = vmatpush1.msra.mxu0 0.0
        %4595 = vmatprep.mubr.f32.mxu0 0.0
        %v4596 = vand.u32 %v4430, 4294901760
        %4597 = vmatmul.mubr.f32.gmra.mrb[0].mxu0 %v4596
        %v4598 = vpop.f32.mrb[0].mxu0
        %v4599 = vadd.f32 %v4508, %v4598
        %v4600 = vpop.f32.mrb[0].mxu0
        %4601 = vdwg.mxu0
        %4602 = vmatprep.subr.mxu0 0.0
        %v4603 = vand.u32 %v266, 4294901760
        %v4604 = vsub.f32 %v266, %v4603
        %4605 = vmatpush1.msra.mxu0 %v4604
        %4606 = vmatprep.subr.mxu0 0.0
        %v4607 = vand.u32 %v267, 4294901760
        %v4608 = vsub.f32 %v267, %v4607
        %4609 = vmatpush1.msra.mxu0 %v4608
        %4610 = vmatprep.subr.mxu0 0.0
        %v4611 = vand.u32 %v268, 4294901760
        %v4612 = vsub.f32 %v268, %v4611
        %4613 = vmatpush1.msra.mxu0 %v4612
        %4614 = vmatprep.subr.mxu0 0.0
        %v4615 = vand.u32 %v269, 4294901760
        %v4616 = vsub.f32 %v269, %v4615
        %4617 = vmatpush1.msra.mxu0 %v4616
        %4618 = vmatprep.subr.mxu0 0.0
        %4619 = vmatpush1.msra.mxu0 0.0
        %4620 = vmatprep.subr.mxu0 0.0
        %4621 = vmatpush1.msra.mxu0 0.0
        %4622 = vmatprep.subr.mxu0 0.0
        %4623 = vmatpush1.msra.mxu0 0.0
        %4624 = vmatprep.subr.mxu0 0.0
        %4625 = vmatpush1.msra.mxu0 0.0
        %4626 = vmatprep.subr.mxu0 0.0
        %4627 = vmatpush1.msra.mxu0 0.0
        %4628 = vmatprep.subr.mxu0 0.0
        %4629 = vmatpush1.msra.mxu0 0.0
        %4630 = vmatprep.subr.mxu0 0.0
        %4631 = vmatpush1.msra.mxu0 0.0
        %4632 = vmatprep.subr.mxu0 0.0
        %4633 = vmatpush1.msra.mxu0 0.0
        %4634 = vmatprep.subr.mxu0 0.0
        %4635 = vmatpush1.msra.mxu0 0.0
        %4636 = vmatprep.subr.mxu0 0.0
        %4637 = vmatpush1.msra.mxu0 0.0
        %4638 = vmatprep.subr.mxu0 0.0
        %4639 = vmatpush1.msra.mxu0 0.0
        %4640 = vmatprep.subr.mxu0 0.0
        %4641 = vmatpush1.msra.mxu0 0.0
        %4642 = vmatprep.subr.mxu0 0.0
        %4643 = vmatpush1.msra.mxu0 0.0
        %4644 = vmatprep.subr.mxu0 0.0
        %4645 = vmatpush1.msra.mxu0 0.0
        %4646 = vmatprep.subr.mxu0 0.0
        %4647 = vmatpush1.msra.mxu0 0.0
        %4648 = vmatprep.subr.mxu0 0.0
        %4649 = vmatpush1.msra.mxu0 0.0
        %4650 = vmatprep.subr.mxu0 0.0
        %4651 = vmatpush1.msra.mxu0 0.0
        %4652 = vmatprep.subr.mxu0 0.0
        %4653 = vmatpush1.msra.mxu0 0.0
        %4654 = vmatprep.subr.mxu0 0.0
        %4655 = vmatpush1.msra.mxu0 0.0
        %4656 = vmatprep.subr.mxu0 0.0
        %4657 = vmatpush1.msra.mxu0 0.0
        %4658 = vmatprep.subr.mxu0 0.0
        %4659 = vmatpush1.msra.mxu0 0.0
        %4660 = vmatprep.subr.mxu0 0.0
        %4661 = vmatpush1.msra.mxu0 0.0
        %4662 = vmatprep.subr.mxu0 0.0
        %4663 = vmatpush1.msra.mxu0 0.0
        %4664 = vmatprep.subr.mxu0 0.0
        %4665 = vmatpush1.msra.mxu0 0.0
        %4666 = vmatprep.subr.mxu0 0.0
        %4667 = vmatpush1.msra.mxu0 0.0
        %4668 = vmatprep.subr.mxu0 0.0
        %4669 = vmatpush1.msra.mxu0 0.0
        %4670 = vmatprep.subr.mxu0 0.0
        %4671 = vmatpush1.msra.mxu0 0.0
        %4672 = vmatprep.subr.mxu0 0.0
        %4673 = vmatpush1.msra.mxu0 0.0
        %4674 = vmatprep.mubr.f32.mxu0 0.0
        %v4675 = vand.u32 %v4430, 4294901760
        %v4676 = vsub.f32 %v4430, %v4675
        %4677 = vmatmul.mubr.f32.gmra.mrb[0].mxu0 %v4676
        %v4678 = vpop.f32.mrb[0].mxu0
        %v4679 = vadd.f32 %v4599, %v4678
        %v4680 = vpop.f32.mrb[0].mxu0
        %4681 = vdwg.mxu0
        %4682 = vmatprep.subr.mxu0 0.0
        %v4683 = vand.u32 %v266, 4294901760
        %4684 = vmatpush1.msra.mxu0 %v4683
        %4685 = vmatprep.subr.mxu0 0.0
        %v4686 = vand.u32 %v267, 4294901760
        %4687 = vmatpush1.msra.mxu0 %v4686
        %4688 = vmatprep.subr.mxu0 0.0
        %v4689 = vand.u32 %v268, 4294901760
        %4690 = vmatpush1.msra.mxu0 %v4689
        %4691 = vmatprep.subr.mxu0 0.0
        %v4692 = vand.u32 %v269, 4294901760
        %4693 = vmatpush1.msra.mxu0 %v4692
        %4694 = vmatprep.subr.mxu0 0.0
        %4695 = vmatpush1.msra.mxu0 0.0
        %4696 = vmatprep.subr.mxu0 0.0
        %4697 = vmatpush1.msra.mxu0 0.0
        %4698 = vmatprep.subr.mxu0 0.0
        %4699 = vmatpush1.msra.mxu0 0.0
        %4700 = vmatprep.subr.mxu0 0.0
        %4701 = vmatpush1.msra.mxu0 0.0
        %4702 = vmatprep.subr.mxu0 0.0
        %4703 = vmatpush1.msra.mxu0 0.0
        %4704 = vmatprep.subr.mxu0 0.0
        %4705 = vmatpush1.msra.mxu0 0.0
        %4706 = vmatprep.subr.mxu0 0.0
        %4707 = vmatpush1.msra.mxu0 0.0
        %4708 = vmatprep.subr.mxu0 0.0
        %4709 = vmatpush1.msra.mxu0 0.0
        %4710 = vmatprep.subr.mxu0 0.0
        %4711 = vmatpush1.msra.mxu0 0.0
        %4712 = vmatprep.subr.mxu0 0.0
        %4713 = vmatpush1.msra.mxu0 0.0
        %4714 = vmatprep.subr.mxu0 0.0
        %4715 = vmatpush1.msra.mxu0 0.0
        %4716 = vmatprep.subr.mxu0 0.0
        %4717 = vmatpush1.msra.mxu0 0.0
        %4718 = vmatprep.subr.mxu0 0.0
        %4719 = vmatpush1.msra.mxu0 0.0
        %4720 = vmatprep.subr.mxu0 0.0
        %4721 = vmatpush1.msra.mxu0 0.0
        %4722 = vmatprep.subr.mxu0 0.0
        %4723 = vmatpush1.msra.mxu0 0.0
        %4724 = vmatprep.subr.mxu0 0.0
        %4725 = vmatpush1.msra.mxu0 0.0
        %4726 = vmatprep.subr.mxu0 0.0
        %4727 = vmatpush1.msra.mxu0 0.0
        %4728 = vmatprep.subr.mxu0 0.0
        %4729 = vmatpush1.msra.mxu0 0.0
        %4730 = vmatprep.subr.mxu0 0.0
        %4731 = vmatpush1.msra.mxu0 0.0
        %4732 = vmatprep.subr.mxu0 0.0
        %4733 = vmatpush1.msra.mxu0 0.0
        %4734 = vmatprep.subr.mxu0 0.0
        %4735 = vmatpush1.msra.mxu0 0.0
        %4736 = vmatprep.subr.mxu0 0.0
        %4737 = vmatpush1.msra.mxu0 0.0
        %4738 = vmatprep.subr.mxu0 0.0
        %4739 = vmatpush1.msra.mxu0 0.0
        %4740 = vmatprep.subr.mxu0 0.0
        %4741 = vmatpush1.msra.mxu0 0.0
        %4742 = vmatprep.subr.mxu0 0.0
        %4743 = vmatpush1.msra.mxu0 0.0
        %4744 = vmatprep.subr.mxu0 0.0
        %4745 = vmatpush1.msra.mxu0 0.0
        %4746 = vmatprep.subr.mxu0 0.0
        %4747 = vmatpush1.msra.mxu0 0.0
        %4748 = vmatprep.subr.mxu0 0.0
        %4749 = vmatpush1.msra.mxu0 0.0
        %4750 = vmatprep.mubr.f32.mxu0 0.0
        %v4751 = vand.u32 %v4430, 4294901760
        %v4752 = vsub.f32 %v4430, %v4751
        %v4753 = vand.u32 %v4752, 4294901760
        %4754 = vmatmul.mubr.f32.gmra.mrb[0].mxu0 %v4753
        %v4755 = vpop.f32.mrb[0].mxu0
        %v4756 = vadd.f32 %v4679, %v4755
        %v4757 = vpop.f32.mrb[0].mxu0
        %4758 = vdwg.mxu0
        %4759 = vmatprep.subr.mxu0 0.0
        %v4760 = vand.u32 %v266, 4294901760
        %v4761 = vsub.f32 %v266, %v4760
        %v4762 = vand.u32 %v4761, 4294901760
        %4763 = vmatpush1.msra.mxu0 %v4762
        %4764 = vmatprep.subr.mxu0 0.0
        %v4765 = vand.u32 %v267, 4294901760
        %v4766 = vsub.f32 %v267, %v4765
        %v4767 = vand.u32 %v4766, 4294901760
        %4768 = vmatpush1.msra.mxu0 %v4767
        %4769 = vmatprep.subr.mxu0 0.0
        %v4770 = vand.u32 %v268, 4294901760
        %v4771 = vsub.f32 %v268, %v4770
        %v4772 = vand.u32 %v4771, 4294901760
        %4773 = vmatpush1.msra.mxu0 %v4772
        %4774 = vmatprep.subr.mxu0 0.0
        %v4775 = vand.u32 %v269, 4294901760
        %v4776 = vsub.f32 %v269, %v4775
        %v4777 = vand.u32 %v4776, 4294901760
        %4778 = vmatpush1.msra.mxu0 %v4777
        %4779 = vmatprep.subr.mxu0 0.0
        %4780 = vmatpush1.msra.mxu0 0.0
        %4781 = vmatprep.subr.mxu0 0.0
        %4782 = vmatpush1.msra.mxu0 0.0
        %4783 = vmatprep.subr.mxu0 0.0
        %4784 = vmatpush1.msra.mxu0 0.0
        %4785 = vmatprep.subr.mxu0 0.0
        %4786 = vmatpush1.msra.mxu0 0.0
        %4787 = vmatprep.subr.mxu0 0.0
        %4788 = vmatpush1.msra.mxu0 0.0
        %4789 = vmatprep.subr.mxu0 0.0
        %4790 = vmatpush1.msra.mxu0 0.0
        %4791 = vmatprep.subr.mxu0 0.0
        %4792 = vmatpush1.msra.mxu0 0.0
        %4793 = vmatprep.subr.mxu0 0.0
        %4794 = vmatpush1.msra.mxu0 0.0
        %4795 = vmatprep.subr.mxu0 0.0
        %4796 = vmatpush1.msra.mxu0 0.0
        %4797 = vmatprep.subr.mxu0 0.0
        %4798 = vmatpush1.msra.mxu0 0.0
        %4799 = vmatprep.subr.mxu0 0.0
        %4800 = vmatpush1.msra.mxu0 0.0
        %4801 = vmatprep.subr.mxu0 0.0
        %4802 = vmatpush1.msra.mxu0 0.0
        %4803 = vmatprep.subr.mxu0 0.0
        %4804 = vmatpush1.msra.mxu0 0.0
        %4805 = vmatprep.subr.mxu0 0.0
        %4806 = vmatpush1.msra.mxu0 0.0
        %4807 = vmatprep.subr.mxu0 0.0
        %4808 = vmatpush1.msra.mxu0 0.0
        %4809 = vmatprep.subr.mxu0 0.0
        %4810 = vmatpush1.msra.mxu0 0.0
        %4811 = vmatprep.subr.mxu0 0.0
        %4812 = vmatpush1.msra.mxu0 0.0
        %4813 = vmatprep.subr.mxu0 0.0
        %4814 = vmatpush1.msra.mxu0 0.0
        %4815 = vmatprep.subr.mxu0 0.0
        %4816 = vmatpush1.msra.mxu0 0.0
        %4817 = vmatprep.subr.mxu0 0.0
        %4818 = vmatpush1.msra.mxu0 0.0
        %4819 = vmatprep.subr.mxu0 0.0
        %4820 = vmatpush1.msra.mxu0 0.0
        %4821 = vmatprep.subr.mxu0 0.0
        %4822 = vmatpush1.msra.mxu0 0.0
        %4823 = vmatprep.subr.mxu0 0.0
        %4824 = vmatpush1.msra.mxu0 0.0
        %4825 = vmatprep.subr.mxu0 0.0
        %4826 = vmatpush1.msra.mxu0 0.0
        %4827 = vmatprep.subr.mxu0 0.0
        %4828 = vmatpush1.msra.mxu0 0.0
        %4829 = vmatprep.subr.mxu0 0.0
        %4830 = vmatpush1.msra.mxu0 0.0
        %4831 = vmatprep.subr.mxu0 0.0
        %4832 = vmatpush1.msra.mxu0 0.0
        %4833 = vmatprep.subr.mxu0 0.0
        %4834 = vmatpush1.msra.mxu0 0.0
        %4835 = vmatprep.mubr.f32.mxu0 0.0
        %v4836 = vand.u32 %v4430, 4294901760
        %4837 = vmatmul.mubr.f32.gmra.mrb[0].mxu0 %v4836
        %v4838 = vpop.f32.mrb[0].mxu0
        %v4839 = vadd.f32 %v4756, %v4838
        %v4840 = vpop.f32.mrb[0].mxu0
        %4841 = vdwg.mxu0
        %4842 = vmatprep.subr.mxu0 0.0
        %v4843 = vand.u32 %v266, 4294901760
        %4844 = vmatpush1.msra.mxu0 %v4843
        %4845 = vmatprep.subr.mxu0 0.0
        %v4846 = vand.u32 %v267, 4294901760
        %4847 = vmatpush1.msra.mxu0 %v4846
        %4848 = vmatprep.subr.mxu0 0.0
        %v4849 = vand.u32 %v268, 4294901760
        %4850 = vmatpush1.msra.mxu0 %v4849
        %4851 = vmatprep.subr.mxu0 0.0
        %v4852 = vand.u32 %v269, 4294901760
        %4853 = vmatpush1.msra.mxu0 %v4852
        %4854 = vmatprep.subr.mxu0 0.0
        %4855 = vmatpush1.msra.mxu0 0.0
        %4856 = vmatprep.subr.mxu0 0.0
        %4857 = vmatpush1.msra.mxu0 0.0
        %4858 = vmatprep.subr.mxu0 0.0
        %4859 = vmatpush1.msra.mxu0 0.0
        %4860 = vmatprep.subr.mxu0 0.0
        %4861 = vmatpush1.msra.mxu0 0.0
        %4862 = vmatprep.subr.mxu0 0.0
        %4863 = vmatpush1.msra.mxu0 0.0
        %4864 = vmatprep.subr.mxu0 0.0
        %4865 = vmatpush1.msra.mxu0 0.0
        %4866 = vmatprep.subr.mxu0 0.0
        %4867 = vmatpush1.msra.mxu0 0.0
        %4868 = vmatprep.subr.mxu0 0.0
        %4869 = vmatpush1.msra.mxu0 0.0
        %4870 = vmatprep.subr.mxu0 0.0
        %4871 = vmatpush1.msra.mxu0 0.0
        %4872 = vmatprep.subr.mxu0 0.0
        %4873 = vmatpush1.msra.mxu0 0.0
        %4874 = vmatprep.subr.mxu0 0.0
        %4875 = vmatpush1.msra.mxu0 0.0
        %4876 = vmatprep.subr.mxu0 0.0
        %4877 = vmatpush1.msra.mxu0 0.0
        %4878 = vmatprep.subr.mxu0 0.0
        %4879 = vmatpush1.msra.mxu0 0.0
        %4880 = vmatprep.subr.mxu0 0.0
        %4881 = vmatpush1.msra.mxu0 0.0
        %4882 = vmatprep.subr.mxu0 0.0
        %4883 = vmatpush1.msra.mxu0 0.0
        %4884 = vmatprep.subr.mxu0 0.0
        %4885 = vmatpush1.msra.mxu0 0.0
        %4886 = vmatprep.subr.mxu0 0.0
        %4887 = vmatpush1.msra.mxu0 0.0
        %4888 = vmatprep.subr.mxu0 0.0
        %4889 = vmatpush1.msra.mxu0 0.0
        %4890 = vmatprep.subr.mxu0 0.0
        %4891 = vmatpush1.msra.mxu0 0.0
        %4892 = vmatprep.subr.mxu0 0.0
        %4893 = vmatpush1.msra.mxu0 0.0
        %4894 = vmatprep.subr.mxu0 0.0
        %4895 = vmatpush1.msra.mxu0 0.0
        %4896 = vmatprep.subr.mxu0 0.0
        %4897 = vmatpush1.msra.mxu0 0.0
        %4898 = vmatprep.subr.mxu0 0.0
        %4899 = vmatpush1.msra.mxu0 0.0
        %4900 = vmatprep.subr.mxu0 0.0
        %4901 = vmatpush1.msra.mxu0 0.0
        %4902 = vmatprep.subr.mxu0 0.0
        %4903 = vmatpush1.msra.mxu0 0.0
        %4904 = vmatprep.subr.mxu0 0.0
        %4905 = vmatpush1.msra.mxu0 0.0
        %4906 = vmatprep.subr.mxu0 0.0
        %4907 = vmatpush1.msra.mxu0 0.0
        %4908 = vmatprep.subr.mxu0 0.0
        %4909 = vmatpush1.msra.mxu0 0.0
        %4910 = vmatprep.mubr.f32.mxu0 0.0
        %v4911 = vand.u32 %v4430, 4294901760
        %4912 = vmatmul.mubr.f32.gmra.mrb[0].mxu0 %v4911
        %v4913 = vpop.f32.mrb[0].mxu0
        %v4914 = vadd.f32 %v4839, %v4913
        %v4915 = vpop.f32.mrb[0].mxu0
        %4916 = vdwg.mxu0
        %4918 = vrot.lane.b32.xlu0 %v4914, 32
        %v4919 = vpop.permute.xlu0 %4918
        %v4921 = vadd.f32 %v4428, %v4919
        %v4922 = vsel %vm1423, %v3955, 0
        %4924 = vmatprep.subr.mxu0 0.0
        %v4925 = vand.u32 %v270, 4294901760
        %4926 = vmatpush1.msra.mxu0 %v4925
        %4927 = vmatprep.subr.mxu0 0.0
        %v4928 = vand.u32 %v271, 4294901760
        %4929 = vmatpush1.msra.mxu0 %v4928
        %4930 = vmatprep.subr.mxu0 0.0
        %v4931 = vand.u32 %v272, 4294901760
        %4932 = vmatpush1.msra.mxu0 %v4931
        %4933 = vmatprep.subr.mxu0 0.0
        %v4934 = vand.u32 %v273, 4294901760
        %4935 = vmatpush1.msra.mxu0 %v4934
        %4936 = vmatprep.subr.mxu0 0.0
        %4937 = vmatpush1.msra.mxu0 0.0
        %4938 = vmatprep.subr.mxu0 0.0
        %4939 = vmatpush1.msra.mxu0 0.0
        %4940 = vmatprep.subr.mxu0 0.0
        %4941 = vmatpush1.msra.mxu0 0.0
        %4942 = vmatprep.subr.mxu0 0.0
        %4943 = vmatpush1.msra.mxu0 0.0
        %4944 = vmatprep.subr.mxu0 0.0
        %4945 = vmatpush1.msra.mxu0 0.0
        %4946 = vmatprep.subr.mxu0 0.0
        %4947 = vmatpush1.msra.mxu0 0.0
        %4948 = vmatprep.subr.mxu0 0.0
        %4949 = vmatpush1.msra.mxu0 0.0
        %4950 = vmatprep.subr.mxu0 0.0
        %4951 = vmatpush1.msra.mxu0 0.0
        %4952 = vmatprep.subr.mxu0 0.0
        %4953 = vmatpush1.msra.mxu0 0.0
        %4954 = vmatprep.subr.mxu0 0.0
        %4955 = vmatpush1.msra.mxu0 0.0
        %4956 = vmatprep.subr.mxu0 0.0
        %4957 = vmatpush1.msra.mxu0 0.0
        %4958 = vmatprep.subr.mxu0 0.0
        %4959 = vmatpush1.msra.mxu0 0.0
        %4960 = vmatprep.subr.mxu0 0.0
        %4961 = vmatpush1.msra.mxu0 0.0
        %4962 = vmatprep.subr.mxu0 0.0
        %4963 = vmatpush1.msra.mxu0 0.0
        %4964 = vmatprep.subr.mxu0 0.0
        %4965 = vmatpush1.msra.mxu0 0.0
        %4966 = vmatprep.subr.mxu0 0.0
        %4967 = vmatpush1.msra.mxu0 0.0
        %4968 = vmatprep.subr.mxu0 0.0
        %4969 = vmatpush1.msra.mxu0 0.0
        %4970 = vmatprep.subr.mxu0 0.0
        %4971 = vmatpush1.msra.mxu0 0.0
        %4972 = vmatprep.subr.mxu0 0.0
        %4973 = vmatpush1.msra.mxu0 0.0
        %4974 = vmatprep.subr.mxu0 0.0
        %4975 = vmatpush1.msra.mxu0 0.0
        %4976 = vmatprep.subr.mxu0 0.0
        %4977 = vmatpush1.msra.mxu0 0.0
        %4978 = vmatprep.subr.mxu0 0.0
        %4979 = vmatpush1.msra.mxu0 0.0
        %4980 = vmatprep.subr.mxu0 0.0
        %4981 = vmatpush1.msra.mxu0 0.0
        %4982 = vmatprep.subr.mxu0 0.0
        %4983 = vmatpush1.msra.mxu0 0.0
        %4984 = vmatprep.subr.mxu0 0.0
        %4985 = vmatpush1.msra.mxu0 0.0
        %4986 = vmatprep.subr.mxu0 0.0
        %4987 = vmatpush1.msra.mxu0 0.0
        %4988 = vmatprep.subr.mxu0 0.0
        %4989 = vmatpush1.msra.mxu0 0.0
        %4990 = vmatprep.subr.mxu0 0.0
        %4991 = vmatpush1.msra.mxu0 0.0
        %4992 = vmatprep.mubr.f32.mxu0 0.0
        %v4993 = vand.u32 %v4922, 4294901760
        %v4994 = vsub.f32 %v4922, %v4993
        %v4995 = vand.u32 %v4994, 4294901760
        %v4996 = vsub.f32 %v4994, %v4995
        %v4997 = vand.u32 %v4996, 4294901760
        %4998 = vmatmul.mubr.f32.gmra.mrb[0].mxu0 %v4997
        %v4999 = vpop.f32.mrb[0].mxu0
        %v5000 = vadd.f32 0.0, %v4999
        %v5001 = vpop.f32.mrb[0].mxu0
        %5002 = vdwg.mxu0
        %5003 = vmatprep.subr.mxu0 0.0
        %v5004 = vand.u32 %v270, 4294901760
        %v5005 = vsub.f32 %v270, %v5004
        %v5006 = vand.u32 %v5005, 4294901760
        %v5007 = vsub.f32 %v5005, %v5006
        %v5008 = vand.u32 %v5007, 4294901760
        %5009 = vmatpush1.msra.mxu0 %v5008
        %5010 = vmatprep.subr.mxu0 0.0
        %v5011 = vand.u32 %v271, 4294901760
        %v5012 = vsub.f32 %v271, %v5011
        %v5013 = vand.u32 %v5012, 4294901760
        %v5014 = vsub.f32 %v5012, %v5013
        %v5015 = vand.u32 %v5014, 4294901760
        %5016 = vmatpush1.msra.mxu0 %v5015
        %5017 = vmatprep.subr.mxu0 0.0
        %v5018 = vand.u32 %v272, 4294901760
        %v5019 = vsub.f32 %v272, %v5018
        %v5020 = vand.u32 %v5019, 4294901760
        %v5021 = vsub.f32 %v5019, %v5020
        %v5022 = vand.u32 %v5021, 4294901760
        %5023 = vmatpush1.msra.mxu0 %v5022
        %5024 = vmatprep.subr.mxu0 0.0
        %v5025 = vand.u32 %v273, 4294901760
        %v5026 = vsub.f32 %v273, %v5025
        %v5027 = vand.u32 %v5026, 4294901760
        %v5028 = vsub.f32 %v5026, %v5027
        %v5029 = vand.u32 %v5028, 4294901760
        %5030 = vmatpush1.msra.mxu0 %v5029
        %5031 = vmatprep.subr.mxu0 0.0
        %5032 = vmatpush1.msra.mxu0 0.0
        %5033 = vmatprep.subr.mxu0 0.0
        %5034 = vmatpush1.msra.mxu0 0.0
        %5035 = vmatprep.subr.mxu0 0.0
        %5036 = vmatpush1.msra.mxu0 0.0
        %5037 = vmatprep.subr.mxu0 0.0
        %5038 = vmatpush1.msra.mxu0 0.0
        %5039 = vmatprep.subr.mxu0 0.0
        %5040 = vmatpush1.msra.mxu0 0.0
        %5041 = vmatprep.subr.mxu0 0.0
        %5042 = vmatpush1.msra.mxu0 0.0
        %5043 = vmatprep.subr.mxu0 0.0
        %5044 = vmatpush1.msra.mxu0 0.0
        %5045 = vmatprep.subr.mxu0 0.0
        %5046 = vmatpush1.msra.mxu0 0.0
        %5047 = vmatprep.subr.mxu0 0.0
        %5048 = vmatpush1.msra.mxu0 0.0
        %5049 = vmatprep.subr.mxu0 0.0
        %5050 = vmatpush1.msra.mxu0 0.0
        %5051 = vmatprep.subr.mxu0 0.0
        %5052 = vmatpush1.msra.mxu0 0.0
        %5053 = vmatprep.subr.mxu0 0.0
        %5054 = vmatpush1.msra.mxu0 0.0
        %5055 = vmatprep.subr.mxu0 0.0
        %5056 = vmatpush1.msra.mxu0 0.0
        %5057 = vmatprep.subr.mxu0 0.0
        %5058 = vmatpush1.msra.mxu0 0.0
        %5059 = vmatprep.subr.mxu0 0.0
        %5060 = vmatpush1.msra.mxu0 0.0
        %5061 = vmatprep.subr.mxu0 0.0
        %5062 = vmatpush1.msra.mxu0 0.0
        %5063 = vmatprep.subr.mxu0 0.0
        %5064 = vmatpush1.msra.mxu0 0.0
        %5065 = vmatprep.subr.mxu0 0.0
        %5066 = vmatpush1.msra.mxu0 0.0
        %5067 = vmatprep.subr.mxu0 0.0
        %5068 = vmatpush1.msra.mxu0 0.0
        %5069 = vmatprep.subr.mxu0 0.0
        %5070 = vmatpush1.msra.mxu0 0.0
        %5071 = vmatprep.subr.mxu0 0.0
        %5072 = vmatpush1.msra.mxu0 0.0
        %5073 = vmatprep.subr.mxu0 0.0
        %5074 = vmatpush1.msra.mxu0 0.0
        %5075 = vmatprep.subr.mxu0 0.0
        %5076 = vmatpush1.msra.mxu0 0.0
        %5077 = vmatprep.subr.mxu0 0.0
        %5078 = vmatpush1.msra.mxu0 0.0
        %5079 = vmatprep.subr.mxu0 0.0
        %5080 = vmatpush1.msra.mxu0 0.0
        %5081 = vmatprep.subr.mxu0 0.0
        %5082 = vmatpush1.msra.mxu0 0.0
        %5083 = vmatprep.subr.mxu0 0.0
        %5084 = vmatpush1.msra.mxu0 0.0
        %5085 = vmatprep.subr.mxu0 0.0
        %5086 = vmatpush1.msra.mxu0 0.0
        %5087 = vmatprep.mubr.f32.mxu0 0.0
        %v5088 = vand.u32 %v4922, 4294901760
        %5089 = vmatmul.mubr.f32.gmra.mrb[0].mxu0 %v5088
        %v5090 = vpop.f32.mrb[0].mxu0
        %v5091 = vadd.f32 %v5000, %v5090
        %v5092 = vpop.f32.mrb[0].mxu0
        %5093 = vdwg.mxu0
        %5094 = vmatprep.subr.mxu0 0.0
        %v5095 = vand.u32 %v270, 4294901760
        %v5096 = vsub.f32 %v270, %v5095
        %5097 = vmatpush1.msra.mxu0 %v5096
        %5098 = vmatprep.subr.mxu0 0.0
        %v5099 = vand.u32 %v271, 4294901760
        %v5100 = vsub.f32 %v271, %v5099
        %5101 = vmatpush1.msra.mxu0 %v5100
        %5102 = vmatprep.subr.mxu0 0.0
        %v5103 = vand.u32 %v272, 4294901760
        %v5104 = vsub.f32 %v272, %v5103
        %5105 = vmatpush1.msra.mxu0 %v5104
        %5106 = vmatprep.subr.mxu0 0.0
        %v5107 = vand.u32 %v273, 4294901760
        %v5108 = vsub.f32 %v273, %v5107
        %5109 = vmatpush1.msra.mxu0 %v5108
        %5110 = vmatprep.subr.mxu0 0.0
        %5111 = vmatpush1.msra.mxu0 0.0
        %5112 = vmatprep.subr.mxu0 0.0
        %5113 = vmatpush1.msra.mxu0 0.0
        %5114 = vmatprep.subr.mxu0 0.0
        %5115 = vmatpush1.msra.mxu0 0.0
        %5116 = vmatprep.subr.mxu0 0.0
        %5117 = vmatpush1.msra.mxu0 0.0
        %5118 = vmatprep.subr.mxu0 0.0
        %5119 = vmatpush1.msra.mxu0 0.0
        %5120 = vmatprep.subr.mxu0 0.0
        %5121 = vmatpush1.msra.mxu0 0.0
        %5122 = vmatprep.subr.mxu0 0.0
        %5123 = vmatpush1.msra.mxu0 0.0
        %5124 = vmatprep.subr.mxu0 0.0
        %5125 = vmatpush1.msra.mxu0 0.0
        %5126 = vmatprep.subr.mxu0 0.0
        %5127 = vmatpush1.msra.mxu0 0.0
        %5128 = vmatprep.subr.mxu0 0.0
        %5129 = vmatpush1.msra.mxu0 0.0
        %5130 = vmatprep.subr.mxu0 0.0
        %5131 = vmatpush1.msra.mxu0 0.0
        %5132 = vmatprep.subr.mxu0 0.0
        %5133 = vmatpush1.msra.mxu0 0.0
        %5134 = vmatprep.subr.mxu0 0.0
        %5135 = vmatpush1.msra.mxu0 0.0
        %5136 = vmatprep.subr.mxu0 0.0
        %5137 = vmatpush1.msra.mxu0 0.0
        %5138 = vmatprep.subr.mxu0 0.0
        %5139 = vmatpush1.msra.mxu0 0.0
        %5140 = vmatprep.subr.mxu0 0.0
        %5141 = vmatpush1.msra.mxu0 0.0
        %5142 = vmatprep.subr.mxu0 0.0
        %5143 = vmatpush1.msra.mxu0 0.0
        %5144 = vmatprep.subr.mxu0 0.0
        %5145 = vmatpush1.msra.mxu0 0.0
        %5146 = vmatprep.subr.mxu0 0.0
        %5147 = vmatpush1.msra.mxu0 0.0
        %5148 = vmatprep.subr.mxu0 0.0
        %5149 = vmatpush1.msra.mxu0 0.0
        %5150 = vmatprep.subr.mxu0 0.0
        %5151 = vmatpush1.msra.mxu0 0.0
        %5152 = vmatprep.subr.mxu0 0.0
        %5153 = vmatpush1.msra.mxu0 0.0
        %5154 = vmatprep.subr.mxu0 0.0
        %5155 = vmatpush1.msra.mxu0 0.0
        %5156 = vmatprep.subr.mxu0 0.0
        %5157 = vmatpush1.msra.mxu0 0.0
        %5158 = vmatprep.subr.mxu0 0.0
        %5159 = vmatpush1.msra.mxu0 0.0
        %5160 = vmatprep.subr.mxu0 0.0
        %5161 = vmatpush1.msra.mxu0 0.0
        %5162 = vmatprep.subr.mxu0 0.0
        %5163 = vmatpush1.msra.mxu0 0.0
        %5164 = vmatprep.subr.mxu0 0.0
        %5165 = vmatpush1.msra.mxu0 0.0
        %5166 = vmatprep.mubr.f32.mxu0 0.0
        %v5167 = vand.u32 %v4922, 4294901760
        %v5168 = vsub.f32 %v4922, %v5167
        %5169 = vmatmul.mubr.f32.gmra.mrb[0].mxu0 %v5168
        %v5170 = vpop.f32.mrb[0].mxu0
        %v5171 = vadd.f32 %v5091, %v5170
        %v5172 = vpop.f32.mrb[0].mxu0
        %5173 = vdwg.mxu0
        %5174 = vmatprep.subr.mxu0 0.0
        %v5175 = vand.u32 %v270, 4294901760
        %5176 = vmatpush1.msra.mxu0 %v5175
        %5177 = vmatprep.subr.mxu0 0.0
        %v5178 = vand.u32 %v271, 4294901760
        %5179 = vmatpush1.msra.mxu0 %v5178
        %5180 = vmatprep.subr.mxu0 0.0
        %v5181 = vand.u32 %v272, 4294901760
        %5182 = vmatpush1.msra.mxu0 %v5181
        %5183 = vmatprep.subr.mxu0 0.0
        %v5184 = vand.u32 %v273, 4294901760
        %5185 = vmatpush1.msra.mxu0 %v5184
        %5186 = vmatprep.subr.mxu0 0.0
        %5187 = vmatpush1.msra.mxu0 0.0
        %5188 = vmatprep.subr.mxu0 0.0
        %5189 = vmatpush1.msra.mxu0 0.0
        %5190 = vmatprep.subr.mxu0 0.0
        %5191 = vmatpush1.msra.mxu0 0.0
        %5192 = vmatprep.subr.mxu0 0.0
        %5193 = vmatpush1.msra.mxu0 0.0
        %5194 = vmatprep.subr.mxu0 0.0
        %5195 = vmatpush1.msra.mxu0 0.0
        %5196 = vmatprep.subr.mxu0 0.0
        %5197 = vmatpush1.msra.mxu0 0.0
        %5198 = vmatprep.subr.mxu0 0.0
        %5199 = vmatpush1.msra.mxu0 0.0
        %5200 = vmatprep.subr.mxu0 0.0
        %5201 = vmatpush1.msra.mxu0 0.0
        %5202 = vmatprep.subr.mxu0 0.0
        %5203 = vmatpush1.msra.mxu0 0.0
        %5204 = vmatprep.subr.mxu0 0.0
        %5205 = vmatpush1.msra.mxu0 0.0
        %5206 = vmatprep.subr.mxu0 0.0
        %5207 = vmatpush1.msra.mxu0 0.0
        %5208 = vmatprep.subr.mxu0 0.0
        %5209 = vmatpush1.msra.mxu0 0.0
        %5210 = vmatprep.subr.mxu0 0.0
        %5211 = vmatpush1.msra.mxu0 0.0
        %5212 = vmatprep.subr.mxu0 0.0
        %5213 = vmatpush1.msra.mxu0 0.0
        %5214 = vmatprep.subr.mxu0 0.0
        %5215 = vmatpush1.msra.mxu0 0.0
        %5216 = vmatprep.subr.mxu0 0.0
        %5217 = vmatpush1.msra.mxu0 0.0
        %5218 = vmatprep.subr.mxu0 0.0
        %5219 = vmatpush1.msra.mxu0 0.0
        %5220 = vmatprep.subr.mxu0 0.0
        %5221 = vmatpush1.msra.mxu0 0.0
        %5222 = vmatprep.subr.mxu0 0.0
        %5223 = vmatpush1.msra.mxu0 0.0
        %5224 = vmatprep.subr.mxu0 0.0
        %5225 = vmatpush1.msra.mxu0 0.0
        %5226 = vmatprep.subr.mxu0 0.0
        %5227 = vmatpush1.msra.mxu0 0.0
        %5228 = vmatprep.subr.mxu0 0.0
        %5229 = vmatpush1.msra.mxu0 0.0
        %5230 = vmatprep.subr.mxu0 0.0
        %5231 = vmatpush1.msra.mxu0 0.0
        %5232 = vmatprep.subr.mxu0 0.0
        %5233 = vmatpush1.msra.mxu0 0.0
        %5234 = vmatprep.subr.mxu0 0.0
        %5235 = vmatpush1.msra.mxu0 0.0
        %5236 = vmatprep.subr.mxu0 0.0
        %5237 = vmatpush1.msra.mxu0 0.0
        %5238 = vmatprep.subr.mxu0 0.0
        %5239 = vmatpush1.msra.mxu0 0.0
        %5240 = vmatprep.subr.mxu0 0.0
        %5241 = vmatpush1.msra.mxu0 0.0
        %5242 = vmatprep.mubr.f32.mxu0 0.0
        %v5243 = vand.u32 %v4922, 4294901760
        %v5244 = vsub.f32 %v4922, %v5243
        %v5245 = vand.u32 %v5244, 4294901760
        %5246 = vmatmul.mubr.f32.gmra.mrb[0].mxu0 %v5245
        %v5247 = vpop.f32.mrb[0].mxu0
        %v5248 = vadd.f32 %v5171, %v5247
        %v5249 = vpop.f32.mrb[0].mxu0
        %5250 = vdwg.mxu0
        %5251 = vmatprep.subr.mxu0 0.0
        %v5252 = vand.u32 %v270, 4294901760
        %v5253 = vsub.f32 %v270, %v5252
        %v5254 = vand.u32 %v5253, 4294901760
        %5255 = vmatpush1.msra.mxu0 %v5254
        %5256 = vmatprep.subr.mxu0 0.0
        %v5257 = vand.u32 %v271, 4294901760
        %v5258 = vsub.f32 %v271, %v5257
        %v5259 = vand.u32 %v5258, 4294901760
        %5260 = vmatpush1.msra.mxu0 %v5259
        %5261 = vmatprep.subr.mxu0 0.0
        %v5262 = vand.u32 %v272, 4294901760
        %v5263 = vsub.f32 %v272, %v5262
        %v5264 = vand.u32 %v5263, 4294901760
        %5265 = vmatpush1.msra.mxu0 %v5264
        %5266 = vmatprep.subr.mxu0 0.0
        %v5267 = vand.u32 %v273, 4294901760
        %v5268 = vsub.f32 %v273, %v5267
        %v5269 = vand.u32 %v5268, 4294901760
        %5270 = vmatpush1.msra.mxu0 %v5269
        %5271 = vmatprep.subr.mxu0 0.0
        %5272 = vmatpush1.msra.mxu0 0.0
        %5273 = vmatprep.subr.mxu0 0.0
        %5274 = vmatpush1.msra.mxu0 0.0
        %5275 = vmatprep.subr.mxu0 0.0
        %5276 = vmatpush1.msra.mxu0 0.0
        %5277 = vmatprep.subr.mxu0 0.0
        %5278 = vmatpush1.msra.mxu0 0.0
        %5279 = vmatprep.subr.mxu0 0.0
        %5280 = vmatpush1.msra.mxu0 0.0
        %5281 = vmatprep.subr.mxu0 0.0
        %5282 = vmatpush1.msra.mxu0 0.0
        %5283 = vmatprep.subr.mxu0 0.0
        %5284 = vmatpush1.msra.mxu0 0.0
        %5285 = vmatprep.subr.mxu0 0.0
        %5286 = vmatpush1.msra.mxu0 0.0
        %5287 = vmatprep.subr.mxu0 0.0
        %5288 = vmatpush1.msra.mxu0 0.0
        %5289 = vmatprep.subr.mxu0 0.0
        %5290 = vmatpush1.msra.mxu0 0.0
        %5291 = vmatprep.subr.mxu0 0.0
        %5292 = vmatpush1.msra.mxu0 0.0
        %5293 = vmatprep.subr.mxu0 0.0
        %5294 = vmatpush1.msra.mxu0 0.0
        %5295 = vmatprep.subr.mxu0 0.0
        %5296 = vmatpush1.msra.mxu0 0.0
        %5297 = vmatprep.subr.mxu0 0.0
        %5298 = vmatpush1.msra.mxu0 0.0
        %5299 = vmatprep.subr.mxu0 0.0
        %5300 = vmatpush1.msra.mxu0 0.0
        %5301 = vmatprep.subr.mxu0 0.0
        %5302 = vmatpush1.msra.mxu0 0.0
        %5303 = vmatprep.subr.mxu0 0.0
        %5304 = vmatpush1.msra.mxu0 0.0
        %5305 = vmatprep.subr.mxu0 0.0
        %5306 = vmatpush1.msra.mxu0 0.0
        %5307 = vmatprep.subr.mxu0 0.0
        %5308 = vmatpush1.msra.mxu0 0.0
        %5309 = vmatprep.subr.mxu0 0.0
        %5310 = vmatpush1.msra.mxu0 0.0
        %5311 = vmatprep.subr.mxu0 0.0
        %5312 = vmatpush1.msra.mxu0 0.0
        %5313 = vmatprep.subr.mxu0 0.0
        %5314 = vmatpush1.msra.mxu0 0.0
        %5315 = vmatprep.subr.mxu0 0.0
        %5316 = vmatpush1.msra.mxu0 0.0
        %5317 = vmatprep.subr.mxu0 0.0
        %5318 = vmatpush1.msra.mxu0 0.0
        %5319 = vmatprep.subr.mxu0 0.0
        %5320 = vmatpush1.msra.mxu0 0.0
        %5321 = vmatprep.subr.mxu0 0.0
        %5322 = vmatpush1.msra.mxu0 0.0
        %5323 = vmatprep.subr.mxu0 0.0
        %5324 = vmatpush1.msra.mxu0 0.0
        %5325 = vmatprep.subr.mxu0 0.0
        %5326 = vmatpush1.msra.mxu0 0.0
        %5327 = vmatprep.mubr.f32.mxu0 0.0
        %v5328 = vand.u32 %v4922, 4294901760
        %5329 = vmatmul.mubr.f32.gmra.mrb[0].mxu0 %v5328
        %v5330 = vpop.f32.mrb[0].mxu0
        %v5331 = vadd.f32 %v5248, %v5330
        %v5332 = vpop.f32.mrb[0].mxu0
        %5333 = vdwg.mxu0
        %5334 = vmatprep.subr.mxu0 0.0
        %v5335 = vand.u32 %v270, 4294901760
        %5336 = vmatpush1.msra.mxu0 %v5335
        %5337 = vmatprep.subr.mxu0 0.0
        %v5338 = vand.u32 %v271, 4294901760
        %5339 = vmatpush1.msra.mxu0 %v5338
        %5340 = vmatprep.subr.mxu0 0.0
        %v5341 = vand.u32 %v272, 4294901760
        %5342 = vmatpush1.msra.mxu0 %v5341
        %5343 = vmatprep.subr.mxu0 0.0
        %v5344 = vand.u32 %v273, 4294901760
        %5345 = vmatpush1.msra.mxu0 %v5344
        %5346 = vmatprep.subr.mxu0 0.0
        %5347 = vmatpush1.msra.mxu0 0.0
        %5348 = vmatprep.subr.mxu0 0.0
        %5349 = vmatpush1.msra.mxu0 0.0
        %5350 = vmatprep.subr.mxu0 0.0
        %5351 = vmatpush1.msra.mxu0 0.0
        %5352 = vmatprep.subr.mxu0 0.0
        %5353 = vmatpush1.msra.mxu0 0.0
        %5354 = vmatprep.subr.mxu0 0.0
        %5355 = vmatpush1.msra.mxu0 0.0
        %5356 = vmatprep.subr.mxu0 0.0
        %5357 = vmatpush1.msra.mxu0 0.0
        %5358 = vmatprep.subr.mxu0 0.0
        %5359 = vmatpush1.msra.mxu0 0.0
        %5360 = vmatprep.subr.mxu0 0.0
        %5361 = vmatpush1.msra.mxu0 0.0
        %5362 = vmatprep.subr.mxu0 0.0
        %5363 = vmatpush1.msra.mxu0 0.0
        %5364 = vmatprep.subr.mxu0 0.0
        %5365 = vmatpush1.msra.mxu0 0.0
        %5366 = vmatprep.subr.mxu0 0.0
        %5367 = vmatpush1.msra.mxu0 0.0
        %5368 = vmatprep.subr.mxu0 0.0
        %5369 = vmatpush1.msra.mxu0 0.0
        %5370 = vmatprep.subr.mxu0 0.0
        %5371 = vmatpush1.msra.mxu0 0.0
        %5372 = vmatprep.subr.mxu0 0.0
        %5373 = vmatpush1.msra.mxu0 0.0
        %5374 = vmatprep.subr.mxu0 0.0
        %5375 = vmatpush1.msra.mxu0 0.0
        %5376 = vmatprep.subr.mxu0 0.0
        %5377 = vmatpush1.msra.mxu0 0.0
        %5378 = vmatprep.subr.mxu0 0.0
        %5379 = vmatpush1.msra.mxu0 0.0
        %5380 = vmatprep.subr.mxu0 0.0
        %5381 = vmatpush1.msra.mxu0 0.0
        %5382 = vmatprep.subr.mxu0 0.0
        %5383 = vmatpush1.msra.mxu0 0.0
        %5384 = vmatprep.subr.mxu0 0.0
        %5385 = vmatpush1.msra.mxu0 0.0
        %5386 = vmatprep.subr.mxu0 0.0
        %5387 = vmatpush1.msra.mxu0 0.0
        %5388 = vmatprep.subr.mxu0 0.0
        %5389 = vmatpush1.msra.mxu0 0.0
        %5390 = vmatprep.subr.mxu0 0.0
        %5391 = vmatpush1.msra.mxu0 0.0
        %5392 = vmatprep.subr.mxu0 0.0
        %5393 = vmatpush1.msra.mxu0 0.0
        %5394 = vmatprep.subr.mxu0 0.0
        %5395 = vmatpush1.msra.mxu0 0.0
        %5396 = vmatprep.subr.mxu0 0.0
        %5397 = vmatpush1.msra.mxu0 0.0
        %5398 = vmatprep.subr.mxu0 0.0
        %5399 = vmatpush1.msra.mxu0 0.0
        %5400 = vmatprep.subr.mxu0 0.0
        %5401 = vmatpush1.msra.mxu0 0.0
        %5402 = vmatprep.mubr.f32.mxu0 0.0
        %v5403 = vand.u32 %v4922, 4294901760
        %5404 = vmatmul.mubr.f32.gmra.mrb[0].mxu0 %v5403
        %v5405 = vpop.f32.mrb[0].mxu0
        %v5406 = vadd.f32 %v5331, %v5405
        %v5407 = vpop.f32.mrb[0].mxu0
        %5408 = vdwg.mxu0
        %5410 = vrot.lane.b32.xlu0 %v5406, 32
        %v5411 = vpop.permute.xlu0 %5410
        %v5413 = vadd.f32 %v4921, %v5411
        %v5414 = vxor.u32 %v5413, 2147483648
        %v5415 = vmul.f32 %v5414, 1.442695
        %v5416 = vpow.pop %v5415
        %v5417 = vadd.f32 %v5416, 1.0
        %v5418 = vrcp.pop %v5417
        %v5419 = vmul.f32 1.0, %v5418
        %v5420 = vadd.f32 %v5406, %v2418
        %5422 = vrot.lane.b32.xlu0 %v5420, 96
        %v5423 = vpop.permute.xlu0 %5422
        %v5425 = vmul.f32 %v5419, %v5423
        %5427 = vrot.lane.b32.xlu0 %v5425, 64
        %v5428 = vpop.permute.xlu0 %5427
        %v5430 = vadd.f32 %v4921, %v5428
        %v5431 = vtanh.pop %v5430
        %v5432 = vsub.f32 %v3943, %v5431
        %5434 = vrot.lane.b32.xlu0 %v5432, 96
        %v5435 = vpop.permute.xlu0 %5434
        %v5437 = vmul.f32 %v5419, %v5435
        %5439 = vrot.lane.b32.xlu0 %v5437, 32
        %v5440 = vpop.permute.xlu0 %5439
        %v5442 = vadd.f32 %v5431, %v5440
        %v5443 = vmul.f32 %v5442, %v2444
        %5445 = vrot.lane.b32.xlu0 %v5443, 32
        %v5446 = vpop.permute.xlu0 %5445
        %v5448 = vsel %vm1423, %v5446, 0.0
        %5449 = vadd.xlane.f32.xlu0 %v5448
        %v5450 = vpop.xlane.xlu0 %5449
        %v5451 = vadd.f32 %v5450, %v953
        %5453 = vrot.lane.b32.xlu0 %v5442, 32
        %v5454 = vpop.permute.xlu0 %5453
        %s5456 = scalar_lea.vmem %s264, 16 [#allocation3]
        %5457 = vst.msk [vmem:[%s5456] sm:$0xff] %vm1423, %v5454
        %5459 = vset.pattern.permute.xlu0 96
        %5460 = vperm.xlu0 %5459, %v5451
        %v5461 = vpop.permute.xlu0 %5460
        %v5463 = vmul.f32 %v5461, %v949
        %v5464 = vadd.f32 %v943, %v5463
        %5466 = vrot.lane.b32.xlu0 %v5463, 96
        %v5467 = vpop.permute.xlu0 %5466
        %5469 = vmatprep.subr.mxu0 0.0
        %v5470 = vand.u32 %v5467, 4294901760
        %5471 = vmatpush1.msra.mxu0 %v5470
        %5472 = vmatprep.subr.mxu0 0.0
        %5473 = vmatpush1.msra.mxu0 0.0
        %5474 = vmatprep.subr.mxu0 0.0
        %5475 = vmatpush1.msra.mxu0 0.0
        %5476 = vmatprep.subr.mxu0 0.0
        %5477 = vmatpush1.msra.mxu0 0.0
        %5478 = vmatprep.subr.mxu0 0.0
        %5479 = vmatpush1.msra.mxu0 0.0
        %5480 = vmatprep.subr.mxu0 0.0
        %5481 = vmatpush1.msra.mxu0 0.0
        %5482 = vmatprep.subr.mxu0 0.0
        %5483 = vmatpush1.msra.mxu0 0.0
        %5484 = vmatprep.subr.mxu0 0.0
        %5485 = vmatpush1.msra.mxu0 0.0
        %5486 = vmatprep.subr.mxu0 0.0
        %5487 = vmatpush1.msra.mxu0 0.0
        %5488 = vmatprep.subr.mxu0 0.0
        %5489 = vmatpush1.msra.mxu0 0.0
        %5490 = vmatprep.subr.mxu0 0.0
        %5491 = vmatpush1.msra.mxu0 0.0
        %5492 = vmatprep.subr.mxu0 0.0
        %5493 = vmatpush1.msra.mxu0 0.0
        %5494 = vmatprep.subr.mxu0 0.0
        %5495 = vmatpush1.msra.mxu0 0.0
        %5496 = vmatprep.subr.mxu0 0.0
        %5497 = vmatpush1.msra.mxu0 0.0
        %5498 = vmatprep.subr.mxu0 0.0
        %5499 = vmatpush1.msra.mxu0 0.0
        %5500 = vmatprep.subr.mxu0 0.0
        %5501 = vmatpush1.msra.mxu0 0.0
        %5502 = vmatprep.subr.mxu0 0.0
        %5503 = vmatpush1.msra.mxu0 0.0
        %5504 = vmatprep.subr.mxu0 0.0
        %5505 = vmatpush1.msra.mxu0 0.0
        %5506 = vmatprep.subr.mxu0 0.0
        %5507 = vmatpush1.msra.mxu0 0.0
        %5508 = vmatprep.subr.mxu0 0.0
        %5509 = vmatpush1.msra.mxu0 0.0
        %5510 = vmatprep.subr.mxu0 0.0
        %5511 = vmatpush1.msra.mxu0 0.0
        %5512 = vmatprep.subr.mxu0 0.0
        %5513 = vmatpush1.msra.mxu0 0.0
        %5514 = vmatprep.subr.mxu0 0.0
        %5515 = vmatpush1.msra.mxu0 0.0
        %5516 = vmatprep.subr.mxu0 0.0
        %5517 = vmatpush1.msra.mxu0 0.0
        %5518 = vmatprep.subr.mxu0 0.0
        %5519 = vmatpush1.msra.mxu0 0.0
        %5520 = vmatprep.subr.mxu0 0.0
        %5521 = vmatpush1.msra.mxu0 0.0
        %5522 = vmatprep.subr.mxu0 0.0
        %5523 = vmatpush1.msra.mxu0 0.0
        %5524 = vmatprep.subr.mxu0 0.0
        %5525 = vmatpush1.msra.mxu0 0.0
        %5526 = vmatprep.subr.mxu0 0.0
        %5527 = vmatpush1.msra.mxu0 0.0
        %5528 = vmatprep.subr.mxu0 0.0
        %5529 = vmatpush1.msra.mxu0 0.0
        %5530 = vmatprep.subr.mxu0 0.0
        %5531 = vmatpush1.msra.mxu0 0.0
        %5532 = vmatprep.subr.mxu0 0.0
        %5533 = vmatpush1.msra.mxu0 0.0
        %5534 = vmatprep.mubr.f32.mxu0 0.0
        %v5535 = vand.u32 %v962, 4294901760
        %v5536 = vsub.f32 %v962, %v5535
        %v5537 = vand.u32 %v5536, 4294901760
        %v5538 = vsub.f32 %v5536, %v5537
        %v5539 = vand.u32 %v5538, 4294901760
        %5540 = vmatmul.mubr.f32.gmra.mrb[0].mxu0 %v5539
        %v5541 = vpop.f32.mrb[0].mxu0
        %v5542 = vadd.f32 0.0, %v5541
        %v5543 = vpop.f32.mrb[0].mxu0
        %5544 = vdwg.mxu0
        %5545 = vmatprep.subr.mxu0 0.0
        %v5546 = vand.u32 %v5467, 4294901760
        %v5547 = vsub.f32 %v5467, %v5546
        %v5548 = vand.u32 %v5547, 4294901760
        %v5549 = vsub.f32 %v5547, %v5548
        %v5550 = vand.u32 %v5549, 4294901760
        %5551 = vmatpush1.msra.mxu0 %v5550
        %5552 = vmatprep.subr.mxu0 0.0
        %5553 = vmatpush1.msra.mxu0 0.0
        %5554 = vmatprep.subr.mxu0 0.0
        %5555 = vmatpush1.msra.mxu0 0.0
        %5556 = vmatprep.subr.mxu0 0.0
        %5557 = vmatpush1.msra.mxu0 0.0
        %5558 = vmatprep.subr.mxu0 0.0
        %5559 = vmatpush1.msra.mxu0 0.0
        %5560 = vmatprep.subr.mxu0 0.0
        %5561 = vmatpush1.msra.mxu0 0.0
        %5562 = vmatprep.subr.mxu0 0.0
        %5563 = vmatpush1.msra.mxu0 0.0
        %5564 = vmatprep.subr.mxu0 0.0
        %5565 = vmatpush1.msra.mxu0 0.0
        %5566 = vmatprep.subr.mxu0 0.0
        %5567 = vmatpush1.msra.mxu0 0.0
        %5568 = vmatprep.subr.mxu0 0.0
        %5569 = vmatpush1.msra.mxu0 0.0
        %5570 = vmatprep.subr.mxu0 0.0
        %5571 = vmatpush1.msra.mxu0 0.0
        %5572 = vmatprep.subr.mxu0 0.0
        %5573 = vmatpush1.msra.mxu0 0.0
        %5574 = vmatprep.subr.mxu0 0.0
        %5575 = vmatpush1.msra.mxu0 0.0
        %5576 = vmatprep.subr.mxu0 0.0
        %5577 = vmatpush1.msra.mxu0 0.0
        %5578 = vmatprep.subr.mxu0 0.0
        %5579 = vmatpush1.msra.mxu0 0.0
        %5580 = vmatprep.subr.mxu0 0.0
        %5581 = vmatpush1.msra.mxu0 0.0
        %5582 = vmatprep.subr.mxu0 0.0
        %5583 = vmatpush1.msra.mxu0 0.0
        %5584 = vmatprep.subr.mxu0 0.0
        %5585 = vmatpush1.msra.mxu0 0.0
        %5586 = vmatprep.subr.mxu0 0.0
        %5587 = vmatpush1.msra.mxu0 0.0
        %5588 = vmatprep.subr.mxu0 0.0
        %5589 = vmatpush1.msra.mxu0 0.0
        %5590 = vmatprep.subr.mxu0 0.0
        %5591 = vmatpush1.msra.mxu0 0.0
        %5592 = vmatprep.subr.mxu0 0.0
        %5593 = vmatpush1.msra.mxu0 0.0
        %5594 = vmatprep.subr.mxu0 0.0
        %5595 = vmatpush1.msra.mxu0 0.0
        %5596 = vmatprep.subr.mxu0 0.0
        %5597 = vmatpush1.msra.mxu0 0.0
        %5598 = vmatprep.subr.mxu0 0.0
        %5599 = vmatpush1.msra.mxu0 0.0
        %5600 = vmatprep.subr.mxu0 0.0
        %5601 = vmatpush1.msra.mxu0 0.0
        %5602 = vmatprep.subr.mxu0 0.0
        %5603 = vmatpush1.msra.mxu0 0.0
        %5604 = vmatprep.subr.mxu0 0.0
        %5605 = vmatpush1.msra.mxu0 0.0
        %5606 = vmatprep.subr.mxu0 0.0
        %5607 = vmatpush1.msra.mxu0 0.0
        %5608 = vmatprep.subr.mxu0 0.0
        %5609 = vmatpush1.msra.mxu0 0.0
        %5610 = vmatprep.subr.mxu0 0.0
        %5611 = vmatpush1.msra.mxu0 0.0
        %5612 = vmatprep.subr.mxu0 0.0
        %5613 = vmatpush1.msra.mxu0 0.0
        %5614 = vmatprep.mubr.f32.mxu0 0.0
        %v5615 = vand.u32 %v962, 4294901760
        %5616 = vmatmul.mubr.f32.gmra.mrb[0].mxu0 %v5615
        %v5617 = vpop.f32.mrb[0].mxu0
        %v5618 = vadd.f32 %v5542, %v5617
        %v5619 = vpop.f32.mrb[0].mxu0
        %5620 = vdwg.mxu0
        %5621 = vmatprep.subr.mxu0 0.0
        %v5622 = vand.u32 %v5467, 4294901760
        %v5623 = vsub.f32 %v5467, %v5622
        %5624 = vmatpush1.msra.mxu0 %v5623
        %5625 = vmatprep.subr.mxu0 0.0
        %5626 = vmatpush1.msra.mxu0 0.0
        %5627 = vmatprep.subr.mxu0 0.0
        %5628 = vmatpush1.msra.mxu0 0.0
        %5629 = vmatprep.subr.mxu0 0.0
        %5630 = vmatpush1.msra.mxu0 0.0
        %5631 = vmatprep.subr.mxu0 0.0
        %5632 = vmatpush1.msra.mxu0 0.0
        %5633 = vmatprep.subr.mxu0 0.0
        %5634 = vmatpush1.msra.mxu0 0.0
        %5635 = vmatprep.subr.mxu0 0.0
        %5636 = vmatpush1.msra.mxu0 0.0
        %5637 = vmatprep.subr.mxu0 0.0
        %5638 = vmatpush1.msra.mxu0 0.0
        %5639 = vmatprep.subr.mxu0 0.0
        %5640 = vmatpush1.msra.mxu0 0.0
        %5641 = vmatprep.subr.mxu0 0.0
        %5642 = vmatpush1.msra.mxu0 0.0
        %5643 = vmatprep.subr.mxu0 0.0
        %5644 = vmatpush1.msra.mxu0 0.0
        %5645 = vmatprep.subr.mxu0 0.0
        %5646 = vmatpush1.msra.mxu0 0.0
        %5647 = vmatprep.subr.mxu0 0.0
        %5648 = vmatpush1.msra.mxu0 0.0
        %5649 = vmatprep.subr.mxu0 0.0
        %5650 = vmatpush1.msra.mxu0 0.0
        %5651 = vmatprep.subr.mxu0 0.0
        %5652 = vmatpush1.msra.mxu0 0.0
        %5653 = vmatprep.subr.mxu0 0.0
        %5654 = vmatpush1.msra.mxu0 0.0
        %5655 = vmatprep.subr.mxu0 0.0
        %5656 = vmatpush1.msra.mxu0 0.0
        %5657 = vmatprep.subr.mxu0 0.0
        %5658 = vmatpush1.msra.mxu0 0.0
        %5659 = vmatprep.subr.mxu0 0.0
        %5660 = vmatpush1.msra.mxu0 0.0
        %5661 = vmatprep.subr.mxu0 0.0
        %5662 = vmatpush1.msra.mxu0 0.0
        %5663 = vmatprep.subr.mxu0 0.0
        %5664 = vmatpush1.msra.mxu0 0.0
        %5665 = vmatprep.subr.mxu0 0.0
        %5666 = vmatpush1.msra.mxu0 0.0
        %5667 = vmatprep.subr.mxu0 0.0
        %5668 = vmatpush1.msra.mxu0 0.0
        %5669 = vmatprep.subr.mxu0 0.0
        %5670 = vmatpush1.msra.mxu0 0.0
        %5671 = vmatprep.subr.mxu0 0.0
        %5672 = vmatpush1.msra.mxu0 0.0
        %5673 = vmatprep.subr.mxu0 0.0
        %5674 = vmatpush1.msra.mxu0 0.0
        %5675 = vmatprep.subr.mxu0 0.0
        %5676 = vmatpush1.msra.mxu0 0.0
        %5677 = vmatprep.subr.mxu0 0.0
        %5678 = vmatpush1.msra.mxu0 0.0
        %5679 = vmatprep.subr.mxu0 0.0
        %5680 = vmatpush1.msra.mxu0 0.0
        %5681 = vmatprep.subr.mxu0 0.0
        %5682 = vmatpush1.msra.mxu0 0.0
        %5683 = vmatprep.subr.mxu0 0.0
        %5684 = vmatpush1.msra.mxu0 0.0
        %5685 = vmatprep.subr.mxu0 0.0
        %5686 = vmatpush1.msra.mxu0 0.0
        %5687 = vmatprep.mubr.f32.mxu0 0.0
        %v5688 = vand.u32 %v962, 4294901760
        %v5689 = vsub.f32 %v962, %v5688
        %5690 = vmatmul.mubr.f32.gmra.mrb[0].mxu0 %v5689
        %v5691 = vpop.f32.mrb[0].mxu0
        %v5692 = vadd.f32 %v5618, %v5691
        %v5693 = vpop.f32.mrb[0].mxu0
        %5694 = vdwg.mxu0
        %5695 = vmatprep.subr.mxu0 0.0
        %v5696 = vand.u32 %v5467, 4294901760
        %5697 = vmatpush1.msra.mxu0 %v5696
        %5698 = vmatprep.subr.mxu0 0.0
        %5699 = vmatpush1.msra.mxu0 0.0
        %5700 = vmatprep.subr.mxu0 0.0
        %5701 = vmatpush1.msra.mxu0 0.0
        %5702 = vmatprep.subr.mxu0 0.0
        %5703 = vmatpush1.msra.mxu0 0.0
        %5704 = vmatprep.subr.mxu0 0.0
        %5705 = vmatpush1.msra.mxu0 0.0
        %5706 = vmatprep.subr.mxu0 0.0
        %5707 = vmatpush1.msra.mxu0 0.0
        %5708 = vmatprep.subr.mxu0 0.0
        %5709 = vmatpush1.msra.mxu0 0.0
        %5710 = vmatprep.subr.mxu0 0.0
        %5711 = vmatpush1.msra.mxu0 0.0
        %5712 = vmatprep.subr.mxu0 0.0
        %5713 = vmatpush1.msra.mxu0 0.0
        %5714 = vmatprep.subr.mxu0 0.0
        %5715 = vmatpush1.msra.mxu0 0.0
        %5716 = vmatprep.subr.mxu0 0.0
        %5717 = vmatpush1.msra.mxu0 0.0
        %5718 = vmatprep.subr.mxu0 0.0
        %5719 = vmatpush1.msra.mxu0 0.0
        %5720 = vmatprep.subr.mxu0 0.0
        %5721 = vmatpush1.msra.mxu0 0.0
        %5722 = vmatprep.subr.mxu0 0.0
        %5723 = vmatpush1.msra.mxu0 0.0
        %5724 = vmatprep.subr.mxu0 0.0
        %5725 = vmatpush1.msra.mxu0 0.0
        %5726 = vmatprep.subr.mxu0 0.0
        %5727 = vmatpush1.msra.mxu0 0.0
        %5728 = vmatprep.subr.mxu0 0.0
        %5729 = vmatpush1.msra.mxu0 0.0
        %5730 = vmatprep.subr.mxu0 0.0
        %5731 = vmatpush1.msra.mxu0 0.0
        %5732 = vmatprep.subr.mxu0 0.0
        %5733 = vmatpush1.msra.mxu0 0.0
        %5734 = vmatprep.subr.mxu0 0.0
        %5735 = vmatpush1.msra.mxu0 0.0
        %5736 = vmatprep.subr.mxu0 0.0
        %5737 = vmatpush1.msra.mxu0 0.0
        %5738 = vmatprep.subr.mxu0 0.0
        %5739 = vmatpush1.msra.mxu0 0.0
        %5740 = vmatprep.subr.mxu0 0.0
        %5741 = vmatpush1.msra.mxu0 0.0
        %5742 = vmatprep.subr.mxu0 0.0
        %5743 = vmatpush1.msra.mxu0 0.0
        %5744 = vmatprep.subr.mxu0 0.0
        %5745 = vmatpush1.msra.mxu0 0.0
        %5746 = vmatprep.subr.mxu0 0.0
        %5747 = vmatpush1.msra.mxu0 0.0
        %5748 = vmatprep.subr.mxu0 0.0
        %5749 = vmatpush1.msra.mxu0 0.0
        %5750 = vmatprep.subr.mxu0 0.0
        %5751 = vmatpush1.msra.mxu0 0.0
        %5752 = vmatprep.subr.mxu0 0.0
        %5753 = vmatpush1.msra.mxu0 0.0
        %5754 = vmatprep.subr.mxu0 0.0
        %5755 = vmatpush1.msra.mxu0 0.0
        %5756 = vmatprep.subr.mxu0 0.0
        %5757 = vmatpush1.msra.mxu0 0.0
        %5758 = vmatprep.subr.mxu0 0.0
        %5759 = vmatpush1.msra.mxu0 0.0
        %5760 = vmatprep.mubr.f32.mxu0 0.0
        %v5761 = vand.u32 %v962, 4294901760
        %v5762 = vsub.f32 %v962, %v5761
        %v5763 = vand.u32 %v5762, 4294901760
        %5764 = vmatmul.mubr.f32.gmra.mrb[0].mxu0 %v5763
        %v5765 = vpop.f32.mrb[0].mxu0
        %v5766 = vadd.f32 %v5692, %v5765
        %v5767 = vpop.f32.mrb[0].mxu0
        %5768 = vdwg.mxu0
        %5769 = vmatprep.subr.mxu0 0.0
        %v5770 = vand.u32 %v5467, 4294901760
        %v5771 = vsub.f32 %v5467, %v5770
        %v5772 = vand.u32 %v5771, 4294901760
        %5773 = vmatpush1.msra.mxu0 %v5772
        %5774 = vmatprep.subr.mxu0 0.0
        %5775 = vmatpush1.msra.mxu0 0.0
        %5776 = vmatprep.subr.mxu0 0.0
        %5777 = vmatpush1.msra.mxu0 0.0
        %5778 = vmatprep.subr.mxu0 0.0
        %5779 = vmatpush1.msra.mxu0 0.0
        %5780 = vmatprep.subr.mxu0 0.0
        %5781 = vmatpush1.msra.mxu0 0.0
        %5782 = vmatprep.subr.mxu0 0.0
        %5783 = vmatpush1.msra.mxu0 0.0
        %5784 = vmatprep.subr.mxu0 0.0
        %5785 = vmatpush1.msra.mxu0 0.0
        %5786 = vmatprep.subr.mxu0 0.0
        %5787 = vmatpush1.msra.mxu0 0.0
        %5788 = vmatprep.subr.mxu0 0.0
        %5789 = vmatpush1.msra.mxu0 0.0
        %5790 = vmatprep.subr.mxu0 0.0
        %5791 = vmatpush1.msra.mxu0 0.0
        %5792 = vmatprep.subr.mxu0 0.0
        %5793 = vmatpush1.msra.mxu0 0.0
        %5794 = vmatprep.subr.mxu0 0.0
        %5795 = vmatpush1.msra.mxu0 0.0
        %5796 = vmatprep.subr.mxu0 0.0
        %5797 = vmatpush1.msra.mxu0 0.0
        %5798 = vmatprep.subr.mxu0 0.0
        %5799 = vmatpush1.msra.mxu0 0.0
        %5800 = vmatprep.subr.mxu0 0.0
        %5801 = vmatpush1.msra.mxu0 0.0
        %5802 = vmatprep.subr.mxu0 0.0
        %5803 = vmatpush1.msra.mxu0 0.0
        %5804 = vmatprep.subr.mxu0 0.0
        %5805 = vmatpush1.msra.mxu0 0.0
        %5806 = vmatprep.subr.mxu0 0.0
        %5807 = vmatpush1.msra.mxu0 0.0
        %5808 = vmatprep.subr.mxu0 0.0
        %5809 = vmatpush1.msra.mxu0 0.0
        %5810 = vmatprep.subr.mxu0 0.0
        %5811 = vmatpush1.msra.mxu0 0.0
        %5812 = vmatprep.subr.mxu0 0.0
        %5813 = vmatpush1.msra.mxu0 0.0
        %5814 = vmatprep.subr.mxu0 0.0
        %5815 = vmatpush1.msra.mxu0 0.0
        %5816 = vmatprep.subr.mxu0 0.0
        %5817 = vmatpush1.msra.mxu0 0.0
        %5818 = vmatprep.subr.mxu0 0.0
        %5819 = vmatpush1.msra.mxu0 0.0
        %5820 = vmatprep.subr.mxu0 0.0
        %5821 = vmatpush1.msra.mxu0 0.0
        %5822 = vmatprep.subr.mxu0 0.0
        %5823 = vmatpush1.msra.mxu0 0.0
        %5824 = vmatprep.subr.mxu0 0.0
        %5825 = vmatpush1.msra.mxu0 0.0
        %5826 = vmatprep.subr.mxu0 0.0
        %5827 = vmatpush1.msra.mxu0 0.0
        %5828 = vmatprep.subr.mxu0 0.0
        %5829 = vmatpush1.msra.mxu0 0.0
        %5830 = vmatprep.subr.mxu0 0.0
        %5831 = vmatpush1.msra.mxu0 0.0
        %5832 = vmatprep.subr.mxu0 0.0
        %5833 = vmatpush1.msra.mxu0 0.0
        %5834 = vmatprep.subr.mxu0 0.0
        %5835 = vmatpush1.msra.mxu0 0.0
        %5836 = vmatprep.mubr.f32.mxu0 0.0
        %v5837 = vand.u32 %v962, 4294901760
        %5838 = vmatmul.mubr.f32.gmra.mrb[0].mxu0 %v5837
        %v5839 = vpop.f32.mrb[0].mxu0
        %v5840 = vadd.f32 %v5766, %v5839
        %v5841 = vpop.f32.mrb[0].mxu0
        %5842 = vdwg.mxu0
        %5843 = vmatprep.subr.mxu0 0.0
        %v5844 = vand.u32 %v5467, 4294901760
        %5845 = vmatpush1.msra.mxu0 %v5844
        %5846 = vmatprep.subr.mxu0 0.0
        %5847 = vmatpush1.msra.mxu0 0.0
        %5848 = vmatprep.subr.mxu0 0.0
        %5849 = vmatpush1.msra.mxu0 0.0
        %5850 = vmatprep.subr.mxu0 0.0
        %5851 = vmatpush1.msra.mxu0 0.0
        %5852 = vmatprep.subr.mxu0 0.0
        %5853 = vmatpush1.msra.mxu0 0.0
        %5854 = vmatprep.subr.mxu0 0.0
        %5855 = vmatpush1.msra.mxu0 0.0
        %5856 = vmatprep.subr.mxu0 0.0
        %5857 = vmatpush1.msra.mxu0 0.0
        %5858 = vmatprep.subr.mxu0 0.0
        %5859 = vmatpush1.msra.mxu0 0.0
        %5860 = vmatprep.subr.mxu0 0.0
        %5861 = vmatpush1.msra.mxu0 0.0
        %5862 = vmatprep.subr.mxu0 0.0
        %5863 = vmatpush1.msra.mxu0 0.0
        %5864 = vmatprep.subr.mxu0 0.0
        %5865 = vmatpush1.msra.mxu0 0.0
        %5866 = vmatprep.subr.mxu0 0.0
        %5867 = vmatpush1.msra.mxu0 0.0
        %5868 = vmatprep.subr.mxu0 0.0
        %5869 = vmatpush1.msra.mxu0 0.0
        %5870 = vmatprep.subr.mxu0 0.0
        %5871 = vmatpush1.msra.mxu0 0.0
        %5872 = vmatprep.subr.mxu0 0.0
        %5873 = vmatpush1.msra.mxu0 0.0
        %5874 = vmatprep.subr.mxu0 0.0
        %5875 = vmatpush1.msra.mxu0 0.0
        %5876 = vmatprep.subr.mxu0 0.0
        %5877 = vmatpush1.msra.mxu0 0.0
        %5878 = vmatprep.subr.mxu0 0.0
        %5879 = vmatpush1.msra.mxu0 0.0
        %5880 = vmatprep.subr.mxu0 0.0
        %5881 = vmatpush1.msra.mxu0 0.0
        %5882 = vmatprep.subr.mxu0 0.0
        %5883 = vmatpush1.msra.mxu0 0.0
        %5884 = vmatprep.subr.mxu0 0.0
        %5885 = vmatpush1.msra.mxu0 0.0
        %5886 = vmatprep.subr.mxu0 0.0
        %5887 = vmatpush1.msra.mxu0 0.0
        %5888 = vmatprep.subr.mxu0 0.0
        %5889 = vmatpush1.msra.mxu0 0.0
        %5890 = vmatprep.subr.mxu0 0.0
        %5891 = vmatpush1.msra.mxu0 0.0
        %5892 = vmatprep.subr.mxu0 0.0
        %5893 = vmatpush1.msra.mxu0 0.0
        %5894 = vmatprep.subr.mxu0 0.0
        %5895 = vmatpush1.msra.mxu0 0.0
        %5896 = vmatprep.subr.mxu0 0.0
        %5897 = vmatpush1.msra.mxu0 0.0
        %5898 = vmatprep.subr.mxu0 0.0
        %5899 = vmatpush1.msra.mxu0 0.0
        %5900 = vmatprep.subr.mxu0 0.0
        %5901 = vmatpush1.msra.mxu0 0.0
        %5902 = vmatprep.subr.mxu0 0.0
        %5903 = vmatpush1.msra.mxu0 0.0
        %5904 = vmatprep.subr.mxu0 0.0
        %5905 = vmatpush1.msra.mxu0 0.0
        %5906 = vmatprep.subr.mxu0 0.0
        %5907 = vmatpush1.msra.mxu0 0.0
        %5908 = vmatprep.mubr.f32.mxu0 0.0
        %v5909 = vand.u32 %v962, 4294901760
        %5910 = vmatmul.mubr.f32.gmra.mrb[0].mxu0 %v5909
        %v5911 = vpop.f32.mrb[0].mxu0
        %v5912 = vadd.f32 %v5840, %v5911
        %v5913 = vpop.f32.mrb[0].mxu0
        %5914 = vdwg.mxu0
        %v5915 = vadd.f32 %v5464, %v5912
        %v5916 = vxor.u32 %v5915, 2147483648
        %v5917 = vmul.f32 %v5916, 1.442695
        %v5918 = vpow.pop %v5917
        %v5919 = vadd.f32 %v5918, 1.0
        %v5920 = vrcp.pop %v5919
        %v5921 = vmul.f32 1.0, %v5920
        %v5922 = vmul.f32 %v5461, %v953
        %5924 = vrot.lane.b32.xlu0 %v5922, 32
        %v5925 = vpop.permute.xlu0 %5924
        %v5927 = vadd.f32 %v943, %v5925
        %v5929 = vsel %vm1423, %v5921, 0
        %5931 = vmatprep.subr.mxu0 0.0
        %v5932 = vand.u32 %v266, 4294901760
        %5933 = vmatpush1.msra.mxu0 %v5932
        %5934 = vmatprep.subr.mxu0 0.0
        %v5935 = vand.u32 %v267, 4294901760
        %5936 = vmatpush1.msra.mxu0 %v5935
        %5937 = vmatprep.subr.mxu0 0.0
        %v5938 = vand.u32 %v268, 4294901760
        %5939 = vmatpush1.msra.mxu0 %v5938
        %5940 = vmatprep.subr.mxu0 0.0
        %v5941 = vand.u32 %v269, 4294901760
        %5942 = vmatpush1.msra.mxu0 %v5941
        %5943 = vmatprep.subr.mxu0 0.0
        %5944 = vmatpush1.msra.mxu0 0.0
        %5945 = vmatprep.subr.mxu0 0.0
        %5946 = vmatpush1.msra.mxu0 0.0
        %5947 = vmatprep.subr.mxu0 0.0
        %5948 = vmatpush1.msra.mxu0 0.0
        %5949 = vmatprep.subr.mxu0 0.0
        %5950 = vmatpush1.msra.mxu0 0.0
        %5951 = vmatprep.subr.mxu0 0.0
        %5952 = vmatpush1.msra.mxu0 0.0
        %5953 = vmatprep.subr.mxu0 0.0
        %5954 = vmatpush1.msra.mxu0 0.0
        %5955 = vmatprep.subr.mxu0 0.0
        %5956 = vmatpush1.msra.mxu0 0.0
        %5957 = vmatprep.subr.mxu0 0.0
        %5958 = vmatpush1.msra.mxu0 0.0
        %5959 = vmatprep.subr.mxu0 0.0
        %5960 = vmatpush1.msra.mxu0 0.0
        %5961 = vmatprep.subr.mxu0 0.0
        %5962 = vmatpush1.msra.mxu0 0.0
        %5963 = vmatprep.subr.mxu0 0.0
        %5964 = vmatpush1.msra.mxu0 0.0
        %5965 = vmatprep.subr.mxu0 0.0
        %5966 = vmatpush1.msra.mxu0 0.0
        %5967 = vmatprep.subr.mxu0 0.0
        %5968 = vmatpush1.msra.mxu0 0.0
        %5969 = vmatprep.subr.mxu0 0.0
        %5970 = vmatpush1.msra.mxu0 0.0
        %5971 = vmatprep.subr.mxu0 0.0
        %5972 = vmatpush1.msra.mxu0 0.0
        %5973 = vmatprep.subr.mxu0 0.0
        %5974 = vmatpush1.msra.mxu0 0.0
        %5975 = vmatprep.subr.mxu0 0.0
        %5976 = vmatpush1.msra.mxu0 0.0
        %5977 = vmatprep.subr.mxu0 0.0
        %5978 = vmatpush1.msra.mxu0 0.0
        %5979 = vmatprep.subr.mxu0 0.0
        %5980 = vmatpush1.msra.mxu0 0.0
        %5981 = vmatprep.subr.mxu0 0.0
        %5982 = vmatpush1.msra.mxu0 0.0
        %5983 = vmatprep.subr.mxu0 0.0
        %5984 = vmatpush1.msra.mxu0 0.0
        %5985 = vmatprep.subr.mxu0 0.0
        %5986 = vmatpush1.msra.mxu0 0.0
        %5987 = vmatprep.subr.mxu0 0.0
        %5988 = vmatpush1.msra.mxu0 0.0
        %5989 = vmatprep.subr.mxu0 0.0
        %5990 = vmatpush1.msra.mxu0 0.0
        %5991 = vmatprep.subr.mxu0 0.0
        %5992 = vmatpush1.msra.mxu0 0.0
        %5993 = vmatprep.subr.mxu0 0.0
        %5994 = vmatpush1.msra.mxu0 0.0
        %5995 = vmatprep.subr.mxu0 0.0
        %5996 = vmatpush1.msra.mxu0 0.0
        %5997 = vmatprep.subr.mxu0 0.0
        %5998 = vmatpush1.msra.mxu0 0.0
        %5999 = vmatprep.mubr.f32.mxu0 0.0
        %v6000 = vand.u32 %v5929, 4294901760
        %v6001 = vsub.f32 %v5929, %v6000
        %v6002 = vand.u32 %v6001, 4294901760
        %v6003 = vsub.f32 %v6001, %v6002
        %v6004 = vand.u32 %v6003, 4294901760
        %6005 = vmatmul.mubr.f32.gmra.mrb[0].mxu0 %v6004
        %v6006 = vpop.f32.mrb[0].mxu0
        %v6007 = vadd.f32 0.0, %v6006
        %v6008 = vpop.f32.mrb[0].mxu0
        %6009 = vdwg.mxu0
        %6010 = vmatprep.subr.mxu0 0.0
        %v6011 = vand.u32 %v266, 4294901760
        %v6012 = vsub.f32 %v266, %v6011
        %v6013 = vand.u32 %v6012, 4294901760
        %v6014 = vsub.f32 %v6012, %v6013
        %v6015 = vand.u32 %v6014, 4294901760
        %6016 = vmatpush1.msra.mxu0 %v6015
        %6017 = vmatprep.subr.mxu0 0.0
        %v6018 = vand.u32 %v267, 4294901760
        %v6019 = vsub.f32 %v267, %v6018
        %v6020 = vand.u32 %v6019, 4294901760
        %v6021 = vsub.f32 %v6019, %v6020
        %v6022 = vand.u32 %v6021, 4294901760
        %6023 = vmatpush1.msra.mxu0 %v6022
        %6024 = vmatprep.subr.mxu0 0.0
        %v6025 = vand.u32 %v268, 4294901760
        %v6026 = vsub.f32 %v268, %v6025
        %v6027 = vand.u32 %v6026, 4294901760
        %v6028 = vsub.f32 %v6026, %v6027
        %v6029 = vand.u32 %v6028, 4294901760
        %6030 = vmatpush1.msra.mxu0 %v6029
        %6031 = vmatprep.subr.mxu0 0.0
        %v6032 = vand.u32 %v269, 4294901760
        %v6033 = vsub.f32 %v269, %v6032
        %v6034 = vand.u32 %v6033, 4294901760
        %v6035 = vsub.f32 %v6033, %v6034
        %v6036 = vand.u32 %v6035, 4294901760
        %6037 = vmatpush1.msra.mxu0 %v6036
        %6038 = vmatprep.subr.mxu0 0.0
        %6039 = vmatpush1.msra.mxu0 0.0
        %6040 = vmatprep.subr.mxu0 0.0
        %6041 = vmatpush1.msra.mxu0 0.0
        %6042 = vmatprep.subr.mxu0 0.0
        %6043 = vmatpush1.msra.mxu0 0.0
        %6044 = vmatprep.subr.mxu0 0.0
        %6045 = vmatpush1.msra.mxu0 0.0
        %6046 = vmatprep.subr.mxu0 0.0
        %6047 = vmatpush1.msra.mxu0 0.0
        %6048 = vmatprep.subr.mxu0 0.0
        %6049 = vmatpush1.msra.mxu0 0.0
        %6050 = vmatprep.subr.mxu0 0.0
        %6051 = vmatpush1.msra.mxu0 0.0
        %6052 = vmatprep.subr.mxu0 0.0
        %6053 = vmatpush1.msra.mxu0 0.0
        %6054 = vmatprep.subr.mxu0 0.0
        %6055 = vmatpush1.msra.mxu0 0.0
        %6056 = vmatprep.subr.mxu0 0.0
        %6057 = vmatpush1.msra.mxu0 0.0
        %6058 = vmatprep.subr.mxu0 0.0
        %6059 = vmatpush1.msra.mxu0 0.0
        %6060 = vmatprep.subr.mxu0 0.0
        %6061 = vmatpush1.msra.mxu0 0.0
        %6062 = vmatprep.subr.mxu0 0.0
        %6063 = vmatpush1.msra.mxu0 0.0
        %6064 = vmatprep.subr.mxu0 0.0
        %6065 = vmatpush1.msra.mxu0 0.0
        %6066 = vmatprep.subr.mxu0 0.0
        %6067 = vmatpush1.msra.mxu0 0.0
        %6068 = vmatprep.subr.mxu0 0.0
        %6069 = vmatpush1.msra.mxu0 0.0
        %6070 = vmatprep.subr.mxu0 0.0
        %6071 = vmatpush1.msra.mxu0 0.0
        %6072 = vmatprep.subr.mxu0 0.0
        %6073 = vmatpush1.msra.mxu0 0.0
        %6074 = vmatprep.subr.mxu0 0.0
        %6075 = vmatpush1.msra.mxu0 0.0
        %6076 = vmatprep.subr.mxu0 0.0
        %6077 = vmatpush1.msra.mxu0 0.0
        %6078 = vmatprep.subr.mxu0 0.0
        %6079 = vmatpush1.msra.mxu0 0.0
        %6080 = vmatprep.subr.mxu0 0.0
        %6081 = vmatpush1.msra.mxu0 0.0
        %6082 = vmatprep.subr.mxu0 0.0
        %6083 = vmatpush1.msra.mxu0 0.0
        %6084 = vmatprep.subr.mxu0 0.0
        %6085 = vmatpush1.msra.mxu0 0.0
        %6086 = vmatprep.subr.mxu0 0.0
        %6087 = vmatpush1.msra.mxu0 0.0
        %6088 = vmatprep.subr.mxu0 0.0
        %6089 = vmatpush1.msra.mxu0 0.0
        %6090 = vmatprep.subr.mxu0 0.0
        %6091 = vmatpush1.msra.mxu0 0.0
        %6092 = vmatprep.subr.mxu0 0.0
        %6093 = vmatpush1.msra.mxu0 0.0
        %6094 = vmatprep.mubr.f32.mxu0 0.0
        %v6095 = vand.u32 %v5929, 4294901760
        %6096 = vmatmul.mubr.f32.gmra.mrb[0].mxu0 %v6095
        %v6097 = vpop.f32.mrb[0].mxu0
        %v6098 = vadd.f32 %v6007, %v6097
        %v6099 = vpop.f32.mrb[0].mxu0
        %6100 = vdwg.mxu0
        %6101 = vmatprep.subr.mxu0 0.0
        %v6102 = vand.u32 %v266, 4294901760
        %v6103 = vsub.f32 %v266, %v6102
        %6104 = vmatpush1.msra.mxu0 %v6103
        %6105 = vmatprep.subr.mxu0 0.0
        %v6106 = vand.u32 %v267, 4294901760
        %v6107 = vsub.f32 %v267, %v6106
        %6108 = vmatpush1.msra.mxu0 %v6107
        %6109 = vmatprep.subr.mxu0 0.0
        %v6110 = vand.u32 %v268, 4294901760
        %v6111 = vsub.f32 %v268, %v6110
        %6112 = vmatpush1.msra.mxu0 %v6111
        %6113 = vmatprep.subr.mxu0 0.0
        %v6114 = vand.u32 %v269, 4294901760
        %v6115 = vsub.f32 %v269, %v6114
        %6116 = vmatpush1.msra.mxu0 %v6115
        %6117 = vmatprep.subr.mxu0 0.0
        %6118 = vmatpush1.msra.mxu0 0.0
        %6119 = vmatprep.subr.mxu0 0.0
        %6120 = vmatpush1.msra.mxu0 0.0
        %6121 = vmatprep.subr.mxu0 0.0
        %6122 = vmatpush1.msra.mxu0 0.0
        %6123 = vmatprep.subr.mxu0 0.0
        %6124 = vmatpush1.msra.mxu0 0.0
        %6125 = vmatprep.subr.mxu0 0.0
        %6126 = vmatpush1.msra.mxu0 0.0
        %6127 = vmatprep.subr.mxu0 0.0
        %6128 = vmatpush1.msra.mxu0 0.0
        %6129 = vmatprep.subr.mxu0 0.0
        %6130 = vmatpush1.msra.mxu0 0.0
        %6131 = vmatprep.subr.mxu0 0.0
        %6132 = vmatpush1.msra.mxu0 0.0
        %6133 = vmatprep.subr.mxu0 0.0
        %6134 = vmatpush1.msra.mxu0 0.0
        %6135 = vmatprep.subr.mxu0 0.0
        %6136 = vmatpush1.msra.mxu0 0.0
        %6137 = vmatprep.subr.mxu0 0.0
        %6138 = vmatpush1.msra.mxu0 0.0
        %6139 = vmatprep.subr.mxu0 0.0
        %6140 = vmatpush1.msra.mxu0 0.0
        %6141 = vmatprep.subr.mxu0 0.0
        %6142 = vmatpush1.msra.mxu0 0.0
        %6143 = vmatprep.subr.mxu0 0.0
        %6144 = vmatpush1.msra.mxu0 0.0
        %6145 = vmatprep.subr.mxu0 0.0
        %6146 = vmatpush1.msra.mxu0 0.0
        %6147 = vmatprep.subr.mxu0 0.0
        %6148 = vmatpush1.msra.mxu0 0.0
        %6149 = vmatprep.subr.mxu0 0.0
        %6150 = vmatpush1.msra.mxu0 0.0
        %6151 = vmatprep.subr.mxu0 0.0
        %6152 = vmatpush1.msra.mxu0 0.0
        %6153 = vmatprep.subr.mxu0 0.0
        %6154 = vmatpush1.msra.mxu0 0.0
        %6155 = vmatprep.subr.mxu0 0.0
        %6156 = vmatpush1.msra.mxu0 0.0
        %6157 = vmatprep.subr.mxu0 0.0
        %6158 = vmatpush1.msra.mxu0 0.0
        %6159 = vmatprep.subr.mxu0 0.0
        %6160 = vmatpush1.msra.mxu0 0.0
        %6161 = vmatprep.subr.mxu0 0.0
        %6162 = vmatpush1.msra.mxu0 0.0
        %6163 = vmatprep.subr.mxu0 0.0
        %6164 = vmatpush1.msra.mxu0 0.0
        %6165 = vmatprep.subr.mxu0 0.0
        %6166 = vmatpush1.msra.mxu0 0.0
        %6167 = vmatprep.subr.mxu0 0.0
        %6168 = vmatpush1.msra.mxu0 0.0
        %6169 = vmatprep.subr.mxu0 0.0
        %6170 = vmatpush1.msra.mxu0 0.0
        %6171 = vmatprep.subr.mxu0 0.0
        %6172 = vmatpush1.msra.mxu0 0.0
        %6173 = vmatprep.mubr.f32.mxu0 0.0
        %v6174 = vand.u32 %v5929, 4294901760
        %v6175 = vsub.f32 %v5929, %v6174
        %6176 = vmatmul.mubr.f32.gmra.mrb[0].mxu0 %v6175
        %v6177 = vpop.f32.mrb[0].mxu0
        %v6178 = vadd.f32 %v6098, %v6177
        %v6179 = vpop.f32.mrb[0].mxu0
        %6180 = vdwg.mxu0
        %6181 = vmatprep.subr.mxu0 0.0
        %v6182 = vand.u32 %v266, 4294901760
        %6183 = vmatpush1.msra.mxu0 %v6182
        %6184 = vmatprep.subr.mxu0 0.0
        %v6185 = vand.u32 %v267, 4294901760
        %6186 = vmatpush1.msra.mxu0 %v6185
        %6187 = vmatprep.subr.mxu0 0.0
        %v6188 = vand.u32 %v268, 4294901760
        %6189 = vmatpush1.msra.mxu0 %v6188
        %6190 = vmatprep.subr.mxu0 0.0
        %v6191 = vand.u32 %v269, 4294901760
        %6192 = vmatpush1.msra.mxu0 %v6191
        %6193 = vmatprep.subr.mxu0 0.0
        %6194 = vmatpush1.msra.mxu0 0.0
        %6195 = vmatprep.subr.mxu0 0.0
        %6196 = vmatpush1.msra.mxu0 0.0
        %6197 = vmatprep.subr.mxu0 0.0
        %6198 = vmatpush1.msra.mxu0 0.0
        %6199 = vmatprep.subr.mxu0 0.0
        %6200 = vmatpush1.msra.mxu0 0.0
        %6201 = vmatprep.subr.mxu0 0.0
        %6202 = vmatpush1.msra.mxu0 0.0
        %6203 = vmatprep.subr.mxu0 0.0
        %6204 = vmatpush1.msra.mxu0 0.0
        %6205 = vmatprep.subr.mxu0 0.0
        %6206 = vmatpush1.msra.mxu0 0.0
        %6207 = vmatprep.subr.mxu0 0.0
        %6208 = vmatpush1.msra.mxu0 0.0
        %6209 = vmatprep.subr.mxu0 0.0
        %6210 = vmatpush1.msra.mxu0 0.0
        %6211 = vmatprep.subr.mxu0 0.0
        %6212 = vmatpush1.msra.mxu0 0.0
        %6213 = vmatprep.subr.mxu0 0.0
        %6214 = vmatpush1.msra.mxu0 0.0
        %6215 = vmatprep.subr.mxu0 0.0
        %6216 = vmatpush1.msra.mxu0 0.0
        %6217 = vmatprep.subr.mxu0 0.0
        %6218 = vmatpush1.msra.mxu0 0.0
        %6219 = vmatprep.subr.mxu0 0.0
        %6220 = vmatpush1.msra.mxu0 0.0
        %6221 = vmatprep.subr.mxu0 0.0
        %6222 = vmatpush1.msra.mxu0 0.0
        %6223 = vmatprep.subr.mxu0 0.0
        %6224 = vmatpush1.msra.mxu0 0.0
        %6225 = vmatprep.subr.mxu0 0.0
        %6226 = vmatpush1.msra.mxu0 0.0
        %6227 = vmatprep.subr.mxu0 0.0
        %6228 = vmatpush1.msra.mxu0 0.0
        %6229 = vmatprep.subr.mxu0 0.0
        %6230 = vmatpush1.msra.mxu0 0.0
        %6231 = vmatprep.subr.mxu0 0.0
        %6232 = vmatpush1.msra.mxu0 0.0
        %6233 = vmatprep.subr.mxu0 0.0
        %6234 = vmatpush1.msra.mxu0 0.0
        %6235 = vmatprep.subr.mxu0 0.0
        %6236 = vmatpush1.msra.mxu0 0.0
        %6237 = vmatprep.subr.mxu0 0.0
        %6238 = vmatpush1.msra.mxu0 0.0
        %6239 = vmatprep.subr.mxu0 0.0
        %6240 = vmatpush1.msra.mxu0 0.0
        %6241 = vmatprep.subr.mxu0 0.0
        %6242 = vmatpush1.msra.mxu0 0.0
        %6243 = vmatprep.subr.mxu0 0.0
        %6244 = vmatpush1.msra.mxu0 0.0
        %6245 = vmatprep.subr.mxu0 0.0
        %6246 = vmatpush1.msra.mxu0 0.0
        %6247 = vmatprep.subr.mxu0 0.0
        %6248 = vmatpush1.msra.mxu0 0.0
        %6249 = vmatprep.mubr.f32.mxu0 0.0
        %v6250 = vand.u32 %v5929, 4294901760
        %v6251 = vsub.f32 %v5929, %v6250
        %v6252 = vand.u32 %v6251, 4294901760
        %6253 = vmatmul.mubr.f32.gmra.mrb[0].mxu0 %v6252
        %v6254 = vpop.f32.mrb[0].mxu0
        %v6255 = vadd.f32 %v6178, %v6254
        %v6256 = vpop.f32.mrb[0].mxu0
        %6257 = vdwg.mxu0
        %6258 = vmatprep.subr.mxu0 0.0
        %v6259 = vand.u32 %v266, 4294901760
        %v6260 = vsub.f32 %v266, %v6259
        %v6261 = vand.u32 %v6260, 4294901760
        %6262 = vmatpush1.msra.mxu0 %v6261
        %6263 = vmatprep.subr.mxu0 0.0
        %v6264 = vand.u32 %v267, 4294901760
        %v6265 = vsub.f32 %v267, %v6264
        %v6266 = vand.u32 %v6265, 4294901760
        %6267 = vmatpush1.msra.mxu0 %v6266
        %6268 = vmatprep.subr.mxu0 0.0
        %v6269 = vand.u32 %v268, 4294901760
        %v6270 = vsub.f32 %v268, %v6269
        %v6271 = vand.u32 %v6270, 4294901760
        %6272 = vmatpush1.msra.mxu0 %v6271
        %6273 = vmatprep.subr.mxu0 0.0
        %v6274 = vand.u32 %v269, 4294901760
        %v6275 = vsub.f32 %v269, %v6274
        %v6276 = vand.u32 %v6275, 4294901760
        %6277 = vmatpush1.msra.mxu0 %v6276
        %6278 = vmatprep.subr.mxu0 0.0
        %6279 = vmatpush1.msra.mxu0 0.0
        %6280 = vmatprep.subr.mxu0 0.0
        %6281 = vmatpush1.msra.mxu0 0.0
        %6282 = vmatprep.subr.mxu0 0.0
        %6283 = vmatpush1.msra.mxu0 0.0
        %6284 = vmatprep.subr.mxu0 0.0
        %6285 = vmatpush1.msra.mxu0 0.0
        %6286 = vmatprep.subr.mxu0 0.0
        %6287 = vmatpush1.msra.mxu0 0.0
        %6288 = vmatprep.subr.mxu0 0.0
        %6289 = vmatpush1.msra.mxu0 0.0
        %6290 = vmatprep.subr.mxu0 0.0
        %6291 = vmatpush1.msra.mxu0 0.0
        %6292 = vmatprep.subr.mxu0 0.0
        %6293 = vmatpush1.msra.mxu0 0.0
        %6294 = vmatprep.subr.mxu0 0.0
        %6295 = vmatpush1.msra.mxu0 0.0
        %6296 = vmatprep.subr.mxu0 0.0
        %6297 = vmatpush1.msra.mxu0 0.0
        %6298 = vmatprep.subr.mxu0 0.0
        %6299 = vmatpush1.msra.mxu0 0.0
        %6300 = vmatprep.subr.mxu0 0.0
        %6301 = vmatpush1.msra.mxu0 0.0
        %6302 = vmatprep.subr.mxu0 0.0
        %6303 = vmatpush1.msra.mxu0 0.0
        %6304 = vmatprep.subr.mxu0 0.0
        %6305 = vmatpush1.msra.mxu0 0.0
        %6306 = vmatprep.subr.mxu0 0.0
        %6307 = vmatpush1.msra.mxu0 0.0
        %6308 = vmatprep.subr.mxu0 0.0
        %6309 = vmatpush1.msra.mxu0 0.0
        %6310 = vmatprep.subr.mxu0 0.0
        %6311 = vmatpush1.msra.mxu0 0.0
        %6312 = vmatprep.subr.mxu0 0.0
        %6313 = vmatpush1.msra.mxu0 0.0
        %6314 = vmatprep.subr.mxu0 0.0
        %6315 = vmatpush1.msra.mxu0 0.0
        %6316 = vmatprep.subr.mxu0 0.0
        %6317 = vmatpush1.msra.mxu0 0.0
        %6318 = vmatprep.subr.mxu0 0.0
        %6319 = vmatpush1.msra.mxu0 0.0
        %6320 = vmatprep.subr.mxu0 0.0
        %6321 = vmatpush1.msra.mxu0 0.0
        %6322 = vmatprep.subr.mxu0 0.0
        %6323 = vmatpush1.msra.mxu0 0.0
        %6324 = vmatprep.subr.mxu0 0.0
        %6325 = vmatpush1.msra.mxu0 0.0
        %6326 = vmatprep.subr.mxu0 0.0
        %6327 = vmatpush1.msra.mxu0 0.0
        %6328 = vmatprep.subr.mxu0 0.0
        %6329 = vmatpush1.msra.mxu0 0.0
        %6330 = vmatprep.subr.mxu0 0.0
        %6331 = vmatpush1.msra.mxu0 0.0
        %6332 = vmatprep.subr.mxu0 0.0
        %6333 = vmatpush1.msra.mxu0 0.0
        %6334 = vmatprep.mubr.f32.mxu0 0.0
        %v6335 = vand.u32 %v5929, 4294901760
        %6336 = vmatmul.mubr.f32.gmra.mrb[0].mxu0 %v6335
        %v6337 = vpop.f32.mrb[0].mxu0
        %v6338 = vadd.f32 %v6255, %v6337
        %v6339 = vpop.f32.mrb[0].mxu0
        %6340 = vdwg.mxu0
        %6341 = vmatprep.subr.mxu0 0.0
        %v6342 = vand.u32 %v266, 4294901760
        %6343 = vmatpush1.msra.mxu0 %v6342
        %6344 = vmatprep.subr.mxu0 0.0
        %v6345 = vand.u32 %v267, 4294901760
        %6346 = vmatpush1.msra.mxu0 %v6345
        %6347 = vmatprep.subr.mxu0 0.0
        %v6348 = vand.u32 %v268, 4294901760
        %6349 = vmatpush1.msra.mxu0 %v6348
        %6350 = vmatprep.subr.mxu0 0.0
        %v6351 = vand.u32 %v269, 4294901760
        %6352 = vmatpush1.msra.mxu0 %v6351
        %6353 = vmatprep.subr.mxu0 0.0
        %6354 = vmatpush1.msra.mxu0 0.0
        %6355 = vmatprep.subr.mxu0 0.0
        %6356 = vmatpush1.msra.mxu0 0.0
        %6357 = vmatprep.subr.mxu0 0.0
        %6358 = vmatpush1.msra.mxu0 0.0
        %6359 = vmatprep.subr.mxu0 0.0
        %6360 = vmatpush1.msra.mxu0 0.0
        %6361 = vmatprep.subr.mxu0 0.0
        %6362 = vmatpush1.msra.mxu0 0.0
        %6363 = vmatprep.subr.mxu0 0.0
        %6364 = vmatpush1.msra.mxu0 0.0
        %6365 = vmatprep.subr.mxu0 0.0
        %6366 = vmatpush1.msra.mxu0 0.0
        %6367 = vmatprep.subr.mxu0 0.0
        %6368 = vmatpush1.msra.mxu0 0.0
        %6369 = vmatprep.subr.mxu0 0.0
        %6370 = vmatpush1.msra.mxu0 0.0
        %6371 = vmatprep.subr.mxu0 0.0
        %6372 = vmatpush1.msra.mxu0 0.0
        %6373 = vmatprep.subr.mxu0 0.0
        %6374 = vmatpush1.msra.mxu0 0.0
        %6375 = vmatprep.subr.mxu0 0.0
        %6376 = vmatpush1.msra.mxu0 0.0
        %6377 = vmatprep.subr.mxu0 0.0
        %6378 = vmatpush1.msra.mxu0 0.0
        %6379 = vmatprep.subr.mxu0 0.0
        %6380 = vmatpush1.msra.mxu0 0.0
        %6381 = vmatprep.subr.mxu0 0.0
        %6382 = vmatpush1.msra.mxu0 0.0
        %6383 = vmatprep.subr.mxu0 0.0
        %6384 = vmatpush1.msra.mxu0 0.0
        %6385 = vmatprep.subr.mxu0 0.0
        %6386 = vmatpush1.msra.mxu0 0.0
        %6387 = vmatprep.subr.mxu0 0.0
        %6388 = vmatpush1.msra.mxu0 0.0
        %6389 = vmatprep.subr.mxu0 0.0
        %6390 = vmatpush1.msra.mxu0 0.0
        %6391 = vmatprep.subr.mxu0 0.0
        %6392 = vmatpush1.msra.mxu0 0.0
        %6393 = vmatprep.subr.mxu0 0.0
        %6394 = vmatpush1.msra.mxu0 0.0
        %6395 = vmatprep.subr.mxu0 0.0
        %6396 = vmatpush1.msra.mxu0 0.0
        %6397 = vmatprep.subr.mxu0 0.0
        %6398 = vmatpush1.msra.mxu0 0.0
        %6399 = vmatprep.subr.mxu0 0.0
        %6400 = vmatpush1.msra.mxu0 0.0
        %6401 = vmatprep.subr.mxu0 0.0
        %6402 = vmatpush1.msra.mxu0 0.0
        %6403 = vmatprep.subr.mxu0 0.0
        %6404 = vmatpush1.msra.mxu0 0.0
        %6405 = vmatprep.subr.mxu0 0.0
        %6406 = vmatpush1.msra.mxu0 0.0
        %6407 = vmatprep.subr.mxu0 0.0
        %6408 = vmatpush1.msra.mxu0 0.0
        %6409 = vmatprep.mubr.f32.mxu0 0.0
        %v6410 = vand.u32 %v5929, 4294901760
        %6411 = vmatmul.mubr.f32.gmra.mrb[0].mxu0 %v6410
        %v6412 = vpop.f32.mrb[0].mxu0
        %v6413 = vadd.f32 %v6338, %v6412
        %v6414 = vpop.f32.mrb[0].mxu0
        %6415 = vdwg.mxu0
        %6417 = vrot.lane.b32.xlu0 %v6413, 32
        %v6418 = vpop.permute.xlu0 %6417
        %v6420 = vadd.f32 %v5927, %v6418
        %v6421 = vsel %vm1423, %v5454, 0
        %6423 = vmatprep.subr.mxu0 0.0
        %v6424 = vand.u32 %v270, 4294901760
        %6425 = vmatpush1.msra.mxu0 %v6424
        %6426 = vmatprep.subr.mxu0 0.0
        %v6427 = vand.u32 %v271, 4294901760
        %6428 = vmatpush1.msra.mxu0 %v6427
        %6429 = vmatprep.subr.mxu0 0.0
        %v6430 = vand.u32 %v272, 4294901760
        %6431 = vmatpush1.msra.mxu0 %v6430
        %6432 = vmatprep.subr.mxu0 0.0
        %v6433 = vand.u32 %v273, 4294901760
        %6434 = vmatpush1.msra.mxu0 %v6433
        %6435 = vmatprep.subr.mxu0 0.0
        %6436 = vmatpush1.msra.mxu0 0.0
        %6437 = vmatprep.subr.mxu0 0.0
        %6438 = vmatpush1.msra.mxu0 0.0
        %6439 = vmatprep.subr.mxu0 0.0
        %6440 = vmatpush1.msra.mxu0 0.0
        %6441 = vmatprep.subr.mxu0 0.0
        %6442 = vmatpush1.msra.mxu0 0.0
        %6443 = vmatprep.subr.mxu0 0.0
        %6444 = vmatpush1.msra.mxu0 0.0
        %6445 = vmatprep.subr.mxu0 0.0
        %6446 = vmatpush1.msra.mxu0 0.0
        %6447 = vmatprep.subr.mxu0 0.0
        %6448 = vmatpush1.msra.mxu0 0.0
        %6449 = vmatprep.subr.mxu0 0.0
        %6450 = vmatpush1.msra.mxu0 0.0
        %6451 = vmatprep.subr.mxu0 0.0
        %6452 = vmatpush1.msra.mxu0 0.0
        %6453 = vmatprep.subr.mxu0 0.0
        %6454 = vmatpush1.msra.mxu0 0.0
        %6455 = vmatprep.subr.mxu0 0.0
        %6456 = vmatpush1.msra.mxu0 0.0
        %6457 = vmatprep.subr.mxu0 0.0
        %6458 = vmatpush1.msra.mxu0 0.0
        %6459 = vmatprep.subr.mxu0 0.0
        %6460 = vmatpush1.msra.mxu0 0.0
        %6461 = vmatprep.subr.mxu0 0.0
        %6462 = vmatpush1.msra.mxu0 0.0
        %6463 = vmatprep.subr.mxu0 0.0
        %6464 = vmatpush1.msra.mxu0 0.0
        %6465 = vmatprep.subr.mxu0 0.0
        %6466 = vmatpush1.msra.mxu0 0.0
        %6467 = vmatprep.subr.mxu0 0.0
        %6468 = vmatpush1.msra.mxu0 0.0
        %6469 = vmatprep.subr.mxu0 0.0
        %6470 = vmatpush1.msra.mxu0 0.0
        %6471 = vmatprep.subr.mxu0 0.0
        %6472 = vmatpush1.msra.mxu0 0.0
        %6473 = vmatprep.subr.mxu0 0.0
        %6474 = vmatpush1.msra.mxu0 0.0
        %6475 = vmatprep.subr.mxu0 0.0
        %6476 = vmatpush1.msra.mxu0 0.0
        %6477 = vmatprep.subr.mxu0 0.0
        %6478 = vmatpush1.msra.mxu0 0.0
        %6479 = vmatprep.subr.mxu0 0.0
        %6480 = vmatpush1.msra.mxu0 0.0
        %6481 = vmatprep.subr.mxu0 0.0
        %6482 = vmatpush1.msra.mxu0 0.0
        %6483 = vmatprep.subr.mxu0 0.0
        %6484 = vmatpush1.msra.mxu0 0.0
        %6485 = vmatprep.subr.mxu0 0.0
        %6486 = vmatpush1.msra.mxu0 0.0
        %6487 = vmatprep.subr.mxu0 0.0
        %6488 = vmatpush1.msra.mxu0 0.0
        %6489 = vmatprep.subr.mxu0 0.0
        %6490 = vmatpush1.msra.mxu0 0.0
        %6491 = vmatprep.mubr.f32.mxu0 0.0
        %v6492 = vand.u32 %v6421, 4294901760
        %v6493 = vsub.f32 %v6421, %v6492
        %v6494 = vand.u32 %v6493, 4294901760
        %v6495 = vsub.f32 %v6493, %v6494
        %v6496 = vand.u32 %v6495, 4294901760
        %6497 = vmatmul.mubr.f32.gmra.mrb[0].mxu0 %v6496
        %v6498 = vpop.f32.mrb[0].mxu0
        %v6499 = vadd.f32 0.0, %v6498
        %v6500 = vpop.f32.mrb[0].mxu0
        %6501 = vdwg.mxu0
        %6502 = vmatprep.subr.mxu0 0.0
        %v6503 = vand.u32 %v270, 4294901760
        %v6504 = vsub.f32 %v270, %v6503
        %v6505 = vand.u32 %v6504, 4294901760
        %v6506 = vsub.f32 %v6504, %v6505
        %v6507 = vand.u32 %v6506, 4294901760
        %6508 = vmatpush1.msra.mxu0 %v6507
        %6509 = vmatprep.subr.mxu0 0.0
        %v6510 = vand.u32 %v271, 4294901760
        %v6511 = vsub.f32 %v271, %v6510
        %v6512 = vand.u32 %v6511, 4294901760
        %v6513 = vsub.f32 %v6511, %v6512
        %v6514 = vand.u32 %v6513, 4294901760
        %6515 = vmatpush1.msra.mxu0 %v6514
        %6516 = vmatprep.subr.mxu0 0.0
        %v6517 = vand.u32 %v272, 4294901760
        %v6518 = vsub.f32 %v272, %v6517
        %v6519 = vand.u32 %v6518, 4294901760
        %v6520 = vsub.f32 %v6518, %v6519
        %v6521 = vand.u32 %v6520, 4294901760
        %6522 = vmatpush1.msra.mxu0 %v6521
        %6523 = vmatprep.subr.mxu0 0.0
        %v6524 = vand.u32 %v273, 4294901760
        %v6525 = vsub.f32 %v273, %v6524
        %v6526 = vand.u32 %v6525, 4294901760
        %v6527 = vsub.f32 %v6525, %v6526
        %v6528 = vand.u32 %v6527, 4294901760
        %6529 = vmatpush1.msra.mxu0 %v6528
        %6530 = vmatprep.subr.mxu0 0.0
        %6531 = vmatpush1.msra.mxu0 0.0
        %6532 = vmatprep.subr.mxu0 0.0
        %6533 = vmatpush1.msra.mxu0 0.0
        %6534 = vmatprep.subr.mxu0 0.0
        %6535 = vmatpush1.msra.mxu0 0.0
        %6536 = vmatprep.subr.mxu0 0.0
        %6537 = vmatpush1.msra.mxu0 0.0
        %6538 = vmatprep.subr.mxu0 0.0
        %6539 = vmatpush1.msra.mxu0 0.0
        %6540 = vmatprep.subr.mxu0 0.0
        %6541 = vmatpush1.msra.mxu0 0.0
        %6542 = vmatprep.subr.mxu0 0.0
        %6543 = vmatpush1.msra.mxu0 0.0
        %6544 = vmatprep.subr.mxu0 0.0
        %6545 = vmatpush1.msra.mxu0 0.0
        %6546 = vmatprep.subr.mxu0 0.0
        %6547 = vmatpush1.msra.mxu0 0.0
        %6548 = vmatprep.subr.mxu0 0.0
        %6549 = vmatpush1.msra.mxu0 0.0
        %6550 = vmatprep.subr.mxu0 0.0
        %6551 = vmatpush1.msra.mxu0 0.0
        %6552 = vmatprep.subr.mxu0 0.0
        %6553 = vmatpush1.msra.mxu0 0.0
        %6554 = vmatprep.subr.mxu0 0.0
        %6555 = vmatpush1.msra.mxu0 0.0
        %6556 = vmatprep.subr.mxu0 0.0
        %6557 = vmatpush1.msra.mxu0 0.0
        %6558 = vmatprep.subr.mxu0 0.0
        %6559 = vmatpush1.msra.mxu0 0.0
        %6560 = vmatprep.subr.mxu0 0.0
        %6561 = vmatpush1.msra.mxu0 0.0
        %6562 = vmatprep.subr.mxu0 0.0
        %6563 = vmatpush1.msra.mxu0 0.0
        %6564 = vmatprep.subr.mxu0 0.0
        %6565 = vmatpush1.msra.mxu0 0.0
        %6566 = vmatprep.subr.mxu0 0.0
        %6567 = vmatpush1.msra.mxu0 0.0
        %6568 = vmatprep.subr.mxu0 0.0
        %6569 = vmatpush1.msra.mxu0 0.0
        %6570 = vmatprep.subr.mxu0 0.0
        %6571 = vmatpush1.msra.mxu0 0.0
        %6572 = vmatprep.subr.mxu0 0.0
        %6573 = vmatpush1.msra.mxu0 0.0
        %6574 = vmatprep.subr.mxu0 0.0
        %6575 = vmatpush1.msra.mxu0 0.0
        %6576 = vmatprep.subr.mxu0 0.0
        %6577 = vmatpush1.msra.mxu0 0.0
        %6578 = vmatprep.subr.mxu0 0.0
        %6579 = vmatpush1.msra.mxu0 0.0
        %6580 = vmatprep.subr.mxu0 0.0
        %6581 = vmatpush1.msra.mxu0 0.0
        %6582 = vmatprep.subr.mxu0 0.0
        %6583 = vmatpush1.msra.mxu0 0.0
        %6584 = vmatprep.subr.mxu0 0.0
        %6585 = vmatpush1.msra.mxu0 0.0
        %6586 = vmatprep.mubr.f32.mxu0 0.0
        %v6587 = vand.u32 %v6421, 4294901760
        %6588 = vmatmul.mubr.f32.gmra.mrb[0].mxu0 %v6587
        %v6589 = vpop.f32.mrb[0].mxu0
        %v6590 = vadd.f32 %v6499, %v6589
        %v6591 = vpop.f32.mrb[0].mxu0
        %6592 = vdwg.mxu0
        %6593 = vmatprep.subr.mxu0 0.0
        %v6594 = vand.u32 %v270, 4294901760
        %v6595 = vsub.f32 %v270, %v6594
        %6596 = vmatpush1.msra.mxu0 %v6595
        %6597 = vmatprep.subr.mxu0 0.0
        %v6598 = vand.u32 %v271, 4294901760
        %v6599 = vsub.f32 %v271, %v6598
        %6600 = vmatpush1.msra.mxu0 %v6599
        %6601 = vmatprep.subr.mxu0 0.0
        %v6602 = vand.u32 %v272, 4294901760
        %v6603 = vsub.f32 %v272, %v6602
        %6604 = vmatpush1.msra.mxu0 %v6603
        %6605 = vmatprep.subr.mxu0 0.0
        %v6606 = vand.u32 %v273, 4294901760
        %v6607 = vsub.f32 %v273, %v6606
        %6608 = vmatpush1.msra.mxu0 %v6607
        %6609 = vmatprep.subr.mxu0 0.0
        %6610 = vmatpush1.msra.mxu0 0.0
        %6611 = vmatprep.subr.mxu0 0.0
        %6612 = vmatpush1.msra.mxu0 0.0
        %6613 = vmatprep.subr.mxu0 0.0
        %6614 = vmatpush1.msra.mxu0 0.0
        %6615 = vmatprep.subr.mxu0 0.0
        %6616 = vmatpush1.msra.mxu0 0.0
        %6617 = vmatprep.subr.mxu0 0.0
        %6618 = vmatpush1.msra.mxu0 0.0
        %6619 = vmatprep.subr.mxu0 0.0
        %6620 = vmatpush1.msra.mxu0 0.0
        %6621 = vmatprep.subr.mxu0 0.0
        %6622 = vmatpush1.msra.mxu0 0.0
        %6623 = vmatprep.subr.mxu0 0.0
        %6624 = vmatpush1.msra.mxu0 0.0
        %6625 = vmatprep.subr.mxu0 0.0
        %6626 = vmatpush1.msra.mxu0 0.0
        %6627 = vmatprep.subr.mxu0 0.0
        %6628 = vmatpush1.msra.mxu0 0.0
        %6629 = vmatprep.subr.mxu0 0.0
        %6630 = vmatpush1.msra.mxu0 0.0
        %6631 = vmatprep.subr.mxu0 0.0
        %6632 = vmatpush1.msra.mxu0 0.0
        %6633 = vmatprep.subr.mxu0 0.0
        %6634 = vmatpush1.msra.mxu0 0.0
        %6635 = vmatprep.subr.mxu0 0.0
        %6636 = vmatpush1.msra.mxu0 0.0
        %6637 = vmatprep.subr.mxu0 0.0
        %6638 = vmatpush1.msra.mxu0 0.0
        %6639 = vmatprep.subr.mxu0 0.0
        %6640 = vmatpush1.msra.mxu0 0.0
        %6641 = vmatprep.subr.mxu0 0.0
        %6642 = vmatpush1.msra.mxu0 0.0
        %6643 = vmatprep.subr.mxu0 0.0
        %6644 = vmatpush1.msra.mxu0 0.0
        %6645 = vmatprep.subr.mxu0 0.0
        %6646 = vmatpush1.msra.mxu0 0.0
        %6647 = vmatprep.subr.mxu0 0.0
        %6648 = vmatpush1.msra.mxu0 0.0
        %6649 = vmatprep.subr.mxu0 0.0
        %6650 = vmatpush1.msra.mxu0 0.0
        %6651 = vmatprep.subr.mxu0 0.0
        %6652 = vmatpush1.msra.mxu0 0.0
        %6653 = vmatprep.subr.mxu0 0.0
        %6654 = vmatpush1.msra.mxu0 0.0
        %6655 = vmatprep.subr.mxu0 0.0
        %6656 = vmatpush1.msra.mxu0 0.0
        %6657 = vmatprep.subr.mxu0 0.0
        %6658 = vmatpush1.msra.mxu0 0.0
        %6659 = vmatprep.subr.mxu0 0.0
        %6660 = vmatpush1.msra.mxu0 0.0
        %6661 = vmatprep.subr.mxu0 0.0
        %6662 = vmatpush1.msra.mxu0 0.0
        %6663 = vmatprep.subr.mxu0 0.0
        %6664 = vmatpush1.msra.mxu0 0.0
        %6665 = vmatprep.mubr.f32.mxu0 0.0
        %v6666 = vand.u32 %v6421, 4294901760
        %v6667 = vsub.f32 %v6421, %v6666
        %6668 = vmatmul.mubr.f32.gmra.mrb[0].mxu0 %v6667
        %v6669 = vpop.f32.mrb[0].mxu0
        %v6670 = vadd.f32 %v6590, %v6669
        %v6671 = vpop.f32.mrb[0].mxu0
        %6672 = vdwg.mxu0
        %6673 = vmatprep.subr.mxu0 0.0
        %v6674 = vand.u32 %v270, 4294901760
        %6675 = vmatpush1.msra.mxu0 %v6674
        %6676 = vmatprep.subr.mxu0 0.0
        %v6677 = vand.u32 %v271, 4294901760
        %6678 = vmatpush1.msra.mxu0 %v6677
        %6679 = vmatprep.subr.mxu0 0.0
        %v6680 = vand.u32 %v272, 4294901760
        %6681 = vmatpush1.msra.mxu0 %v6680
        %6682 = vmatprep.subr.mxu0 0.0
        %v6683 = vand.u32 %v273, 4294901760
        %6684 = vmatpush1.msra.mxu0 %v6683
        %6685 = vmatprep.subr.mxu0 0.0
        %6686 = vmatpush1.msra.mxu0 0.0
        %6687 = vmatprep.subr.mxu0 0.0
        %6688 = vmatpush1.msra.mxu0 0.0
        %6689 = vmatprep.subr.mxu0 0.0
        %6690 = vmatpush1.msra.mxu0 0.0
        %6691 = vmatprep.subr.mxu0 0.0
        %6692 = vmatpush1.msra.mxu0 0.0
        %6693 = vmatprep.subr.mxu0 0.0
        %6694 = vmatpush1.msra.mxu0 0.0
        %6695 = vmatprep.subr.mxu0 0.0
        %6696 = vmatpush1.msra.mxu0 0.0
        %6697 = vmatprep.subr.mxu0 0.0
        %6698 = vmatpush1.msra.mxu0 0.0
        %6699 = vmatprep.subr.mxu0 0.0
        %6700 = vmatpush1.msra.mxu0 0.0
        %6701 = vmatprep.subr.mxu0 0.0
        %6702 = vmatpush1.msra.mxu0 0.0
        %6703 = vmatprep.subr.mxu0 0.0
        %6704 = vmatpush1.msra.mxu0 0.0
        %6705 = vmatprep.subr.mxu0 0.0
        %6706 = vmatpush1.msra.mxu0 0.0
        %6707 = vmatprep.subr.mxu0 0.0
        %6708 = vmatpush1.msra.mxu0 0.0
        %6709 = vmatprep.subr.mxu0 0.0
        %6710 = vmatpush1.msra.mxu0 0.0
        %6711 = vmatprep.subr.mxu0 0.0
        %6712 = vmatpush1.msra.mxu0 0.0
        %6713 = vmatprep.subr.mxu0 0.0
        %6714 = vmatpush1.msra.mxu0 0.0
        %6715 = vmatprep.subr.mxu0 0.0
        %6716 = vmatpush1.msra.mxu0 0.0
        %6717 = vmatprep.subr.mxu0 0.0
        %6718 = vmatpush1.msra.mxu0 0.0
        %6719 = vmatprep.subr.mxu0 0.0
        %6720 = vmatpush1.msra.mxu0 0.0
        %6721 = vmatprep.subr.mxu0 0.0
        %6722 = vmatpush1.msra.mxu0 0.0
        %6723 = vmatprep.subr.mxu0 0.0
        %6724 = vmatpush1.msra.mxu0 0.0
        %6725 = vmatprep.subr.mxu0 0.0
        %6726 = vmatpush1.msra.mxu0 0.0
        %6727 = vmatprep.subr.mxu0 0.0
        %6728 = vmatpush1.msra.mxu0 0.0
        %6729 = vmatprep.subr.mxu0 0.0
        %6730 = vmatpush1.msra.mxu0 0.0
        %6731 = vmatprep.subr.mxu0 0.0
        %6732 = vmatpush1.msra.mxu0 0.0
        %6733 = vmatprep.subr.mxu0 0.0
        %6734 = vmatpush1.msra.mxu0 0.0
        %6735 = vmatprep.subr.mxu0 0.0
        %6736 = vmatpush1.msra.mxu0 0.0
        %6737 = vmatprep.subr.mxu0 0.0
        %6738 = vmatpush1.msra.mxu0 0.0
        %6739 = vmatprep.subr.mxu0 0.0
        %6740 = vmatpush1.msra.mxu0 0.0
        %6741 = vmatprep.mubr.f32.mxu0 0.0
        %v6742 = vand.u32 %v6421, 4294901760
        %v6743 = vsub.f32 %v6421, %v6742
        %v6744 = vand.u32 %v6743, 4294901760
        %6745 = vmatmul.mubr.f32.gmra.mrb[0].mxu0 %v6744
        %v6746 = vpop.f32.mrb[0].mxu0
        %v6747 = vadd.f32 %v6670, %v6746
        %v6748 = vpop.f32.mrb[0].mxu0
        %6749 = vdwg.mxu0
        %6750 = vmatprep.subr.mxu0 0.0
        %v6751 = vand.u32 %v270, 4294901760
        %v6752 = vsub.f32 %v270, %v6751
        %v6753 = vand.u32 %v6752, 4294901760
        %6754 = vmatpush1.msra.mxu0 %v6753
        %6755 = vmatprep.subr.mxu0 0.0
        %v6756 = vand.u32 %v271, 4294901760
        %v6757 = vsub.f32 %v271, %v6756
        %v6758 = vand.u32 %v6757, 4294901760
        %6759 = vmatpush1.msra.mxu0 %v6758
        %6760 = vmatprep.subr.mxu0 0.0
        %v6761 = vand.u32 %v272, 4294901760
        %v6762 = vsub.f32 %v272, %v6761
        %v6763 = vand.u32 %v6762, 4294901760
        %6764 = vmatpush1.msra.mxu0 %v6763
        %6765 = vmatprep.subr.mxu0 0.0
        %v6766 = vand.u32 %v273, 4294901760
        %v6767 = vsub.f32 %v273, %v6766
        %v6768 = vand.u32 %v6767, 4294901760
        %6769 = vmatpush1.msra.mxu0 %v6768
        %6770 = vmatprep.subr.mxu0 0.0
        %6771 = vmatpush1.msra.mxu0 0.0
        %6772 = vmatprep.subr.mxu0 0.0
        %6773 = vmatpush1.msra.mxu0 0.0
        %6774 = vmatprep.subr.mxu0 0.0
        %6775 = vmatpush1.msra.mxu0 0.0
        %6776 = vmatprep.subr.mxu0 0.0
        %6777 = vmatpush1.msra.mxu0 0.0
        %6778 = vmatprep.subr.mxu0 0.0
        %6779 = vmatpush1.msra.mxu0 0.0
        %6780 = vmatprep.subr.mxu0 0.0
        %6781 = vmatpush1.msra.mxu0 0.0
        %6782 = vmatprep.subr.mxu0 0.0
        %6783 = vmatpush1.msra.mxu0 0.0
        %6784 = vmatprep.subr.mxu0 0.0
        %6785 = vmatpush1.msra.mxu0 0.0
        %6786 = vmatprep.subr.mxu0 0.0
        %6787 = vmatpush1.msra.mxu0 0.0
        %6788 = vmatprep.subr.mxu0 0.0
        %6789 = vmatpush1.msra.mxu0 0.0
        %6790 = vmatprep.subr.mxu0 0.0
        %6791 = vmatpush1.msra.mxu0 0.0
        %6792 = vmatprep.subr.mxu0 0.0
        %6793 = vmatpush1.msra.mxu0 0.0
        %6794 = vmatprep.subr.mxu0 0.0
        %6795 = vmatpush1.msra.mxu0 0.0
        %6796 = vmatprep.subr.mxu0 0.0
        %6797 = vmatpush1.msra.mxu0 0.0
        %6798 = vmatprep.subr.mxu0 0.0
        %6799 = vmatpush1.msra.mxu0 0.0
        %6800 = vmatprep.subr.mxu0 0.0
        %6801 = vmatpush1.msra.mxu0 0.0
        %6802 = vmatprep.subr.mxu0 0.0
        %6803 = vmatpush1.msra.mxu0 0.0
        %6804 = vmatprep.subr.mxu0 0.0
        %6805 = vmatpush1.msra.mxu0 0.0
        %6806 = vmatprep.subr.mxu0 0.0
        %6807 = vmatpush1.msra.mxu0 0.0
        %6808 = vmatprep.subr.mxu0 0.0
        %6809 = vmatpush1.msra.mxu0 0.0
        %6810 = vmatprep.subr.mxu0 0.0
        %6811 = vmatpush1.msra.mxu0 0.0
        %6812 = vmatprep.subr.mxu0 0.0
        %6813 = vmatpush1.msra.mxu0 0.0
        %6814 = vmatprep.subr.mxu0 0.0
        %6815 = vmatpush1.msra.mxu0 0.0
        %6816 = vmatprep.subr.mxu0 0.0
        %6817 = vmatpush1.msra.mxu0 0.0
        %6818 = vmatprep.subr.mxu0 0.0
        %6819 = vmatpush1.msra.mxu0 0.0
        %6820 = vmatprep.subr.mxu0 0.0
        %6821 = vmatpush1.msra.mxu0 0.0
        %6822 = vmatprep.subr.mxu0 0.0
        %6823 = vmatpush1.msra.mxu0 0.0
        %6824 = vmatprep.subr.mxu0 0.0
        %6825 = vmatpush1.msra.mxu0 0.0
        %6826 = vmatprep.mubr.f32.mxu0 0.0
        %v6827 = vand.u32 %v6421, 4294901760
        %6828 = vmatmul.mubr.f32.gmra.mrb[0].mxu0 %v6827
        %v6829 = vpop.f32.mrb[0].mxu0
        %v6830 = vadd.f32 %v6747, %v6829
        %v6831 = vpop.f32.mrb[0].mxu0
        %6832 = vdwg.mxu0
        %6833 = vmatprep.subr.mxu0 0.0
        %v6834 = vand.u32 %v270, 4294901760
        %6835 = vmatpush1.msra.mxu0 %v6834
        %6836 = vmatprep.subr.mxu0 0.0
        %v6837 = vand.u32 %v271, 4294901760
        %6838 = vmatpush1.msra.mxu0 %v6837
        %6839 = vmatprep.subr.mxu0 0.0
        %v6840 = vand.u32 %v272, 4294901760
        %6841 = vmatpush1.msra.mxu0 %v6840
        %6842 = vmatprep.subr.mxu0 0.0
        %v6843 = vand.u32 %v273, 4294901760
        %6844 = vmatpush1.msra.mxu0 %v6843
        %6845 = vmatprep.subr.mxu0 0.0
        %6846 = vmatpush1.msra.mxu0 0.0
        %6847 = vmatprep.subr.mxu0 0.0
        %6848 = vmatpush1.msra.mxu0 0.0
        %6849 = vmatprep.subr.mxu0 0.0
        %6850 = vmatpush1.msra.mxu0 0.0
        %6851 = vmatprep.subr.mxu0 0.0
        %6852 = vmatpush1.msra.mxu0 0.0
        %6853 = vmatprep.subr.mxu0 0.0
        %6854 = vmatpush1.msra.mxu0 0.0
        %6855 = vmatprep.subr.mxu0 0.0
        %6856 = vmatpush1.msra.mxu0 0.0
        %6857 = vmatprep.subr.mxu0 0.0
        %6858 = vmatpush1.msra.mxu0 0.0
        %6859 = vmatprep.subr.mxu0 0.0
        %6860 = vmatpush1.msra.mxu0 0.0
        %6861 = vmatprep.subr.mxu0 0.0
        %6862 = vmatpush1.msra.mxu0 0.0
        %6863 = vmatprep.subr.mxu0 0.0
        %6864 = vmatpush1.msra.mxu0 0.0
        %6865 = vmatprep.subr.mxu0 0.0
        %6866 = vmatpush1.msra.mxu0 0.0
        %6867 = vmatprep.subr.mxu0 0.0
        %6868 = vmatpush1.msra.mxu0 0.0
        %6869 = vmatprep.subr.mxu0 0.0
        %6870 = vmatpush1.msra.mxu0 0.0
        %6871 = vmatprep.subr.mxu0 0.0
        %6872 = vmatpush1.msra.mxu0 0.0
        %6873 = vmatprep.subr.mxu0 0.0
        %6874 = vmatpush1.msra.mxu0 0.0
        %6875 = vmatprep.subr.mxu0 0.0
        %6876 = vmatpush1.msra.mxu0 0.0
        %6877 = vmatprep.subr.mxu0 0.0
        %6878 = vmatpush1.msra.mxu0 0.0
        %6879 = vmatprep.subr.mxu0 0.0
        %6880 = vmatpush1.msra.mxu0 0.0
        %6881 = vmatprep.subr.mxu0 0.0
        %6882 = vmatpush1.msra.mxu0 0.0
        %6883 = vmatprep.subr.mxu0 0.0
        %6884 = vmatpush1.msra.mxu0 0.0
        %6885 = vmatprep.subr.mxu0 0.0
        %6886 = vmatpush1.msra.mxu0 0.0
        %6887 = vmatprep.subr.mxu0 0.0
        %6888 = vmatpush1.msra.mxu0 0.0
        %6889 = vmatprep.subr.mxu0 0.0
        %6890 = vmatpush1.msra.mxu0 0.0
        %6891 = vmatprep.subr.mxu0 0.0
        %6892 = vmatpush1.msra.mxu0 0.0
        %6893 = vmatprep.subr.mxu0 0.0
        %6894 = vmatpush1.msra.mxu0 0.0
        %6895 = vmatprep.subr.mxu0 0.0
        %6896 = vmatpush1.msra.mxu0 0.0
        %6897 = vmatprep.subr.mxu0 0.0
        %6898 = vmatpush1.msra.mxu0 0.0
        %6899 = vmatprep.subr.mxu0 0.0
        %6900 = vmatpush1.msra.mxu0 0.0
        %6901 = vmatprep.mubr.f32.mxu0 0.0
        %v6902 = vand.u32 %v6421, 4294901760
        %6903 = vmatmul.mubr.f32.gmra.mrb[0].mxu0 %v6902
        %v6904 = vpop.f32.mrb[0].mxu0
        %v6905 = vadd.f32 %v6830, %v6904
        %v6906 = vpop.f32.mrb[0].mxu0
        %6907 = vdwg.mxu0
        %6909 = vrot.lane.b32.xlu0 %v6905, 32
        %v6910 = vpop.permute.xlu0 %6909
        %v6912 = vadd.f32 %v6420, %v6910
        %v6913 = vxor.u32 %v6912, 2147483648
        %v6914 = vmul.f32 %v6913, 1.442695
        %v6915 = vpow.pop %v6914
        %v6916 = vadd.f32 %v6915, 1.0
        %v6917 = vrcp.pop %v6916
        %v6918 = vmul.f32 1.0, %v6917
        %v6919 = vadd.f32 %v6905, %v2418
        %6921 = vrot.lane.b32.xlu0 %v6919, 96
        %v6922 = vpop.permute.xlu0 %6921
        %v6924 = vmul.f32 %v6918, %v6922
        %6926 = vrot.lane.b32.xlu0 %v6924, 64
        %v6927 = vpop.permute.xlu0 %6926
        %v6929 = vadd.f32 %v6420, %v6927
        %v6930 = vtanh.pop %v6929
        %v6931 = vsub.f32 %v5442, %v6930
        %6933 = vrot.lane.b32.xlu0 %v6931, 96
        %v6934 = vpop.permute.xlu0 %6933
        %v6936 = vmul.f32 %v6918, %v6934
        %6938 = vrot.lane.b32.xlu0 %v6936, 32
        %v6939 = vpop.permute.xlu0 %6938
        %v6941 = vadd.f32 %v6930, %v6939
        %6943 = vrot.lane.b32.xlu0 %v6941, 32
        %v6944 = vpop.permute.xlu0 %6943
        %s6946 = scalar_lea.vmem %s264, 24 [#allocation3]
        %6947 = vst.msk [vmem:[%s6946] sm:$0xff] %vm1423, %v6944
        %s6948 = sand.u32 %s134, 1
        %s6949 = sand.u32 %s134, 1
        %s6950 = smul.addr %s6949, 32
        %s6951 = scalar_lea.vmem [#allocation3], %s6950
        // Predicated region
        $region79: #{encoder_forward.1} parent=73 // pred_check
          %p6952 = pneg %p144
        $region80: #{encoder_forward.1} parent=73 // pred_check_branch
          %6954 = sbr.rel (%p6952) target = $region82
        $region81: #{encoder_forward.1} parent=73 // pred_region
          %s6955 = smul.addr %s16, 8
          %s6956 = scalar_lea.vmem %s5, %s6955
          // Predicated region
          $region83: #{encoder_forward.1} parent=81 // pred_check
            _
          $region84: #{encoder_forward.1} parent=81 // pred_check_branch
            %6958 = sbr.rel (0) target = $region86
          $region85: #{encoder_forward.1} parent=81 // pred_region
            // Predicated region
            $region87: #{encoder_forward.1} parent=85 // pred_check
              _
            $region88: #{encoder_forward.1} parent=85 // pred_check_branch
              %6960 = sbr.rel (0) target = $region90
            $region89: #{encoder_forward.1} parent=85 // pred_region
              // Predicated region
              $region102: #{encoder_forward.1} parent=89 // pred_check
                _
              $region103: #{encoder_forward.1} parent=89 // pred_check_branch
                %6981 = sbr.rel (0) target = $region105
              $region104: #{encoder_forward.1} parent=89 // pred_region
                loop: start=0, step=1, limit=1
                $region106: #{encoder_forward.1} parent=104 // loop_pre_header
                  _
                $region107: #{encoder_forward.1} parent=104 // loop_header
                  %s6983 = sphi 0, %s6987
                  %p6984 = scmp.ge.s32.totalorder %s6983, 1
                  %s6988 = sphi %s6951, %s6951
                  %s6989 = sphi %s6956, %s6956
                $region108: #{encoder_forward.1} parent=104 // loop_header_branch
                  %6986 = sbr.rel (%p6984) target = $region112
                $region109: #{encoder_forward.1} parent=104 // loop_body
                  %v6990 = vld [vmem:[%s6988] sm:$0xff]
                  %6991 = vst [vmem:[%s6989] sm:$0xff] %v6990
                  %v6992 = vld [vmem:[%s6988 + $0x8] sm:$0xff]
                  %6993 = vst [vmem:[%s6989 + $0x10] sm:$0xff] %v6992
                  %v6994 = vld [vmem:[%s6988 + $0x10] sm:$0xff]
                  %6995 = vst [vmem:[%s6989 + $0x20] sm:$0xff] %v6994
                  %v6996 = vld [vmem:[%s6988 + $0x18] sm:$0xff]
                  %6997 = vst [vmem:[%s6989 + $0x30] sm:$0xff] %v6996
                $region110: #{encoder_forward.1} parent=104 // loop_footer
                  %s6987 = sadd.s32 1, %s6983
                $region111: #{encoder_forward.1} parent=104 // loop_footer_branch
                  %6982 = sbr.rel target = $region107
                $region112: #{encoder_forward.1} parent=104 // loop_exit
                  _
              $region105: #{encoder_forward.1} parent=89 // pred_fallthru
                _
              // Predicated region
              $region113: #{encoder_forward.1} parent=89 // pred_check
                _
              $region114: #{encoder_forward.1} parent=89 // pred_check_branch
                %6999 = sbr.rel target = $region116
              $region115: #{encoder_forward.1} parent=89 // pred_region
                _
              $region116: #{encoder_forward.1} parent=89 // pred_fallthru
                _
            $region90: #{encoder_forward.1} parent=85 // pred_fallthru
              _
            // Predicated region
            $region91: #{encoder_forward.1} parent=85 // pred_check
              _
            $region92: #{encoder_forward.1} parent=85 // pred_check_branch
              %6962 = sbr.rel target = $region94
            $region93: #{encoder_forward.1} parent=85 // pred_region
              loop: start=0, step=1, limit=1
              $region95: #{encoder_forward.1} parent=93 // loop_pre_header
                _
              $region96: #{encoder_forward.1} parent=93 // loop_header
                %s6965 = sphi 0, %s6969
                %p6966 = scmp.ge.s32.totalorder %s6965, 1
                %s6970 = sphi %s6951, %s6951
                %s6971 = sphi %s6956, %s6956
              $region97: #{encoder_forward.1} parent=93 // loop_header_branch
                %6968 = sbr.rel (%p6966) target = $region101
              $region98: #{encoder_forward.1} parent=93 // loop_body
                %v6972 = vld [vmem:[%s6970] sm:$0xff]
                %6973 = vst [vmem:[%s6971] sm:$0xff] %v6972
                %v6974 = vld [vmem:[%s6970 + $0x8] sm:$0xff]
                %6975 = vst [vmem:[%s6971 + $0x10] sm:$0xff] %v6974
                %v6976 = vld [vmem:[%s6970 + $0x10] sm:$0xff]
                %6977 = vst [vmem:[%s6971 + $0x20] sm:$0xff] %v6976
                %v6978 = vld [vmem:[%s6970 + $0x18] sm:$0xff]
                %6979 = vst [vmem:[%s6971 + $0x30] sm:$0xff] %v6978
              $region99: #{encoder_forward.1} parent=93 // loop_footer
                %s6969 = sadd.s32 1, %s6965
              $region100: #{encoder_forward.1} parent=93 // loop_footer_branch
                %6964 = sbr.rel target = $region96
              $region101: #{encoder_forward.1} parent=93 // loop_exit
                _
            $region94: #{encoder_forward.1} parent=85 // pred_fallthru
              _
          $region86: #{encoder_forward.1} parent=81 // pred_fallthru
            _
          %7000 = vnop
        $region82: #{encoder_forward.1} parent=73 // pred_fallthru
          _
      $region74: #{encoder_forward.1} parent=5 // pred_fallthru
        _
      %p7001 = scmp.le.s32.totalorder 2, %s11
      // Predicated region
      $region117: #{encoder_forward.1} parent=5 // pred_check
        %p7002 = pneg %p7001
      $region118: #{encoder_forward.1} parent=5 // pred_check_branch
        %7004 = sbr.rel (%p7002) target = $region120
      $region119: #{encoder_forward.1} parent=5 // pred_region
        %s7005 = ssub.s32 %s11, 2
        // Predicated region
        $region121: #{encoder_forward.1} parent=119 // pred_check
          %p7006 = pneg %p150
        $region122: #{encoder_forward.1} parent=119 // pred_check_branch
          %7008 = sbr.rel (%p7006) target = $region124
        $region123: #{encoder_forward.1} parent=119 // pred_region
          %s7009 = sand.u32 %s135, 1
          %s7010 = sand.u32 %s135, 1
          %s7011 = smul.addr %s7010, 32
          %s7012 = scalar_lea.vmem [#allocation3], %s7011
        $region124: #{encoder_forward.1} parent=119 // pred_fallthru
          _
      $region120: #{encoder_forward.1} parent=5 // pred_fallthru
        _
    $region6: #{encoder_forward.1} parent=1 // loop_footer
      %s15 = sadd.s32 1, %s11
    $region7: #{encoder_forward.1} parent=1 // loop_footer_branch
      %10 = sbr.rel target = $region3
    $region8: #{encoder_forward.1} parent=1 // loop_exit
      _

</llo_original>
